<compile_context>
chip_gen: v6e
topology: v6e:2x2x1
jax: 0.10.0
libtpu: 0.0.40
codegen_flags: <defaults>
</compile_context>

<pallas_src>
import jax
import jax.numpy as jnp
from jax.experimental import pallas as pl
from jax.experimental.pallas import tpu as pltpu


# ----------------------------------------------------------------------------
# Tiling helpers
# ----------------------------------------------------------------------------
def _round_up(x, m):
    return (x + m - 1) // m * m


def _pick_tm(m):
    """Row tile for the conv matmuls: as large as possible (<=2048) to
    amortize per-grid-step overhead, but keep >=2 grid steps so the parallel
    M axis can shard across v7x's two TensorCores."""
    if m % 8 != 0 or m <= 16:
        return m                      # full-dim block (legal: equals array dim)
    tm = max(8, min(2048, m // 2))
    tm -= tm % 8
    while tm > 8 and m % tm:
        tm -= 8
    return tm


def _pick_tk(k):
    """Reduction tile for the FC head: single step when small, otherwise a
    few large (<=4096) k-steps so the W1 stream is pipeline-bound, not
    per-step-overhead bound."""
    if k <= 2048:
        return k
    for tk in (4096, 2048, 1024, 512, 256, 128):
        if k % tk == 0:
            return tk
    return k                           # fall back to one full-K step


# ----------------------------------------------------------------------------
# Conv-as-matmul kernel: relu((patches @ W) + bias), single k-step,
# exact (unpadded) output channels. BN scale already folded into W/bias.
# ----------------------------------------------------------------------------
def _conv_mm_kernel(a_ref, w_ref, bias_ref, o_ref):
    y = jnp.dot(a_ref[...].astype(w_ref.dtype), w_ref[...],
                preferred_element_type=jnp.float32) + bias_ref[...]
    o_ref[...] = jnp.maximum(y, 0.0).astype(o_ref.dtype)


def conv_matmul(a, w, bias_row):
    """a: (M, K) bf16 patches, w: (K, Cout) bf16, bias_row: (1, Cout) f32."""
    M, K = a.shape
    Kw, Cout = w.shape
    assert K == Kw, (K, Kw)
    tm = _pick_tm(M)
    grid = (M // tm,)

    return pl.pallas_call(
        _conv_mm_kernel,
        out_shape=jax.ShapeDtypeStruct((M, Cout), jnp.bfloat16),
        grid_spec=pltpu.PrefetchScalarGridSpec(
            num_scalar_prefetch=0,
            grid=grid,
            in_specs=[
                pl.BlockSpec((tm, K), lambda i: (i, 0)),      # full-K block
                pl.BlockSpec((K, Cout), lambda i: (0, 0)),    # resident weight
                pl.BlockSpec((1, Cout), lambda i: (0, 0)),
            ],
            out_specs=pl.BlockSpec((tm, Cout), lambda i: (i, 0)),
        ),
        compiler_params=pltpu.CompilerParams(
            dimension_semantics=("parallel",)),
    )(a, w, bias_row)


# ----------------------------------------------------------------------------
# Fused FC head: (flat @ W1 + b1) -> ReLU -> (@ W2 + b2), single pallas_call
# ----------------------------------------------------------------------------
def _fc_head_kernel(a_ref, w1_ref, b1_ref, w2_ref, b2_ref, o_ref, h_acc):
    k = pl.program_id(0)

    @pl.when(k == 0)
    def _():
        h_acc[...] = jnp.zeros_like(h_acc)

    h_acc[...] += jnp.dot(a_ref[...].astype(w1_ref.dtype), w1_ref[...],
                          preferred_element_type=jnp.float32)

    @pl.when(k == pl.num_programs(0) - 1)
    def _():
        h = jnp.maximum(h_acc[...] + b1_ref[...], 0.0)        # FC1 + BN1d + ReLU
        o_ref[...] = (jnp.dot(h.astype(w2_ref.dtype), w2_ref[...],
                              preferred_element_type=jnp.float32)
                      + b2_ref[...])                           # fused FC2


def fc_head(flat, hp):
    M, K = flat.shape
    w1, b1, w2, b2 = hp["w1"], hp["b1"], hp["w2"], hp["b2"]
    Kw, H = w1.shape
    assert K == Kw, (K, Kw)
    H2, N2p = w2.shape
    tk = _pick_tk(K)
    grid = (K // tk,)

    out = pl.pallas_call(
        _fc_head_kernel,
        out_shape=jax.ShapeDtypeStruct((M, N2p), jnp.float32),
        grid_spec=pltpu.PrefetchScalarGridSpec(
            num_scalar_prefetch=0,
            grid=grid,
            in_specs=[
                pl.BlockSpec((M, tk), lambda k: (0, k)),
                pl.BlockSpec((tk, H), lambda k: (k, 0)),
                pl.BlockSpec((1, H), lambda k: (0, 0)),
                pl.BlockSpec((H2, N2p), lambda k: (0, 0)),
                pl.BlockSpec((1, N2p), lambda k: (0, 0)),
            ],
            out_specs=pl.BlockSpec((M, N2p), lambda k: (0, 0)),
            scratch_shapes=[pltpu.VMEM((M, H), jnp.float32)],
        ),
        compiler_params=pltpu.CompilerParams(
            dimension_semantics=("arbitrary",)),
    )(flat, w1, b1, w2, b2)

    return out[:, :hp["n_out"]]        # tiny (M,128)->(M,10) slice


# ----------------------------------------------------------------------------
# im2col for Conv2d(kernel=3, stride=2, padding=1)  (XLA glue, bf16 in/out)
# ----------------------------------------------------------------------------
def _im2col_s2p1k3(x_nhwc):
    n, h, w, c = x_nhwc.shape
    xp = jnp.pad(x_nhwc, ((0, 0), (1, 1), (1, 1), (0, 0)))
    ho, wo = (h + 2 - 3) // 2 + 1, (w + 2 - 3) // 2 + 1
    cols = []
    for kh in range(3):
        for kw in range(3):
            cols.append(xp[:, kh:kh + 2 * ho:2, kw:kw + 2 * wo:2, :])
    patches = jnp.concatenate(cols, axis=-1)               # (N, Ho, Wo, 9*C)
    return patches.reshape(n * ho * wo, 9 * c), (n, ho, wo)


def conv_block(x_nhwc, wp):
    patches, (n, ho, wo) = _im2col_s2p1k3(x_nhwc)
    y = conv_matmul(patches, wp["w"], wp["bias"])           # (M, Cout) bf16
    return y.reshape(n, ho, wo, wp["cout"])


# ----------------------------------------------------------------------------
# Parameters: synthetic init + one-time packing (BN fold, layout, bf16 cast)
# ----------------------------------------------------------------------------
def init_params(key):
    ks = jax.random.split(key, 26)
    p = {}

    def conv_params(i, cin, cout):
        base = 6 * i
        return dict(
            w=jax.random.normal(ks[base + 0], (3, 3, cin, cout), jnp.float32) * 0.05,
            b=jax.random.normal(ks[base + 1], (cout,), jnp.float32) * 0.01,
            gamma=1.0 + 0.1 * jax.random.normal(ks[base + 2], (cout,), jnp.float32),
            beta=0.1 * jax.random.normal(ks[base + 3], (cout,), jnp.float32),
            mean=0.05 * jax.random.normal(ks[base + 4], (cout,), jnp.float32),
            var=jax.random.uniform(ks[base + 5], (cout,), jnp.float32, 0.5, 1.5),
        )

    p["c1"] = conv_params(0, 3, 32)
    p["c2"] = conv_params(1, 32, 64)
    p["c3"] = conv_params(2, 64, 64)

    p["fc1_w"] = jax.random.normal(ks[18], (64 * 16 * 16, 128), jnp.float32) * 0.01
    p["fc1_b"] = jax.random.normal(ks[19], (128,), jnp.float32) * 0.01
    p["bn1d_gamma"] = 1.0 + 0.1 * jax.random.normal(ks[20], (128,), jnp.float32)
    p["bn1d_beta"] = 0.1 * jax.random.normal(ks[21], (128,), jnp.float32)
    p["bn1d_mean"] = 0.05 * jax.random.normal(ks[22], (128,), jnp.float32)
    p["bn1d_var"] = jax.random.uniform(ks[23], (128,), jnp.float32, 0.5, 1.5)
    p["fc2_w"] = jax.random.normal(ks[24], (128, 10), jnp.float32) * 0.05
    p["fc2_b"] = jax.random.normal(ks[25], (10,), jnp.float32) * 0.01
    return p


def prepare_params(p, eps=1e-5):
    """One-time: fold eval-mode BN into weights, pad Cin to 8, permute W1
    rows to the NHWC flatten order, cast weights to bf16."""
    # NOTE: synthetic conv weights are HWIO and fc weights are (in,out); real
    # PyTorch weights would need OIHW->HWIO / (out,in)->(in,out) permutes here.
    packed = {}

    for name in ("c1", "c2", "c3"):
        cp = p[name]
        w = cp["w"]                                   # (3, 3, Cin, Cout)
        cin, cout = w.shape[2], w.shape[3]
        cin_p = _round_up(cin, 8)
        if cin_p != cin:
            w = jnp.pad(w, ((0, 0), (0, 0), (0, cin_p - cin), (0, 0)))
        scale = cp["gamma"] / jnp.sqrt(cp["var"] + eps)
        w_mat = (w.reshape(9 * cin_p, cout) * scale[None, :]).astype(jnp.bfloat16)
        bias = (scale * (cp["b"] - cp["mean"]) + cp["beta"]).reshape(1, cout)
        packed[name] = dict(w=w_mat, bias=bias.astype(jnp.float32),
                            cout=cout, cin_p=cin_p)

    K1, H = p["fc1_w"].shape                          # (64*16*16, 128)
    c3 = p["c3"]["w"].shape[-1]
    hw = K1 // c3
    ho = wo = int(round(hw ** 0.5))
    assert ho * wo == hw
    scale1 = p["bn1d_gamma"] / jnp.sqrt(p["bn1d_var"] + eps)
    # PyTorch flattens NCHW (row = c*Ho*Wo + h*Wo + w); the conv stack here is
    # NHWC (row = h*Wo*C + w*C + c). Permute W1's rows ONCE here so the
    # forward pass needs no activation transpose before flattening.
    w1 = p["fc1_w"].reshape(c3, ho, wo, H).transpose(1, 2, 0, 3).reshape(K1, H)
    w1 = (w1 * scale1[None, :]).astype(jnp.bfloat16)
    b1 = (scale1 * (p["fc1_b"] - p["bn1d_mean"]) + p["bn1d_beta"])
    b1 = b1.reshape(1, H).astype(jnp.float32)

    H2, N2 = p["fc2_w"].shape
    N2p = _round_up(N2, 128)
    w2 = jnp.pad(p["fc2_w"], ((0, 0), (0, N2p - N2))).astype(jnp.bfloat16)
    b2 = jnp.pad(p["fc2_b"], (0, N2p - N2)).reshape(1, N2p).astype(jnp.float32)

    packed["head"] = dict(w1=w1, b1=b1, w2=w2, b2=b2, n_out=N2)
    return packed


# ----------------------------------------------------------------------------
# Full forward pass
# ----------------------------------------------------------------------------
def net_o_forward(x_nchw, packed):
    # NCHW -> NHWC, cast to bf16 once, pad channels 3 -> 8 (fused XLA op).
    x = jnp.transpose(x_nchw, (0, 2, 3, 1)).astype(jnp.bfloat16)
    cpad = packed["c1"]["cin_p"] - x.shape[-1]
    if cpad:
        x = jnp.pad(x, ((0, 0), (0, 0), (0, 0), (0, cpad)))

    for name in ("c1", "c2", "c3"):
        x = conv_block(x, packed[name])

    # NHWC flatten (contiguous, free); W1 rows were permuted to match the
    # PyTorch CHW flatten order at prepare_params time.
    flat = x.reshape(x.shape[0], -1)                     # (N, 64*16*16) bf16

    # Fused Linear + BN1d(eval) + ReLU + Linear in one Pallas kernel.
    return fc_head(flat, packed["head"])                 # (N, 10)


if __name__ == "__main__":
    key = jax.random.PRNGKey(0)
    k_x, k_p = jax.random.split(key)

    # (N, 3, 128, 128): three stride-2 convs -> 16x16 for Linear(64*16*16, .)
    x = jax.random.normal(k_x, (2, 3, 128, 128), jnp.float32)
    params = init_params(k_p)
    packed = prepare_params(params)      # one-time weight prep (BN fold, bf16)

    forward = jax.jit(lambda xin: net_o_forward(xin, packed))
    logits = forward(x)
    jax.block_until_ready(logits)
    assert logits.shape == (2, 10), logits.shape
    print("KERNEL_OK")
</pallas_src>

<mosaic_0001>
module attributes {stable_mosaic.version = 11 : i64} {
  func.func @_conv_mm_kernel(%arg0: i32, %arg1: memref<2048x72xbf16, #tpu.memory_space<vmem>>, %arg2: memref<72x32xbf16, #tpu.memory_space<vmem>>, %arg3: memref<1x32xf32, #tpu.memory_space<vmem>>, %arg4: memref<2048x32xbf16, #tpu.memory_space<vmem>>) attributes {dimension_semantics = [#tpu.dimension_semantics<parallel>], iteration_bounds = array<i64: 4>, scalar_prefetch = 0 : i64, scratch_operands = 0 : i64, tpu.core_type = #tpu.core_type<tc>, window_params = [{transform_indices = @transform_0, window_bounds = array<i64: 2048, 72>}, {pipeline_mode = #tpu.pipeline_mode<synchronous>, transform_indices = @transform_1, window_bounds = array<i64: 72, 32>}, {pipeline_mode = #tpu.pipeline_mode<synchronous>, transform_indices = @transform_2, window_bounds = array<i64: 1, 32>}, {transform_indices = @transform_3, window_bounds = array<i64: 2048, 32>}]} {
    %c0 = arith.constant 0 : index
    %c0_0 = arith.constant 0 : index
    %0 = vector.load %arg1[%c0, %c0_0] : memref<2048x72xbf16, #tpu.memory_space<vmem>>, vector<2048x72xbf16>
    %c0_1 = arith.constant 0 : index
    %c0_2 = arith.constant 0 : index
    %1 = vector.load %arg2[%c0_1, %c0_2] : memref<72x32xbf16, #tpu.memory_space<vmem>>, vector<72x32xbf16>
    %cst = arith.constant dense<0.000000e+00> : vector<2048x32xf32>
    %2 = tpu.matmul %0, %1, %cst {dimension_numbers = #tpu.dot_dimension_numbers<[1], [0], [0], [1], [0, 0, 1, 1], [], []>} : vector<2048x72xbf16>, vector<72x32xbf16>, vector<2048x32xf32> -> vector<2048x32xf32>
    %c0_3 = arith.constant 0 : index
    %c0_4 = arith.constant 0 : index
    %3 = vector.load %arg3[%c0_3, %c0_4] : memref<1x32xf32, #tpu.memory_space<vmem>>, vector<1x32xf32>
    %4 = vector.broadcast %3 : vector<1x32xf32> to vector<2048x32xf32>
    %5 = arith.addf %2, %4 : vector<2048x32xf32>
    %cst_5 = arith.constant 0.000000e+00 : f32
    %6 = vector.broadcast %cst_5 : f32 to vector<2048x32xf32>
    %7 = arith.maximumf %5, %6 : vector<2048x32xf32>
    %8 = arith.truncf %7 : vector<2048x32xf32> to vector<2048x32xbf16>
    %c0_6 = arith.constant 0 : index
    %c0_7 = arith.constant 0 : index
    %9 = vector.load %arg4[%c0_6, %c0_7] : memref<2048x32xbf16, #tpu.memory_space<vmem>>, vector<2048x32xbf16>
    tpu.vector_store %arg4[%c0_6, %c0_7], %8 {strides = array<i32>} : memref<2048x32xbf16, #tpu.memory_space<vmem>>, vector<2048x32xbf16>,
    return
  }
  func.func @transform_0(%arg0: i32) -> (i32, i32) {
    %c0_i32 = arith.constant 0 : i32
    %c0_i32_0 = arith.constant 0 : i32
    return %arg0, %c0_i32 : i32, i32
  }
  func.func @transform_1(%arg0: i32) -> (i32, i32) {
    %c0_i32 = arith.constant 0 : i32
    %c0_i32_0 = arith.constant 0 : i32
    %c0_i32_1 = arith.constant 0 : i32
    return %c0_i32, %c0_i32_0 : i32, i32
  }
  func.func @transform_2(%arg0: i32) -> (i32, i32) {
    %c0_i32 = arith.constant 0 : i32
    %c0_i32_0 = arith.constant 0 : i32
    %c0_i32_1 = arith.constant 0 : i32
    return %c0_i32, %c0_i32_0 : i32, i32
  }
  func.func @transform_3(%arg0: i32) -> (i32, i32) {
    %c0_i32 = arith.constant 0 : i32
    %c0_i32_0 = arith.constant 0 : i32
    return %arg0, %c0_i32 : i32, i32
  }
}

module attributes {stable_mosaic.version = 11 : i64} {
  func.func @_conv_mm_kernel(%arg0: i32, %arg1: memref<1024x288xbf16, #tpu.memory_space<vmem>>, %arg2: memref<288x64xbf16, #tpu.memory_space<vmem>>, %arg3: memref<1x64xf32, #tpu.memory_space<vmem>>, %arg4: memref<1024x64xbf16, #tpu.memory_space<vmem>>) attributes {dimension_semantics = [#tpu.dimension_semantics<parallel>], iteration_bounds = array<i64: 2>, scalar_prefetch = 0 : i64, scratch_operands = 0 : i64, tpu.core_type = #tpu.core_type<tc>, window_params = [{transform_indices = @transform_0, window_bounds = array<i64: 1024, 288>}, {pipeline_mode = #tpu.pipeline_mode<synchronous>, transform_indices = @transform_1, window_bounds = array<i64: 288, 64>}, {pipeline_mode = #tpu.pipeline_mode<synchronous>, transform_indices = @transform_2, window_bounds = array<i64: 1, 64>}, {transform_indices = @transform_3, window_bounds = array<i64: 1024, 64>}]} {
    %c0 = arith.constant 0 : index
    %c0_0 = arith.constant 0 : index
    %0 = vector.load %arg1[%c0, %c0_0] : memref<1024x288xbf16, #tpu.memory_space<vmem>>, vector<1024x288xbf16>
    %c0_1 = arith.constant 0 : index
    %c0_2 = arith.constant 0 : index
    %1 = vector.load %arg2[%c0_1, %c0_2] : memref<288x64xbf16, #tpu.memory_space<vmem>>, vector<288x64xbf16>
    %cst = arith.constant dense<0.000000e+00> : vector<1024x64xf32>
    %2 = tpu.matmul %0, %1, %cst {dimension_numbers = #tpu.dot_dimension_numbers<[1], [0], [0], [1], [0, 0, 1, 1], [], []>} : vector<1024x288xbf16>, vector<288x64xbf16>, vector<1024x64xf32> -> vector<1024x64xf32>
    %c0_3 = arith.constant 0 : index
    %c0_4 = arith.constant 0 : index
    %3 = vector.load %arg3[%c0_3, %c0_4] : memref<1x64xf32, #tpu.memory_space<vmem>>, vector<1x64xf32>
    %4 = vector.broadcast %3 : vector<1x64xf32> to vector<1024x64xf32>
    %5 = arith.addf %2, %4 : vector<1024x64xf32>
    %cst_5 = arith.constant 0.000000e+00 : f32
    %6 = vector.broadcast %cst_5 : f32 to vector<1024x64xf32>
    %7 = arith.maximumf %5, %6 : vector<1024x64xf32>
    %8 = arith.truncf %7 : vector<1024x64xf32> to vector<1024x64xbf16>
    %c0_6 = arith.constant 0 : index
    %c0_7 = arith.constant 0 : index
    %9 = vector.load %arg4[%c0_6, %c0_7] : memref<1024x64xbf16, #tpu.memory_space<vmem>>, vector<1024x64xbf16>
    tpu.vector_store %arg4[%c0_6, %c0_7], %8 {strides = array<i32>} : memref<1024x64xbf16, #tpu.memory_space<vmem>>, vector<1024x64xbf16>,
    return
  }
  func.func @transform_0(%arg0: i32) -> (i32, i32) {
    %c0_i32 = arith.constant 0 : i32
    %c0_i32_0 = arith.constant 0 : i32
    return %arg0, %c0_i32 : i32, i32
  }
  func.func @transform_1(%arg0: i32) -> (i32, i32) {
    %c0_i32 = arith.constant 0 : i32
    %c0_i32_0 = arith.constant 0 : i32
    %c0_i32_1 = arith.constant 0 : i32
    return %c0_i32, %c0_i32_0 : i32, i32
  }
  func.func @transform_2(%arg0: i32) -> (i32, i32) {
    %c0_i32 = arith.constant 0 : i32
    %c0_i32_0 = arith.constant 0 : i32
    %c0_i32_1 = arith.constant 0 : i32
    return %c0_i32, %c0_i32_0 : i32, i32
  }
  func.func @transform_3(%arg0: i32) -> (i32, i32) {
    %c0_i32 = arith.constant 0 : i32
    %c0_i32_0 = arith.constant 0 : i32
    return %arg0, %c0_i32 : i32, i32
  }
}

module attributes {stable_mosaic.version = 11 : i64} {
  func.func @_conv_mm_kernel(%arg0: i32, %arg1: memref<256x576xbf16, #tpu.memory_space<vmem>>, %arg2: memref<576x64xbf16, #tpu.memory_space<vmem>>, %arg3: memref<1x64xf32, #tpu.memory_space<vmem>>, %arg4: memref<256x64xbf16, #tpu.memory_space<vmem>>) attributes {dimension_semantics = [#tpu.dimension_semantics<parallel>], iteration_bounds = array<i64: 2>, scalar_prefetch = 0 : i64, scratch_operands = 0 : i64, tpu.core_type = #tpu.core_type<tc>, window_params = [{transform_indices = @transform_0, window_bounds = array<i64: 256, 576>}, {pipeline_mode = #tpu.pipeline_mode<synchronous>, transform_indices = @transform_1, window_bounds = array<i64: 576, 64>}, {pipeline_mode = #tpu.pipeline_mode<synchronous>, transform_indices = @transform_2, window_bounds = array<i64: 1, 64>}, {transform_indices = @transform_3, window_bounds = array<i64: 256, 64>}]} {
    %c0 = arith.constant 0 : index
    %c0_0 = arith.constant 0 : index
    %0 = vector.load %arg1[%c0, %c0_0] : memref<256x576xbf16, #tpu.memory_space<vmem>>, vector<256x576xbf16>
    %c0_1 = arith.constant 0 : index
    %c0_2 = arith.constant 0 : index
    %1 = vector.load %arg2[%c0_1, %c0_2] : memref<576x64xbf16, #tpu.memory_space<vmem>>, vector<576x64xbf16>
    %cst = arith.constant dense<0.000000e+00> : vector<256x64xf32>
    %2 = tpu.matmul %0, %1, %cst {dimension_numbers = #tpu.dot_dimension_numbers<[1], [0], [0], [1], [0, 0, 1, 1], [], []>} : vector<256x576xbf16>, vector<576x64xbf16>, vector<256x64xf32> -> vector<256x64xf32>
    %c0_3 = arith.constant 0 : index
    %c0_4 = arith.constant 0 : index
    %3 = vector.load %arg3[%c0_3, %c0_4] : memref<1x64xf32, #tpu.memory_space<vmem>>, vector<1x64xf32>
    %4 = vector.broadcast %3 : vector<1x64xf32> to vector<256x64xf32>
    %5 = arith.addf %2, %4 : vector<256x64xf32>
    %cst_5 = arith.constant 0.000000e+00 : f32
    %6 = vector.broadcast %cst_5 : f32 to vector<256x64xf32>
    %7 = arith.maximumf %5, %6 : vector<256x64xf32>
    %8 = arith.truncf %7 : vector<256x64xf32> to vector<256x64xbf16>
    %c0_6 = arith.constant 0 : index
    %c0_7 = arith.constant 0 : index
    %9 = vector.load %arg4[%c0_6, %c0_7] : memref<256x64xbf16, #tpu.memory_space<vmem>>, vector<256x64xbf16>
    tpu.vector_store %arg4[%c0_6, %c0_7], %8 {strides = array<i32>} : memref<256x64xbf16, #tpu.memory_space<vmem>>, vector<256x64xbf16>,
    return
  }
  func.func @transform_0(%arg0: i32) -> (i32, i32) {
    %c0_i32 = arith.constant 0 : i32
    %c0_i32_0 = arith.constant 0 : i32
    return %arg0, %c0_i32 : i32, i32
  }
  func.func @transform_1(%arg0: i32) -> (i32, i32) {
    %c0_i32 = arith.constant 0 : i32
    %c0_i32_0 = arith.constant 0 : i32
    %c0_i32_1 = arith.constant 0 : i32
    return %c0_i32, %c0_i32_0 : i32, i32
  }
  func.func @transform_2(%arg0: i32) -> (i32, i32) {
    %c0_i32 = arith.constant 0 : i32
    %c0_i32_0 = arith.constant 0 : i32
    %c0_i32_1 = arith.constant 0 : i32
    return %c0_i32, %c0_i32_0 : i32, i32
  }
  func.func @transform_3(%arg0: i32) -> (i32, i32) {
    %c0_i32 = arith.constant 0 : i32
    %c0_i32_0 = arith.constant 0 : i32
    return %arg0, %c0_i32 : i32, i32
  }
}

module attributes {stable_mosaic.version = 11 : i64} {
  func.func @_fc_head_kernel(%arg0: i32, %arg1: memref<2x4096xbf16, #tpu.memory_space<vmem>>, %arg2: memref<4096x128xbf16, #tpu.memory_space<vmem>>, %arg3: memref<1x128xf32, #tpu.memory_space<vmem>>, %arg4: memref<128x128xbf16, #tpu.memory_space<vmem>>, %arg5: memref<1x128xf32, #tpu.memory_space<vmem>>, %arg6: memref<2x128xf32, #tpu.memory_space<vmem>>, %arg7: memref<2x128xf32, #tpu.memory_space<vmem>>) attributes {dimension_semantics = [#tpu.dimension_semantics<arbitrary>], iteration_bounds = array<i64: 4>, scalar_prefetch = 0 : i64, scratch_operands = 1 : i64, tpu.core_type = #tpu.core_type<tc>, window_params = [{transform_indices = @transform_0, window_bounds = array<i64: 2, 4096>}, {transform_indices = @transform_1, window_bounds = array<i64: 4096, 128>}, {pipeline_mode = #tpu.pipeline_mode<synchronous>, transform_indices = @transform_2, window_bounds = array<i64: 1, 128>}, {pipeline_mode = #tpu.pipeline_mode<synchronous>, transform_indices = @transform_3, window_bounds = array<i64: 128, 128>}, {pipeline_mode = #tpu.pipeline_mode<synchronous>, transform_indices = @transform_4, window_bounds = array<i64: 1, 128>}, {pipeline_mode = #tpu.pipeline_mode<synchronous>, transform_indices = @transform_5, window_bounds = array<i64: 2, 128>}]} {
    %c0_i32 = arith.constant 0 : i32
    %0 = arith.cmpi eq, %arg0, %c0_i32 : i32
    %1 = arith.extui %0 : i1 to i32
    %c0_i32_0 = arith.constant 0 : i32
    %2 = arith.cmpi ne, %1, %c0_i32_0 : i32
    scf.if %2 {
      %cst_9 = arith.constant 0.000000e+00 : f32
      %12 = vector.broadcast %cst_9 : f32 to vector<2x128xf32>
      %c0_10 = arith.constant 0 : index
      %c0_11 = arith.constant 0 : index
      %13 = vector.load %arg7[%c0_10, %c0_11] : memref<2x128xf32, #tpu.memory_space<vmem>>, vector<2x128xf32>
      tpu.vector_store %arg7[%c0_10, %c0_11], %12 {strides = array<i32>} : memref<2x128xf32, #tpu.memory_space<vmem>>, vector<2x128xf32>,
    } else {
    }
    %c0 = arith.constant 0 : index
    %c0_1 = arith.constant 0 : index
    %3 = vector.load %arg7[%c0, %c0_1] : memref<2x128xf32, #tpu.memory_space<vmem>>, vector<2x128xf32>
    %c0_2 = arith.constant 0 : index
    %c0_3 = arith.constant 0 : index
    %4 = vector.load %arg1[%c0_2, %c0_3] : memref<2x4096xbf16, #tpu.memory_space<vmem>>, vector<2x4096xbf16>
    %c0_4 = arith.constant 0 : index
    %c0_5 = arith.constant 0 : index
    %5 = vector.load %arg2[%c0_4, %c0_5] : memref<4096x128xbf16, #tpu.memory_space<vmem>>, vector<4096x128xbf16>
    %cst = arith.constant dense<0.000000e+00> : vector<2x128xf32>
    %6 = tpu.matmul %4, %5, %cst {dimension_numbers = #tpu.dot_dimension_numbers<[1], [0], [0], [1], [0, 0, 1, 1], [], []>} : vector<2x4096xbf16>, vector<4096x128xbf16>, vector<2x128xf32> -> vector<2x128xf32>
    %7 = arith.addf %3, %6 : vector<2x128xf32>
    %c0_6 = arith.constant 0 : index
    %c0_7 = arith.constant 0 : index
    %8 = vector.load %arg7[%c0_6, %c0_7] : memref<2x128xf32, #tpu.memory_space<vmem>>, vector<2x128xf32>
    tpu.vector_store %arg7[%c0_6, %c0_7], %7 {strides = array<i32>} : memref<2x128xf32, #tpu.memory_space<vmem>>, vector<2x128xf32>,
    %c3_i32 = arith.constant 3 : i32
    %9 = arith.cmpi eq, %arg0, %c3_i32 : i32
    %10 = arith.extui %9 : i1 to i32
    %c0_i32_8 = arith.constant 0 : i32
    %11 = arith.cmpi ne, %10, %c0_i32_8 : i32
    scf.if %11 {
      %c0_9 = arith.constant 0 : index
      %c0_10 = arith.constant 0 : index
      %12 = vector.load %arg7[%c0_9, %c0_10] : memref<2x128xf32, #tpu.memory_space<vmem>>, vector<2x128xf32>
      %c0_11 = arith.constant 0 : index
      %c0_12 = arith.constant 0 : index
      %13 = vector.load %arg3[%c0_11, %c0_12] : memref<1x128xf32, #tpu.memory_space<vmem>>, vector<1x128xf32>
      %14 = vector.broadcast %13 : vector<1x128xf32> to vector<2x128xf32>
      %15 = arith.addf %12, %14 : vector<2x128xf32>
      %cst_13 = arith.constant 0.000000e+00 : f32
      %16 = vector.broadcast %cst_13 : f32 to vector<2x128xf32>
      %17 = arith.maximumf %15, %16 : vector<2x128xf32>
      %18 = arith.truncf %17 : vector<2x128xf32> to vector<2x128xbf16>
      %c0_14 = arith.constant 0 : index
      %c0_15 = arith.constant 0 : index
      %19 = vector.load %arg4[%c0_14, %c0_15] : memref<128x128xbf16, #tpu.memory_space<vmem>>, vector<128x128xbf16>
      %cst_16 = arith.constant dense<0.000000e+00> : vector<2x128xf32>
      %20 = tpu.matmul %18, %19, %cst_16 {dimension_numbers = #tpu.dot_dimension_numbers<[1], [0], [0], [1], [0, 0, 1, 1], [], []>} : vector<2x128xbf16>, vector<128x128xbf16>, vector<2x128xf32> -> vector<2x128xf32>
      %c0_17 = arith.constant 0 : index
      %c0_18 = arith.constant 0 : index
      %21 = vector.load %arg5[%c0_17, %c0_18] : memref<1x128xf32, #tpu.memory_space<vmem>>, vector<1x128xf32>
      %22 = vector.broadcast %21 : vector<1x128xf32> to vector<2x128xf32>
      %23 = arith.addf %20, %22 : vector<2x128xf32>
      %c0_19 = arith.constant 0 : index
      %c0_20 = arith.constant 0 : index
      %24 = vector.load %arg6[%c0_19, %c0_20] : memref<2x128xf32, #tpu.memory_space<vmem>>, vector<2x128xf32>
      tpu.vector_store %arg6[%c0_19, %c0_20], %23 {strides = array<i32>} : memref<2x128xf32, #tpu.memory_space<vmem>>, vector<2x128xf32>,
    } else {
    }
    return
  }
  func.func @transform_0(%arg0: i32) -> (i32, i32) {
    %c0_i32 = arith.constant 0 : i32
    %c0_i32_0 = arith.constant 0 : i32
    return %c0_i32, %arg0 : i32, i32
  }
  func.func @transform_1(%arg0: i32) -> (i32, i32) {
    %c0_i32 = arith.constant 0 : i32
    %c0_i32_0 = arith.constant 0 : i32
    return %arg0, %c0_i32 : i32, i32
  }
  func.func @transform_2(%arg0: i32) -> (i32, i32) {
    %c0_i32 = arith.constant 0 : i32
    %c0_i32_0 = arith.constant 0 : i32
    %c0_i32_1 = arith.constant 0 : i32
    return %c0_i32, %c0_i32_0 : i32, i32
  }
  func.func @transform_3(%arg0: i32) -> (i32, i32) {
    %c0_i32 = arith.constant 0 : i32
    %c0_i32_0 = arith.constant 0 : i32
    %c0_i32_1 = arith.constant 0 : i32
    return %c0_i32, %c0_i32_0 : i32, i32
  }
  func.func @transform_4(%arg0: i32) -> (i32, i32) {
    %c0_i32 = arith.constant 0 : i32
    %c0_i32_0 = arith.constant 0 : i32
    %c0_i32_1 = arith.constant 0 : i32
    return %c0_i32, %c0_i32_0 : i32, i32
  }
  func.func @transform_5(%arg0: i32) -> (i32, i32) {
    %c0_i32 = arith.constant 0 : i32
    %c0_i32_0 = arith.constant 0 : i32
    %c0_i32_1 = arith.constant 0 : i32
    return %c0_i32, %c0_i32_0 : i32, i32
  }
}

</mosaic_0001>

<llo_original>
// kernel: _lambda_.4
$region0: #{_lambda_.4}
  #allocation0 [shape = 'u32[]', space=smem, size = 0x4, offset = 0x4, fixed_abs, tag = 'smem constant byte address 0x4 - core index']
  #allocation1 [shape = 'u32[144,128]{1,0:T(1,128)}', space=vmem, size = 0x12000, scoped, tag = 'internal scratch']
  %s0 = inlined_call_operand.vmem [shape: bf16[8192,72], index: 0, kind: input, shape index: {}]
  %s1 = inlined_call_operand.vmem [shape: bf16[72,32], index: 1, kind: input, shape index: {}]
  %s2 = inlined_call_operand.vmem [shape: f32[1,32], index: 2, kind: input, shape index: {}]
  %s3 = inlined_call_operand.vmem [shape: bf16[8192,32], index: 3, kind: output, shape index: {}]
  %s4 = sld [smem:[#allocation0]]
  $region45: #{_lambda_.4} parent=0
    _
  %s6 = ssub.s32 1, %s4
  %s7 = scalar_select 0, %s6, %s4
  loop: start=0, step=1, limit=6
  $region2: #{_lambda_.4} parent=0 // loop_pre_header
    _
  $region3: #{_lambda_.4} parent=0 // loop_header
    %s9 = sphi 0, %s13
    %p10 = scmp.ge.s32.totalorder %s9, 6
    %s19 = sphi 0, %s21
    %s22 = sphi 0, %s19
    %s23 = sphi 0, %s22
    %s39 = sphi 0, %s23
    %s43 = sphi 0, %s43
    %s45 = sphi 0, %s43
    %s46 = sphi 0, %s45
    %s60 = sphi 0, %s46
    %s64 = sphi 0, %s64
    %s66 = sphi 0, %s64
    %s67 = sphi 0, %s66
    %s81 = sphi 0, %s67
    %s87 = sphi 0, %s89
    %s90 = sphi 0, %s87
    %s91 = sphi 0, %s90
    %s107 = sphi 0, %s91
  $region4: #{_lambda_.4} parent=0 // loop_header_branch
    %12 = sbr.rel (%p10) target = $region8
  $region5: #{_lambda_.4} parent=0 // loop_body
    %s14 = ssub.s32 %s9, 1
    %s15 = ssub.s32 %s9, 2
    %s16 = sadd.s32 %s9, 1
    %s17 = ssub.s32 %s9, %s16
    %p18 = scmp.eq.s32.totalorder %s17, 0
    %s20 = sadd.s32 %s19, 1
    %s21 = scalar_select %p18, %s19, %s20
    %p24 = pneg %p18
    %p25 = scmp.eq.s32.totalorder %s9, 3
    %p26 = por %p24, %p25
    %p27 = scmp.ne.s32.totalorder %s19, %s22
    %p28 = scmp.eq.s32.totalorder %s9, 0
    %p29 = por %p27, %p28
    %p30 = scmp.ne.s32.totalorder %s19, %s22
    %p31 = scmp.eq.s32.totalorder %s14, 3
    %p32 = por %p30, %p31
    %p33 = scmp.ne.s32.totalorder %s22, %s23
    %p34 = scmp.eq.s32.totalorder %s14, 0
    %p35 = por %p33, %p34
    %p36 = scmp.ne.s32.totalorder %s22, %s23
    %p37 = scmp.eq.s32.totalorder %s15, 3
    %p38 = por %p36, %p37
    %p40 = scmp.ne.s32.totalorder %s23, %s39
    %p41 = scmp.eq.s32.totalorder %s15, 0
    %p42 = por %p40, %p41
    %s44 = sadd.s32 %s43, 1
    %p47 = scmp.eq.s32.totalorder %s9, 3
    %p48 = scmp.ne.s32.totalorder %s43, %s45
    %p49 = scmp.eq.s32.totalorder %s9, 0
    %p50 = por %p48, %p49
    %p51 = scmp.ne.s32.totalorder %s43, %s45
    %p52 = scmp.eq.s32.totalorder %s14, 3
    %p53 = por %p51, %p52
    %p54 = scmp.ne.s32.totalorder %s45, %s46
    %p55 = scmp.eq.s32.totalorder %s14, 0
    %p56 = por %p54, %p55
    %p57 = scmp.ne.s32.totalorder %s45, %s46
    %p58 = scmp.eq.s32.totalorder %s15, 3
    %p59 = por %p57, %p58
    %p61 = scmp.ne.s32.totalorder %s46, %s60
    %p62 = scmp.eq.s32.totalorder %s15, 0
    %p63 = por %p61, %p62
    %s65 = sadd.s32 %s64, 1
    %p68 = scmp.eq.s32.totalorder %s9, 3
    %p69 = scmp.ne.s32.totalorder %s64, %s66
    %p70 = scmp.eq.s32.totalorder %s9, 0
    %p71 = por %p69, %p70
    %p72 = scmp.ne.s32.totalorder %s64, %s66
    %p73 = scmp.eq.s32.totalorder %s14, 3
    %p74 = por %p72, %p73
    %p75 = scmp.ne.s32.totalorder %s66, %s67
    %p76 = scmp.eq.s32.totalorder %s14, 0
    %p77 = por %p75, %p76
    %p78 = scmp.ne.s32.totalorder %s66, %s67
    %p79 = scmp.eq.s32.totalorder %s15, 3
    %p80 = por %p78, %p79
    %p82 = scmp.ne.s32.totalorder %s67, %s81
    %p83 = scmp.eq.s32.totalorder %s15, 0
    %p84 = por %p82, %p83
    %s85 = ssub.s32 %s9, %s16
    %p86 = scmp.eq.s32.totalorder %s85, 0
    %s88 = sadd.s32 %s87, 1
    %s89 = scalar_select %p86, %s87, %s88
    %p92 = pneg %p86
    %p93 = scmp.eq.s32.totalorder %s9, 3
    %p94 = por %p92, %p93
    %p95 = scmp.ne.s32.totalorder %s87, %s90
    %p96 = scmp.eq.s32.totalorder %s9, 0
    %p97 = por %p95, %p96
    %p98 = scmp.ne.s32.totalorder %s87, %s90
    %p99 = scmp.eq.s32.totalorder %s14, 3
    %p100 = por %p98, %p99
    %p101 = scmp.ne.s32.totalorder %s90, %s91
    %p102 = scmp.eq.s32.totalorder %s14, 0
    %p103 = por %p101, %p102
    %p104 = scmp.ne.s32.totalorder %s90, %s91
    %p105 = scmp.eq.s32.totalorder %s15, 3
    %p106 = por %p104, %p105
    %p108 = scmp.ne.s32.totalorder %s91, %s107
    %p109 = scmp.eq.s32.totalorder %s15, 0
    %p110 = por %p108, %p109
    %p111 = scmp.le.s32.totalorder 1, %s9
    %p112 = scmp.lt.s32.totalorder %s9, 5
    %p113 = pnand %p111, %p112
    %p114 = pneg %p113
    // Predicated region
    $region9: #{_lambda_.4} parent=5 // pred_check
      _
    $region10: #{_lambda_.4} parent=5 // pred_check_branch
      %116 = sbr.rel (%p113) target = $region12
    $region11: #{_lambda_.4} parent=5 // pred_region
      %s117 = ssub.s32 %s9, 1
      // Predicated region
      $region13: #{_lambda_.4} parent=11 // pred_check
        %p118 = pneg %p56
      $region14: #{_lambda_.4} parent=11 // pred_check_branch
        %120 = sbr.rel (%p118) target = $region16
      $region15: #{_lambda_.4} parent=11 // pred_region
        _
      $region16: #{_lambda_.4} parent=11 // pred_fallthru
        _
      // Predicated region
      $region17: #{_lambda_.4} parent=11 // pred_check
        %p121 = pneg %p77
      $region18: #{_lambda_.4} parent=11 // pred_check_branch
        %123 = sbr.rel (%p121) target = $region20
      $region19: #{_lambda_.4} parent=11 // pred_region
        _
      $region20: #{_lambda_.4} parent=11 // pred_fallthru
        _
    $region12: #{_lambda_.4} parent=5 // pred_fallthru
      _
    %p124 = scmp.lt.s32.totalorder %s9, 4
    // Predicated region
    $region21: #{_lambda_.4} parent=5 // pred_check
      %p125 = pneg %p124
    $region22: #{_lambda_.4} parent=5 // pred_check_branch
      %127 = sbr.rel (%p125) target = $region24
    $region23: #{_lambda_.4} parent=5 // pred_region
      // Predicated region
      $region25: #{_lambda_.4} parent=23 // pred_check
        %p128 = pneg %p29
      $region26: #{_lambda_.4} parent=23 // pred_check_branch
        %130 = sbr.rel (%p128) target = $region28
      $region27: #{_lambda_.4} parent=23 // pred_region
        %s131 = smul.u32 256, %s9
        %p132 = scmp.lt.s32.totalorder %s131, 1023
        %s133 = scalar_select %p132, %s131, 1023
        %s134 = smul.addr %s133, 4
        %s135 = scalar_lea.vmem %s0, %s134
        %s136 = smul.u32 256, %s9
      $region28: #{_lambda_.4} parent=23 // pred_fallthru
        _
    $region24: #{_lambda_.4} parent=5 // pred_fallthru
      _
    %p137 = scmp.le.s32.totalorder 1, %s9
    %p138 = scmp.lt.s32.totalorder %s9, 5
    %p139 = pnand %p137, %p138
    %p140 = pneg %p139
    // Predicated region
    $region29: #{_lambda_.4} parent=5 // pred_check
      _
    $region30: #{_lambda_.4} parent=5 // pred_check_branch
      %142 = sbr.rel (%p139) target = $region32
    $region31: #{_lambda_.4} parent=5 // pred_region
      %s143 = ssub.s32 %s9, 1
      %s144 = smul.u32 256, %s14
      %p145 = scmp.lt.s32.totalorder %s144, 1023
      %s146 = scalar_select %p145, %s144, 1023
      %s147 = smul.addr %s146, 4
      %s148 = scalar_lea.vmem %s0, %s147
      %p149 = pneg %p35
      %p150 = pneg %p32
      %p151 = pneg %p56
      %p152 = pneg %p53
      %p153 = pneg %p77
      %p154 = pneg %p74
      %p155 = pneg %p103
      %p156 = pneg %p100
      %s157 = smul.u32 256, %s14
      %p158 = scmp.lt.s32.totalorder %s157, 1023
      %s159 = scalar_select %p158, %s157, 1023
      %s160 = smul.addr %s159, 4
      %s161 = scalar_lea.vmem %s3, %s160
      %s162 = smul.u32 256, %s14
      %p163 = scmp.lt.s32.totalorder %s162, 1023
      %s164 = scalar_select %p163, %s162, 1023
      %s165 = smul.addr %s164, 4
      %s166 = scalar_lea.vmem %s0, %s165
      %s167 = smul.u32 256, %s14
      %s168 = smul.u32 256, %s14
      %p169 = scmp.lt.s32.totalorder %s168, 1023
      %s170 = scalar_select %p169, %s168, 1023
      %s171 = smul.addr %s170, 4
      %s172 = scalar_lea.vmem %s3, %s171
      %s173 = smul.u32 256, %s14
      %v175 = vld [vmem:[%s166] sm:$0xf]
      %v176 = vld [vmem:[%s166 + $0x4] sm:$0xf]
      %v177 = vld [vmem:[%s166 + $0x8] sm:$0xf]
      %v178 = vld [vmem:[%s166 + $0xc] sm:$0xf]
      %v179 = vld [vmem:[%s166 + $0x10] sm:$0xf]
      %v180 = vld [vmem:[%s166 + $0x14] sm:$0xf]
      %v181 = vld [vmem:[%s166 + $0x18] sm:$0xf]
      %v182 = vld [vmem:[%s166 + $0x1c] sm:$0xf]
      %v183 = vld [vmem:[%s166 + $0x20] sm:$0xf]
      %v184 = vld [vmem:[%s166 + $0x24] sm:$0xf]
      %v185 = vld [vmem:[%s166 + $0x28] sm:$0xf]
      %v186 = vld [vmem:[%s166 + $0x2c] sm:$0xf]
      %v187 = vld [vmem:[%s166 + $0x30] sm:$0xf]
      %v188 = vld [vmem:[%s166 + $0x34] sm:$0xf]
      %v189 = vld [vmem:[%s166 + $0x38] sm:$0xf]
      %v190 = vld [vmem:[%s166 + $0x3c] sm:$0xf]
      %v191 = vld [vmem:[%s166 + $0x40] sm:$0xf]
      %v192 = vld [vmem:[%s166 + $0x44] sm:$0xf]
      %v193 = vld [vmem:[%s166 + $0x48] sm:$0xf]
      %v194 = vld [vmem:[%s166 + $0x4c] sm:$0xf]
      %v195 = vld [vmem:[%s166 + $0x50] sm:$0xf]
      %v196 = vld [vmem:[%s166 + $0x54] sm:$0xf]
      %v197 = vld [vmem:[%s166 + $0x58] sm:$0xf]
      %v198 = vld [vmem:[%s166 + $0x5c] sm:$0xf]
      %v199 = vld [vmem:[%s166 + $0x60] sm:$0xf]
      %v200 = vld [vmem:[%s166 + $0x64] sm:$0xf]
      %v201 = vld [vmem:[%s166 + $0x68] sm:$0xf]
      %v202 = vld [vmem:[%s166 + $0x6c] sm:$0xf]
      %v203 = vld [vmem:[%s166 + $0x70] sm:$0xf]
      %v204 = vld [vmem:[%s166 + $0x74] sm:$0xf]
      %v205 = vld [vmem:[%s166 + $0x78] sm:$0xf]
      %v206 = vld [vmem:[%s166 + $0x7c] sm:$0xf]
      %v207 = vld [vmem:[%s166 + $0x80] sm:$0xf]
      %v208 = vld [vmem:[%s166 + $0x84] sm:$0xf]
      %v209 = vld [vmem:[%s166 + $0x88] sm:$0xf]
      %v210 = vld [vmem:[%s166 + $0x8c] sm:$0xf]
      %v211 = vld [vmem:[%s166 + $0x90] sm:$0xf]
      %v212 = vld [vmem:[%s166 + $0x94] sm:$0xf]
      %v213 = vld [vmem:[%s166 + $0x98] sm:$0xf]
      %v214 = vld [vmem:[%s166 + $0x9c] sm:$0xf]
      %v215 = vld [vmem:[%s166 + $0xa0] sm:$0xf]
      %v216 = vld [vmem:[%s166 + $0xa4] sm:$0xf]
      %v217 = vld [vmem:[%s166 + $0xa8] sm:$0xf]
      %v218 = vld [vmem:[%s166 + $0xac] sm:$0xf]
      %v219 = vld [vmem:[%s166 + $0xb0] sm:$0xf]
      %v220 = vld [vmem:[%s166 + $0xb4] sm:$0xf]
      %v221 = vld [vmem:[%s166 + $0xb8] sm:$0xf]
      %v222 = vld [vmem:[%s166 + $0xbc] sm:$0xf]
      %v223 = vld [vmem:[%s166 + $0xc0] sm:$0xf]
      %v224 = vld [vmem:[%s166 + $0xc4] sm:$0xf]
      %v225 = vld [vmem:[%s166 + $0xc8] sm:$0xf]
      %v226 = vld [vmem:[%s166 + $0xcc] sm:$0xf]
      %v227 = vld [vmem:[%s166 + $0xd0] sm:$0xf]
      %v228 = vld [vmem:[%s166 + $0xd4] sm:$0xf]
      %v229 = vld [vmem:[%s166 + $0xd8] sm:$0xf]
      %v230 = vld [vmem:[%s166 + $0xdc] sm:$0xf]
      %v231 = vld [vmem:[%s166 + $0xe0] sm:$0xf]
      %v232 = vld [vmem:[%s166 + $0xe4] sm:$0xf]
      %v233 = vld [vmem:[%s166 + $0xe8] sm:$0xf]
      %v234 = vld [vmem:[%s166 + $0xec] sm:$0xf]
      %v235 = vld [vmem:[%s166 + $0xf0] sm:$0xf]
      %v236 = vld [vmem:[%s166 + $0xf4] sm:$0xf]
      %v237 = vld [vmem:[%s166 + $0xf8] sm:$0xf]
      %v238 = vld [vmem:[%s166 + $0xfc] sm:$0xf]
      %v239 = vld [vmem:[%s166 + $0x100] sm:$0xf]
      %v240 = vld [vmem:[%s166 + $0x104] sm:$0xf]
      %v241 = vld [vmem:[%s166 + $0x108] sm:$0xf]
      %v242 = vld [vmem:[%s166 + $0x10c] sm:$0xf]
      %v243 = vld [vmem:[%s166 + $0x110] sm:$0xf]
      %v244 = vld [vmem:[%s166 + $0x114] sm:$0xf]
      %v245 = vld [vmem:[%s166 + $0x118] sm:$0xf]
      %v246 = vld [vmem:[%s166 + $0x11c] sm:$0xf]
      %v247 = vld [vmem:[%s166 + $0x120] sm:$0xf]
      %v248 = vld [vmem:[%s166 + $0x124] sm:$0xf]
      %v249 = vld [vmem:[%s166 + $0x128] sm:$0xf]
      %v250 = vld [vmem:[%s166 + $0x12c] sm:$0xf]
      %v251 = vld [vmem:[%s166 + $0x130] sm:$0xf]
      %v252 = vld [vmem:[%s166 + $0x134] sm:$0xf]
      %v253 = vld [vmem:[%s166 + $0x138] sm:$0xf]
      %v254 = vld [vmem:[%s166 + $0x13c] sm:$0xf]
      %v255 = vld [vmem:[%s166 + $0x140] sm:$0xf]
      %v256 = vld [vmem:[%s166 + $0x144] sm:$0xf]
      %v257 = vld [vmem:[%s166 + $0x148] sm:$0xf]
      %v258 = vld [vmem:[%s166 + $0x14c] sm:$0xf]
      %v259 = vld [vmem:[%s166 + $0x150] sm:$0xf]
      %v260 = vld [vmem:[%s166 + $0x154] sm:$0xf]
      %v261 = vld [vmem:[%s166 + $0x158] sm:$0xf]
      %v262 = vld [vmem:[%s166 + $0x15c] sm:$0xf]
      %v263 = vld [vmem:[%s166 + $0x160] sm:$0xf]
      %v264 = vld [vmem:[%s166 + $0x164] sm:$0xf]
      %v265 = vld [vmem:[%s166 + $0x168] sm:$0xf]
      %v266 = vld [vmem:[%s166 + $0x16c] sm:$0xf]
      %v267 = vld [vmem:[%s166 + $0x170] sm:$0xf]
      %v268 = vld [vmem:[%s166 + $0x174] sm:$0xf]
      %v269 = vld [vmem:[%s166 + $0x178] sm:$0xf]
      %v270 = vld [vmem:[%s166 + $0x17c] sm:$0xf]
      %v271 = vld [vmem:[%s166 + $0x180] sm:$0xf]
      %v272 = vld [vmem:[%s166 + $0x184] sm:$0xf]
      %v273 = vld [vmem:[%s166 + $0x188] sm:$0xf]
      %v274 = vld [vmem:[%s166 + $0x18c] sm:$0xf]
      %v275 = vld [vmem:[%s166 + $0x190] sm:$0xf]
      %v276 = vld [vmem:[%s166 + $0x194] sm:$0xf]
      %v277 = vld [vmem:[%s166 + $0x198] sm:$0xf]
      %v278 = vld [vmem:[%s166 + $0x19c] sm:$0xf]
      %v279 = vld [vmem:[%s166 + $0x1a0] sm:$0xf]
      %v280 = vld [vmem:[%s166 + $0x1a4] sm:$0xf]
      %v281 = vld [vmem:[%s166 + $0x1a8] sm:$0xf]
      %v282 = vld [vmem:[%s166 + $0x1ac] sm:$0xf]
      %v283 = vld [vmem:[%s166 + $0x1b0] sm:$0xf]
      %v284 = vld [vmem:[%s166 + $0x1b4] sm:$0xf]
      %v285 = vld [vmem:[%s166 + $0x1b8] sm:$0xf]
      %v286 = vld [vmem:[%s166 + $0x1bc] sm:$0xf]
      %v287 = vld [vmem:[%s166 + $0x1c0] sm:$0xf]
      %v288 = vld [vmem:[%s166 + $0x1c4] sm:$0xf]
      %v289 = vld [vmem:[%s166 + $0x1c8] sm:$0xf]
      %v290 = vld [vmem:[%s166 + $0x1cc] sm:$0xf]
      %v291 = vld [vmem:[%s166 + $0x1d0] sm:$0xf]
      %v292 = vld [vmem:[%s166 + $0x1d4] sm:$0xf]
      %v293 = vld [vmem:[%s166 + $0x1d8] sm:$0xf]
      %v294 = vld [vmem:[%s166 + $0x1dc] sm:$0xf]
      %v295 = vld [vmem:[%s166 + $0x1e0] sm:$0xf]
      %v296 = vld [vmem:[%s166 + $0x1e4] sm:$0xf]
      %v297 = vld [vmem:[%s166 + $0x1e8] sm:$0xf]
      %v298 = vld [vmem:[%s166 + $0x1ec] sm:$0xf]
      %v299 = vld [vmem:[%s166 + $0x1f0] sm:$0xf]
      %v300 = vld [vmem:[%s166 + $0x1f4] sm:$0xf]
      %v301 = vld [vmem:[%s166 + $0x1f8] sm:$0xf]
      %v302 = vld [vmem:[%s166 + $0x1fc] sm:$0xf]
      %v303 = vld [vmem:[%s166 + $0x200] sm:$0xf]
      %v304 = vld [vmem:[%s166 + $0x204] sm:$0xf]
      %v305 = vld [vmem:[%s166 + $0x208] sm:$0xf]
      %v306 = vld [vmem:[%s166 + $0x20c] sm:$0xf]
      %v307 = vld [vmem:[%s166 + $0x210] sm:$0xf]
      %v308 = vld [vmem:[%s166 + $0x214] sm:$0xf]
      %v309 = vld [vmem:[%s166 + $0x218] sm:$0xf]
      %v310 = vld [vmem:[%s166 + $0x21c] sm:$0xf]
      %v311 = vld [vmem:[%s166 + $0x220] sm:$0xf]
      %v312 = vld [vmem:[%s166 + $0x224] sm:$0xf]
      %v313 = vld [vmem:[%s166 + $0x228] sm:$0xf]
      %v314 = vld [vmem:[%s166 + $0x22c] sm:$0xf]
      %v315 = vld [vmem:[%s166 + $0x230] sm:$0xf]
      %v316 = vld [vmem:[%s166 + $0x234] sm:$0xf]
      %v317 = vld [vmem:[%s166 + $0x238] sm:$0xf]
      %v318 = vld [vmem:[%s166 + $0x23c] sm:$0xf]
      %v319 = vld [vmem:[%s166 + $0x240] sm:$0xf]
      %v320 = vld [vmem:[%s166 + $0x244] sm:$0xf]
      %v321 = vld [vmem:[%s166 + $0x248] sm:$0xf]
      %v322 = vld [vmem:[%s166 + $0x24c] sm:$0xf]
      %v323 = vld [vmem:[%s166 + $0x250] sm:$0xf]
      %v324 = vld [vmem:[%s166 + $0x254] sm:$0xf]
      %v325 = vld [vmem:[%s166 + $0x258] sm:$0xf]
      %v326 = vld [vmem:[%s166 + $0x25c] sm:$0xf]
      %v327 = vld [vmem:[%s166 + $0x260] sm:$0xf]
      %v328 = vld [vmem:[%s166 + $0x264] sm:$0xf]
      %v329 = vld [vmem:[%s166 + $0x268] sm:$0xf]
      %v330 = vld [vmem:[%s166 + $0x26c] sm:$0xf]
      %v331 = vld [vmem:[%s166 + $0x270] sm:$0xf]
      %v332 = vld [vmem:[%s166 + $0x274] sm:$0xf]
      %v333 = vld [vmem:[%s166 + $0x278] sm:$0xf]
      %v334 = vld [vmem:[%s166 + $0x27c] sm:$0xf]
      %v335 = vld [vmem:[%s166 + $0x280] sm:$0xf]
      %v336 = vld [vmem:[%s166 + $0x284] sm:$0xf]
      %v337 = vld [vmem:[%s166 + $0x288] sm:$0xf]
      %v338 = vld [vmem:[%s166 + $0x28c] sm:$0xf]
      %v339 = vld [vmem:[%s166 + $0x290] sm:$0xf]
      %v340 = vld [vmem:[%s166 + $0x294] sm:$0xf]
      %v341 = vld [vmem:[%s166 + $0x298] sm:$0xf]
      %v342 = vld [vmem:[%s166 + $0x29c] sm:$0xf]
      %v343 = vld [vmem:[%s166 + $0x2a0] sm:$0xf]
      %v344 = vld [vmem:[%s166 + $0x2a4] sm:$0xf]
      %v345 = vld [vmem:[%s166 + $0x2a8] sm:$0xf]
      %v346 = vld [vmem:[%s166 + $0x2ac] sm:$0xf]
      %v347 = vld [vmem:[%s166 + $0x2b0] sm:$0xf]
      %v348 = vld [vmem:[%s166 + $0x2b4] sm:$0xf]
      %v349 = vld [vmem:[%s166 + $0x2b8] sm:$0xf]
      %v350 = vld [vmem:[%s166 + $0x2bc] sm:$0xf]
      %v351 = vld [vmem:[%s166 + $0x2c0] sm:$0xf]
      %v352 = vld [vmem:[%s166 + $0x2c4] sm:$0xf]
      %v353 = vld [vmem:[%s166 + $0x2c8] sm:$0xf]
      %v354 = vld [vmem:[%s166 + $0x2cc] sm:$0xf]
      %v355 = vld [vmem:[%s166 + $0x2d0] sm:$0xf]
      %v356 = vld [vmem:[%s166 + $0x2d4] sm:$0xf]
      %v357 = vld [vmem:[%s166 + $0x2d8] sm:$0xf]
      %v358 = vld [vmem:[%s166 + $0x2dc] sm:$0xf]
      %v359 = vld [vmem:[%s166 + $0x2e0] sm:$0xf]
      %v360 = vld [vmem:[%s166 + $0x2e4] sm:$0xf]
      %v361 = vld [vmem:[%s166 + $0x2e8] sm:$0xf]
      %v362 = vld [vmem:[%s166 + $0x2ec] sm:$0xf]
      %v363 = vld [vmem:[%s166 + $0x2f0] sm:$0xf]
      %v364 = vld [vmem:[%s166 + $0x2f4] sm:$0xf]
      %v365 = vld [vmem:[%s166 + $0x2f8] sm:$0xf]
      %v366 = vld [vmem:[%s166 + $0x2fc] sm:$0xf]
      %v367 = vld [vmem:[%s166 + $0x300] sm:$0xf]
      %v368 = vld [vmem:[%s166 + $0x304] sm:$0xf]
      %v369 = vld [vmem:[%s166 + $0x308] sm:$0xf]
      %v370 = vld [vmem:[%s166 + $0x30c] sm:$0xf]
      %v371 = vld [vmem:[%s166 + $0x310] sm:$0xf]
      %v372 = vld [vmem:[%s166 + $0x314] sm:$0xf]
      %v373 = vld [vmem:[%s166 + $0x318] sm:$0xf]
      %v374 = vld [vmem:[%s166 + $0x31c] sm:$0xf]
      %v375 = vld [vmem:[%s166 + $0x320] sm:$0xf]
      %v376 = vld [vmem:[%s166 + $0x324] sm:$0xf]
      %v377 = vld [vmem:[%s166 + $0x328] sm:$0xf]
      %v378 = vld [vmem:[%s166 + $0x32c] sm:$0xf]
      %v379 = vld [vmem:[%s166 + $0x330] sm:$0xf]
      %v380 = vld [vmem:[%s166 + $0x334] sm:$0xf]
      %v381 = vld [vmem:[%s166 + $0x338] sm:$0xf]
      %v382 = vld [vmem:[%s166 + $0x33c] sm:$0xf]
      %v383 = vld [vmem:[%s166 + $0x340] sm:$0xf]
      %v384 = vld [vmem:[%s166 + $0x344] sm:$0xf]
      %v385 = vld [vmem:[%s166 + $0x348] sm:$0xf]
      %v386 = vld [vmem:[%s166 + $0x34c] sm:$0xf]
      %v387 = vld [vmem:[%s166 + $0x350] sm:$0xf]
      %v388 = vld [vmem:[%s166 + $0x354] sm:$0xf]
      %v389 = vld [vmem:[%s166 + $0x358] sm:$0xf]
      %v390 = vld [vmem:[%s166 + $0x35c] sm:$0xf]
      %v391 = vld [vmem:[%s166 + $0x360] sm:$0xf]
      %v392 = vld [vmem:[%s166 + $0x364] sm:$0xf]
      %v393 = vld [vmem:[%s166 + $0x368] sm:$0xf]
      %v394 = vld [vmem:[%s166 + $0x36c] sm:$0xf]
      %v395 = vld [vmem:[%s166 + $0x370] sm:$0xf]
      %v396 = vld [vmem:[%s166 + $0x374] sm:$0xf]
      %v397 = vld [vmem:[%s166 + $0x378] sm:$0xf]
      %v398 = vld [vmem:[%s166 + $0x37c] sm:$0xf]
      %v399 = vld [vmem:[%s166 + $0x380] sm:$0xf]
      %v400 = vld [vmem:[%s166 + $0x384] sm:$0xf]
      %v401 = vld [vmem:[%s166 + $0x388] sm:$0xf]
      %v402 = vld [vmem:[%s166 + $0x38c] sm:$0xf]
      %v403 = vld [vmem:[%s166 + $0x390] sm:$0xf]
      %v404 = vld [vmem:[%s166 + $0x394] sm:$0xf]
      %v405 = vld [vmem:[%s166 + $0x398] sm:$0xf]
      %v406 = vld [vmem:[%s166 + $0x39c] sm:$0xf]
      %v407 = vld [vmem:[%s166 + $0x3a0] sm:$0xf]
      %v408 = vld [vmem:[%s166 + $0x3a4] sm:$0xf]
      %v409 = vld [vmem:[%s166 + $0x3a8] sm:$0xf]
      %v410 = vld [vmem:[%s166 + $0x3ac] sm:$0xf]
      %v411 = vld [vmem:[%s166 + $0x3b0] sm:$0xf]
      %v412 = vld [vmem:[%s166 + $0x3b4] sm:$0xf]
      %v413 = vld [vmem:[%s166 + $0x3b8] sm:$0xf]
      %v414 = vld [vmem:[%s166 + $0x3bc] sm:$0xf]
      %v415 = vld [vmem:[%s166 + $0x3c0] sm:$0xf]
      %v416 = vld [vmem:[%s166 + $0x3c4] sm:$0xf]
      %v417 = vld [vmem:[%s166 + $0x3c8] sm:$0xf]
      %v418 = vld [vmem:[%s166 + $0x3cc] sm:$0xf]
      %v419 = vld [vmem:[%s166 + $0x3d0] sm:$0xf]
      %v420 = vld [vmem:[%s166 + $0x3d4] sm:$0xf]
      %v421 = vld [vmem:[%s166 + $0x3d8] sm:$0xf]
      %v422 = vld [vmem:[%s166 + $0x3dc] sm:$0xf]
      %v423 = vld [vmem:[%s166 + $0x3e0] sm:$0xf]
      %v424 = vld [vmem:[%s166 + $0x3e4] sm:$0xf]
      %v425 = vld [vmem:[%s166 + $0x3e8] sm:$0xf]
      %v426 = vld [vmem:[%s166 + $0x3ec] sm:$0xf]
      %v427 = vld [vmem:[%s166 + $0x3f0] sm:$0xf]
      %v428 = vld [vmem:[%s166 + $0x3f4] sm:$0xf]
      %v429 = vld [vmem:[%s166 + $0x3f8] sm:$0xf]
      %v430 = vld [vmem:[%s166 + $0x3fc] sm:$0xf]
      %v431 = vld [vmem:[%s1] sm:$0xf]
      %v432 = vld [vmem:[%s1 + $0x4] sm:$0xf]
      %v433 = vld [vmem:[%s1 + $0x8] sm:$0xf]
      %v434 = vld [vmem:[%s1 + $0xc] sm:$0xf]
      %v435 = vld [vmem:[%s1 + $0x10] sm:$0xf]
      %v436 = vld [vmem:[%s1 + $0x14] sm:$0xf]
      %v437 = vld [vmem:[%s1 + $0x18] sm:$0xf]
      %v438 = vld [vmem:[%s1 + $0x1c] sm:$0xf]
      %v439 = vld [vmem:[%s1 + $0x20] sm:$0xf]
      %v440 = vld [vmem:[%s2] sm:$0x1]
      %v442 = vlaneseq
      %v443 = vshrl.u32 %v442, 7
      %v444 = vsub.s32 0, %v443
      %v445 = vrot.slane %v440, %v444
      %v703 = vunpack.c.l.b16 %v175
      %v704 = vunpack.c.l.b16 %v176
      %v705 = vunpack.c.l.b16 %v177
      %v706 = vunpack.c.l.b16 %v178
      %v707 = vunpack.c.l.b16 %v179
      %v708 = vunpack.c.l.b16 %v180
      %v709 = vunpack.c.l.b16 %v181
      %v710 = vunpack.c.l.b16 %v182
      %v711 = vunpack.c.l.b16 %v183
      %v712 = vunpack.c.l.b16 %v184
      %v713 = vunpack.c.l.b16 %v185
      %v714 = vunpack.c.l.b16 %v186
      %v715 = vunpack.c.l.b16 %v187
      %v716 = vunpack.c.l.b16 %v188
      %v717 = vunpack.c.l.b16 %v189
      %v718 = vunpack.c.l.b16 %v190
      %v719 = vunpack.c.l.b16 %v191
      %v720 = vunpack.c.l.b16 %v192
      %v721 = vunpack.c.l.b16 %v193
      %v722 = vunpack.c.l.b16 %v194
      %v723 = vunpack.c.l.b16 %v195
      %v724 = vunpack.c.l.b16 %v196
      %v725 = vunpack.c.l.b16 %v197
      %v726 = vunpack.c.l.b16 %v198
      %v727 = vunpack.c.l.b16 %v199
      %v728 = vunpack.c.l.b16 %v200
      %v729 = vunpack.c.l.b16 %v201
      %v730 = vunpack.c.l.b16 %v202
      %v731 = vunpack.c.l.b16 %v203
      %v732 = vunpack.c.l.b16 %v204
      %v733 = vunpack.c.l.b16 %v205
      %v734 = vunpack.c.l.b16 %v206
      %v735 = vunpack.c.l.b16 %v207
      %v736 = vunpack.c.l.b16 %v208
      %v737 = vunpack.c.l.b16 %v209
      %v738 = vunpack.c.l.b16 %v210
      %v739 = vunpack.c.l.b16 %v211
      %v740 = vunpack.c.l.b16 %v212
      %v741 = vunpack.c.l.b16 %v213
      %v742 = vunpack.c.l.b16 %v214
      %v743 = vunpack.c.l.b16 %v215
      %v744 = vunpack.c.l.b16 %v216
      %v745 = vunpack.c.l.b16 %v217
      %v746 = vunpack.c.l.b16 %v218
      %v747 = vunpack.c.l.b16 %v219
      %v748 = vunpack.c.l.b16 %v220
      %v749 = vunpack.c.l.b16 %v221
      %v750 = vunpack.c.l.b16 %v222
      %v751 = vunpack.c.l.b16 %v223
      %v752 = vunpack.c.l.b16 %v224
      %v753 = vunpack.c.l.b16 %v225
      %v754 = vunpack.c.l.b16 %v226
      %v755 = vunpack.c.l.b16 %v227
      %v756 = vunpack.c.l.b16 %v228
      %v757 = vunpack.c.l.b16 %v229
      %v758 = vunpack.c.l.b16 %v230
      %v759 = vunpack.c.l.b16 %v231
      %v760 = vunpack.c.l.b16 %v232
      %v761 = vunpack.c.l.b16 %v233
      %v762 = vunpack.c.l.b16 %v234
      %v763 = vunpack.c.l.b16 %v235
      %v764 = vunpack.c.l.b16 %v236
      %v765 = vunpack.c.l.b16 %v237
      %v766 = vunpack.c.l.b16 %v238
      %v767 = vunpack.c.l.b16 %v239
      %v768 = vunpack.c.l.b16 %v240
      %v769 = vunpack.c.l.b16 %v241
      %v770 = vunpack.c.l.b16 %v242
      %v771 = vunpack.c.l.b16 %v243
      %v772 = vunpack.c.l.b16 %v244
      %v773 = vunpack.c.l.b16 %v245
      %v774 = vunpack.c.l.b16 %v246
      %v775 = vunpack.c.l.b16 %v247
      %v776 = vunpack.c.l.b16 %v248
      %v777 = vunpack.c.l.b16 %v249
      %v778 = vunpack.c.l.b16 %v250
      %v779 = vunpack.c.l.b16 %v251
      %v780 = vunpack.c.l.b16 %v252
      %v781 = vunpack.c.l.b16 %v253
      %v782 = vunpack.c.l.b16 %v254
      %v783 = vunpack.c.l.b16 %v255
      %v784 = vunpack.c.l.b16 %v256
      %v785 = vunpack.c.l.b16 %v257
      %v786 = vunpack.c.l.b16 %v258
      %v787 = vunpack.c.l.b16 %v259
      %v788 = vunpack.c.l.b16 %v260
      %v789 = vunpack.c.l.b16 %v261
      %v790 = vunpack.c.l.b16 %v262
      %v791 = vunpack.c.l.b16 %v263
      %v792 = vunpack.c.l.b16 %v264
      %v793 = vunpack.c.l.b16 %v265
      %v794 = vunpack.c.l.b16 %v266
      %v795 = vunpack.c.l.b16 %v267
      %v796 = vunpack.c.l.b16 %v268
      %v797 = vunpack.c.l.b16 %v269
      %v798 = vunpack.c.l.b16 %v270
      %v799 = vunpack.c.l.b16 %v271
      %v800 = vunpack.c.l.b16 %v272
      %v801 = vunpack.c.l.b16 %v273
      %v802 = vunpack.c.l.b16 %v274
      %v803 = vunpack.c.l.b16 %v275
      %v804 = vunpack.c.l.b16 %v276
      %v805 = vunpack.c.l.b16 %v277
      %v806 = vunpack.c.l.b16 %v278
      %v807 = vunpack.c.l.b16 %v279
      %v808 = vunpack.c.l.b16 %v280
      %v809 = vunpack.c.l.b16 %v281
      %v810 = vunpack.c.l.b16 %v282
      %v811 = vunpack.c.l.b16 %v283
      %v812 = vunpack.c.l.b16 %v284
      %v813 = vunpack.c.l.b16 %v285
      %v814 = vunpack.c.l.b16 %v286
      %v815 = vunpack.c.l.b16 %v287
      %v816 = vunpack.c.l.b16 %v288
      %v817 = vunpack.c.l.b16 %v289
      %v818 = vunpack.c.l.b16 %v290
      %v819 = vunpack.c.l.b16 %v291
      %v820 = vunpack.c.l.b16 %v292
      %v821 = vunpack.c.l.b16 %v293
      %v822 = vunpack.c.l.b16 %v294
      %v823 = vunpack.c.l.b16 %v295
      %v824 = vunpack.c.l.b16 %v296
      %v825 = vunpack.c.l.b16 %v297
      %v826 = vunpack.c.l.b16 %v298
      %v827 = vunpack.c.l.b16 %v299
      %v828 = vunpack.c.l.b16 %v300
      %v829 = vunpack.c.l.b16 %v301
      %v830 = vunpack.c.l.b16 %v302
      %v831 = vunpack.c.l.b16 %v303
      %v832 = vunpack.c.l.b16 %v304
      %v833 = vunpack.c.l.b16 %v305
      %v834 = vunpack.c.l.b16 %v306
      %v835 = vunpack.c.l.b16 %v307
      %v836 = vunpack.c.l.b16 %v308
      %v837 = vunpack.c.l.b16 %v309
      %v838 = vunpack.c.l.b16 %v310
      %v839 = vunpack.c.l.b16 %v311
      %v840 = vunpack.c.l.b16 %v312
      %v841 = vunpack.c.l.b16 %v313
      %v842 = vunpack.c.l.b16 %v314
      %v843 = vunpack.c.l.b16 %v315
      %v844 = vunpack.c.l.b16 %v316
      %v845 = vunpack.c.l.b16 %v317
      %v846 = vunpack.c.l.b16 %v318
      %v847 = vunpack.c.l.b16 %v319
      %v848 = vunpack.c.l.b16 %v320
      %v849 = vunpack.c.l.b16 %v321
      %v850 = vunpack.c.l.b16 %v322
      %v851 = vunpack.c.l.b16 %v323
      %v852 = vunpack.c.l.b16 %v324
      %v853 = vunpack.c.l.b16 %v325
      %v854 = vunpack.c.l.b16 %v326
      %v855 = vunpack.c.l.b16 %v327
      %v856 = vunpack.c.l.b16 %v328
      %v857 = vunpack.c.l.b16 %v329
      %v858 = vunpack.c.l.b16 %v330
      %v859 = vunpack.c.l.b16 %v331
      %v860 = vunpack.c.l.b16 %v332
      %v861 = vunpack.c.l.b16 %v333
      %v862 = vunpack.c.l.b16 %v334
      %v863 = vunpack.c.l.b16 %v335
      %v864 = vunpack.c.l.b16 %v336
      %v865 = vunpack.c.l.b16 %v337
      %v866 = vunpack.c.l.b16 %v338
      %v867 = vunpack.c.l.b16 %v339
      %v868 = vunpack.c.l.b16 %v340
      %v869 = vunpack.c.l.b16 %v341
      %v870 = vunpack.c.l.b16 %v342
      %v871 = vunpack.c.l.b16 %v343
      %v872 = vunpack.c.l.b16 %v344
      %v873 = vunpack.c.l.b16 %v345
      %v874 = vunpack.c.l.b16 %v346
      %v875 = vunpack.c.l.b16 %v347
      %v876 = vunpack.c.l.b16 %v348
      %v877 = vunpack.c.l.b16 %v349
      %v878 = vunpack.c.l.b16 %v350
      %v879 = vunpack.c.l.b16 %v351
      %v880 = vunpack.c.l.b16 %v352
      %v881 = vunpack.c.l.b16 %v353
      %v882 = vunpack.c.l.b16 %v354
      %v883 = vunpack.c.l.b16 %v355
      %v884 = vunpack.c.l.b16 %v356
      %v885 = vunpack.c.l.b16 %v357
      %v886 = vunpack.c.l.b16 %v358
      %v887 = vunpack.c.l.b16 %v359
      %v888 = vunpack.c.l.b16 %v360
      %v889 = vunpack.c.l.b16 %v361
      %v890 = vunpack.c.l.b16 %v362
      %v891 = vunpack.c.l.b16 %v363
      %v892 = vunpack.c.l.b16 %v364
      %v893 = vunpack.c.l.b16 %v365
      %v894 = vunpack.c.l.b16 %v366
      %v895 = vunpack.c.l.b16 %v367
      %v896 = vunpack.c.l.b16 %v368
      %v897 = vunpack.c.l.b16 %v369
      %v898 = vunpack.c.l.b16 %v370
      %v899 = vunpack.c.l.b16 %v371
      %v900 = vunpack.c.l.b16 %v372
      %v901 = vunpack.c.l.b16 %v373
      %v902 = vunpack.c.l.b16 %v374
      %v903 = vunpack.c.l.b16 %v375
      %v904 = vunpack.c.l.b16 %v376
      %v905 = vunpack.c.l.b16 %v377
      %v906 = vunpack.c.l.b16 %v378
      %v907 = vunpack.c.l.b16 %v379
      %v908 = vunpack.c.l.b16 %v380
      %v909 = vunpack.c.l.b16 %v381
      %v910 = vunpack.c.l.b16 %v382
      %v911 = vunpack.c.l.b16 %v383
      %v912 = vunpack.c.l.b16 %v384
      %v913 = vunpack.c.l.b16 %v385
      %v914 = vunpack.c.l.b16 %v386
      %v915 = vunpack.c.l.b16 %v387
      %v916 = vunpack.c.l.b16 %v388
      %v917 = vunpack.c.l.b16 %v389
      %v918 = vunpack.c.l.b16 %v390
      %v919 = vunpack.c.l.b16 %v391
      %v920 = vunpack.c.l.b16 %v392
      %v921 = vunpack.c.l.b16 %v393
      %v922 = vunpack.c.l.b16 %v394
      %v923 = vunpack.c.l.b16 %v395
      %v924 = vunpack.c.l.b16 %v396
      %v925 = vunpack.c.l.b16 %v397
      %v926 = vunpack.c.l.b16 %v398
      %v927 = vunpack.c.l.b16 %v399
      %v928 = vunpack.c.l.b16 %v400
      %v929 = vunpack.c.l.b16 %v401
      %v930 = vunpack.c.l.b16 %v402
      %v931 = vunpack.c.l.b16 %v403
      %v932 = vunpack.c.l.b16 %v404
      %v933 = vunpack.c.l.b16 %v405
      %v934 = vunpack.c.l.b16 %v406
      %v935 = vunpack.c.l.b16 %v407
      %v936 = vunpack.c.l.b16 %v408
      %v937 = vunpack.c.l.b16 %v409
      %v938 = vunpack.c.l.b16 %v410
      %v939 = vunpack.c.l.b16 %v411
      %v940 = vunpack.c.l.b16 %v412
      %v941 = vunpack.c.l.b16 %v413
      %v942 = vunpack.c.l.b16 %v414
      %v943 = vunpack.c.l.b16 %v415
      %v944 = vunpack.c.l.b16 %v416
      %v945 = vunpack.c.l.b16 %v417
      %v946 = vunpack.c.l.b16 %v418
      %v947 = vunpack.c.l.b16 %v419
      %v948 = vunpack.c.l.b16 %v420
      %v949 = vunpack.c.l.b16 %v421
      %v950 = vunpack.c.l.b16 %v422
      %v951 = vunpack.c.l.b16 %v423
      %v952 = vunpack.c.l.b16 %v424
      %v953 = vunpack.c.l.b16 %v425
      %v954 = vunpack.c.l.b16 %v426
      %v955 = vunpack.c.l.b16 %v427
      %v956 = vunpack.c.l.b16 %v428
      %v957 = vunpack.c.l.b16 %v429
      %v958 = vunpack.c.l.b16 %v430
      %v959 = vpack.c.b16 %v704, %v703
      %v960 = vpack.c.b16 %v706, %v705
      %v961 = vpack.c.b16 %v708, %v707
      %v962 = vpack.c.b16 %v710, %v709
      %v963 = vpack.c.b16 %v712, %v711
      %v964 = vpack.c.b16 %v714, %v713
      %v965 = vpack.c.b16 %v716, %v715
      %v966 = vpack.c.b16 %v718, %v717
      %v967 = vpack.c.b16 %v720, %v719
      %v968 = vpack.c.b16 %v722, %v721
      %v969 = vpack.c.b16 %v724, %v723
      %v970 = vpack.c.b16 %v726, %v725
      %v971 = vpack.c.b16 %v728, %v727
      %v972 = vpack.c.b16 %v730, %v729
      %v973 = vpack.c.b16 %v732, %v731
      %v974 = vpack.c.b16 %v734, %v733
      %v975 = vpack.c.b16 %v736, %v735
      %v976 = vpack.c.b16 %v738, %v737
      %v977 = vpack.c.b16 %v740, %v739
      %v978 = vpack.c.b16 %v742, %v741
      %v979 = vpack.c.b16 %v744, %v743
      %v980 = vpack.c.b16 %v746, %v745
      %v981 = vpack.c.b16 %v748, %v747
      %v982 = vpack.c.b16 %v750, %v749
      %v983 = vpack.c.b16 %v752, %v751
      %v984 = vpack.c.b16 %v754, %v753
      %v985 = vpack.c.b16 %v756, %v755
      %v986 = vpack.c.b16 %v758, %v757
      %v987 = vpack.c.b16 %v760, %v759
      %v988 = vpack.c.b16 %v762, %v761
      %v989 = vpack.c.b16 %v764, %v763
      %v990 = vpack.c.b16 %v766, %v765
      %v991 = vpack.c.b16 %v768, %v767
      %v992 = vpack.c.b16 %v770, %v769
      %v993 = vpack.c.b16 %v772, %v771
      %v994 = vpack.c.b16 %v774, %v773
      %v995 = vpack.c.b16 %v776, %v775
      %v996 = vpack.c.b16 %v778, %v777
      %v997 = vpack.c.b16 %v780, %v779
      %v998 = vpack.c.b16 %v782, %v781
      %v999 = vpack.c.b16 %v784, %v783
      %v1000 = vpack.c.b16 %v786, %v785
      %v1001 = vpack.c.b16 %v788, %v787
      %v1002 = vpack.c.b16 %v790, %v789
      %v1003 = vpack.c.b16 %v792, %v791
      %v1004 = vpack.c.b16 %v794, %v793
      %v1005 = vpack.c.b16 %v796, %v795
      %v1006 = vpack.c.b16 %v798, %v797
      %v1007 = vpack.c.b16 %v800, %v799
      %v1008 = vpack.c.b16 %v802, %v801
      %v1009 = vpack.c.b16 %v804, %v803
      %v1010 = vpack.c.b16 %v806, %v805
      %v1011 = vpack.c.b16 %v808, %v807
      %v1012 = vpack.c.b16 %v810, %v809
      %v1013 = vpack.c.b16 %v812, %v811
      %v1014 = vpack.c.b16 %v814, %v813
      %v1015 = vpack.c.b16 %v816, %v815
      %v1016 = vpack.c.b16 %v818, %v817
      %v1017 = vpack.c.b16 %v820, %v819
      %v1018 = vpack.c.b16 %v822, %v821
      %v1019 = vpack.c.b16 %v824, %v823
      %v1020 = vpack.c.b16 %v826, %v825
      %v1021 = vpack.c.b16 %v828, %v827
      %v1022 = vpack.c.b16 %v830, %v829
      %v1023 = vpack.c.b16 %v832, %v831
      %v1024 = vpack.c.b16 %v834, %v833
      %v1025 = vpack.c.b16 %v836, %v835
      %v1026 = vpack.c.b16 %v838, %v837
      %v1027 = vpack.c.b16 %v840, %v839
      %v1028 = vpack.c.b16 %v842, %v841
      %v1029 = vpack.c.b16 %v844, %v843
      %v1030 = vpack.c.b16 %v846, %v845
      %v1031 = vpack.c.b16 %v848, %v847
      %v1032 = vpack.c.b16 %v850, %v849
      %v1033 = vpack.c.b16 %v852, %v851
      %v1034 = vpack.c.b16 %v854, %v853
      %v1035 = vpack.c.b16 %v856, %v855
      %v1036 = vpack.c.b16 %v858, %v857
      %v1037 = vpack.c.b16 %v860, %v859
      %v1038 = vpack.c.b16 %v862, %v861
      %v1039 = vpack.c.b16 %v864, %v863
      %v1040 = vpack.c.b16 %v866, %v865
      %v1041 = vpack.c.b16 %v868, %v867
      %v1042 = vpack.c.b16 %v870, %v869
      %v1043 = vpack.c.b16 %v872, %v871
      %v1044 = vpack.c.b16 %v874, %v873
      %v1045 = vpack.c.b16 %v876, %v875
      %v1046 = vpack.c.b16 %v878, %v877
      %v1047 = vpack.c.b16 %v880, %v879
      %v1048 = vpack.c.b16 %v882, %v881
      %v1049 = vpack.c.b16 %v884, %v883
      %v1050 = vpack.c.b16 %v886, %v885
      %v1051 = vpack.c.b16 %v888, %v887
      %v1052 = vpack.c.b16 %v890, %v889
      %v1053 = vpack.c.b16 %v892, %v891
      %v1054 = vpack.c.b16 %v894, %v893
      %v1055 = vpack.c.b16 %v896, %v895
      %v1056 = vpack.c.b16 %v898, %v897
      %v1057 = vpack.c.b16 %v900, %v899
      %v1058 = vpack.c.b16 %v902, %v901
      %v1059 = vpack.c.b16 %v904, %v903
      %v1060 = vpack.c.b16 %v906, %v905
      %v1061 = vpack.c.b16 %v908, %v907
      %v1062 = vpack.c.b16 %v910, %v909
      %v1063 = vpack.c.b16 %v912, %v911
      %v1064 = vpack.c.b16 %v914, %v913
      %v1065 = vpack.c.b16 %v916, %v915
      %v1066 = vpack.c.b16 %v918, %v917
      %v1067 = vpack.c.b16 %v920, %v919
      %v1068 = vpack.c.b16 %v922, %v921
      %v1069 = vpack.c.b16 %v924, %v923
      %v1070 = vpack.c.b16 %v926, %v925
      %v1071 = vpack.c.b16 %v928, %v927
      %v1072 = vpack.c.b16 %v930, %v929
      %v1073 = vpack.c.b16 %v932, %v931
      %v1074 = vpack.c.b16 %v934, %v933
      %v1075 = vpack.c.b16 %v936, %v935
      %v1076 = vpack.c.b16 %v938, %v937
      %v1077 = vpack.c.b16 %v940, %v939
      %v1078 = vpack.c.b16 %v942, %v941
      %v1079 = vpack.c.b16 %v944, %v943
      %v1080 = vpack.c.b16 %v946, %v945
      %v1081 = vpack.c.b16 %v948, %v947
      %v1082 = vpack.c.b16 %v950, %v949
      %v1083 = vpack.c.b16 %v952, %v951
      %v1084 = vpack.c.b16 %v954, %v953
      %v1085 = vpack.c.b16 %v956, %v955
      %v1086 = vpack.c.b16 %v958, %v957
      %v1096 = vunpack.c.l.b16 %v431
      %v1097 = vunpack.c.l.b16 %v432
      %v1098 = vunpack.c.l.b16 %v433
      %v1099 = vunpack.c.l.b16 %v434
      %v1100 = vunpack.c.l.b16 %v435
      %v1101 = vunpack.c.l.b16 %v436
      %v1102 = vunpack.c.l.b16 %v437
      %v1103 = vunpack.c.l.b16 %v438
      %v1104 = vunpack.c.l.b16 %v439
      %v1105 = vpack.c.b16 %v1097, %v1096
      %v1106 = vpack.c.b16 %v1099, %v1098
      %v1107 = vpack.c.b16 %v1101, %v1100
      %v1108 = vpack.c.b16 %v1103, %v1102
      %v1109 = vpack.c.b16 %v1104, %v1104
      %vm1114 = vcmask 588800
      %v1116 = vsel %vm1114, %v959, 0
      %v1119 = vsel %vm1114, %v960, 0
      %v1122 = vsel %vm1114, %v961, 0
      %v1125 = vsel %vm1114, %v962, 0
      %v1128 = vsel %vm1114, %v963, 0
      %v1131 = vsel %vm1114, %v964, 0
      %v1134 = vsel %vm1114, %v965, 0
      %v1137 = vsel %vm1114, %v966, 0
      %v1140 = vsel %vm1114, %v967, 0
      %v1143 = vsel %vm1114, %v968, 0
      %v1146 = vsel %vm1114, %v969, 0
      %v1149 = vsel %vm1114, %v970, 0
      %v1152 = vsel %vm1114, %v971, 0
      %v1155 = vsel %vm1114, %v972, 0
      %v1158 = vsel %vm1114, %v973, 0
      %v1161 = vsel %vm1114, %v974, 0
      %v1164 = vsel %vm1114, %v975, 0
      %v1167 = vsel %vm1114, %v976, 0
      %v1170 = vsel %vm1114, %v977, 0
      %v1173 = vsel %vm1114, %v978, 0
      %v1176 = vsel %vm1114, %v979, 0
      %v1179 = vsel %vm1114, %v980, 0
      %v1182 = vsel %vm1114, %v981, 0
      %v1185 = vsel %vm1114, %v982, 0
      %v1188 = vsel %vm1114, %v983, 0
      %v1191 = vsel %vm1114, %v984, 0
      %v1194 = vsel %vm1114, %v985, 0
      %v1197 = vsel %vm1114, %v986, 0
      %v1200 = vsel %vm1114, %v987, 0
      %v1203 = vsel %vm1114, %v988, 0
      %v1206 = vsel %vm1114, %v989, 0
      %v1209 = vsel %vm1114, %v990, 0
      %v1212 = vsel %vm1114, %v991, 0
      %v1215 = vsel %vm1114, %v992, 0
      %v1218 = vsel %vm1114, %v993, 0
      %v1221 = vsel %vm1114, %v994, 0
      %v1224 = vsel %vm1114, %v995, 0
      %v1227 = vsel %vm1114, %v996, 0
      %v1230 = vsel %vm1114, %v997, 0
      %v1233 = vsel %vm1114, %v998, 0
      %v1236 = vsel %vm1114, %v999, 0
      %v1239 = vsel %vm1114, %v1000, 0
      %v1242 = vsel %vm1114, %v1001, 0
      %v1245 = vsel %vm1114, %v1002, 0
      %v1248 = vsel %vm1114, %v1003, 0
      %v1251 = vsel %vm1114, %v1004, 0
      %v1254 = vsel %vm1114, %v1005, 0
      %v1257 = vsel %vm1114, %v1006, 0
      %v1260 = vsel %vm1114, %v1007, 0
      %v1263 = vsel %vm1114, %v1008, 0
      %v1266 = vsel %vm1114, %v1009, 0
      %v1269 = vsel %vm1114, %v1010, 0
      %v1272 = vsel %vm1114, %v1011, 0
      %v1275 = vsel %vm1114, %v1012, 0
      %v1278 = vsel %vm1114, %v1013, 0
      %v1281 = vsel %vm1114, %v1014, 0
      %v1284 = vsel %vm1114, %v1015, 0
      %v1287 = vsel %vm1114, %v1016, 0
      %v1290 = vsel %vm1114, %v1017, 0
      %v1293 = vsel %vm1114, %v1018, 0
      %v1296 = vsel %vm1114, %v1019, 0
      %v1299 = vsel %vm1114, %v1020, 0
      %v1302 = vsel %vm1114, %v1021, 0
      %v1305 = vsel %vm1114, %v1022, 0
      %v1308 = vsel %vm1114, %v1023, 0
      %v1311 = vsel %vm1114, %v1024, 0
      %v1314 = vsel %vm1114, %v1025, 0
      %v1317 = vsel %vm1114, %v1026, 0
      %v1320 = vsel %vm1114, %v1027, 0
      %v1323 = vsel %vm1114, %v1028, 0
      %v1326 = vsel %vm1114, %v1029, 0
      %v1329 = vsel %vm1114, %v1030, 0
      %v1332 = vsel %vm1114, %v1031, 0
      %v1335 = vsel %vm1114, %v1032, 0
      %v1338 = vsel %vm1114, %v1033, 0
      %v1341 = vsel %vm1114, %v1034, 0
      %v1344 = vsel %vm1114, %v1035, 0
      %v1347 = vsel %vm1114, %v1036, 0
      %v1350 = vsel %vm1114, %v1037, 0
      %v1353 = vsel %vm1114, %v1038, 0
      %v1356 = vsel %vm1114, %v1039, 0
      %v1359 = vsel %vm1114, %v1040, 0
      %v1362 = vsel %vm1114, %v1041, 0
      %v1365 = vsel %vm1114, %v1042, 0
      %v1368 = vsel %vm1114, %v1043, 0
      %v1371 = vsel %vm1114, %v1044, 0
      %v1374 = vsel %vm1114, %v1045, 0
      %v1377 = vsel %vm1114, %v1046, 0
      %v1380 = vsel %vm1114, %v1047, 0
      %v1383 = vsel %vm1114, %v1048, 0
      %v1386 = vsel %vm1114, %v1049, 0
      %v1389 = vsel %vm1114, %v1050, 0
      %v1392 = vsel %vm1114, %v1051, 0
      %v1395 = vsel %vm1114, %v1052, 0
      %v1398 = vsel %vm1114, %v1053, 0
      %v1401 = vsel %vm1114, %v1054, 0
      %v1404 = vsel %vm1114, %v1055, 0
      %v1407 = vsel %vm1114, %v1056, 0
      %v1410 = vsel %vm1114, %v1057, 0
      %v1413 = vsel %vm1114, %v1058, 0
      %v1416 = vsel %vm1114, %v1059, 0
      %v1419 = vsel %vm1114, %v1060, 0
      %v1422 = vsel %vm1114, %v1061, 0
      %v1425 = vsel %vm1114, %v1062, 0
      %v1428 = vsel %vm1114, %v1063, 0
      %v1431 = vsel %vm1114, %v1064, 0
      %v1434 = vsel %vm1114, %v1065, 0
      %v1437 = vsel %vm1114, %v1066, 0
      %v1440 = vsel %vm1114, %v1067, 0
      %v1443 = vsel %vm1114, %v1068, 0
      %v1446 = vsel %vm1114, %v1069, 0
      %v1449 = vsel %vm1114, %v1070, 0
      %v1452 = vsel %vm1114, %v1071, 0
      %v1455 = vsel %vm1114, %v1072, 0
      %v1458 = vsel %vm1114, %v1073, 0
      %v1461 = vsel %vm1114, %v1074, 0
      %v1464 = vsel %vm1114, %v1075, 0
      %v1467 = vsel %vm1114, %v1076, 0
      %v1470 = vsel %vm1114, %v1077, 0
      %v1473 = vsel %vm1114, %v1078, 0
      %v1476 = vsel %vm1114, %v1079, 0
      %v1479 = vsel %vm1114, %v1080, 0
      %v1482 = vsel %vm1114, %v1081, 0
      %v1485 = vsel %vm1114, %v1082, 0
      %v1488 = vsel %vm1114, %v1083, 0
      %v1491 = vsel %vm1114, %v1084, 0
      %v1494 = vsel %vm1114, %v1085, 0
      %v1497 = vsel %vm1114, %v1086, 0
      %vm1499 = vcmask 1043456
      %v1501 = vsel %vm1499, %v1109, 0
      %1503 = vmatprep.subr.bf16.mxu0 0
      %1504 = vmatpush1.bf16.msra.mxu0 0
      %1505 = vmatprep.subr.bf16.mxu0 0
      %1506 = vmatpush1.bf16.msra.mxu0 0
      %1507 = vmatprep.subr.bf16.mxu0 0
      %1508 = vmatpush1.bf16.msra.mxu0 0
      %1509 = vmatprep.subr.bf16.mxu0 0
      %1510 = vmatpush1.bf16.msra.mxu0 %v1501
      %1511 = vmatprep.subr.bf16.mxu0 0
      %1512 = vmatpush1.bf16.msra.mxu0 %v1108
      %1513 = vmatprep.subr.bf16.mxu0 0
      %1514 = vmatpush1.bf16.msra.mxu0 %v1107
      %1515 = vmatprep.subr.bf16.mxu0 0
      %1516 = vmatpush1.bf16.msra.mxu0 %v1106
      %1517 = vmatprep.subr.bf16.mxu0 0
      %1518 = vmatpush1.bf16.msra.mxu0 %v1105
      %1519 = vmatprep.subr.bf16.mxu0 0
      %1520 = vmatpush2.bf16.msra.mxu0 0
      %1521 = vmatprep.subr.bf16.mxu0 0
      %1522 = vmatpush2.bf16.msra.mxu0 0
      %1523 = vmatprep.subr.bf16.mxu0 0
      %1524 = vmatpush2.bf16.msra.mxu0 0
      %1525 = vmatprep.subr.bf16.mxu0 0
      %1526 = vmatpush2.bf16.msra.mxu0 0
      %1527 = vmatprep.subr.bf16.mxu0 0
      %1528 = vmatpush2.bf16.msra.mxu0 0
      %1529 = vmatprep.subr.bf16.mxu0 0
      %1530 = vmatpush2.bf16.msra.mxu0 0
      %1531 = vmatprep.subr.bf16.mxu0 0
      %1532 = vmatpush2.bf16.msra.mxu0 0
      %1533 = vmatprep.subr.bf16.mxu0 0
      %1534 = vmatpush2.bf16.msra.mxu0 0
      %1535 = vmatprep.mubr.bf16.mxu0 0
      %1536 = vmatmul.mubr.bf16.gmra.mxu0 %v1116
      %v1537 = vpop.f32.mrf.mxu0
      %v1538 = vadd.f32 %v445, %v1537
      %v1539 = vpop.f32.mrf.mxu0
      %v1540 = vpop.f32.mrf.mxu0
      %v1541 = vadd.f32 %v445, %v1540
      %v1542 = vpop.f32.mrf.mxu0
      %1543 = vmatprep.mubr.bf16.mxu0 0
      %1544 = vmatmul.mubr.bf16.gmra.mxu0 %v1119
      %v1545 = vpop.f32.mrf.mxu0
      %v1546 = vadd.f32 %v445, %v1545
      %v1547 = vpop.f32.mrf.mxu0
      %v1548 = vpop.f32.mrf.mxu0
      %v1549 = vadd.f32 %v445, %v1548
      %v1550 = vpop.f32.mrf.mxu0
      %1551 = vmatprep.mubr.bf16.mxu0 0
      %1552 = vmatmul.mubr.bf16.gmra.mxu0 %v1122
      %v1553 = vpop.f32.mrf.mxu0
      %v1554 = vadd.f32 %v445, %v1553
      %v1555 = vpop.f32.mrf.mxu0
      %v1556 = vpop.f32.mrf.mxu0
      %v1557 = vadd.f32 %v445, %v1556
      %v1558 = vpop.f32.mrf.mxu0
      %1559 = vmatprep.mubr.bf16.mxu0 0
      %1560 = vmatmul.mubr.bf16.gmra.mxu0 %v1125
      %v1561 = vpop.f32.mrf.mxu0
      %v1562 = vadd.f32 %v445, %v1561
      %v1563 = vpop.f32.mrf.mxu0
      %v1564 = vpop.f32.mrf.mxu0
      %v1565 = vadd.f32 %v445, %v1564
      %v1566 = vpop.f32.mrf.mxu0
      %1567 = vmatprep.mubr.bf16.mxu0 0
      %1568 = vmatmul.mubr.bf16.gmra.mxu0 %v1128
      %v1569 = vpop.f32.mrf.mxu0
      %v1570 = vadd.f32 %v445, %v1569
      %v1571 = vpop.f32.mrf.mxu0
      %v1572 = vpop.f32.mrf.mxu0
      %v1573 = vadd.f32 %v445, %v1572
      %v1574 = vpop.f32.mrf.mxu0
      %1575 = vmatprep.mubr.bf16.mxu0 0
      %1576 = vmatmul.mubr.bf16.gmra.mxu0 %v1131
      %v1577 = vpop.f32.mrf.mxu0
      %v1578 = vadd.f32 %v445, %v1577
      %v1579 = vpop.f32.mrf.mxu0
      %v1580 = vpop.f32.mrf.mxu0
      %v1581 = vadd.f32 %v445, %v1580
      %v1582 = vpop.f32.mrf.mxu0
      %1583 = vmatprep.mubr.bf16.mxu0 0
      %1584 = vmatmul.mubr.bf16.gmra.mxu0 %v1134
      %v1585 = vpop.f32.mrf.mxu0
      %v1586 = vadd.f32 %v445, %v1585
      %v1587 = vpop.f32.mrf.mxu0
      %v1588 = vpop.f32.mrf.mxu0
      %v1589 = vadd.f32 %v445, %v1588
      %v1590 = vpop.f32.mrf.mxu0
      %1591 = vmatprep.mubr.bf16.mxu0 0
      %1592 = vmatmul.mubr.bf16.gmra.mxu0 %v1137
      %v1593 = vpop.f32.mrf.mxu0
      %v1594 = vadd.f32 %v445, %v1593
      %v1595 = vpop.f32.mrf.mxu0
      %v1596 = vpop.f32.mrf.mxu0
      %v1597 = vadd.f32 %v445, %v1596
      %v1598 = vpop.f32.mrf.mxu0
      %1599 = vmatprep.mubr.bf16.mxu0 0
      %1600 = vmatmul.mubr.bf16.gmra.mxu0 %v1140
      %v1601 = vpop.f32.mrf.mxu0
      %v1602 = vadd.f32 %v445, %v1601
      %v1603 = vpop.f32.mrf.mxu0
      %v1604 = vpop.f32.mrf.mxu0
      %v1605 = vadd.f32 %v445, %v1604
      %v1606 = vpop.f32.mrf.mxu0
      %1607 = vmatprep.mubr.bf16.mxu0 0
      %1608 = vmatmul.mubr.bf16.gmra.mxu0 %v1143
      %v1609 = vpop.f32.mrf.mxu0
      %v1610 = vadd.f32 %v445, %v1609
      %v1611 = vpop.f32.mrf.mxu0
      %v1612 = vpop.f32.mrf.mxu0
      %v1613 = vadd.f32 %v445, %v1612
      %v1614 = vpop.f32.mrf.mxu0
      %1615 = vmatprep.mubr.bf16.mxu0 0
      %1616 = vmatmul.mubr.bf16.gmra.mxu0 %v1146
      %v1617 = vpop.f32.mrf.mxu0
      %v1618 = vadd.f32 %v445, %v1617
      %v1619 = vpop.f32.mrf.mxu0
      %v1620 = vpop.f32.mrf.mxu0
      %v1621 = vadd.f32 %v445, %v1620
      %v1622 = vpop.f32.mrf.mxu0
      %1623 = vmatprep.mubr.bf16.mxu0 0
      %1624 = vmatmul.mubr.bf16.gmra.mxu0 %v1149
      %v1625 = vpop.f32.mrf.mxu0
      %v1626 = vadd.f32 %v445, %v1625
      %v1627 = vpop.f32.mrf.mxu0
      %v1628 = vpop.f32.mrf.mxu0
      %v1629 = vadd.f32 %v445, %v1628
      %v1630 = vpop.f32.mrf.mxu0
      %1631 = vmatprep.mubr.bf16.mxu0 0
      %1632 = vmatmul.mubr.bf16.gmra.mxu0 %v1152
      %v1633 = vpop.f32.mrf.mxu0
      %v1634 = vadd.f32 %v445, %v1633
      %v1635 = vpop.f32.mrf.mxu0
      %v1636 = vpop.f32.mrf.mxu0
      %v1637 = vadd.f32 %v445, %v1636
      %v1638 = vpop.f32.mrf.mxu0
      %1639 = vmatprep.mubr.bf16.mxu0 0
      %1640 = vmatmul.mubr.bf16.gmra.mxu0 %v1155
      %v1641 = vpop.f32.mrf.mxu0
      %v1642 = vadd.f32 %v445, %v1641
      %v1643 = vpop.f32.mrf.mxu0
      %v1644 = vpop.f32.mrf.mxu0
      %v1645 = vadd.f32 %v445, %v1644
      %v1646 = vpop.f32.mrf.mxu0
      %1647 = vmatprep.mubr.bf16.mxu0 0
      %1648 = vmatmul.mubr.bf16.gmra.mxu0 %v1158
      %v1649 = vpop.f32.mrf.mxu0
      %v1650 = vadd.f32 %v445, %v1649
      %v1651 = vpop.f32.mrf.mxu0
      %v1652 = vpop.f32.mrf.mxu0
      %v1653 = vadd.f32 %v445, %v1652
      %v1654 = vpop.f32.mrf.mxu0
      %1655 = vmatprep.mubr.bf16.mxu0 0
      %1656 = vmatmul.mubr.bf16.gmra.mxu0 %v1161
      %v1657 = vpop.f32.mrf.mxu0
      %v1658 = vadd.f32 %v445, %v1657
      %v1659 = vpop.f32.mrf.mxu0
      %v1660 = vpop.f32.mrf.mxu0
      %v1661 = vadd.f32 %v445, %v1660
      %v1662 = vpop.f32.mrf.mxu0
      %1663 = vmatprep.mubr.bf16.mxu0 0
      %1664 = vmatmul.mubr.bf16.gmra.mxu0 %v1164
      %v1665 = vpop.f32.mrf.mxu0
      %v1666 = vadd.f32 %v445, %v1665
      %v1667 = vpop.f32.mrf.mxu0
      %v1668 = vpop.f32.mrf.mxu0
      %v1669 = vadd.f32 %v445, %v1668
      %v1670 = vpop.f32.mrf.mxu0
      %1671 = vmatprep.mubr.bf16.mxu0 0
      %1672 = vmatmul.mubr.bf16.gmra.mxu0 %v1167
      %v1673 = vpop.f32.mrf.mxu0
      %v1674 = vadd.f32 %v445, %v1673
      %v1675 = vpop.f32.mrf.mxu0
      %v1676 = vpop.f32.mrf.mxu0
      %v1677 = vadd.f32 %v445, %v1676
      %v1678 = vpop.f32.mrf.mxu0
      %1679 = vmatprep.mubr.bf16.mxu0 0
      %1680 = vmatmul.mubr.bf16.gmra.mxu0 %v1170
      %v1681 = vpop.f32.mrf.mxu0
      %v1682 = vadd.f32 %v445, %v1681
      %v1683 = vpop.f32.mrf.mxu0
      %v1684 = vpop.f32.mrf.mxu0
      %v1685 = vadd.f32 %v445, %v1684
      %v1686 = vpop.f32.mrf.mxu0
      %1687 = vmatprep.mubr.bf16.mxu0 0
      %1688 = vmatmul.mubr.bf16.gmra.mxu0 %v1173
      %v1689 = vpop.f32.mrf.mxu0
      %v1690 = vadd.f32 %v445, %v1689
      %v1691 = vpop.f32.mrf.mxu0
      %v1692 = vpop.f32.mrf.mxu0
      %v1693 = vadd.f32 %v445, %v1692
      %v1694 = vpop.f32.mrf.mxu0
      %1695 = vmatprep.mubr.bf16.mxu0 0
      %1696 = vmatmul.mubr.bf16.gmra.mxu0 %v1176
      %v1697 = vpop.f32.mrf.mxu0
      %v1698 = vadd.f32 %v445, %v1697
      %v1699 = vpop.f32.mrf.mxu0
      %v1700 = vpop.f32.mrf.mxu0
      %v1701 = vadd.f32 %v445, %v1700
      %v1702 = vpop.f32.mrf.mxu0
      %1703 = vmatprep.mubr.bf16.mxu0 0
      %1704 = vmatmul.mubr.bf16.gmra.mxu0 %v1179
      %v1705 = vpop.f32.mrf.mxu0
      %v1706 = vadd.f32 %v445, %v1705
      %v1707 = vpop.f32.mrf.mxu0
      %v1708 = vpop.f32.mrf.mxu0
      %v1709 = vadd.f32 %v445, %v1708
      %v1710 = vpop.f32.mrf.mxu0
      %1711 = vmatprep.mubr.bf16.mxu0 0
      %1712 = vmatmul.mubr.bf16.gmra.mxu0 %v1182
      %v1713 = vpop.f32.mrf.mxu0
      %v1714 = vadd.f32 %v445, %v1713
      %v1715 = vpop.f32.mrf.mxu0
      %v1716 = vpop.f32.mrf.mxu0
      %v1717 = vadd.f32 %v445, %v1716
      %v1718 = vpop.f32.mrf.mxu0
      %1719 = vmatprep.mubr.bf16.mxu0 0
      %1720 = vmatmul.mubr.bf16.gmra.mxu0 %v1185
      %v1721 = vpop.f32.mrf.mxu0
      %v1722 = vadd.f32 %v445, %v1721
      %v1723 = vpop.f32.mrf.mxu0
      %v1724 = vpop.f32.mrf.mxu0
      %v1725 = vadd.f32 %v445, %v1724
      %v1726 = vpop.f32.mrf.mxu0
      %1727 = vmatprep.mubr.bf16.mxu0 0
      %1728 = vmatmul.mubr.bf16.gmra.mxu0 %v1188
      %v1729 = vpop.f32.mrf.mxu0
      %v1730 = vadd.f32 %v445, %v1729
      %v1731 = vpop.f32.mrf.mxu0
      %v1732 = vpop.f32.mrf.mxu0
      %v1733 = vadd.f32 %v445, %v1732
      %v1734 = vpop.f32.mrf.mxu0
      %1735 = vmatprep.mubr.bf16.mxu0 0
      %1736 = vmatmul.mubr.bf16.gmra.mxu0 %v1191
      %v1737 = vpop.f32.mrf.mxu0
      %v1738 = vadd.f32 %v445, %v1737
      %v1739 = vpop.f32.mrf.mxu0
      %v1740 = vpop.f32.mrf.mxu0
      %v1741 = vadd.f32 %v445, %v1740
      %v1742 = vpop.f32.mrf.mxu0
      %1743 = vmatprep.mubr.bf16.mxu0 0
      %1744 = vmatmul.mubr.bf16.gmra.mxu0 %v1194
      %v1745 = vpop.f32.mrf.mxu0
      %v1746 = vadd.f32 %v445, %v1745
      %v1747 = vpop.f32.mrf.mxu0
      %v1748 = vpop.f32.mrf.mxu0
      %v1749 = vadd.f32 %v445, %v1748
      %v1750 = vpop.f32.mrf.mxu0
      %1751 = vmatprep.mubr.bf16.mxu0 0
      %1752 = vmatmul.mubr.bf16.gmra.mxu0 %v1197
      %v1753 = vpop.f32.mrf.mxu0
      %v1754 = vadd.f32 %v445, %v1753
      %v1755 = vpop.f32.mrf.mxu0
      %v1756 = vpop.f32.mrf.mxu0
      %v1757 = vadd.f32 %v445, %v1756
      %v1758 = vpop.f32.mrf.mxu0
      %1759 = vmatprep.mubr.bf16.mxu0 0
      %1760 = vmatmul.mubr.bf16.gmra.mxu0 %v1200
      %v1761 = vpop.f32.mrf.mxu0
      %v1762 = vadd.f32 %v445, %v1761
      %v1763 = vpop.f32.mrf.mxu0
      %v1764 = vpop.f32.mrf.mxu0
      %v1765 = vadd.f32 %v445, %v1764
      %v1766 = vpop.f32.mrf.mxu0
      %1767 = vmatprep.mubr.bf16.mxu0 0
      %1768 = vmatmul.mubr.bf16.gmra.mxu0 %v1203
      %v1769 = vpop.f32.mrf.mxu0
      %v1770 = vadd.f32 %v445, %v1769
      %v1771 = vpop.f32.mrf.mxu0
      %v1772 = vpop.f32.mrf.mxu0
      %v1773 = vadd.f32 %v445, %v1772
      %v1774 = vpop.f32.mrf.mxu0
      %1775 = vmatprep.mubr.bf16.mxu0 0
      %1776 = vmatmul.mubr.bf16.gmra.mxu0 %v1206
      %v1777 = vpop.f32.mrf.mxu0
      %v1778 = vadd.f32 %v445, %v1777
      %v1779 = vpop.f32.mrf.mxu0
      %v1780 = vpop.f32.mrf.mxu0
      %v1781 = vadd.f32 %v445, %v1780
      %v1782 = vpop.f32.mrf.mxu0
      %1783 = vmatprep.mubr.bf16.mxu0 0
      %1784 = vmatmul.mubr.bf16.gmra.mxu0 %v1209
      %v1785 = vpop.f32.mrf.mxu0
      %v1786 = vadd.f32 %v445, %v1785
      %v1787 = vpop.f32.mrf.mxu0
      %v1788 = vpop.f32.mrf.mxu0
      %v1789 = vadd.f32 %v445, %v1788
      %v1790 = vpop.f32.mrf.mxu0
      %1791 = vmatprep.mubr.bf16.mxu0 0
      %1792 = vmatmul.mubr.bf16.gmra.mxu0 %v1212
      %v1793 = vpop.f32.mrf.mxu0
      %v1794 = vadd.f32 %v445, %v1793
      %v1795 = vpop.f32.mrf.mxu0
      %v1796 = vpop.f32.mrf.mxu0
      %v1797 = vadd.f32 %v445, %v1796
      %v1798 = vpop.f32.mrf.mxu0
      %1799 = vmatprep.mubr.bf16.mxu0 0
      %1800 = vmatmul.mubr.bf16.gmra.mxu0 %v1215
      %v1801 = vpop.f32.mrf.mxu0
      %v1802 = vadd.f32 %v445, %v1801
      %v1803 = vpop.f32.mrf.mxu0
      %v1804 = vpop.f32.mrf.mxu0
      %v1805 = vadd.f32 %v445, %v1804
      %v1806 = vpop.f32.mrf.mxu0
      %1807 = vmatprep.mubr.bf16.mxu0 0
      %1808 = vmatmul.mubr.bf16.gmra.mxu0 %v1218
      %v1809 = vpop.f32.mrf.mxu0
      %v1810 = vadd.f32 %v445, %v1809
      %v1811 = vpop.f32.mrf.mxu0
      %v1812 = vpop.f32.mrf.mxu0
      %v1813 = vadd.f32 %v445, %v1812
      %v1814 = vpop.f32.mrf.mxu0
      %1815 = vmatprep.mubr.bf16.mxu0 0
      %1816 = vmatmul.mubr.bf16.gmra.mxu0 %v1221
      %v1817 = vpop.f32.mrf.mxu0
      %v1818 = vadd.f32 %v445, %v1817
      %v1819 = vpop.f32.mrf.mxu0
      %v1820 = vpop.f32.mrf.mxu0
      %v1821 = vadd.f32 %v445, %v1820
      %v1822 = vpop.f32.mrf.mxu0
      %1823 = vmatprep.mubr.bf16.mxu0 0
      %1824 = vmatmul.mubr.bf16.gmra.mxu0 %v1224
      %v1825 = vpop.f32.mrf.mxu0
      %v1826 = vadd.f32 %v445, %v1825
      %v1827 = vpop.f32.mrf.mxu0
      %v1828 = vpop.f32.mrf.mxu0
      %v1829 = vadd.f32 %v445, %v1828
      %v1830 = vpop.f32.mrf.mxu0
      %1831 = vmatprep.mubr.bf16.mxu0 0
      %1832 = vmatmul.mubr.bf16.gmra.mxu0 %v1227
      %v1833 = vpop.f32.mrf.mxu0
      %v1834 = vadd.f32 %v445, %v1833
      %v1835 = vpop.f32.mrf.mxu0
      %v1836 = vpop.f32.mrf.mxu0
      %v1837 = vadd.f32 %v445, %v1836
      %v1838 = vpop.f32.mrf.mxu0
      %1839 = vmatprep.mubr.bf16.mxu0 0
      %1840 = vmatmul.mubr.bf16.gmra.mxu0 %v1230
      %v1841 = vpop.f32.mrf.mxu0
      %v1842 = vadd.f32 %v445, %v1841
      %v1843 = vpop.f32.mrf.mxu0
      %v1844 = vpop.f32.mrf.mxu0
      %v1845 = vadd.f32 %v445, %v1844
      %v1846 = vpop.f32.mrf.mxu0
      %1847 = vmatprep.mubr.bf16.mxu0 0
      %1848 = vmatmul.mubr.bf16.gmra.mxu0 %v1233
      %v1849 = vpop.f32.mrf.mxu0
      %v1850 = vadd.f32 %v445, %v1849
      %v1851 = vpop.f32.mrf.mxu0
      %v1852 = vpop.f32.mrf.mxu0
      %v1853 = vadd.f32 %v445, %v1852
      %v1854 = vpop.f32.mrf.mxu0
      %1855 = vmatprep.mubr.bf16.mxu0 0
      %1856 = vmatmul.mubr.bf16.gmra.mxu0 %v1236
      %v1857 = vpop.f32.mrf.mxu0
      %v1858 = vadd.f32 %v445, %v1857
      %v1859 = vpop.f32.mrf.mxu0
      %v1860 = vpop.f32.mrf.mxu0
      %v1861 = vadd.f32 %v445, %v1860
      %v1862 = vpop.f32.mrf.mxu0
      %1863 = vmatprep.mubr.bf16.mxu0 0
      %1864 = vmatmul.mubr.bf16.gmra.mxu0 %v1239
      %v1865 = vpop.f32.mrf.mxu0
      %v1866 = vadd.f32 %v445, %v1865
      %v1867 = vpop.f32.mrf.mxu0
      %v1868 = vpop.f32.mrf.mxu0
      %v1869 = vadd.f32 %v445, %v1868
      %v1870 = vpop.f32.mrf.mxu0
      %1871 = vmatprep.mubr.bf16.mxu0 0
      %1872 = vmatmul.mubr.bf16.gmra.mxu0 %v1242
      %v1873 = vpop.f32.mrf.mxu0
      %v1874 = vadd.f32 %v445, %v1873
      %v1875 = vpop.f32.mrf.mxu0
      %v1876 = vpop.f32.mrf.mxu0
      %v1877 = vadd.f32 %v445, %v1876
      %v1878 = vpop.f32.mrf.mxu0
      %1879 = vmatprep.mubr.bf16.mxu0 0
      %1880 = vmatmul.mubr.bf16.gmra.mxu0 %v1245
      %v1881 = vpop.f32.mrf.mxu0
      %v1882 = vadd.f32 %v445, %v1881
      %v1883 = vpop.f32.mrf.mxu0
      %v1884 = vpop.f32.mrf.mxu0
      %v1885 = vadd.f32 %v445, %v1884
      %v1886 = vpop.f32.mrf.mxu0
      %1887 = vmatprep.mubr.bf16.mxu0 0
      %1888 = vmatmul.mubr.bf16.gmra.mxu0 %v1248
      %v1889 = vpop.f32.mrf.mxu0
      %v1890 = vadd.f32 %v445, %v1889
      %v1891 = vpop.f32.mrf.mxu0
      %v1892 = vpop.f32.mrf.mxu0
      %v1893 = vadd.f32 %v445, %v1892
      %v1894 = vpop.f32.mrf.mxu0
      %1895 = vmatprep.mubr.bf16.mxu0 0
      %1896 = vmatmul.mubr.bf16.gmra.mxu0 %v1251
      %v1897 = vpop.f32.mrf.mxu0
      %v1898 = vadd.f32 %v445, %v1897
      %v1899 = vpop.f32.mrf.mxu0
      %v1900 = vpop.f32.mrf.mxu0
      %v1901 = vadd.f32 %v445, %v1900
      %v1902 = vpop.f32.mrf.mxu0
      %1903 = vmatprep.mubr.bf16.mxu0 0
      %1904 = vmatmul.mubr.bf16.gmra.mxu0 %v1254
      %v1905 = vpop.f32.mrf.mxu0
      %v1906 = vadd.f32 %v445, %v1905
      %v1907 = vpop.f32.mrf.mxu0
      %v1908 = vpop.f32.mrf.mxu0
      %v1909 = vadd.f32 %v445, %v1908
      %v1910 = vpop.f32.mrf.mxu0
      %1911 = vmatprep.mubr.bf16.mxu0 0
      %1912 = vmatmul.mubr.bf16.gmra.mxu0 %v1257
      %v1913 = vpop.f32.mrf.mxu0
      %v1914 = vadd.f32 %v445, %v1913
      %v1915 = vpop.f32.mrf.mxu0
      %v1916 = vpop.f32.mrf.mxu0
      %v1917 = vadd.f32 %v445, %v1916
      %v1918 = vpop.f32.mrf.mxu0
      %1919 = vmatprep.mubr.bf16.mxu0 0
      %1920 = vmatmul.mubr.bf16.gmra.mxu0 %v1260
      %v1921 = vpop.f32.mrf.mxu0
      %v1922 = vadd.f32 %v445, %v1921
      %v1923 = vpop.f32.mrf.mxu0
      %v1924 = vpop.f32.mrf.mxu0
      %v1925 = vadd.f32 %v445, %v1924
      %v1926 = vpop.f32.mrf.mxu0
      %1927 = vmatprep.mubr.bf16.mxu0 0
      %1928 = vmatmul.mubr.bf16.gmra.mxu0 %v1263
      %v1929 = vpop.f32.mrf.mxu0
      %v1930 = vadd.f32 %v445, %v1929
      %v1931 = vpop.f32.mrf.mxu0
      %v1932 = vpop.f32.mrf.mxu0
      %v1933 = vadd.f32 %v445, %v1932
      %v1934 = vpop.f32.mrf.mxu0
      %1935 = vmatprep.mubr.bf16.mxu0 0
      %1936 = vmatmul.mubr.bf16.gmra.mxu0 %v1266
      %v1937 = vpop.f32.mrf.mxu0
      %v1938 = vadd.f32 %v445, %v1937
      %v1939 = vpop.f32.mrf.mxu0
      %v1940 = vpop.f32.mrf.mxu0
      %v1941 = vadd.f32 %v445, %v1940
      %v1942 = vpop.f32.mrf.mxu0
      %1943 = vmatprep.mubr.bf16.mxu0 0
      %1944 = vmatmul.mubr.bf16.gmra.mxu0 %v1269
      %v1945 = vpop.f32.mrf.mxu0
      %v1946 = vadd.f32 %v445, %v1945
      %v1947 = vpop.f32.mrf.mxu0
      %v1948 = vpop.f32.mrf.mxu0
      %v1949 = vadd.f32 %v445, %v1948
      %v1950 = vpop.f32.mrf.mxu0
      %1951 = vmatprep.mubr.bf16.mxu0 0
      %1952 = vmatmul.mubr.bf16.gmra.mxu0 %v1272
      %v1953 = vpop.f32.mrf.mxu0
      %v1954 = vadd.f32 %v445, %v1953
      %v1955 = vpop.f32.mrf.mxu0
      %v1956 = vpop.f32.mrf.mxu0
      %v1957 = vadd.f32 %v445, %v1956
      %v1958 = vpop.f32.mrf.mxu0
      %1959 = vmatprep.mubr.bf16.mxu0 0
      %1960 = vmatmul.mubr.bf16.gmra.mxu0 %v1275
      %v1961 = vpop.f32.mrf.mxu0
      %v1962 = vadd.f32 %v445, %v1961
      %v1963 = vpop.f32.mrf.mxu0
      %v1964 = vpop.f32.mrf.mxu0
      %v1965 = vadd.f32 %v445, %v1964
      %v1966 = vpop.f32.mrf.mxu0
      %1967 = vmatprep.mubr.bf16.mxu0 0
      %1968 = vmatmul.mubr.bf16.gmra.mxu0 %v1278
      %v1969 = vpop.f32.mrf.mxu0
      %v1970 = vadd.f32 %v445, %v1969
      %v1971 = vpop.f32.mrf.mxu0
      %v1972 = vpop.f32.mrf.mxu0
      %v1973 = vadd.f32 %v445, %v1972
      %v1974 = vpop.f32.mrf.mxu0
      %1975 = vmatprep.mubr.bf16.mxu0 0
      %1976 = vmatmul.mubr.bf16.gmra.mxu0 %v1281
      %v1977 = vpop.f32.mrf.mxu0
      %v1978 = vadd.f32 %v445, %v1977
      %v1979 = vpop.f32.mrf.mxu0
      %v1980 = vpop.f32.mrf.mxu0
      %v1981 = vadd.f32 %v445, %v1980
      %v1982 = vpop.f32.mrf.mxu0
      %1983 = vmatprep.mubr.bf16.mxu0 0
      %1984 = vmatmul.mubr.bf16.gmra.mxu0 %v1284
      %v1985 = vpop.f32.mrf.mxu0
      %v1986 = vadd.f32 %v445, %v1985
      %v1987 = vpop.f32.mrf.mxu0
      %v1988 = vpop.f32.mrf.mxu0
      %v1989 = vadd.f32 %v445, %v1988
      %v1990 = vpop.f32.mrf.mxu0
      %1991 = vmatprep.mubr.bf16.mxu0 0
      %1992 = vmatmul.mubr.bf16.gmra.mxu0 %v1287
      %v1993 = vpop.f32.mrf.mxu0
      %v1994 = vadd.f32 %v445, %v1993
      %v1995 = vpop.f32.mrf.mxu0
      %v1996 = vpop.f32.mrf.mxu0
      %v1997 = vadd.f32 %v445, %v1996
      %v1998 = vpop.f32.mrf.mxu0
      %1999 = vmatprep.mubr.bf16.mxu0 0
      %2000 = vmatmul.mubr.bf16.gmra.mxu0 %v1290
      %v2001 = vpop.f32.mrf.mxu0
      %v2002 = vadd.f32 %v445, %v2001
      %v2003 = vpop.f32.mrf.mxu0
      %v2004 = vpop.f32.mrf.mxu0
      %v2005 = vadd.f32 %v445, %v2004
      %v2006 = vpop.f32.mrf.mxu0
      %2007 = vmatprep.mubr.bf16.mxu0 0
      %2008 = vmatmul.mubr.bf16.gmra.mxu0 %v1293
      %v2009 = vpop.f32.mrf.mxu0
      %v2010 = vadd.f32 %v445, %v2009
      %v2011 = vpop.f32.mrf.mxu0
      %v2012 = vpop.f32.mrf.mxu0
      %v2013 = vadd.f32 %v445, %v2012
      %v2014 = vpop.f32.mrf.mxu0
      %2015 = vmatprep.mubr.bf16.mxu0 0
      %2016 = vmatmul.mubr.bf16.gmra.mxu0 %v1296
      %v2017 = vpop.f32.mrf.mxu0
      %v2018 = vadd.f32 %v445, %v2017
      %v2019 = vpop.f32.mrf.mxu0
      %v2020 = vpop.f32.mrf.mxu0
      %v2021 = vadd.f32 %v445, %v2020
      %v2022 = vpop.f32.mrf.mxu0
      %2023 = vmatprep.mubr.bf16.mxu0 0
      %2024 = vmatmul.mubr.bf16.gmra.mxu0 %v1299
      %v2025 = vpop.f32.mrf.mxu0
      %v2026 = vadd.f32 %v445, %v2025
      %v2027 = vpop.f32.mrf.mxu0
      %v2028 = vpop.f32.mrf.mxu0
      %v2029 = vadd.f32 %v445, %v2028
      %v2030 = vpop.f32.mrf.mxu0
      %2031 = vmatprep.mubr.bf16.mxu0 0
      %2032 = vmatmul.mubr.bf16.gmra.mxu0 %v1302
      %v2033 = vpop.f32.mrf.mxu0
      %v2034 = vadd.f32 %v445, %v2033
      %v2035 = vpop.f32.mrf.mxu0
      %v2036 = vpop.f32.mrf.mxu0
      %v2037 = vadd.f32 %v445, %v2036
      %v2038 = vpop.f32.mrf.mxu0
      %2039 = vmatprep.mubr.bf16.mxu0 0
      %2040 = vmatmul.mubr.bf16.gmra.mxu0 %v1305
      %v2041 = vpop.f32.mrf.mxu0
      %v2042 = vadd.f32 %v445, %v2041
      %v2043 = vpop.f32.mrf.mxu0
      %v2044 = vpop.f32.mrf.mxu0
      %v2045 = vadd.f32 %v445, %v2044
      %v2046 = vpop.f32.mrf.mxu0
      %2047 = vmatprep.mubr.bf16.mxu0 0
      %2048 = vmatmul.mubr.bf16.gmra.mxu0 %v1308
      %v2049 = vpop.f32.mrf.mxu0
      %v2050 = vadd.f32 %v445, %v2049
      %v2051 = vpop.f32.mrf.mxu0
      %v2052 = vpop.f32.mrf.mxu0
      %v2053 = vadd.f32 %v445, %v2052
      %v2054 = vpop.f32.mrf.mxu0
      %2055 = vmatprep.mubr.bf16.mxu0 0
      %2056 = vmatmul.mubr.bf16.gmra.mxu0 %v1311
      %v2057 = vpop.f32.mrf.mxu0
      %v2058 = vadd.f32 %v445, %v2057
      %v2059 = vpop.f32.mrf.mxu0
      %v2060 = vpop.f32.mrf.mxu0
      %v2061 = vadd.f32 %v445, %v2060
      %v2062 = vpop.f32.mrf.mxu0
      %2063 = vmatprep.mubr.bf16.mxu0 0
      %2064 = vmatmul.mubr.bf16.gmra.mxu0 %v1314
      %v2065 = vpop.f32.mrf.mxu0
      %v2066 = vadd.f32 %v445, %v2065
      %v2067 = vpop.f32.mrf.mxu0
      %v2068 = vpop.f32.mrf.mxu0
      %v2069 = vadd.f32 %v445, %v2068
      %v2070 = vpop.f32.mrf.mxu0
      %2071 = vmatprep.mubr.bf16.mxu0 0
      %2072 = vmatmul.mubr.bf16.gmra.mxu0 %v1317
      %v2073 = vpop.f32.mrf.mxu0
      %v2074 = vadd.f32 %v445, %v2073
      %v2075 = vpop.f32.mrf.mxu0
      %v2076 = vpop.f32.mrf.mxu0
      %v2077 = vadd.f32 %v445, %v2076
      %v2078 = vpop.f32.mrf.mxu0
      %2079 = vmatprep.mubr.bf16.mxu0 0
      %2080 = vmatmul.mubr.bf16.gmra.mxu0 %v1320
      %v2081 = vpop.f32.mrf.mxu0
      %v2082 = vadd.f32 %v445, %v2081
      %v2083 = vpop.f32.mrf.mxu0
      %v2084 = vpop.f32.mrf.mxu0
      %v2085 = vadd.f32 %v445, %v2084
      %v2086 = vpop.f32.mrf.mxu0
      %2087 = vmatprep.mubr.bf16.mxu0 0
      %2088 = vmatmul.mubr.bf16.gmra.mxu0 %v1323
      %v2089 = vpop.f32.mrf.mxu0
      %v2090 = vadd.f32 %v445, %v2089
      %v2091 = vpop.f32.mrf.mxu0
      %v2092 = vpop.f32.mrf.mxu0
      %v2093 = vadd.f32 %v445, %v2092
      %v2094 = vpop.f32.mrf.mxu0
      %2095 = vmatprep.mubr.bf16.mxu0 0
      %2096 = vmatmul.mubr.bf16.gmra.mxu0 %v1326
      %v2097 = vpop.f32.mrf.mxu0
      %v2098 = vadd.f32 %v445, %v2097
      %v2099 = vpop.f32.mrf.mxu0
      %v2100 = vpop.f32.mrf.mxu0
      %v2101 = vadd.f32 %v445, %v2100
      %v2102 = vpop.f32.mrf.mxu0
      %2103 = vmatprep.mubr.bf16.mxu0 0
      %2104 = vmatmul.mubr.bf16.gmra.mxu0 %v1329
      %v2105 = vpop.f32.mrf.mxu0
      %v2106 = vadd.f32 %v445, %v2105
      %v2107 = vpop.f32.mrf.mxu0
      %v2108 = vpop.f32.mrf.mxu0
      %v2109 = vadd.f32 %v445, %v2108
      %v2110 = vpop.f32.mrf.mxu0
      %2111 = vmatprep.mubr.bf16.mxu0 0
      %2112 = vmatmul.mubr.bf16.gmra.mxu0 %v1332
      %v2113 = vpop.f32.mrf.mxu0
      %v2114 = vadd.f32 %v445, %v2113
      %v2115 = vpop.f32.mrf.mxu0
      %v2116 = vpop.f32.mrf.mxu0
      %v2117 = vadd.f32 %v445, %v2116
      %v2118 = vpop.f32.mrf.mxu0
      %2119 = vmatprep.mubr.bf16.mxu0 0
      %2120 = vmatmul.mubr.bf16.gmra.mxu0 %v1335
      %v2121 = vpop.f32.mrf.mxu0
      %v2122 = vadd.f32 %v445, %v2121
      %v2123 = vpop.f32.mrf.mxu0
      %v2124 = vpop.f32.mrf.mxu0
      %v2125 = vadd.f32 %v445, %v2124
      %v2126 = vpop.f32.mrf.mxu0
      %2127 = vmatprep.mubr.bf16.mxu0 0
      %2128 = vmatmul.mubr.bf16.gmra.mxu0 %v1338
      %v2129 = vpop.f32.mrf.mxu0
      %v2130 = vadd.f32 %v445, %v2129
      %v2131 = vpop.f32.mrf.mxu0
      %v2132 = vpop.f32.mrf.mxu0
      %v2133 = vadd.f32 %v445, %v2132
      %v2134 = vpop.f32.mrf.mxu0
      %2135 = vmatprep.mubr.bf16.mxu0 0
      %2136 = vmatmul.mubr.bf16.gmra.mxu0 %v1341
      %v2137 = vpop.f32.mrf.mxu0
      %v2138 = vadd.f32 %v445, %v2137
      %v2139 = vpop.f32.mrf.mxu0
      %v2140 = vpop.f32.mrf.mxu0
      %v2141 = vadd.f32 %v445, %v2140
      %v2142 = vpop.f32.mrf.mxu0
      %2143 = vmatprep.mubr.bf16.mxu0 0
      %2144 = vmatmul.mubr.bf16.gmra.mxu0 %v1344
      %v2145 = vpop.f32.mrf.mxu0
      %v2146 = vadd.f32 %v445, %v2145
      %v2147 = vpop.f32.mrf.mxu0
      %v2148 = vpop.f32.mrf.mxu0
      %v2149 = vadd.f32 %v445, %v2148
      %v2150 = vpop.f32.mrf.mxu0
      %2151 = vmatprep.mubr.bf16.mxu0 0
      %2152 = vmatmul.mubr.bf16.gmra.mxu0 %v1347
      %v2153 = vpop.f32.mrf.mxu0
      %v2154 = vadd.f32 %v445, %v2153
      %v2155 = vpop.f32.mrf.mxu0
      %v2156 = vpop.f32.mrf.mxu0
      %v2157 = vadd.f32 %v445, %v2156
      %v2158 = vpop.f32.mrf.mxu0
      %2159 = vmatprep.mubr.bf16.mxu0 0
      %2160 = vmatmul.mubr.bf16.gmra.mxu0 %v1350
      %v2161 = vpop.f32.mrf.mxu0
      %v2162 = vadd.f32 %v445, %v2161
      %v2163 = vpop.f32.mrf.mxu0
      %v2164 = vpop.f32.mrf.mxu0
      %v2165 = vadd.f32 %v445, %v2164
      %v2166 = vpop.f32.mrf.mxu0
      %2167 = vmatprep.mubr.bf16.mxu0 0
      %2168 = vmatmul.mubr.bf16.gmra.mxu0 %v1353
      %v2169 = vpop.f32.mrf.mxu0
      %v2170 = vadd.f32 %v445, %v2169
      %v2171 = vpop.f32.mrf.mxu0
      %v2172 = vpop.f32.mrf.mxu0
      %v2173 = vadd.f32 %v445, %v2172
      %v2174 = vpop.f32.mrf.mxu0
      %2175 = vmatprep.mubr.bf16.mxu0 0
      %2176 = vmatmul.mubr.bf16.gmra.mxu0 %v1356
      %v2177 = vpop.f32.mrf.mxu0
      %v2178 = vadd.f32 %v445, %v2177
      %v2179 = vpop.f32.mrf.mxu0
      %v2180 = vpop.f32.mrf.mxu0
      %v2181 = vadd.f32 %v445, %v2180
      %v2182 = vpop.f32.mrf.mxu0
      %2183 = vmatprep.mubr.bf16.mxu0 0
      %2184 = vmatmul.mubr.bf16.gmra.mxu0 %v1359
      %v2185 = vpop.f32.mrf.mxu0
      %v2186 = vadd.f32 %v445, %v2185
      %v2187 = vpop.f32.mrf.mxu0
      %v2188 = vpop.f32.mrf.mxu0
      %v2189 = vadd.f32 %v445, %v2188
      %v2190 = vpop.f32.mrf.mxu0
      %2191 = vmatprep.mubr.bf16.mxu0 0
      %2192 = vmatmul.mubr.bf16.gmra.mxu0 %v1362
      %v2193 = vpop.f32.mrf.mxu0
      %v2194 = vadd.f32 %v445, %v2193
      %v2195 = vpop.f32.mrf.mxu0
      %v2196 = vpop.f32.mrf.mxu0
      %v2197 = vadd.f32 %v445, %v2196
      %v2198 = vpop.f32.mrf.mxu0
      %2199 = vmatprep.mubr.bf16.mxu0 0
      %2200 = vmatmul.mubr.bf16.gmra.mxu0 %v1365
      %v2201 = vpop.f32.mrf.mxu0
      %v2202 = vadd.f32 %v445, %v2201
      %v2203 = vpop.f32.mrf.mxu0
      %v2204 = vpop.f32.mrf.mxu0
      %v2205 = vadd.f32 %v445, %v2204
      %v2206 = vpop.f32.mrf.mxu0
      %2207 = vmatprep.mubr.bf16.mxu0 0
      %2208 = vmatmul.mubr.bf16.gmra.mxu0 %v1368
      %v2209 = vpop.f32.mrf.mxu0
      %v2210 = vadd.f32 %v445, %v2209
      %v2211 = vpop.f32.mrf.mxu0
      %v2212 = vpop.f32.mrf.mxu0
      %v2213 = vadd.f32 %v445, %v2212
      %v2214 = vpop.f32.mrf.mxu0
      %2215 = vmatprep.mubr.bf16.mxu0 0
      %2216 = vmatmul.mubr.bf16.gmra.mxu0 %v1371
      %v2217 = vpop.f32.mrf.mxu0
      %v2218 = vadd.f32 %v445, %v2217
      %v2219 = vpop.f32.mrf.mxu0
      %v2220 = vpop.f32.mrf.mxu0
      %v2221 = vadd.f32 %v445, %v2220
      %v2222 = vpop.f32.mrf.mxu0
      %2223 = vmatprep.mubr.bf16.mxu0 0
      %2224 = vmatmul.mubr.bf16.gmra.mxu0 %v1374
      %v2225 = vpop.f32.mrf.mxu0
      %v2226 = vadd.f32 %v445, %v2225
      %v2227 = vpop.f32.mrf.mxu0
      %v2228 = vpop.f32.mrf.mxu0
      %v2229 = vadd.f32 %v445, %v2228
      %v2230 = vpop.f32.mrf.mxu0
      %2231 = vmatprep.mubr.bf16.mxu0 0
      %2232 = vmatmul.mubr.bf16.gmra.mxu0 %v1377
      %v2233 = vpop.f32.mrf.mxu0
      %v2234 = vadd.f32 %v445, %v2233
      %v2235 = vpop.f32.mrf.mxu0
      %v2236 = vpop.f32.mrf.mxu0
      %v2237 = vadd.f32 %v445, %v2236
      %v2238 = vpop.f32.mrf.mxu0
      %2239 = vmatprep.mubr.bf16.mxu0 0
      %2240 = vmatmul.mubr.bf16.gmra.mxu0 %v1380
      %v2241 = vpop.f32.mrf.mxu0
      %v2242 = vadd.f32 %v445, %v2241
      %v2243 = vpop.f32.mrf.mxu0
      %v2244 = vpop.f32.mrf.mxu0
      %v2245 = vadd.f32 %v445, %v2244
      %v2246 = vpop.f32.mrf.mxu0
      %2247 = vmatprep.mubr.bf16.mxu0 0
      %2248 = vmatmul.mubr.bf16.gmra.mxu0 %v1383
      %v2249 = vpop.f32.mrf.mxu0
      %v2250 = vadd.f32 %v445, %v2249
      %v2251 = vpop.f32.mrf.mxu0
      %v2252 = vpop.f32.mrf.mxu0
      %v2253 = vadd.f32 %v445, %v2252
      %v2254 = vpop.f32.mrf.mxu0
      %2255 = vmatprep.mubr.bf16.mxu0 0
      %2256 = vmatmul.mubr.bf16.gmra.mxu0 %v1386
      %v2257 = vpop.f32.mrf.mxu0
      %v2258 = vadd.f32 %v445, %v2257
      %v2259 = vpop.f32.mrf.mxu0
      %v2260 = vpop.f32.mrf.mxu0
      %v2261 = vadd.f32 %v445, %v2260
      %v2262 = vpop.f32.mrf.mxu0
      %2263 = vmatprep.mubr.bf16.mxu0 0
      %2264 = vmatmul.mubr.bf16.gmra.mxu0 %v1389
      %v2265 = vpop.f32.mrf.mxu0
      %v2266 = vadd.f32 %v445, %v2265
      %v2267 = vpop.f32.mrf.mxu0
      %v2268 = vpop.f32.mrf.mxu0
      %v2269 = vadd.f32 %v445, %v2268
      %v2270 = vpop.f32.mrf.mxu0
      %2271 = vmatprep.mubr.bf16.mxu0 0
      %2272 = vmatmul.mubr.bf16.gmra.mxu0 %v1392
      %v2273 = vpop.f32.mrf.mxu0
      %v2274 = vadd.f32 %v445, %v2273
      %v2275 = vpop.f32.mrf.mxu0
      %v2276 = vpop.f32.mrf.mxu0
      %v2277 = vadd.f32 %v445, %v2276
      %v2278 = vpop.f32.mrf.mxu0
      %2279 = vmatprep.mubr.bf16.mxu0 0
      %2280 = vmatmul.mubr.bf16.gmra.mxu0 %v1395
      %v2281 = vpop.f32.mrf.mxu0
      %v2282 = vadd.f32 %v445, %v2281
      %v2283 = vpop.f32.mrf.mxu0
      %v2284 = vpop.f32.mrf.mxu0
      %v2285 = vadd.f32 %v445, %v2284
      %v2286 = vpop.f32.mrf.mxu0
      %2287 = vmatprep.mubr.bf16.mxu0 0
      %2288 = vmatmul.mubr.bf16.gmra.mxu0 %v1398
      %v2289 = vpop.f32.mrf.mxu0
      %v2290 = vadd.f32 %v445, %v2289
      %v2291 = vpop.f32.mrf.mxu0
      %v2292 = vpop.f32.mrf.mxu0
      %v2293 = vadd.f32 %v445, %v2292
      %v2294 = vpop.f32.mrf.mxu0
      %2295 = vmatprep.mubr.bf16.mxu0 0
      %2296 = vmatmul.mubr.bf16.gmra.mxu0 %v1401
      %v2297 = vpop.f32.mrf.mxu0
      %v2298 = vadd.f32 %v445, %v2297
      %v2299 = vpop.f32.mrf.mxu0
      %v2300 = vpop.f32.mrf.mxu0
      %v2301 = vadd.f32 %v445, %v2300
      %v2302 = vpop.f32.mrf.mxu0
      %2303 = vmatprep.mubr.bf16.mxu0 0
      %2304 = vmatmul.mubr.bf16.gmra.mxu0 %v1404
      %v2305 = vpop.f32.mrf.mxu0
      %v2306 = vadd.f32 %v445, %v2305
      %v2307 = vpop.f32.mrf.mxu0
      %v2308 = vpop.f32.mrf.mxu0
      %v2309 = vadd.f32 %v445, %v2308
      %v2310 = vpop.f32.mrf.mxu0
      %2311 = vmatprep.mubr.bf16.mxu0 0
      %2312 = vmatmul.mubr.bf16.gmra.mxu0 %v1407
      %v2313 = vpop.f32.mrf.mxu0
      %v2314 = vadd.f32 %v445, %v2313
      %v2315 = vpop.f32.mrf.mxu0
      %v2316 = vpop.f32.mrf.mxu0
      %v2317 = vadd.f32 %v445, %v2316
      %v2318 = vpop.f32.mrf.mxu0
      %2319 = vmatprep.mubr.bf16.mxu0 0
      %2320 = vmatmul.mubr.bf16.gmra.mxu0 %v1410
      %v2321 = vpop.f32.mrf.mxu0
      %v2322 = vadd.f32 %v445, %v2321
      %v2323 = vpop.f32.mrf.mxu0
      %v2324 = vpop.f32.mrf.mxu0
      %v2325 = vadd.f32 %v445, %v2324
      %v2326 = vpop.f32.mrf.mxu0
      %2327 = vmatprep.mubr.bf16.mxu0 0
      %2328 = vmatmul.mubr.bf16.gmra.mxu0 %v1413
      %v2329 = vpop.f32.mrf.mxu0
      %v2330 = vadd.f32 %v445, %v2329
      %v2331 = vpop.f32.mrf.mxu0
      %v2332 = vpop.f32.mrf.mxu0
      %v2333 = vadd.f32 %v445, %v2332
      %v2334 = vpop.f32.mrf.mxu0
      %2335 = vmatprep.mubr.bf16.mxu0 0
      %2336 = vmatmul.mubr.bf16.gmra.mxu0 %v1416
      %v2337 = vpop.f32.mrf.mxu0
      %v2338 = vadd.f32 %v445, %v2337
      %v2339 = vpop.f32.mrf.mxu0
      %v2340 = vpop.f32.mrf.mxu0
      %v2341 = vadd.f32 %v445, %v2340
      %v2342 = vpop.f32.mrf.mxu0
      %2343 = vmatprep.mubr.bf16.mxu0 0
      %2344 = vmatmul.mubr.bf16.gmra.mxu0 %v1419
      %v2345 = vpop.f32.mrf.mxu0
      %v2346 = vadd.f32 %v445, %v2345
      %v2347 = vpop.f32.mrf.mxu0
      %v2348 = vpop.f32.mrf.mxu0
      %v2349 = vadd.f32 %v445, %v2348
      %v2350 = vpop.f32.mrf.mxu0
      %2351 = vmatprep.mubr.bf16.mxu0 0
      %2352 = vmatmul.mubr.bf16.gmra.mxu0 %v1422
      %v2353 = vpop.f32.mrf.mxu0
      %v2354 = vadd.f32 %v445, %v2353
      %v2355 = vpop.f32.mrf.mxu0
      %v2356 = vpop.f32.mrf.mxu0
      %v2357 = vadd.f32 %v445, %v2356
      %v2358 = vpop.f32.mrf.mxu0
      %2359 = vmatprep.mubr.bf16.mxu0 0
      %2360 = vmatmul.mubr.bf16.gmra.mxu0 %v1425
      %v2361 = vpop.f32.mrf.mxu0
      %v2362 = vadd.f32 %v445, %v2361
      %v2363 = vpop.f32.mrf.mxu0
      %v2364 = vpop.f32.mrf.mxu0
      %v2365 = vadd.f32 %v445, %v2364
      %v2366 = vpop.f32.mrf.mxu0
      %2367 = vmatprep.mubr.bf16.mxu0 0
      %2368 = vmatmul.mubr.bf16.gmra.mxu0 %v1428
      %v2369 = vpop.f32.mrf.mxu0
      %v2370 = vadd.f32 %v445, %v2369
      %v2371 = vpop.f32.mrf.mxu0
      %v2372 = vpop.f32.mrf.mxu0
      %v2373 = vadd.f32 %v445, %v2372
      %v2374 = vpop.f32.mrf.mxu0
      %2375 = vmatprep.mubr.bf16.mxu0 0
      %2376 = vmatmul.mubr.bf16.gmra.mxu0 %v1431
      %v2377 = vpop.f32.mrf.mxu0
      %v2378 = vadd.f32 %v445, %v2377
      %v2379 = vpop.f32.mrf.mxu0
      %v2380 = vpop.f32.mrf.mxu0
      %v2381 = vadd.f32 %v445, %v2380
      %v2382 = vpop.f32.mrf.mxu0
      %2383 = vmatprep.mubr.bf16.mxu0 0
      %2384 = vmatmul.mubr.bf16.gmra.mxu0 %v1434
      %v2385 = vpop.f32.mrf.mxu0
      %v2386 = vadd.f32 %v445, %v2385
      %v2387 = vpop.f32.mrf.mxu0
      %v2388 = vpop.f32.mrf.mxu0
      %v2389 = vadd.f32 %v445, %v2388
      %v2390 = vpop.f32.mrf.mxu0
      %2391 = vmatprep.mubr.bf16.mxu0 0
      %2392 = vmatmul.mubr.bf16.gmra.mxu0 %v1437
      %v2393 = vpop.f32.mrf.mxu0
      %v2394 = vadd.f32 %v445, %v2393
      %v2395 = vpop.f32.mrf.mxu0
      %v2396 = vpop.f32.mrf.mxu0
      %v2397 = vadd.f32 %v445, %v2396
      %v2398 = vpop.f32.mrf.mxu0
      %2399 = vmatprep.mubr.bf16.mxu0 0
      %2400 = vmatmul.mubr.bf16.gmra.mxu0 %v1440
      %v2401 = vpop.f32.mrf.mxu0
      %v2402 = vadd.f32 %v445, %v2401
      %v2403 = vpop.f32.mrf.mxu0
      %v2404 = vpop.f32.mrf.mxu0
      %v2405 = vadd.f32 %v445, %v2404
      %v2406 = vpop.f32.mrf.mxu0
      %2407 = vmatprep.mubr.bf16.mxu0 0
      %2408 = vmatmul.mubr.bf16.gmra.mxu0 %v1443
      %v2409 = vpop.f32.mrf.mxu0
      %v2410 = vadd.f32 %v445, %v2409
      %v2411 = vpop.f32.mrf.mxu0
      %v2412 = vpop.f32.mrf.mxu0
      %v2413 = vadd.f32 %v445, %v2412
      %v2414 = vpop.f32.mrf.mxu0
      %2415 = vmatprep.mubr.bf16.mxu0 0
      %2416 = vmatmul.mubr.bf16.gmra.mxu0 %v1446
      %v2417 = vpop.f32.mrf.mxu0
      %v2418 = vadd.f32 %v445, %v2417
      %v2419 = vpop.f32.mrf.mxu0
      %v2420 = vpop.f32.mrf.mxu0
      %v2421 = vadd.f32 %v445, %v2420
      %v2422 = vpop.f32.mrf.mxu0
      %2423 = vmatprep.mubr.bf16.mxu0 0
      %2424 = vmatmul.mubr.bf16.gmra.mxu0 %v1449
      %v2425 = vpop.f32.mrf.mxu0
      %v2426 = vadd.f32 %v445, %v2425
      %v2427 = vpop.f32.mrf.mxu0
      %v2428 = vpop.f32.mrf.mxu0
      %v2429 = vadd.f32 %v445, %v2428
      %v2430 = vpop.f32.mrf.mxu0
      %2431 = vmatprep.mubr.bf16.mxu0 0
      %2432 = vmatmul.mubr.bf16.gmra.mxu0 %v1452
      %v2433 = vpop.f32.mrf.mxu0
      %v2434 = vadd.f32 %v445, %v2433
      %v2435 = vpop.f32.mrf.mxu0
      %v2436 = vpop.f32.mrf.mxu0
      %v2437 = vadd.f32 %v445, %v2436
      %v2438 = vpop.f32.mrf.mxu0
      %2439 = vmatprep.mubr.bf16.mxu0 0
      %2440 = vmatmul.mubr.bf16.gmra.mxu0 %v1455
      %v2441 = vpop.f32.mrf.mxu0
      %v2442 = vadd.f32 %v445, %v2441
      %v2443 = vpop.f32.mrf.mxu0
      %v2444 = vpop.f32.mrf.mxu0
      %v2445 = vadd.f32 %v445, %v2444
      %v2446 = vpop.f32.mrf.mxu0
      %2447 = vmatprep.mubr.bf16.mxu0 0
      %2448 = vmatmul.mubr.bf16.gmra.mxu0 %v1458
      %v2449 = vpop.f32.mrf.mxu0
      %v2450 = vadd.f32 %v445, %v2449
      %v2451 = vpop.f32.mrf.mxu0
      %v2452 = vpop.f32.mrf.mxu0
      %v2453 = vadd.f32 %v445, %v2452
      %v2454 = vpop.f32.mrf.mxu0
      %2455 = vmatprep.mubr.bf16.mxu0 0
      %2456 = vmatmul.mubr.bf16.gmra.mxu0 %v1461
      %v2457 = vpop.f32.mrf.mxu0
      %v2458 = vadd.f32 %v445, %v2457
      %v2459 = vpop.f32.mrf.mxu0
      %v2460 = vpop.f32.mrf.mxu0
      %v2461 = vadd.f32 %v445, %v2460
      %v2462 = vpop.f32.mrf.mxu0
      %2463 = vmatprep.mubr.bf16.mxu0 0
      %2464 = vmatmul.mubr.bf16.gmra.mxu0 %v1464
      %v2465 = vpop.f32.mrf.mxu0
      %v2466 = vadd.f32 %v445, %v2465
      %v2467 = vpop.f32.mrf.mxu0
      %v2468 = vpop.f32.mrf.mxu0
      %v2469 = vadd.f32 %v445, %v2468
      %v2470 = vpop.f32.mrf.mxu0
      %2471 = vmatprep.mubr.bf16.mxu0 0
      %2472 = vmatmul.mubr.bf16.gmra.mxu0 %v1467
      %v2473 = vpop.f32.mrf.mxu0
      %v2474 = vadd.f32 %v445, %v2473
      %v2475 = vpop.f32.mrf.mxu0
      %v2476 = vpop.f32.mrf.mxu0
      %v2477 = vadd.f32 %v445, %v2476
      %v2478 = vpop.f32.mrf.mxu0
      %2479 = vmatprep.mubr.bf16.mxu0 0
      %2480 = vmatmul.mubr.bf16.gmra.mxu0 %v1470
      %v2481 = vpop.f32.mrf.mxu0
      %v2482 = vadd.f32 %v445, %v2481
      %v2483 = vpop.f32.mrf.mxu0
      %v2484 = vpop.f32.mrf.mxu0
      %v2485 = vadd.f32 %v445, %v2484
      %v2486 = vpop.f32.mrf.mxu0
      %2487 = vmatprep.mubr.bf16.mxu0 0
      %2488 = vmatmul.mubr.bf16.gmra.mxu0 %v1473
      %v2489 = vpop.f32.mrf.mxu0
      %v2490 = vadd.f32 %v445, %v2489
      %v2491 = vpop.f32.mrf.mxu0
      %v2492 = vpop.f32.mrf.mxu0
      %v2493 = vadd.f32 %v445, %v2492
      %v2494 = vpop.f32.mrf.mxu0
      %2495 = vmatprep.mubr.bf16.mxu0 0
      %2496 = vmatmul.mubr.bf16.gmra.mxu0 %v1476
      %v2497 = vpop.f32.mrf.mxu0
      %v2498 = vadd.f32 %v445, %v2497
      %v2499 = vpop.f32.mrf.mxu0
      %v2500 = vpop.f32.mrf.mxu0
      %v2501 = vadd.f32 %v445, %v2500
      %v2502 = vpop.f32.mrf.mxu0
      %2503 = vmatprep.mubr.bf16.mxu0 0
      %2504 = vmatmul.mubr.bf16.gmra.mxu0 %v1479
      %v2505 = vpop.f32.mrf.mxu0
      %v2506 = vadd.f32 %v445, %v2505
      %v2507 = vpop.f32.mrf.mxu0
      %v2508 = vpop.f32.mrf.mxu0
      %v2509 = vadd.f32 %v445, %v2508
      %v2510 = vpop.f32.mrf.mxu0
      %2511 = vmatprep.mubr.bf16.mxu0 0
      %2512 = vmatmul.mubr.bf16.gmra.mxu0 %v1482
      %v2513 = vpop.f32.mrf.mxu0
      %v2514 = vadd.f32 %v445, %v2513
      %v2515 = vpop.f32.mrf.mxu0
      %v2516 = vpop.f32.mrf.mxu0
      %v2517 = vadd.f32 %v445, %v2516
      %v2518 = vpop.f32.mrf.mxu0
      %2519 = vmatprep.mubr.bf16.mxu0 0
      %2520 = vmatmul.mubr.bf16.gmra.mxu0 %v1485
      %v2521 = vpop.f32.mrf.mxu0
      %v2522 = vadd.f32 %v445, %v2521
      %v2523 = vpop.f32.mrf.mxu0
      %v2524 = vpop.f32.mrf.mxu0
      %v2525 = vadd.f32 %v445, %v2524
      %v2526 = vpop.f32.mrf.mxu0
      %2527 = vmatprep.mubr.bf16.mxu0 0
      %2528 = vmatmul.mubr.bf16.gmra.mxu0 %v1488
      %v2529 = vpop.f32.mrf.mxu0
      %v2530 = vadd.f32 %v445, %v2529
      %v2531 = vpop.f32.mrf.mxu0
      %v2532 = vpop.f32.mrf.mxu0
      %v2533 = vadd.f32 %v445, %v2532
      %v2534 = vpop.f32.mrf.mxu0
      %2535 = vmatprep.mubr.bf16.mxu0 0
      %2536 = vmatmul.mubr.bf16.gmra.mxu0 %v1491
      %v2537 = vpop.f32.mrf.mxu0
      %v2538 = vadd.f32 %v445, %v2537
      %v2539 = vpop.f32.mrf.mxu0
      %v2540 = vpop.f32.mrf.mxu0
      %v2541 = vadd.f32 %v445, %v2540
      %v2542 = vpop.f32.mrf.mxu0
      %2543 = vmatprep.mubr.bf16.mxu0 0
      %2544 = vmatmul.mubr.bf16.gmra.mxu0 %v1494
      %v2545 = vpop.f32.mrf.mxu0
      %v2546 = vadd.f32 %v445, %v2545
      %v2547 = vpop.f32.mrf.mxu0
      %v2548 = vpop.f32.mrf.mxu0
      %v2549 = vadd.f32 %v445, %v2548
      %v2550 = vpop.f32.mrf.mxu0
      %2551 = vmatprep.mubr.bf16.mxu0 0
      %2552 = vmatmul.mubr.bf16.gmra.mxu0 %v1497
      %v2553 = vpop.f32.mrf.mxu0
      %v2554 = vadd.f32 %v445, %v2553
      %v2555 = vpop.f32.mrf.mxu0
      %v2556 = vpop.f32.mrf.mxu0
      %v2557 = vadd.f32 %v445, %v2556
      %v2558 = vpop.f32.mrf.mxu0
      %2559 = vdwg.mxu0
      %v2560 = vmax.f32 %v1538, 0.0
      %v2561 = vmax.f32 %v1541, 0.0
      %v2562 = vmax.f32 %v1546, 0.0
      %v2563 = vmax.f32 %v1549, 0.0
      %v2564 = vmax.f32 %v1554, 0.0
      %v2565 = vmax.f32 %v1557, 0.0
      %v2566 = vmax.f32 %v1562, 0.0
      %v2567 = vmax.f32 %v1565, 0.0
      %v2568 = vmax.f32 %v1570, 0.0
      %v2569 = vmax.f32 %v1573, 0.0
      %v2570 = vmax.f32 %v1578, 0.0
      %v2571 = vmax.f32 %v1581, 0.0
      %v2572 = vmax.f32 %v1586, 0.0
      %v2573 = vmax.f32 %v1589, 0.0
      %v2574 = vmax.f32 %v1594, 0.0
      %v2575 = vmax.f32 %v1597, 0.0
      %v2576 = vmax.f32 %v1602, 0.0
      %v2577 = vmax.f32 %v1605, 0.0
      %v2578 = vmax.f32 %v1610, 0.0
      %v2579 = vmax.f32 %v1613, 0.0
      %v2580 = vmax.f32 %v1618, 0.0
      %v2581 = vmax.f32 %v1621, 0.0
      %v2582 = vmax.f32 %v1626, 0.0
      %v2583 = vmax.f32 %v1629, 0.0
      %v2584 = vmax.f32 %v1634, 0.0
      %v2585 = vmax.f32 %v1637, 0.0
      %v2586 = vmax.f32 %v1642, 0.0
      %v2587 = vmax.f32 %v1645, 0.0
      %v2588 = vmax.f32 %v1650, 0.0
      %v2589 = vmax.f32 %v1653, 0.0
      %v2590 = vmax.f32 %v1658, 0.0
      %v2591 = vmax.f32 %v1661, 0.0
      %v2592 = vmax.f32 %v1666, 0.0
      %v2593 = vmax.f32 %v1669, 0.0
      %v2594 = vmax.f32 %v1674, 0.0
      %v2595 = vmax.f32 %v1677, 0.0
      %v2596 = vmax.f32 %v1682, 0.0
      %v2597 = vmax.f32 %v1685, 0.0
      %v2598 = vmax.f32 %v1690, 0.0
      %v2599 = vmax.f32 %v1693, 0.0
      %v2600 = vmax.f32 %v1698, 0.0
      %v2601 = vmax.f32 %v1701, 0.0
      %v2602 = vmax.f32 %v1706, 0.0
      %v2603 = vmax.f32 %v1709, 0.0
      %v2604 = vmax.f32 %v1714, 0.0
      %v2605 = vmax.f32 %v1717, 0.0
      %v2606 = vmax.f32 %v1722, 0.0
      %v2607 = vmax.f32 %v1725, 0.0
      %v2608 = vmax.f32 %v1730, 0.0
      %v2609 = vmax.f32 %v1733, 0.0
      %v2610 = vmax.f32 %v1738, 0.0
      %v2611 = vmax.f32 %v1741, 0.0
      %v2612 = vmax.f32 %v1746, 0.0
      %v2613 = vmax.f32 %v1749, 0.0
      %v2614 = vmax.f32 %v1754, 0.0
      %v2615 = vmax.f32 %v1757, 0.0
      %v2616 = vmax.f32 %v1762, 0.0
      %v2617 = vmax.f32 %v1765, 0.0
      %v2618 = vmax.f32 %v1770, 0.0
      %v2619 = vmax.f32 %v1773, 0.0
      %v2620 = vmax.f32 %v1778, 0.0
      %v2621 = vmax.f32 %v1781, 0.0
      %v2622 = vmax.f32 %v1786, 0.0
      %v2623 = vmax.f32 %v1789, 0.0
      %v2624 = vmax.f32 %v1794, 0.0
      %v2625 = vmax.f32 %v1797, 0.0
      %v2626 = vmax.f32 %v1802, 0.0
      %v2627 = vmax.f32 %v1805, 0.0
      %v2628 = vmax.f32 %v1810, 0.0
      %v2629 = vmax.f32 %v1813, 0.0
      %v2630 = vmax.f32 %v1818, 0.0
      %v2631 = vmax.f32 %v1821, 0.0
      %v2632 = vmax.f32 %v1826, 0.0
      %v2633 = vmax.f32 %v1829, 0.0
      %v2634 = vmax.f32 %v1834, 0.0
      %v2635 = vmax.f32 %v1837, 0.0
      %v2636 = vmax.f32 %v1842, 0.0
      %v2637 = vmax.f32 %v1845, 0.0
      %v2638 = vmax.f32 %v1850, 0.0
      %v2639 = vmax.f32 %v1853, 0.0
      %v2640 = vmax.f32 %v1858, 0.0
      %v2641 = vmax.f32 %v1861, 0.0
      %v2642 = vmax.f32 %v1866, 0.0
      %v2643 = vmax.f32 %v1869, 0.0
      %v2644 = vmax.f32 %v1874, 0.0
      %v2645 = vmax.f32 %v1877, 0.0
      %v2646 = vmax.f32 %v1882, 0.0
      %v2647 = vmax.f32 %v1885, 0.0
      %v2648 = vmax.f32 %v1890, 0.0
      %v2649 = vmax.f32 %v1893, 0.0
      %v2650 = vmax.f32 %v1898, 0.0
      %v2651 = vmax.f32 %v1901, 0.0
      %v2652 = vmax.f32 %v1906, 0.0
      %v2653 = vmax.f32 %v1909, 0.0
      %v2654 = vmax.f32 %v1914, 0.0
      %v2655 = vmax.f32 %v1917, 0.0
      %v2656 = vmax.f32 %v1922, 0.0
      %v2657 = vmax.f32 %v1925, 0.0
      %v2658 = vmax.f32 %v1930, 0.0
      %v2659 = vmax.f32 %v1933, 0.0
      %v2660 = vmax.f32 %v1938, 0.0
      %v2661 = vmax.f32 %v1941, 0.0
      %v2662 = vmax.f32 %v1946, 0.0
      %v2663 = vmax.f32 %v1949, 0.0
      %v2664 = vmax.f32 %v1954, 0.0
      %v2665 = vmax.f32 %v1957, 0.0
      %v2666 = vmax.f32 %v1962, 0.0
      %v2667 = vmax.f32 %v1965, 0.0
      %v2668 = vmax.f32 %v1970, 0.0
      %v2669 = vmax.f32 %v1973, 0.0
      %v2670 = vmax.f32 %v1978, 0.0
      %v2671 = vmax.f32 %v1981, 0.0
      %v2672 = vmax.f32 %v1986, 0.0
      %v2673 = vmax.f32 %v1989, 0.0
      %v2674 = vmax.f32 %v1994, 0.0
      %v2675 = vmax.f32 %v1997, 0.0
      %v2676 = vmax.f32 %v2002, 0.0
      %v2677 = vmax.f32 %v2005, 0.0
      %v2678 = vmax.f32 %v2010, 0.0
      %v2679 = vmax.f32 %v2013, 0.0
      %v2680 = vmax.f32 %v2018, 0.0
      %v2681 = vmax.f32 %v2021, 0.0
      %v2682 = vmax.f32 %v2026, 0.0
      %v2683 = vmax.f32 %v2029, 0.0
      %v2684 = vmax.f32 %v2034, 0.0
      %v2685 = vmax.f32 %v2037, 0.0
      %v2686 = vmax.f32 %v2042, 0.0
      %v2687 = vmax.f32 %v2045, 0.0
      %v2688 = vmax.f32 %v2050, 0.0
      %v2689 = vmax.f32 %v2053, 0.0
      %v2690 = vmax.f32 %v2058, 0.0
      %v2691 = vmax.f32 %v2061, 0.0
      %v2692 = vmax.f32 %v2066, 0.0
      %v2693 = vmax.f32 %v2069, 0.0
      %v2694 = vmax.f32 %v2074, 0.0
      %v2695 = vmax.f32 %v2077, 0.0
      %v2696 = vmax.f32 %v2082, 0.0
      %v2697 = vmax.f32 %v2085, 0.0
      %v2698 = vmax.f32 %v2090, 0.0
      %v2699 = vmax.f32 %v2093, 0.0
      %v2700 = vmax.f32 %v2098, 0.0
      %v2701 = vmax.f32 %v2101, 0.0
      %v2702 = vmax.f32 %v2106, 0.0
      %v2703 = vmax.f32 %v2109, 0.0
      %v2704 = vmax.f32 %v2114, 0.0
      %v2705 = vmax.f32 %v2117, 0.0
      %v2706 = vmax.f32 %v2122, 0.0
      %v2707 = vmax.f32 %v2125, 0.0
      %v2708 = vmax.f32 %v2130, 0.0
      %v2709 = vmax.f32 %v2133, 0.0
      %v2710 = vmax.f32 %v2138, 0.0
      %v2711 = vmax.f32 %v2141, 0.0
      %v2712 = vmax.f32 %v2146, 0.0
      %v2713 = vmax.f32 %v2149, 0.0
      %v2714 = vmax.f32 %v2154, 0.0
      %v2715 = vmax.f32 %v2157, 0.0
      %v2716 = vmax.f32 %v2162, 0.0
      %v2717 = vmax.f32 %v2165, 0.0
      %v2718 = vmax.f32 %v2170, 0.0
      %v2719 = vmax.f32 %v2173, 0.0
      %v2720 = vmax.f32 %v2178, 0.0
      %v2721 = vmax.f32 %v2181, 0.0
      %v2722 = vmax.f32 %v2186, 0.0
      %v2723 = vmax.f32 %v2189, 0.0
      %v2724 = vmax.f32 %v2194, 0.0
      %v2725 = vmax.f32 %v2197, 0.0
      %v2726 = vmax.f32 %v2202, 0.0
      %v2727 = vmax.f32 %v2205, 0.0
      %v2728 = vmax.f32 %v2210, 0.0
      %v2729 = vmax.f32 %v2213, 0.0
      %v2730 = vmax.f32 %v2218, 0.0
      %v2731 = vmax.f32 %v2221, 0.0
      %v2732 = vmax.f32 %v2226, 0.0
      %v2733 = vmax.f32 %v2229, 0.0
      %v2734 = vmax.f32 %v2234, 0.0
      %v2735 = vmax.f32 %v2237, 0.0
      %v2736 = vmax.f32 %v2242, 0.0
      %v2737 = vmax.f32 %v2245, 0.0
      %v2738 = vmax.f32 %v2250, 0.0
      %v2739 = vmax.f32 %v2253, 0.0
      %v2740 = vmax.f32 %v2258, 0.0
      %v2741 = vmax.f32 %v2261, 0.0
      %v2742 = vmax.f32 %v2266, 0.0
      %v2743 = vmax.f32 %v2269, 0.0
      %v2744 = vmax.f32 %v2274, 0.0
      %v2745 = vmax.f32 %v2277, 0.0
      %v2746 = vmax.f32 %v2282, 0.0
      %v2747 = vmax.f32 %v2285, 0.0
      %v2748 = vmax.f32 %v2290, 0.0
      %v2749 = vmax.f32 %v2293, 0.0
      %v2750 = vmax.f32 %v2298, 0.0
      %v2751 = vmax.f32 %v2301, 0.0
      %v2752 = vmax.f32 %v2306, 0.0
      %v2753 = vmax.f32 %v2309, 0.0
      %v2754 = vmax.f32 %v2314, 0.0
      %v2755 = vmax.f32 %v2317, 0.0
      %v2756 = vmax.f32 %v2322, 0.0
      %v2757 = vmax.f32 %v2325, 0.0
      %v2758 = vmax.f32 %v2330, 0.0
      %v2759 = vmax.f32 %v2333, 0.0
      %v2760 = vmax.f32 %v2338, 0.0
      %v2761 = vmax.f32 %v2341, 0.0
      %v2762 = vmax.f32 %v2346, 0.0
      %v2763 = vmax.f32 %v2349, 0.0
      %v2764 = vmax.f32 %v2354, 0.0
      %v2765 = vmax.f32 %v2357, 0.0
      %v2766 = vmax.f32 %v2362, 0.0
      %v2767 = vmax.f32 %v2365, 0.0
      %v2768 = vmax.f32 %v2370, 0.0
      %v2769 = vmax.f32 %v2373, 0.0
      %v2770 = vmax.f32 %v2378, 0.0
      %v2771 = vmax.f32 %v2381, 0.0
      %v2772 = vmax.f32 %v2386, 0.0
      %v2773 = vmax.f32 %v2389, 0.0
      %v2774 = vmax.f32 %v2394, 0.0
      %v2775 = vmax.f32 %v2397, 0.0
      %v2776 = vmax.f32 %v2402, 0.0
      %v2777 = vmax.f32 %v2405, 0.0
      %v2778 = vmax.f32 %v2410, 0.0
      %v2779 = vmax.f32 %v2413, 0.0
      %v2780 = vmax.f32 %v2418, 0.0
      %v2781 = vmax.f32 %v2421, 0.0
      %v2782 = vmax.f32 %v2426, 0.0
      %v2783 = vmax.f32 %v2429, 0.0
      %v2784 = vmax.f32 %v2434, 0.0
      %v2785 = vmax.f32 %v2437, 0.0
      %v2786 = vmax.f32 %v2442, 0.0
      %v2787 = vmax.f32 %v2445, 0.0
      %v2788 = vmax.f32 %v2450, 0.0
      %v2789 = vmax.f32 %v2453, 0.0
      %v2790 = vmax.f32 %v2458, 0.0
      %v2791 = vmax.f32 %v2461, 0.0
      %v2792 = vmax.f32 %v2466, 0.0
      %v2793 = vmax.f32 %v2469, 0.0
      %v2794 = vmax.f32 %v2474, 0.0
      %v2795 = vmax.f32 %v2477, 0.0
      %v2796 = vmax.f32 %v2482, 0.0
      %v2797 = vmax.f32 %v2485, 0.0
      %v2798 = vmax.f32 %v2490, 0.0
      %v2799 = vmax.f32 %v2493, 0.0
      %v2800 = vmax.f32 %v2498, 0.0
      %v2801 = vmax.f32 %v2501, 0.0
      %v2802 = vmax.f32 %v2506, 0.0
      %v2803 = vmax.f32 %v2509, 0.0
      %v2804 = vmax.f32 %v2514, 0.0
      %v2805 = vmax.f32 %v2517, 0.0
      %v2806 = vmax.f32 %v2522, 0.0
      %v2807 = vmax.f32 %v2525, 0.0
      %v2808 = vmax.f32 %v2530, 0.0
      %v2809 = vmax.f32 %v2533, 0.0
      %v2810 = vmax.f32 %v2538, 0.0
      %v2811 = vmax.f32 %v2541, 0.0
      %v2812 = vmax.f32 %v2546, 0.0
      %v2813 = vmax.f32 %v2549, 0.0
      %v2814 = vmax.f32 %v2554, 0.0
      %v2815 = vmax.f32 %v2557, 0.0
      %v2816 = vpack.c.bf16 %v2561, %v2560
      %v2817 = vpack.c.bf16 %v2563, %v2562
      %v2818 = vpack.c.bf16 %v2565, %v2564
      %v2819 = vpack.c.bf16 %v2567, %v2566
      %v2820 = vpack.c.bf16 %v2569, %v2568
      %v2821 = vpack.c.bf16 %v2571, %v2570
      %v2822 = vpack.c.bf16 %v2573, %v2572
      %v2823 = vpack.c.bf16 %v2575, %v2574
      %v2824 = vpack.c.bf16 %v2577, %v2576
      %v2825 = vpack.c.bf16 %v2579, %v2578
      %v2826 = vpack.c.bf16 %v2581, %v2580
      %v2827 = vpack.c.bf16 %v2583, %v2582
      %v2828 = vpack.c.bf16 %v2585, %v2584
      %v2829 = vpack.c.bf16 %v2587, %v2586
      %v2830 = vpack.c.bf16 %v2589, %v2588
      %v2831 = vpack.c.bf16 %v2591, %v2590
      %v2832 = vpack.c.bf16 %v2593, %v2592
      %v2833 = vpack.c.bf16 %v2595, %v2594
      %v2834 = vpack.c.bf16 %v2597, %v2596
      %v2835 = vpack.c.bf16 %v2599, %v2598
      %v2836 = vpack.c.bf16 %v2601, %v2600
      %v2837 = vpack.c.bf16 %v2603, %v2602
      %v2838 = vpack.c.bf16 %v2605, %v2604
      %v2839 = vpack.c.bf16 %v2607, %v2606
      %v2840 = vpack.c.bf16 %v2609, %v2608
      %v2841 = vpack.c.bf16 %v2611, %v2610
      %v2842 = vpack.c.bf16 %v2613, %v2612
      %v2843 = vpack.c.bf16 %v2615, %v2614
      %v2844 = vpack.c.bf16 %v2617, %v2616
      %v2845 = vpack.c.bf16 %v2619, %v2618
      %v2846 = vpack.c.bf16 %v2621, %v2620
      %v2847 = vpack.c.bf16 %v2623, %v2622
      %v2848 = vpack.c.bf16 %v2625, %v2624
      %v2849 = vpack.c.bf16 %v2627, %v2626
      %v2850 = vpack.c.bf16 %v2629, %v2628
      %v2851 = vpack.c.bf16 %v2631, %v2630
      %v2852 = vpack.c.bf16 %v2633, %v2632
      %v2853 = vpack.c.bf16 %v2635, %v2634
      %v2854 = vpack.c.bf16 %v2637, %v2636
      %v2855 = vpack.c.bf16 %v2639, %v2638
      %v2856 = vpack.c.bf16 %v2641, %v2640
      %v2857 = vpack.c.bf16 %v2643, %v2642
      %v2858 = vpack.c.bf16 %v2645, %v2644
      %v2859 = vpack.c.bf16 %v2647, %v2646
      %v2860 = vpack.c.bf16 %v2649, %v2648
      %v2861 = vpack.c.bf16 %v2651, %v2650
      %v2862 = vpack.c.bf16 %v2653, %v2652
      %v2863 = vpack.c.bf16 %v2655, %v2654
      %v2864 = vpack.c.bf16 %v2657, %v2656
      %v2865 = vpack.c.bf16 %v2659, %v2658
      %v2866 = vpack.c.bf16 %v2661, %v2660
      %v2867 = vpack.c.bf16 %v2663, %v2662
      %v2868 = vpack.c.bf16 %v2665, %v2664
      %v2869 = vpack.c.bf16 %v2667, %v2666
      %v2870 = vpack.c.bf16 %v2669, %v2668
      %v2871 = vpack.c.bf16 %v2671, %v2670
      %v2872 = vpack.c.bf16 %v2673, %v2672
      %v2873 = vpack.c.bf16 %v2675, %v2674
      %v2874 = vpack.c.bf16 %v2677, %v2676
      %v2875 = vpack.c.bf16 %v2679, %v2678
      %v2876 = vpack.c.bf16 %v2681, %v2680
      %v2877 = vpack.c.bf16 %v2683, %v2682
      %v2878 = vpack.c.bf16 %v2685, %v2684
      %v2879 = vpack.c.bf16 %v2687, %v2686
      %v2880 = vpack.c.bf16 %v2689, %v2688
      %v2881 = vpack.c.bf16 %v2691, %v2690
      %v2882 = vpack.c.bf16 %v2693, %v2692
      %v2883 = vpack.c.bf16 %v2695, %v2694
      %v2884 = vpack.c.bf16 %v2697, %v2696
      %v2885 = vpack.c.bf16 %v2699, %v2698
      %v2886 = vpack.c.bf16 %v2701, %v2700
      %v2887 = vpack.c.bf16 %v2703, %v2702
      %v2888 = vpack.c.bf16 %v2705, %v2704
      %v2889 = vpack.c.bf16 %v2707, %v2706
      %v2890 = vpack.c.bf16 %v2709, %v2708
      %v2891 = vpack.c.bf16 %v2711, %v2710
      %v2892 = vpack.c.bf16 %v2713, %v2712
      %v2893 = vpack.c.bf16 %v2715, %v2714
      %v2894 = vpack.c.bf16 %v2717, %v2716
      %v2895 = vpack.c.bf16 %v2719, %v2718
      %v2896 = vpack.c.bf16 %v2721, %v2720
      %v2897 = vpack.c.bf16 %v2723, %v2722
      %v2898 = vpack.c.bf16 %v2725, %v2724
      %v2899 = vpack.c.bf16 %v2727, %v2726
      %v2900 = vpack.c.bf16 %v2729, %v2728
      %v2901 = vpack.c.bf16 %v2731, %v2730
      %v2902 = vpack.c.bf16 %v2733, %v2732
      %v2903 = vpack.c.bf16 %v2735, %v2734
      %v2904 = vpack.c.bf16 %v2737, %v2736
      %v2905 = vpack.c.bf16 %v2739, %v2738
      %v2906 = vpack.c.bf16 %v2741, %v2740
      %v2907 = vpack.c.bf16 %v2743, %v2742
      %v2908 = vpack.c.bf16 %v2745, %v2744
      %v2909 = vpack.c.bf16 %v2747, %v2746
      %v2910 = vpack.c.bf16 %v2749, %v2748
      %v2911 = vpack.c.bf16 %v2751, %v2750
      %v2912 = vpack.c.bf16 %v2753, %v2752
      %v2913 = vpack.c.bf16 %v2755, %v2754
      %v2914 = vpack.c.bf16 %v2757, %v2756
      %v2915 = vpack.c.bf16 %v2759, %v2758
      %v2916 = vpack.c.bf16 %v2761, %v2760
      %v2917 = vpack.c.bf16 %v2763, %v2762
      %v2918 = vpack.c.bf16 %v2765, %v2764
      %v2919 = vpack.c.bf16 %v2767, %v2766
      %v2920 = vpack.c.bf16 %v2769, %v2768
      %v2921 = vpack.c.bf16 %v2771, %v2770
      %v2922 = vpack.c.bf16 %v2773, %v2772
      %v2923 = vpack.c.bf16 %v2775, %v2774
      %v2924 = vpack.c.bf16 %v2777, %v2776
      %v2925 = vpack.c.bf16 %v2779, %v2778
      %v2926 = vpack.c.bf16 %v2781, %v2780
      %v2927 = vpack.c.bf16 %v2783, %v2782
      %v2928 = vpack.c.bf16 %v2785, %v2784
      %v2929 = vpack.c.bf16 %v2787, %v2786
      %v2930 = vpack.c.bf16 %v2789, %v2788
      %v2931 = vpack.c.bf16 %v2791, %v2790
      %v2932 = vpack.c.bf16 %v2793, %v2792
      %v2933 = vpack.c.bf16 %v2795, %v2794
      %v2934 = vpack.c.bf16 %v2797, %v2796
      %v2935 = vpack.c.bf16 %v2799, %v2798
      %v2936 = vpack.c.bf16 %v2801, %v2800
      %v2937 = vpack.c.bf16 %v2803, %v2802
      %v2938 = vpack.c.bf16 %v2805, %v2804
      %v2939 = vpack.c.bf16 %v2807, %v2806
      %v2940 = vpack.c.bf16 %v2809, %v2808
      %v2941 = vpack.c.bf16 %v2811, %v2810
      %v2942 = vpack.c.bf16 %v2813, %v2812
      %v2943 = vpack.c.bf16 %v2815, %v2814
      %v3072 = vunpack.c.l.b16 %v2816
      %v3073 = vunpack.c.h.b16 %v2816
      %v3074 = vunpack.c.l.b16 %v2817
      %v3075 = vunpack.c.h.b16 %v2817
      %v3076 = vunpack.c.l.b16 %v2818
      %v3077 = vunpack.c.h.b16 %v2818
      %v3078 = vunpack.c.l.b16 %v2819
      %v3079 = vunpack.c.h.b16 %v2819
      %v3080 = vunpack.c.l.b16 %v2820
      %v3081 = vunpack.c.h.b16 %v2820
      %v3082 = vunpack.c.l.b16 %v2821
      %v3083 = vunpack.c.h.b16 %v2821
      %v3084 = vunpack.c.l.b16 %v2822
      %v3085 = vunpack.c.h.b16 %v2822
      %v3086 = vunpack.c.l.b16 %v2823
      %v3087 = vunpack.c.h.b16 %v2823
      %v3088 = vunpack.c.l.b16 %v2824
      %v3089 = vunpack.c.h.b16 %v2824
      %v3090 = vunpack.c.l.b16 %v2825
      %v3091 = vunpack.c.h.b16 %v2825
      %v3092 = vunpack.c.l.b16 %v2826
      %v3093 = vunpack.c.h.b16 %v2826
      %v3094 = vunpack.c.l.b16 %v2827
      %v3095 = vunpack.c.h.b16 %v2827
      %v3096 = vunpack.c.l.b16 %v2828
      %v3097 = vunpack.c.h.b16 %v2828
      %v3098 = vunpack.c.l.b16 %v2829
      %v3099 = vunpack.c.h.b16 %v2829
      %v3100 = vunpack.c.l.b16 %v2830
      %v3101 = vunpack.c.h.b16 %v2830
      %v3102 = vunpack.c.l.b16 %v2831
      %v3103 = vunpack.c.h.b16 %v2831
      %v3104 = vunpack.c.l.b16 %v2832
      %v3105 = vunpack.c.h.b16 %v2832
      %v3106 = vunpack.c.l.b16 %v2833
      %v3107 = vunpack.c.h.b16 %v2833
      %v3108 = vunpack.c.l.b16 %v2834
      %v3109 = vunpack.c.h.b16 %v2834
      %v3110 = vunpack.c.l.b16 %v2835
      %v3111 = vunpack.c.h.b16 %v2835
      %v3112 = vunpack.c.l.b16 %v2836
      %v3113 = vunpack.c.h.b16 %v2836
      %v3114 = vunpack.c.l.b16 %v2837
      %v3115 = vunpack.c.h.b16 %v2837
      %v3116 = vunpack.c.l.b16 %v2838
      %v3117 = vunpack.c.h.b16 %v2838
      %v3118 = vunpack.c.l.b16 %v2839
      %v3119 = vunpack.c.h.b16 %v2839
      %v3120 = vunpack.c.l.b16 %v2840
      %v3121 = vunpack.c.h.b16 %v2840
      %v3122 = vunpack.c.l.b16 %v2841
      %v3123 = vunpack.c.h.b16 %v2841
      %v3124 = vunpack.c.l.b16 %v2842
      %v3125 = vunpack.c.h.b16 %v2842
      %v3126 = vunpack.c.l.b16 %v2843
      %v3127 = vunpack.c.h.b16 %v2843
      %v3128 = vunpack.c.l.b16 %v2844
      %v3129 = vunpack.c.h.b16 %v2844
      %v3130 = vunpack.c.l.b16 %v2845
      %v3131 = vunpack.c.h.b16 %v2845
      %v3132 = vunpack.c.l.b16 %v2846
      %v3133 = vunpack.c.h.b16 %v2846
      %v3134 = vunpack.c.l.b16 %v2847
      %v3135 = vunpack.c.h.b16 %v2847
      %v3136 = vunpack.c.l.b16 %v2848
      %v3137 = vunpack.c.h.b16 %v2848
      %v3138 = vunpack.c.l.b16 %v2849
      %v3139 = vunpack.c.h.b16 %v2849
      %v3140 = vunpack.c.l.b16 %v2850
      %v3141 = vunpack.c.h.b16 %v2850
      %v3142 = vunpack.c.l.b16 %v2851
      %v3143 = vunpack.c.h.b16 %v2851
      %v3144 = vunpack.c.l.b16 %v2852
      %v3145 = vunpack.c.h.b16 %v2852
      %v3146 = vunpack.c.l.b16 %v2853
      %v3147 = vunpack.c.h.b16 %v2853
      %v3148 = vunpack.c.l.b16 %v2854
      %v3149 = vunpack.c.h.b16 %v2854
      %v3150 = vunpack.c.l.b16 %v2855
      %v3151 = vunpack.c.h.b16 %v2855
      %v3152 = vunpack.c.l.b16 %v2856
      %v3153 = vunpack.c.h.b16 %v2856
      %v3154 = vunpack.c.l.b16 %v2857
      %v3155 = vunpack.c.h.b16 %v2857
      %v3156 = vunpack.c.l.b16 %v2858
      %v3157 = vunpack.c.h.b16 %v2858
      %v3158 = vunpack.c.l.b16 %v2859
      %v3159 = vunpack.c.h.b16 %v2859
      %v3160 = vunpack.c.l.b16 %v2860
      %v3161 = vunpack.c.h.b16 %v2860
      %v3162 = vunpack.c.l.b16 %v2861
      %v3163 = vunpack.c.h.b16 %v2861
      %v3164 = vunpack.c.l.b16 %v2862
      %v3165 = vunpack.c.h.b16 %v2862
      %v3166 = vunpack.c.l.b16 %v2863
      %v3167 = vunpack.c.h.b16 %v2863
      %v3168 = vunpack.c.l.b16 %v2864
      %v3169 = vunpack.c.h.b16 %v2864
      %v3170 = vunpack.c.l.b16 %v2865
      %v3171 = vunpack.c.h.b16 %v2865
      %v3172 = vunpack.c.l.b16 %v2866
      %v3173 = vunpack.c.h.b16 %v2866
      %v3174 = vunpack.c.l.b16 %v2867
      %v3175 = vunpack.c.h.b16 %v2867
      %v3176 = vunpack.c.l.b16 %v2868
      %v3177 = vunpack.c.h.b16 %v2868
      %v3178 = vunpack.c.l.b16 %v2869
      %v3179 = vunpack.c.h.b16 %v2869
      %v3180 = vunpack.c.l.b16 %v2870
      %v3181 = vunpack.c.h.b16 %v2870
      %v3182 = vunpack.c.l.b16 %v2871
      %v3183 = vunpack.c.h.b16 %v2871
      %v3184 = vunpack.c.l.b16 %v2872
      %v3185 = vunpack.c.h.b16 %v2872
      %v3186 = vunpack.c.l.b16 %v2873
      %v3187 = vunpack.c.h.b16 %v2873
      %v3188 = vunpack.c.l.b16 %v2874
      %v3189 = vunpack.c.h.b16 %v2874
      %v3190 = vunpack.c.l.b16 %v2875
      %v3191 = vunpack.c.h.b16 %v2875
      %v3192 = vunpack.c.l.b16 %v2876
      %v3193 = vunpack.c.h.b16 %v2876
      %v3194 = vunpack.c.l.b16 %v2877
      %v3195 = vunpack.c.h.b16 %v2877
      %v3196 = vunpack.c.l.b16 %v2878
      %v3197 = vunpack.c.h.b16 %v2878
      %v3198 = vunpack.c.l.b16 %v2879
      %v3199 = vunpack.c.h.b16 %v2879
      %v3200 = vunpack.c.l.b16 %v2880
      %v3201 = vunpack.c.h.b16 %v2880
      %v3202 = vunpack.c.l.b16 %v2881
      %v3203 = vunpack.c.h.b16 %v2881
      %v3204 = vunpack.c.l.b16 %v2882
      %v3205 = vunpack.c.h.b16 %v2882
      %v3206 = vunpack.c.l.b16 %v2883
      %v3207 = vunpack.c.h.b16 %v2883
      %v3208 = vunpack.c.l.b16 %v2884
      %v3209 = vunpack.c.h.b16 %v2884
      %v3210 = vunpack.c.l.b16 %v2885
      %v3211 = vunpack.c.h.b16 %v2885
      %v3212 = vunpack.c.l.b16 %v2886
      %v3213 = vunpack.c.h.b16 %v2886
      %v3214 = vunpack.c.l.b16 %v2887
      %v3215 = vunpack.c.h.b16 %v2887
      %v3216 = vunpack.c.l.b16 %v2888
      %v3217 = vunpack.c.h.b16 %v2888
      %v3218 = vunpack.c.l.b16 %v2889
      %v3219 = vunpack.c.h.b16 %v2889
      %v3220 = vunpack.c.l.b16 %v2890
      %v3221 = vunpack.c.h.b16 %v2890
      %v3222 = vunpack.c.l.b16 %v2891
      %v3223 = vunpack.c.h.b16 %v2891
      %v3224 = vunpack.c.l.b16 %v2892
      %v3225 = vunpack.c.h.b16 %v2892
      %v3226 = vunpack.c.l.b16 %v2893
      %v3227 = vunpack.c.h.b16 %v2893
      %v3228 = vunpack.c.l.b16 %v2894
      %v3229 = vunpack.c.h.b16 %v2894
      %v3230 = vunpack.c.l.b16 %v2895
      %v3231 = vunpack.c.h.b16 %v2895
      %v3232 = vunpack.c.l.b16 %v2896
      %v3233 = vunpack.c.h.b16 %v2896
      %v3234 = vunpack.c.l.b16 %v2897
      %v3235 = vunpack.c.h.b16 %v2897
      %v3236 = vunpack.c.l.b16 %v2898
      %v3237 = vunpack.c.h.b16 %v2898
      %v3238 = vunpack.c.l.b16 %v2899
      %v3239 = vunpack.c.h.b16 %v2899
      %v3240 = vunpack.c.l.b16 %v2900
      %v3241 = vunpack.c.h.b16 %v2900
      %v3242 = vunpack.c.l.b16 %v2901
      %v3243 = vunpack.c.h.b16 %v2901
      %v3244 = vunpack.c.l.b16 %v2902
      %v3245 = vunpack.c.h.b16 %v2902
      %v3246 = vunpack.c.l.b16 %v2903
      %v3247 = vunpack.c.h.b16 %v2903
      %v3248 = vunpack.c.l.b16 %v2904
      %v3249 = vunpack.c.h.b16 %v2904
      %v3250 = vunpack.c.l.b16 %v2905
      %v3251 = vunpack.c.h.b16 %v2905
      %v3252 = vunpack.c.l.b16 %v2906
      %v3253 = vunpack.c.h.b16 %v2906
      %v3254 = vunpack.c.l.b16 %v2907
      %v3255 = vunpack.c.h.b16 %v2907
      %v3256 = vunpack.c.l.b16 %v2908
      %v3257 = vunpack.c.h.b16 %v2908
      %v3258 = vunpack.c.l.b16 %v2909
      %v3259 = vunpack.c.h.b16 %v2909
      %v3260 = vunpack.c.l.b16 %v2910
      %v3261 = vunpack.c.h.b16 %v2910
      %v3262 = vunpack.c.l.b16 %v2911
      %v3263 = vunpack.c.h.b16 %v2911
      %v3264 = vunpack.c.l.b16 %v2912
      %v3265 = vunpack.c.h.b16 %v2912
      %v3266 = vunpack.c.l.b16 %v2913
      %v3267 = vunpack.c.h.b16 %v2913
      %v3268 = vunpack.c.l.b16 %v2914
      %v3269 = vunpack.c.h.b16 %v2914
      %v3270 = vunpack.c.l.b16 %v2915
      %v3271 = vunpack.c.h.b16 %v2915
      %v3272 = vunpack.c.l.b16 %v2916
      %v3273 = vunpack.c.h.b16 %v2916
      %v3274 = vunpack.c.l.b16 %v2917
      %v3275 = vunpack.c.h.b16 %v2917
      %v3276 = vunpack.c.l.b16 %v2918
      %v3277 = vunpack.c.h.b16 %v2918
      %v3278 = vunpack.c.l.b16 %v2919
      %v3279 = vunpack.c.h.b16 %v2919
      %v3280 = vunpack.c.l.b16 %v2920
      %v3281 = vunpack.c.h.b16 %v2920
      %v3282 = vunpack.c.l.b16 %v2921
      %v3283 = vunpack.c.h.b16 %v2921
      %v3284 = vunpack.c.l.b16 %v2922
      %v3285 = vunpack.c.h.b16 %v2922
      %v3286 = vunpack.c.l.b16 %v2923
      %v3287 = vunpack.c.h.b16 %v2923
      %v3288 = vunpack.c.l.b16 %v2924
      %v3289 = vunpack.c.h.b16 %v2924
      %v3290 = vunpack.c.l.b16 %v2925
      %v3291 = vunpack.c.h.b16 %v2925
      %v3292 = vunpack.c.l.b16 %v2926
      %v3293 = vunpack.c.h.b16 %v2926
      %v3294 = vunpack.c.l.b16 %v2927
      %v3295 = vunpack.c.h.b16 %v2927
      %v3296 = vunpack.c.l.b16 %v2928
      %v3297 = vunpack.c.h.b16 %v2928
      %v3298 = vunpack.c.l.b16 %v2929
      %v3299 = vunpack.c.h.b16 %v2929
      %v3300 = vunpack.c.l.b16 %v2930
      %v3301 = vunpack.c.h.b16 %v2930
      %v3302 = vunpack.c.l.b16 %v2931
      %v3303 = vunpack.c.h.b16 %v2931
      %v3304 = vunpack.c.l.b16 %v2932
      %v3305 = vunpack.c.h.b16 %v2932
      %v3306 = vunpack.c.l.b16 %v2933
      %v3307 = vunpack.c.h.b16 %v2933
      %v3308 = vunpack.c.l.b16 %v2934
      %v3309 = vunpack.c.h.b16 %v2934
      %v3310 = vunpack.c.l.b16 %v2935
      %v3311 = vunpack.c.h.b16 %v2935
      %v3312 = vunpack.c.l.b16 %v2936
      %v3313 = vunpack.c.h.b16 %v2936
      %v3314 = vunpack.c.l.b16 %v2937
      %v3315 = vunpack.c.h.b16 %v2937
      %v3316 = vunpack.c.l.b16 %v2938
      %v3317 = vunpack.c.h.b16 %v2938
      %v3318 = vunpack.c.l.b16 %v2939
      %v3319 = vunpack.c.h.b16 %v2939
      %v3320 = vunpack.c.l.b16 %v2940
      %v3321 = vunpack.c.h.b16 %v2940
      %v3322 = vunpack.c.l.b16 %v2941
      %v3323 = vunpack.c.h.b16 %v2941
      %v3324 = vunpack.c.l.b16 %v2942
      %v3325 = vunpack.c.h.b16 %v2942
      %v3326 = vunpack.c.l.b16 %v2943
      %v3327 = vunpack.c.h.b16 %v2943
      %v3328 = vpack.c.b16 %v3072, %v3072
      %v3329 = vpack.c.b16 %v3073, %v3073
      %v3330 = vpack.c.b16 %v3074, %v3074
      %v3331 = vpack.c.b16 %v3075, %v3075
      %v3332 = vpack.c.b16 %v3076, %v3076
      %v3333 = vpack.c.b16 %v3077, %v3077
      %v3334 = vpack.c.b16 %v3078, %v3078
      %v3335 = vpack.c.b16 %v3079, %v3079
      %v3336 = vpack.c.b16 %v3080, %v3080
      %v3337 = vpack.c.b16 %v3081, %v3081
      %v3338 = vpack.c.b16 %v3082, %v3082
      %v3339 = vpack.c.b16 %v3083, %v3083
      %v3340 = vpack.c.b16 %v3084, %v3084
      %v3341 = vpack.c.b16 %v3085, %v3085
      %v3342 = vpack.c.b16 %v3086, %v3086
      %v3343 = vpack.c.b16 %v3087, %v3087
      %v3344 = vpack.c.b16 %v3088, %v3088
      %v3345 = vpack.c.b16 %v3089, %v3089
      %v3346 = vpack.c.b16 %v3090, %v3090
      %v3347 = vpack.c.b16 %v3091, %v3091
      %v3348 = vpack.c.b16 %v3092, %v3092
      %v3349 = vpack.c.b16 %v3093, %v3093
      %v3350 = vpack.c.b16 %v3094, %v3094
      %v3351 = vpack.c.b16 %v3095, %v3095
      %v3352 = vpack.c.b16 %v3096, %v3096
      %v3353 = vpack.c.b16 %v3097, %v3097
      %v3354 = vpack.c.b16 %v3098, %v3098
      %v3355 = vpack.c.b16 %v3099, %v3099
      %v3356 = vpack.c.b16 %v3100, %v3100
      %v3357 = vpack.c.b16 %v3101, %v3101
      %v3358 = vpack.c.b16 %v3102, %v3102
      %v3359 = vpack.c.b16 %v3103, %v3103
      %v3360 = vpack.c.b16 %v3104, %v3104
      %v3361 = vpack.c.b16 %v3105, %v3105
      %v3362 = vpack.c.b16 %v3106, %v3106
      %v3363 = vpack.c.b16 %v3107, %v3107
      %v3364 = vpack.c.b16 %v3108, %v3108
      %v3365 = vpack.c.b16 %v3109, %v3109
      %v3366 = vpack.c.b16 %v3110, %v3110
      %v3367 = vpack.c.b16 %v3111, %v3111
      %v3368 = vpack.c.b16 %v3112, %v3112
      %v3369 = vpack.c.b16 %v3113, %v3113
      %v3370 = vpack.c.b16 %v3114, %v3114
      %v3371 = vpack.c.b16 %v3115, %v3115
      %v3372 = vpack.c.b16 %v3116, %v3116
      %v3373 = vpack.c.b16 %v3117, %v3117
      %v3374 = vpack.c.b16 %v3118, %v3118
      %v3375 = vpack.c.b16 %v3119, %v3119
      %v3376 = vpack.c.b16 %v3120, %v3120
      %v3377 = vpack.c.b16 %v3121, %v3121
      %v3378 = vpack.c.b16 %v3122, %v3122
      %v3379 = vpack.c.b16 %v3123, %v3123
      %v3380 = vpack.c.b16 %v3124, %v3124
      %v3381 = vpack.c.b16 %v3125, %v3125
      %v3382 = vpack.c.b16 %v3126, %v3126
      %v3383 = vpack.c.b16 %v3127, %v3127
      %v3384 = vpack.c.b16 %v3128, %v3128
      %v3385 = vpack.c.b16 %v3129, %v3129
      %v3386 = vpack.c.b16 %v3130, %v3130
      %v3387 = vpack.c.b16 %v3131, %v3131
      %v3388 = vpack.c.b16 %v3132, %v3132
      %v3389 = vpack.c.b16 %v3133, %v3133
      %v3390 = vpack.c.b16 %v3134, %v3134
      %v3391 = vpack.c.b16 %v3135, %v3135
      %v3392 = vpack.c.b16 %v3136, %v3136
      %v3393 = vpack.c.b16 %v3137, %v3137
      %v3394 = vpack.c.b16 %v3138, %v3138
      %v3395 = vpack.c.b16 %v3139, %v3139
      %v3396 = vpack.c.b16 %v3140, %v3140
      %v3397 = vpack.c.b16 %v3141, %v3141
      %v3398 = vpack.c.b16 %v3142, %v3142
      %v3399 = vpack.c.b16 %v3143, %v3143
      %v3400 = vpack.c.b16 %v3144, %v3144
      %v3401 = vpack.c.b16 %v3145, %v3145
      %v3402 = vpack.c.b16 %v3146, %v3146
      %v3403 = vpack.c.b16 %v3147, %v3147
      %v3404 = vpack.c.b16 %v3148, %v3148
      %v3405 = vpack.c.b16 %v3149, %v3149
      %v3406 = vpack.c.b16 %v3150, %v3150
      %v3407 = vpack.c.b16 %v3151, %v3151
      %v3408 = vpack.c.b16 %v3152, %v3152
      %v3409 = vpack.c.b16 %v3153, %v3153
      %v3410 = vpack.c.b16 %v3154, %v3154
      %v3411 = vpack.c.b16 %v3155, %v3155
      %v3412 = vpack.c.b16 %v3156, %v3156
      %v3413 = vpack.c.b16 %v3157, %v3157
      %v3414 = vpack.c.b16 %v3158, %v3158
      %v3415 = vpack.c.b16 %v3159, %v3159
      %v3416 = vpack.c.b16 %v3160, %v3160
      %v3417 = vpack.c.b16 %v3161, %v3161
      %v3418 = vpack.c.b16 %v3162, %v3162
      %v3419 = vpack.c.b16 %v3163, %v3163
      %v3420 = vpack.c.b16 %v3164, %v3164
      %v3421 = vpack.c.b16 %v3165, %v3165
      %v3422 = vpack.c.b16 %v3166, %v3166
      %v3423 = vpack.c.b16 %v3167, %v3167
      %v3424 = vpack.c.b16 %v3168, %v3168
      %v3425 = vpack.c.b16 %v3169, %v3169
      %v3426 = vpack.c.b16 %v3170, %v3170
      %v3427 = vpack.c.b16 %v3171, %v3171
      %v3428 = vpack.c.b16 %v3172, %v3172
      %v3429 = vpack.c.b16 %v3173, %v3173
      %v3430 = vpack.c.b16 %v3174, %v3174
      %v3431 = vpack.c.b16 %v3175, %v3175
      %v3432 = vpack.c.b16 %v3176, %v3176
      %v3433 = vpack.c.b16 %v3177, %v3177
      %v3434 = vpack.c.b16 %v3178, %v3178
      %v3435 = vpack.c.b16 %v3179, %v3179
      %v3436 = vpack.c.b16 %v3180, %v3180
      %v3437 = vpack.c.b16 %v3181, %v3181
      %v3438 = vpack.c.b16 %v3182, %v3182
      %v3439 = vpack.c.b16 %v3183, %v3183
      %v3440 = vpack.c.b16 %v3184, %v3184
      %v3441 = vpack.c.b16 %v3185, %v3185
      %v3442 = vpack.c.b16 %v3186, %v3186
      %v3443 = vpack.c.b16 %v3187, %v3187
      %v3444 = vpack.c.b16 %v3188, %v3188
      %v3445 = vpack.c.b16 %v3189, %v3189
      %v3446 = vpack.c.b16 %v3190, %v3190
      %v3447 = vpack.c.b16 %v3191, %v3191
      %v3448 = vpack.c.b16 %v3192, %v3192
      %v3449 = vpack.c.b16 %v3193, %v3193
      %v3450 = vpack.c.b16 %v3194, %v3194
      %v3451 = vpack.c.b16 %v3195, %v3195
      %v3452 = vpack.c.b16 %v3196, %v3196
      %v3453 = vpack.c.b16 %v3197, %v3197
      %v3454 = vpack.c.b16 %v3198, %v3198
      %v3455 = vpack.c.b16 %v3199, %v3199
      %v3456 = vpack.c.b16 %v3200, %v3200
      %v3457 = vpack.c.b16 %v3201, %v3201
      %v3458 = vpack.c.b16 %v3202, %v3202
      %v3459 = vpack.c.b16 %v3203, %v3203
      %v3460 = vpack.c.b16 %v3204, %v3204
      %v3461 = vpack.c.b16 %v3205, %v3205
      %v3462 = vpack.c.b16 %v3206, %v3206
      %v3463 = vpack.c.b16 %v3207, %v3207
      %v3464 = vpack.c.b16 %v3208, %v3208
      %v3465 = vpack.c.b16 %v3209, %v3209
      %v3466 = vpack.c.b16 %v3210, %v3210
      %v3467 = vpack.c.b16 %v3211, %v3211
      %v3468 = vpack.c.b16 %v3212, %v3212
      %v3469 = vpack.c.b16 %v3213, %v3213
      %v3470 = vpack.c.b16 %v3214, %v3214
      %v3471 = vpack.c.b16 %v3215, %v3215
      %v3472 = vpack.c.b16 %v3216, %v3216
      %v3473 = vpack.c.b16 %v3217, %v3217
      %v3474 = vpack.c.b16 %v3218, %v3218
      %v3475 = vpack.c.b16 %v3219, %v3219
      %v3476 = vpack.c.b16 %v3220, %v3220
      %v3477 = vpack.c.b16 %v3221, %v3221
      %v3478 = vpack.c.b16 %v3222, %v3222
      %v3479 = vpack.c.b16 %v3223, %v3223
      %v3480 = vpack.c.b16 %v3224, %v3224
      %v3481 = vpack.c.b16 %v3225, %v3225
      %v3482 = vpack.c.b16 %v3226, %v3226
      %v3483 = vpack.c.b16 %v3227, %v3227
      %v3484 = vpack.c.b16 %v3228, %v3228
      %v3485 = vpack.c.b16 %v3229, %v3229
      %v3486 = vpack.c.b16 %v3230, %v3230
      %v3487 = vpack.c.b16 %v3231, %v3231
      %v3488 = vpack.c.b16 %v3232, %v3232
      %v3489 = vpack.c.b16 %v3233, %v3233
      %v3490 = vpack.c.b16 %v3234, %v3234
      %v3491 = vpack.c.b16 %v3235, %v3235
      %v3492 = vpack.c.b16 %v3236, %v3236
      %v3493 = vpack.c.b16 %v3237, %v3237
      %v3494 = vpack.c.b16 %v3238, %v3238
      %v3495 = vpack.c.b16 %v3239, %v3239
      %v3496 = vpack.c.b16 %v3240, %v3240
      %v3497 = vpack.c.b16 %v3241, %v3241
      %v3498 = vpack.c.b16 %v3242, %v3242
      %v3499 = vpack.c.b16 %v3243, %v3243
      %v3500 = vpack.c.b16 %v3244, %v3244
      %v3501 = vpack.c.b16 %v3245, %v3245
      %v3502 = vpack.c.b16 %v3246, %v3246
      %v3503 = vpack.c.b16 %v3247, %v3247
      %v3504 = vpack.c.b16 %v3248, %v3248
      %v3505 = vpack.c.b16 %v3249, %v3249
      %v3506 = vpack.c.b16 %v3250, %v3250
      %v3507 = vpack.c.b16 %v3251, %v3251
      %v3508 = vpack.c.b16 %v3252, %v3252
      %v3509 = vpack.c.b16 %v3253, %v3253
      %v3510 = vpack.c.b16 %v3254, %v3254
      %v3511 = vpack.c.b16 %v3255, %v3255
      %v3512 = vpack.c.b16 %v3256, %v3256
      %v3513 = vpack.c.b16 %v3257, %v3257
      %v3514 = vpack.c.b16 %v3258, %v3258
      %v3515 = vpack.c.b16 %v3259, %v3259
      %v3516 = vpack.c.b16 %v3260, %v3260
      %v3517 = vpack.c.b16 %v3261, %v3261
      %v3518 = vpack.c.b16 %v3262, %v3262
      %v3519 = vpack.c.b16 %v3263, %v3263
      %v3520 = vpack.c.b16 %v3264, %v3264
      %v3521 = vpack.c.b16 %v3265, %v3265
      %v3522 = vpack.c.b16 %v3266, %v3266
      %v3523 = vpack.c.b16 %v3267, %v3267
      %v3524 = vpack.c.b16 %v3268, %v3268
      %v3525 = vpack.c.b16 %v3269, %v3269
      %v3526 = vpack.c.b16 %v3270, %v3270
      %v3527 = vpack.c.b16 %v3271, %v3271
      %v3528 = vpack.c.b16 %v3272, %v3272
      %v3529 = vpack.c.b16 %v3273, %v3273
      %v3530 = vpack.c.b16 %v3274, %v3274
      %v3531 = vpack.c.b16 %v3275, %v3275
      %v3532 = vpack.c.b16 %v3276, %v3276
      %v3533 = vpack.c.b16 %v3277, %v3277
      %v3534 = vpack.c.b16 %v3278, %v3278
      %v3535 = vpack.c.b16 %v3279, %v3279
      %v3536 = vpack.c.b16 %v3280, %v3280
      %v3537 = vpack.c.b16 %v3281, %v3281
      %v3538 = vpack.c.b16 %v3282, %v3282
      %v3539 = vpack.c.b16 %v3283, %v3283
      %v3540 = vpack.c.b16 %v3284, %v3284
      %v3541 = vpack.c.b16 %v3285, %v3285
      %v3542 = vpack.c.b16 %v3286, %v3286
      %v3543 = vpack.c.b16 %v3287, %v3287
      %v3544 = vpack.c.b16 %v3288, %v3288
      %v3545 = vpack.c.b16 %v3289, %v3289
      %v3546 = vpack.c.b16 %v3290, %v3290
      %v3547 = vpack.c.b16 %v3291, %v3291
      %v3548 = vpack.c.b16 %v3292, %v3292
      %v3549 = vpack.c.b16 %v3293, %v3293
      %v3550 = vpack.c.b16 %v3294, %v3294
      %v3551 = vpack.c.b16 %v3295, %v3295
      %v3552 = vpack.c.b16 %v3296, %v3296
      %v3553 = vpack.c.b16 %v3297, %v3297
      %v3554 = vpack.c.b16 %v3298, %v3298
      %v3555 = vpack.c.b16 %v3299, %v3299
      %v3556 = vpack.c.b16 %v3300, %v3300
      %v3557 = vpack.c.b16 %v3301, %v3301
      %v3558 = vpack.c.b16 %v3302, %v3302
      %v3559 = vpack.c.b16 %v3303, %v3303
      %v3560 = vpack.c.b16 %v3304, %v3304
      %v3561 = vpack.c.b16 %v3305, %v3305
      %v3562 = vpack.c.b16 %v3306, %v3306
      %v3563 = vpack.c.b16 %v3307, %v3307
      %v3564 = vpack.c.b16 %v3308, %v3308
      %v3565 = vpack.c.b16 %v3309, %v3309
      %v3566 = vpack.c.b16 %v3310, %v3310
      %v3567 = vpack.c.b16 %v3311, %v3311
      %v3568 = vpack.c.b16 %v3312, %v3312
      %v3569 = vpack.c.b16 %v3313, %v3313
      %v3570 = vpack.c.b16 %v3314, %v3314
      %v3571 = vpack.c.b16 %v3315, %v3315
      %v3572 = vpack.c.b16 %v3316, %v3316
      %v3573 = vpack.c.b16 %v3317, %v3317
      %v3574 = vpack.c.b16 %v3318, %v3318
      %v3575 = vpack.c.b16 %v3319, %v3319
      %v3576 = vpack.c.b16 %v3320, %v3320
      %v3577 = vpack.c.b16 %v3321, %v3321
      %v3578 = vpack.c.b16 %v3322, %v3322
      %v3579 = vpack.c.b16 %v3323, %v3323
      %v3580 = vpack.c.b16 %v3324, %v3324
      %v3581 = vpack.c.b16 %v3325, %v3325
      %v3582 = vpack.c.b16 %v3326, %v3326
      %v3583 = vpack.c.b16 %v3327, %v3327
      %vm3840 = vcmask 257024
      %3841 = vst.msk [vmem:[%s172] sm:$0xf] %vm3840, %v3328
      %3842 = vst.msk [vmem:[%s172 + $0x4] sm:$0xf] %vm3840, %v3329
      %3843 = vst.msk [vmem:[%s172 + $0x8] sm:$0xf] %vm3840, %v3330
      %3844 = vst.msk [vmem:[%s172 + $0xc] sm:$0xf] %vm3840, %v3331
      %3845 = vst.msk [vmem:[%s172 + $0x10] sm:$0xf] %vm3840, %v3332
      %3846 = vst.msk [vmem:[%s172 + $0x14] sm:$0xf] %vm3840, %v3333
      %3847 = vst.msk [vmem:[%s172 + $0x18] sm:$0xf] %vm3840, %v3334
      %3848 = vst.msk [vmem:[%s172 + $0x1c] sm:$0xf] %vm3840, %v3335
      %3849 = vst.msk [vmem:[%s172 + $0x20] sm:$0xf] %vm3840, %v3336
      %3850 = vst.msk [vmem:[%s172 + $0x24] sm:$0xf] %vm3840, %v3337
      %3851 = vst.msk [vmem:[%s172 + $0x28] sm:$0xf] %vm3840, %v3338
      %3852 = vst.msk [vmem:[%s172 + $0x2c] sm:$0xf] %vm3840, %v3339
      %3853 = vst.msk [vmem:[%s172 + $0x30] sm:$0xf] %vm3840, %v3340
      %3854 = vst.msk [vmem:[%s172 + $0x34] sm:$0xf] %vm3840, %v3341
      %3855 = vst.msk [vmem:[%s172 + $0x38] sm:$0xf] %vm3840, %v3342
      %3856 = vst.msk [vmem:[%s172 + $0x3c] sm:$0xf] %vm3840, %v3343
      %3857 = vst.msk [vmem:[%s172 + $0x40] sm:$0xf] %vm3840, %v3344
      %3858 = vst.msk [vmem:[%s172 + $0x44] sm:$0xf] %vm3840, %v3345
      %3859 = vst.msk [vmem:[%s172 + $0x48] sm:$0xf] %vm3840, %v3346
      %3860 = vst.msk [vmem:[%s172 + $0x4c] sm:$0xf] %vm3840, %v3347
      %3861 = vst.msk [vmem:[%s172 + $0x50] sm:$0xf] %vm3840, %v3348
      %3862 = vst.msk [vmem:[%s172 + $0x54] sm:$0xf] %vm3840, %v3349
      %3863 = vst.msk [vmem:[%s172 + $0x58] sm:$0xf] %vm3840, %v3350
      %3864 = vst.msk [vmem:[%s172 + $0x5c] sm:$0xf] %vm3840, %v3351
      %3865 = vst.msk [vmem:[%s172 + $0x60] sm:$0xf] %vm3840, %v3352
      %3866 = vst.msk [vmem:[%s172 + $0x64] sm:$0xf] %vm3840, %v3353
      %3867 = vst.msk [vmem:[%s172 + $0x68] sm:$0xf] %vm3840, %v3354
      %3868 = vst.msk [vmem:[%s172 + $0x6c] sm:$0xf] %vm3840, %v3355
      %3869 = vst.msk [vmem:[%s172 + $0x70] sm:$0xf] %vm3840, %v3356
      %3870 = vst.msk [vmem:[%s172 + $0x74] sm:$0xf] %vm3840, %v3357
      %3871 = vst.msk [vmem:[%s172 + $0x78] sm:$0xf] %vm3840, %v3358
      %3872 = vst.msk [vmem:[%s172 + $0x7c] sm:$0xf] %vm3840, %v3359
      %3873 = vst.msk [vmem:[%s172 + $0x80] sm:$0xf] %vm3840, %v3360
      %3874 = vst.msk [vmem:[%s172 + $0x84] sm:$0xf] %vm3840, %v3361
      %3875 = vst.msk [vmem:[%s172 + $0x88] sm:$0xf] %vm3840, %v3362
      %3876 = vst.msk [vmem:[%s172 + $0x8c] sm:$0xf] %vm3840, %v3363
      %3877 = vst.msk [vmem:[%s172 + $0x90] sm:$0xf] %vm3840, %v3364
      %3878 = vst.msk [vmem:[%s172 + $0x94] sm:$0xf] %vm3840, %v3365
      %3879 = vst.msk [vmem:[%s172 + $0x98] sm:$0xf] %vm3840, %v3366
      %3880 = vst.msk [vmem:[%s172 + $0x9c] sm:$0xf] %vm3840, %v3367
      %3881 = vst.msk [vmem:[%s172 + $0xa0] sm:$0xf] %vm3840, %v3368
      %3882 = vst.msk [vmem:[%s172 + $0xa4] sm:$0xf] %vm3840, %v3369
      %3883 = vst.msk [vmem:[%s172 + $0xa8] sm:$0xf] %vm3840, %v3370
      %3884 = vst.msk [vmem:[%s172 + $0xac] sm:$0xf] %vm3840, %v3371
      %3885 = vst.msk [vmem:[%s172 + $0xb0] sm:$0xf] %vm3840, %v3372
      %3886 = vst.msk [vmem:[%s172 + $0xb4] sm:$0xf] %vm3840, %v3373
      %3887 = vst.msk [vmem:[%s172 + $0xb8] sm:$0xf] %vm3840, %v3374
      %3888 = vst.msk [vmem:[%s172 + $0xbc] sm:$0xf] %vm3840, %v3375
      %3889 = vst.msk [vmem:[%s172 + $0xc0] sm:$0xf] %vm3840, %v3376
      %3890 = vst.msk [vmem:[%s172 + $0xc4] sm:$0xf] %vm3840, %v3377
      %3891 = vst.msk [vmem:[%s172 + $0xc8] sm:$0xf] %vm3840, %v3378
      %3892 = vst.msk [vmem:[%s172 + $0xcc] sm:$0xf] %vm3840, %v3379
      %3893 = vst.msk [vmem:[%s172 + $0xd0] sm:$0xf] %vm3840, %v3380
      %3894 = vst.msk [vmem:[%s172 + $0xd4] sm:$0xf] %vm3840, %v3381
      %3895 = vst.msk [vmem:[%s172 + $0xd8] sm:$0xf] %vm3840, %v3382
      %3896 = vst.msk [vmem:[%s172 + $0xdc] sm:$0xf] %vm3840, %v3383
      %3897 = vst.msk [vmem:[%s172 + $0xe0] sm:$0xf] %vm3840, %v3384
      %3898 = vst.msk [vmem:[%s172 + $0xe4] sm:$0xf] %vm3840, %v3385
      %3899 = vst.msk [vmem:[%s172 + $0xe8] sm:$0xf] %vm3840, %v3386
      %3900 = vst.msk [vmem:[%s172 + $0xec] sm:$0xf] %vm3840, %v3387
      %3901 = vst.msk [vmem:[%s172 + $0xf0] sm:$0xf] %vm3840, %v3388
      %3902 = vst.msk [vmem:[%s172 + $0xf4] sm:$0xf] %vm3840, %v3389
      %3903 = vst.msk [vmem:[%s172 + $0xf8] sm:$0xf] %vm3840, %v3390
      %3904 = vst.msk [vmem:[%s172 + $0xfc] sm:$0xf] %vm3840, %v3391
      %3905 = vst.msk [vmem:[%s172 + $0x100] sm:$0xf] %vm3840, %v3392
      %3906 = vst.msk [vmem:[%s172 + $0x104] sm:$0xf] %vm3840, %v3393
      %3907 = vst.msk [vmem:[%s172 + $0x108] sm:$0xf] %vm3840, %v3394
      %3908 = vst.msk [vmem:[%s172 + $0x10c] sm:$0xf] %vm3840, %v3395
      %3909 = vst.msk [vmem:[%s172 + $0x110] sm:$0xf] %vm3840, %v3396
      %3910 = vst.msk [vmem:[%s172 + $0x114] sm:$0xf] %vm3840, %v3397
      %3911 = vst.msk [vmem:[%s172 + $0x118] sm:$0xf] %vm3840, %v3398
      %3912 = vst.msk [vmem:[%s172 + $0x11c] sm:$0xf] %vm3840, %v3399
      %3913 = vst.msk [vmem:[%s172 + $0x120] sm:$0xf] %vm3840, %v3400
      %3914 = vst.msk [vmem:[%s172 + $0x124] sm:$0xf] %vm3840, %v3401
      %3915 = vst.msk [vmem:[%s172 + $0x128] sm:$0xf] %vm3840, %v3402
      %3916 = vst.msk [vmem:[%s172 + $0x12c] sm:$0xf] %vm3840, %v3403
      %3917 = vst.msk [vmem:[%s172 + $0x130] sm:$0xf] %vm3840, %v3404
      %3918 = vst.msk [vmem:[%s172 + $0x134] sm:$0xf] %vm3840, %v3405
      %3919 = vst.msk [vmem:[%s172 + $0x138] sm:$0xf] %vm3840, %v3406
      %3920 = vst.msk [vmem:[%s172 + $0x13c] sm:$0xf] %vm3840, %v3407
      %3921 = vst.msk [vmem:[%s172 + $0x140] sm:$0xf] %vm3840, %v3408
      %3922 = vst.msk [vmem:[%s172 + $0x144] sm:$0xf] %vm3840, %v3409
      %3923 = vst.msk [vmem:[%s172 + $0x148] sm:$0xf] %vm3840, %v3410
      %3924 = vst.msk [vmem:[%s172 + $0x14c] sm:$0xf] %vm3840, %v3411
      %3925 = vst.msk [vmem:[%s172 + $0x150] sm:$0xf] %vm3840, %v3412
      %3926 = vst.msk [vmem:[%s172 + $0x154] sm:$0xf] %vm3840, %v3413
      %3927 = vst.msk [vmem:[%s172 + $0x158] sm:$0xf] %vm3840, %v3414
      %3928 = vst.msk [vmem:[%s172 + $0x15c] sm:$0xf] %vm3840, %v3415
      %3929 = vst.msk [vmem:[%s172 + $0x160] sm:$0xf] %vm3840, %v3416
      %3930 = vst.msk [vmem:[%s172 + $0x164] sm:$0xf] %vm3840, %v3417
      %3931 = vst.msk [vmem:[%s172 + $0x168] sm:$0xf] %vm3840, %v3418
      %3932 = vst.msk [vmem:[%s172 + $0x16c] sm:$0xf] %vm3840, %v3419
      %3933 = vst.msk [vmem:[%s172 + $0x170] sm:$0xf] %vm3840, %v3420
      %3934 = vst.msk [vmem:[%s172 + $0x174] sm:$0xf] %vm3840, %v3421
      %3935 = vst.msk [vmem:[%s172 + $0x178] sm:$0xf] %vm3840, %v3422
      %3936 = vst.msk [vmem:[%s172 + $0x17c] sm:$0xf] %vm3840, %v3423
      %3937 = vst.msk [vmem:[%s172 + $0x180] sm:$0xf] %vm3840, %v3424
      %3938 = vst.msk [vmem:[%s172 + $0x184] sm:$0xf] %vm3840, %v3425
      %3939 = vst.msk [vmem:[%s172 + $0x188] sm:$0xf] %vm3840, %v3426
      %3940 = vst.msk [vmem:[%s172 + $0x18c] sm:$0xf] %vm3840, %v3427
      %3941 = vst.msk [vmem:[%s172 + $0x190] sm:$0xf] %vm3840, %v3428
      %3942 = vst.msk [vmem:[%s172 + $0x194] sm:$0xf] %vm3840, %v3429
      %3943 = vst.msk [vmem:[%s172 + $0x198] sm:$0xf] %vm3840, %v3430
      %3944 = vst.msk [vmem:[%s172 + $0x19c] sm:$0xf] %vm3840, %v3431
      %3945 = vst.msk [vmem:[%s172 + $0x1a0] sm:$0xf] %vm3840, %v3432
      %3946 = vst.msk [vmem:[%s172 + $0x1a4] sm:$0xf] %vm3840, %v3433
      %3947 = vst.msk [vmem:[%s172 + $0x1a8] sm:$0xf] %vm3840, %v3434
      %3948 = vst.msk [vmem:[%s172 + $0x1ac] sm:$0xf] %vm3840, %v3435
      %3949 = vst.msk [vmem:[%s172 + $0x1b0] sm:$0xf] %vm3840, %v3436
      %3950 = vst.msk [vmem:[%s172 + $0x1b4] sm:$0xf] %vm3840, %v3437
      %3951 = vst.msk [vmem:[%s172 + $0x1b8] sm:$0xf] %vm3840, %v3438
      %3952 = vst.msk [vmem:[%s172 + $0x1bc] sm:$0xf] %vm3840, %v3439
      %3953 = vst.msk [vmem:[%s172 + $0x1c0] sm:$0xf] %vm3840, %v3440
      %3954 = vst.msk [vmem:[%s172 + $0x1c4] sm:$0xf] %vm3840, %v3441
      %3955 = vst.msk [vmem:[%s172 + $0x1c8] sm:$0xf] %vm3840, %v3442
      %3956 = vst.msk [vmem:[%s172 + $0x1cc] sm:$0xf] %vm3840, %v3443
      %3957 = vst.msk [vmem:[%s172 + $0x1d0] sm:$0xf] %vm3840, %v3444
      %3958 = vst.msk [vmem:[%s172 + $0x1d4] sm:$0xf] %vm3840, %v3445
      %3959 = vst.msk [vmem:[%s172 + $0x1d8] sm:$0xf] %vm3840, %v3446
      %3960 = vst.msk [vmem:[%s172 + $0x1dc] sm:$0xf] %vm3840, %v3447
      %3961 = vst.msk [vmem:[%s172 + $0x1e0] sm:$0xf] %vm3840, %v3448
      %3962 = vst.msk [vmem:[%s172 + $0x1e4] sm:$0xf] %vm3840, %v3449
      %3963 = vst.msk [vmem:[%s172 + $0x1e8] sm:$0xf] %vm3840, %v3450
      %3964 = vst.msk [vmem:[%s172 + $0x1ec] sm:$0xf] %vm3840, %v3451
      %3965 = vst.msk [vmem:[%s172 + $0x1f0] sm:$0xf] %vm3840, %v3452
      %3966 = vst.msk [vmem:[%s172 + $0x1f4] sm:$0xf] %vm3840, %v3453
      %3967 = vst.msk [vmem:[%s172 + $0x1f8] sm:$0xf] %vm3840, %v3454
      %3968 = vst.msk [vmem:[%s172 + $0x1fc] sm:$0xf] %vm3840, %v3455
      %3969 = vst.msk [vmem:[%s172 + $0x200] sm:$0xf] %vm3840, %v3456
      %3970 = vst.msk [vmem:[%s172 + $0x204] sm:$0xf] %vm3840, %v3457
      %3971 = vst.msk [vmem:[%s172 + $0x208] sm:$0xf] %vm3840, %v3458
      %3972 = vst.msk [vmem:[%s172 + $0x20c] sm:$0xf] %vm3840, %v3459
      %3973 = vst.msk [vmem:[%s172 + $0x210] sm:$0xf] %vm3840, %v3460
      %3974 = vst.msk [vmem:[%s172 + $0x214] sm:$0xf] %vm3840, %v3461
      %3975 = vst.msk [vmem:[%s172 + $0x218] sm:$0xf] %vm3840, %v3462
      %3976 = vst.msk [vmem:[%s172 + $0x21c] sm:$0xf] %vm3840, %v3463
      %3977 = vst.msk [vmem:[%s172 + $0x220] sm:$0xf] %vm3840, %v3464
      %3978 = vst.msk [vmem:[%s172 + $0x224] sm:$0xf] %vm3840, %v3465
      %3979 = vst.msk [vmem:[%s172 + $0x228] sm:$0xf] %vm3840, %v3466
      %3980 = vst.msk [vmem:[%s172 + $0x22c] sm:$0xf] %vm3840, %v3467
      %3981 = vst.msk [vmem:[%s172 + $0x230] sm:$0xf] %vm3840, %v3468
      %3982 = vst.msk [vmem:[%s172 + $0x234] sm:$0xf] %vm3840, %v3469
      %3983 = vst.msk [vmem:[%s172 + $0x238] sm:$0xf] %vm3840, %v3470
      %3984 = vst.msk [vmem:[%s172 + $0x23c] sm:$0xf] %vm3840, %v3471
      %3985 = vst.msk [vmem:[%s172 + $0x240] sm:$0xf] %vm3840, %v3472
      %3986 = vst.msk [vmem:[%s172 + $0x244] sm:$0xf] %vm3840, %v3473
      %3987 = vst.msk [vmem:[%s172 + $0x248] sm:$0xf] %vm3840, %v3474
      %3988 = vst.msk [vmem:[%s172 + $0x24c] sm:$0xf] %vm3840, %v3475
      %3989 = vst.msk [vmem:[%s172 + $0x250] sm:$0xf] %vm3840, %v3476
      %3990 = vst.msk [vmem:[%s172 + $0x254] sm:$0xf] %vm3840, %v3477
      %3991 = vst.msk [vmem:[%s172 + $0x258] sm:$0xf] %vm3840, %v3478
      %3992 = vst.msk [vmem:[%s172 + $0x25c] sm:$0xf] %vm3840, %v3479
      %3993 = vst.msk [vmem:[%s172 + $0x260] sm:$0xf] %vm3840, %v3480
      %3994 = vst.msk [vmem:[%s172 + $0x264] sm:$0xf] %vm3840, %v3481
      %3995 = vst.msk [vmem:[%s172 + $0x268] sm:$0xf] %vm3840, %v3482
      %3996 = vst.msk [vmem:[%s172 + $0x26c] sm:$0xf] %vm3840, %v3483
      %3997 = vst.msk [vmem:[%s172 + $0x270] sm:$0xf] %vm3840, %v3484
      %3998 = vst.msk [vmem:[%s172 + $0x274] sm:$0xf] %vm3840, %v3485
      %3999 = vst.msk [vmem:[%s172 + $0x278] sm:$0xf] %vm3840, %v3486
      %4000 = vst.msk [vmem:[%s172 + $0x27c] sm:$0xf] %vm3840, %v3487
      %4001 = vst.msk [vmem:[%s172 + $0x280] sm:$0xf] %vm3840, %v3488
      %4002 = vst.msk [vmem:[%s172 + $0x284] sm:$0xf] %vm3840, %v3489
      %4003 = vst.msk [vmem:[%s172 + $0x288] sm:$0xf] %vm3840, %v3490
      %4004 = vst.msk [vmem:[%s172 + $0x28c] sm:$0xf] %vm3840, %v3491
      %4005 = vst.msk [vmem:[%s172 + $0x290] sm:$0xf] %vm3840, %v3492
      %4006 = vst.msk [vmem:[%s172 + $0x294] sm:$0xf] %vm3840, %v3493
      %4007 = vst.msk [vmem:[%s172 + $0x298] sm:$0xf] %vm3840, %v3494
      %4008 = vst.msk [vmem:[%s172 + $0x29c] sm:$0xf] %vm3840, %v3495
      %4009 = vst.msk [vmem:[%s172 + $0x2a0] sm:$0xf] %vm3840, %v3496
      %4010 = vst.msk [vmem:[%s172 + $0x2a4] sm:$0xf] %vm3840, %v3497
      %4011 = vst.msk [vmem:[%s172 + $0x2a8] sm:$0xf] %vm3840, %v3498
      %4012 = vst.msk [vmem:[%s172 + $0x2ac] sm:$0xf] %vm3840, %v3499
      %4013 = vst.msk [vmem:[%s172 + $0x2b0] sm:$0xf] %vm3840, %v3500
      %4014 = vst.msk [vmem:[%s172 + $0x2b4] sm:$0xf] %vm3840, %v3501
      %4015 = vst.msk [vmem:[%s172 + $0x2b8] sm:$0xf] %vm3840, %v3502
      %4016 = vst.msk [vmem:[%s172 + $0x2bc] sm:$0xf] %vm3840, %v3503
      %4017 = vst.msk [vmem:[%s172 + $0x2c0] sm:$0xf] %vm3840, %v3504
      %4018 = vst.msk [vmem:[%s172 + $0x2c4] sm:$0xf] %vm3840, %v3505
      %4019 = vst.msk [vmem:[%s172 + $0x2c8] sm:$0xf] %vm3840, %v3506
      %4020 = vst.msk [vmem:[%s172 + $0x2cc] sm:$0xf] %vm3840, %v3507
      %4021 = vst.msk [vmem:[%s172 + $0x2d0] sm:$0xf] %vm3840, %v3508
      %4022 = vst.msk [vmem:[%s172 + $0x2d4] sm:$0xf] %vm3840, %v3509
      %4023 = vst.msk [vmem:[%s172 + $0x2d8] sm:$0xf] %vm3840, %v3510
      %4024 = vst.msk [vmem:[%s172 + $0x2dc] sm:$0xf] %vm3840, %v3511
      %4025 = vst.msk [vmem:[%s172 + $0x2e0] sm:$0xf] %vm3840, %v3512
      %4026 = vst.msk [vmem:[%s172 + $0x2e4] sm:$0xf] %vm3840, %v3513
      %4027 = vst.msk [vmem:[%s172 + $0x2e8] sm:$0xf] %vm3840, %v3514
      %4028 = vst.msk [vmem:[%s172 + $0x2ec] sm:$0xf] %vm3840, %v3515
      %4029 = vst.msk [vmem:[%s172 + $0x2f0] sm:$0xf] %vm3840, %v3516
      %4030 = vst.msk [vmem:[%s172 + $0x2f4] sm:$0xf] %vm3840, %v3517
      %4031 = vst.msk [vmem:[%s172 + $0x2f8] sm:$0xf] %vm3840, %v3518
      %4032 = vst.msk [vmem:[%s172 + $0x2fc] sm:$0xf] %vm3840, %v3519
      %4033 = vst.msk [vmem:[%s172 + $0x300] sm:$0xf] %vm3840, %v3520
      %4034 = vst.msk [vmem:[%s172 + $0x304] sm:$0xf] %vm3840, %v3521
      %4035 = vst.msk [vmem:[%s172 + $0x308] sm:$0xf] %vm3840, %v3522
      %4036 = vst.msk [vmem:[%s172 + $0x30c] sm:$0xf] %vm3840, %v3523
      %4037 = vst.msk [vmem:[%s172 + $0x310] sm:$0xf] %vm3840, %v3524
      %4038 = vst.msk [vmem:[%s172 + $0x314] sm:$0xf] %vm3840, %v3525
      %4039 = vst.msk [vmem:[%s172 + $0x318] sm:$0xf] %vm3840, %v3526
      %4040 = vst.msk [vmem:[%s172 + $0x31c] sm:$0xf] %vm3840, %v3527
      %4041 = vst.msk [vmem:[%s172 + $0x320] sm:$0xf] %vm3840, %v3528
      %4042 = vst.msk [vmem:[%s172 + $0x324] sm:$0xf] %vm3840, %v3529
      %4043 = vst.msk [vmem:[%s172 + $0x328] sm:$0xf] %vm3840, %v3530
      %4044 = vst.msk [vmem:[%s172 + $0x32c] sm:$0xf] %vm3840, %v3531
      %4045 = vst.msk [vmem:[%s172 + $0x330] sm:$0xf] %vm3840, %v3532
      %4046 = vst.msk [vmem:[%s172 + $0x334] sm:$0xf] %vm3840, %v3533
      %4047 = vst.msk [vmem:[%s172 + $0x338] sm:$0xf] %vm3840, %v3534
      %4048 = vst.msk [vmem:[%s172 + $0x33c] sm:$0xf] %vm3840, %v3535
      %4049 = vst.msk [vmem:[%s172 + $0x340] sm:$0xf] %vm3840, %v3536
      %4050 = vst.msk [vmem:[%s172 + $0x344] sm:$0xf] %vm3840, %v3537
      %4051 = vst.msk [vmem:[%s172 + $0x348] sm:$0xf] %vm3840, %v3538
      %4052 = vst.msk [vmem:[%s172 + $0x34c] sm:$0xf] %vm3840, %v3539
      %4053 = vst.msk [vmem:[%s172 + $0x350] sm:$0xf] %vm3840, %v3540
      %4054 = vst.msk [vmem:[%s172 + $0x354] sm:$0xf] %vm3840, %v3541
      %4055 = vst.msk [vmem:[%s172 + $0x358] sm:$0xf] %vm3840, %v3542
      %4056 = vst.msk [vmem:[%s172 + $0x35c] sm:$0xf] %vm3840, %v3543
      %4057 = vst.msk [vmem:[%s172 + $0x360] sm:$0xf] %vm3840, %v3544
      %4058 = vst.msk [vmem:[%s172 + $0x364] sm:$0xf] %vm3840, %v3545
      %4059 = vst.msk [vmem:[%s172 + $0x368] sm:$0xf] %vm3840, %v3546
      %4060 = vst.msk [vmem:[%s172 + $0x36c] sm:$0xf] %vm3840, %v3547
      %4061 = vst.msk [vmem:[%s172 + $0x370] sm:$0xf] %vm3840, %v3548
      %4062 = vst.msk [vmem:[%s172 + $0x374] sm:$0xf] %vm3840, %v3549
      %4063 = vst.msk [vmem:[%s172 + $0x378] sm:$0xf] %vm3840, %v3550
      %4064 = vst.msk [vmem:[%s172 + $0x37c] sm:$0xf] %vm3840, %v3551
      %4065 = vst.msk [vmem:[%s172 + $0x380] sm:$0xf] %vm3840, %v3552
      %4066 = vst.msk [vmem:[%s172 + $0x384] sm:$0xf] %vm3840, %v3553
      %4067 = vst.msk [vmem:[%s172 + $0x388] sm:$0xf] %vm3840, %v3554
      %4068 = vst.msk [vmem:[%s172 + $0x38c] sm:$0xf] %vm3840, %v3555
      %4069 = vst.msk [vmem:[%s172 + $0x390] sm:$0xf] %vm3840, %v3556
      %4070 = vst.msk [vmem:[%s172 + $0x394] sm:$0xf] %vm3840, %v3557
      %4071 = vst.msk [vmem:[%s172 + $0x398] sm:$0xf] %vm3840, %v3558
      %4072 = vst.msk [vmem:[%s172 + $0x39c] sm:$0xf] %vm3840, %v3559
      %4073 = vst.msk [vmem:[%s172 + $0x3a0] sm:$0xf] %vm3840, %v3560
      %4074 = vst.msk [vmem:[%s172 + $0x3a4] sm:$0xf] %vm3840, %v3561
      %4075 = vst.msk [vmem:[%s172 + $0x3a8] sm:$0xf] %vm3840, %v3562
      %4076 = vst.msk [vmem:[%s172 + $0x3ac] sm:$0xf] %vm3840, %v3563
      %4077 = vst.msk [vmem:[%s172 + $0x3b0] sm:$0xf] %vm3840, %v3564
      %4078 = vst.msk [vmem:[%s172 + $0x3b4] sm:$0xf] %vm3840, %v3565
      %4079 = vst.msk [vmem:[%s172 + $0x3b8] sm:$0xf] %vm3840, %v3566
      %4080 = vst.msk [vmem:[%s172 + $0x3bc] sm:$0xf] %vm3840, %v3567
      %4081 = vst.msk [vmem:[%s172 + $0x3c0] sm:$0xf] %vm3840, %v3568
      %4082 = vst.msk [vmem:[%s172 + $0x3c4] sm:$0xf] %vm3840, %v3569
      %4083 = vst.msk [vmem:[%s172 + $0x3c8] sm:$0xf] %vm3840, %v3570
      %4084 = vst.msk [vmem:[%s172 + $0x3cc] sm:$0xf] %vm3840, %v3571
      %4085 = vst.msk [vmem:[%s172 + $0x3d0] sm:$0xf] %vm3840, %v3572
      %4086 = vst.msk [vmem:[%s172 + $0x3d4] sm:$0xf] %vm3840, %v3573
      %4087 = vst.msk [vmem:[%s172 + $0x3d8] sm:$0xf] %vm3840, %v3574
      %4088 = vst.msk [vmem:[%s172 + $0x3dc] sm:$0xf] %vm3840, %v3575
      %4089 = vst.msk [vmem:[%s172 + $0x3e0] sm:$0xf] %vm3840, %v3576
      %4090 = vst.msk [vmem:[%s172 + $0x3e4] sm:$0xf] %vm3840, %v3577
      %4091 = vst.msk [vmem:[%s172 + $0x3e8] sm:$0xf] %vm3840, %v3578
      %4092 = vst.msk [vmem:[%s172 + $0x3ec] sm:$0xf] %vm3840, %v3579
      %4093 = vst.msk [vmem:[%s172 + $0x3f0] sm:$0xf] %vm3840, %v3580
      %4094 = vst.msk [vmem:[%s172 + $0x3f4] sm:$0xf] %vm3840, %v3581
      %4095 = vst.msk [vmem:[%s172 + $0x3f8] sm:$0xf] %vm3840, %v3582
      %4096 = vst.msk [vmem:[%s172 + $0x3fc] sm:$0xf] %vm3840, %v3583
      %s4097 = smul.u32 256, %s14
      %p4098 = scmp.lt.s32.totalorder %s4097, 1023
      %s4099 = scalar_select %p4098, %s4097, 1023
      %s4100 = smul.addr %s4099, 4
      %s4101 = scalar_lea.vmem %s3, %s4100
      // Predicated region
      $region33: #{_lambda_.4} parent=31 // pred_check
        %p4102 = pneg %p100
      $region34: #{_lambda_.4} parent=31 // pred_check_branch
        %4104 = sbr.rel (%p4102) target = $region36
      $region35: #{_lambda_.4} parent=31 // pred_region
        %s4105 = smul.u32 256, %s14
      $region36: #{_lambda_.4} parent=31 // pred_fallthru
        _
    $region32: #{_lambda_.4} parent=5 // pred_fallthru
      _
    %p4106 = scmp.le.s32.totalorder 2, %s9
    // Predicated region
    $region37: #{_lambda_.4} parent=5 // pred_check
      %p4107 = pneg %p4106
    $region38: #{_lambda_.4} parent=5 // pred_check_branch
      %4109 = sbr.rel (%p4107) target = $region40
    $region39: #{_lambda_.4} parent=5 // pred_region
      %s4110 = ssub.s32 %s9, 2
      // Predicated region
      $region41: #{_lambda_.4} parent=39 // pred_check
        %p4111 = pneg %p106
      $region42: #{_lambda_.4} parent=39 // pred_check_branch
        %4113 = sbr.rel (%p4111) target = $region44
      $region43: #{_lambda_.4} parent=39 // pred_region
        %s4114 = smul.u32 256, %s15
        %p4115 = scmp.lt.s32.totalorder %s4114, 1023
        %s4116 = scalar_select %p4115, %s4114, 1023
        %s4117 = smul.addr %s4116, 4
        %s4118 = scalar_lea.vmem %s3, %s4117
      $region44: #{_lambda_.4} parent=39 // pred_fallthru
        _
    $region40: #{_lambda_.4} parent=5 // pred_fallthru
      _
  $region6: #{_lambda_.4} parent=0 // loop_footer
    %s13 = sadd.s32 1, %s9
  $region7: #{_lambda_.4} parent=0 // loop_footer_branch
    %8 = sbr.rel target = $region3
  $region8: #{_lambda_.4} parent=0 // loop_exit
    _

// kernel: _lambda_.5
$region0: #{_lambda_.5}
  #allocation0 [shape = 'u32[]', space=smem, size = 0x4, offset = 0x4, fixed_abs, tag = 'smem constant byte address 0x4 - core index']
  #allocation1 [shape = 'u32[144,128]{1,0:T(1,128)}', space=vmem, size = 0x12000, scoped, tag = 'internal scratch']
  %s0 = inlined_call_operand.vmem [shape: bf16[2048,288], index: 0, kind: input, shape index: {}]
  %s1 = inlined_call_operand.vmem [shape: bf16[288,64], index: 1, kind: input, shape index: {}]
  %s2 = inlined_call_operand.vmem [shape: f32[1,64], index: 2, kind: input, shape index: {}]
  %s3 = inlined_call_operand.vmem [shape: bf16[2048,64], index: 3, kind: output, shape index: {}]
  %s4 = sld [smem:[#allocation0]]
  $region45: #{_lambda_.5} parent=0
    _
  %s6 = ssub.s32 1, %s4
  %s7 = scalar_select 0, %s6, %s4
  loop: start=0, step=1, limit=4
  $region2: #{_lambda_.5} parent=0 // loop_pre_header
    _
  $region3: #{_lambda_.5} parent=0 // loop_header
    %s9 = sphi 0, %s13
    %p10 = scmp.ge.s32.totalorder %s9, 4
    %s19 = sphi 0, %s21
    %s22 = sphi 0, %s19
    %s23 = sphi 0, %s22
    %s39 = sphi 0, %s23
    %s43 = sphi 0, %s43
    %s45 = sphi 0, %s43
    %s46 = sphi 0, %s45
    %s60 = sphi 0, %s46
    %s64 = sphi 0, %s64
    %s66 = sphi 0, %s64
    %s67 = sphi 0, %s66
    %s81 = sphi 0, %s67
    %s87 = sphi 0, %s89
    %s90 = sphi 0, %s87
    %s91 = sphi 0, %s90
    %s107 = sphi 0, %s91
  $region4: #{_lambda_.5} parent=0 // loop_header_branch
    %12 = sbr.rel (%p10) target = $region8
  $region5: #{_lambda_.5} parent=0 // loop_body
    %s14 = ssub.s32 %s9, 1
    %s15 = ssub.s32 %s9, 2
    %s16 = sadd.s32 %s9, 1
    %s17 = ssub.s32 %s9, %s16
    %p18 = scmp.eq.s32.totalorder %s17, 0
    %s20 = sadd.s32 %s19, 1
    %s21 = scalar_select %p18, %s19, %s20
    %p24 = pneg %p18
    %p25 = scmp.eq.s32.totalorder %s9, 1
    %p26 = por %p24, %p25
    %p27 = scmp.ne.s32.totalorder %s19, %s22
    %p28 = scmp.eq.s32.totalorder %s9, 0
    %p29 = por %p27, %p28
    %p30 = scmp.ne.s32.totalorder %s19, %s22
    %p31 = scmp.eq.s32.totalorder %s14, 1
    %p32 = por %p30, %p31
    %p33 = scmp.ne.s32.totalorder %s22, %s23
    %p34 = scmp.eq.s32.totalorder %s14, 0
    %p35 = por %p33, %p34
    %p36 = scmp.ne.s32.totalorder %s22, %s23
    %p37 = scmp.eq.s32.totalorder %s15, 1
    %p38 = por %p36, %p37
    %p40 = scmp.ne.s32.totalorder %s23, %s39
    %p41 = scmp.eq.s32.totalorder %s15, 0
    %p42 = por %p40, %p41
    %s44 = sadd.s32 %s43, 1
    %p47 = scmp.eq.s32.totalorder %s9, 1
    %p48 = scmp.ne.s32.totalorder %s43, %s45
    %p49 = scmp.eq.s32.totalorder %s9, 0
    %p50 = por %p48, %p49
    %p51 = scmp.ne.s32.totalorder %s43, %s45
    %p52 = scmp.eq.s32.totalorder %s14, 1
    %p53 = por %p51, %p52
    %p54 = scmp.ne.s32.totalorder %s45, %s46
    %p55 = scmp.eq.s32.totalorder %s14, 0
    %p56 = por %p54, %p55
    %p57 = scmp.ne.s32.totalorder %s45, %s46
    %p58 = scmp.eq.s32.totalorder %s15, 1
    %p59 = por %p57, %p58
    %p61 = scmp.ne.s32.totalorder %s46, %s60
    %p62 = scmp.eq.s32.totalorder %s15, 0
    %p63 = por %p61, %p62
    %s65 = sadd.s32 %s64, 1
    %p68 = scmp.eq.s32.totalorder %s9, 1
    %p69 = scmp.ne.s32.totalorder %s64, %s66
    %p70 = scmp.eq.s32.totalorder %s9, 0
    %p71 = por %p69, %p70
    %p72 = scmp.ne.s32.totalorder %s64, %s66
    %p73 = scmp.eq.s32.totalorder %s14, 1
    %p74 = por %p72, %p73
    %p75 = scmp.ne.s32.totalorder %s66, %s67
    %p76 = scmp.eq.s32.totalorder %s14, 0
    %p77 = por %p75, %p76
    %p78 = scmp.ne.s32.totalorder %s66, %s67
    %p79 = scmp.eq.s32.totalorder %s15, 1
    %p80 = por %p78, %p79
    %p82 = scmp.ne.s32.totalorder %s67, %s81
    %p83 = scmp.eq.s32.totalorder %s15, 0
    %p84 = por %p82, %p83
    %s85 = ssub.s32 %s9, %s16
    %p86 = scmp.eq.s32.totalorder %s85, 0
    %s88 = sadd.s32 %s87, 1
    %s89 = scalar_select %p86, %s87, %s88
    %p92 = pneg %p86
    %p93 = scmp.eq.s32.totalorder %s9, 1
    %p94 = por %p92, %p93
    %p95 = scmp.ne.s32.totalorder %s87, %s90
    %p96 = scmp.eq.s32.totalorder %s9, 0
    %p97 = por %p95, %p96
    %p98 = scmp.ne.s32.totalorder %s87, %s90
    %p99 = scmp.eq.s32.totalorder %s14, 1
    %p100 = por %p98, %p99
    %p101 = scmp.ne.s32.totalorder %s90, %s91
    %p102 = scmp.eq.s32.totalorder %s14, 0
    %p103 = por %p101, %p102
    %p104 = scmp.ne.s32.totalorder %s90, %s91
    %p105 = scmp.eq.s32.totalorder %s15, 1
    %p106 = por %p104, %p105
    %p108 = scmp.ne.s32.totalorder %s91, %s107
    %p109 = scmp.eq.s32.totalorder %s15, 0
    %p110 = por %p108, %p109
    %p111 = scmp.le.s32.totalorder 1, %s9
    %p112 = scmp.lt.s32.totalorder %s9, 3
    %p113 = pnand %p111, %p112
    %p114 = pneg %p113
    // Predicated region
    $region9: #{_lambda_.5} parent=5 // pred_check
      _
    $region10: #{_lambda_.5} parent=5 // pred_check_branch
      %116 = sbr.rel (%p113) target = $region12
    $region11: #{_lambda_.5} parent=5 // pred_region
      %s117 = ssub.s32 %s9, 1
      // Predicated region
      $region13: #{_lambda_.5} parent=11 // pred_check
        %p118 = pneg %p56
      $region14: #{_lambda_.5} parent=11 // pred_check_branch
        %120 = sbr.rel (%p118) target = $region16
      $region15: #{_lambda_.5} parent=11 // pred_region
        _
      $region16: #{_lambda_.5} parent=11 // pred_fallthru
        _
      // Predicated region
      $region17: #{_lambda_.5} parent=11 // pred_check
        %p121 = pneg %p77
      $region18: #{_lambda_.5} parent=11 // pred_check_branch
        %123 = sbr.rel (%p121) target = $region20
      $region19: #{_lambda_.5} parent=11 // pred_region
        _
      $region20: #{_lambda_.5} parent=11 // pred_fallthru
        _
    $region12: #{_lambda_.5} parent=5 // pred_fallthru
      _
    %p124 = scmp.lt.s32.totalorder %s9, 2
    // Predicated region
    $region21: #{_lambda_.5} parent=5 // pred_check
      %p125 = pneg %p124
    $region22: #{_lambda_.5} parent=5 // pred_check_branch
      %127 = sbr.rel (%p125) target = $region24
    $region23: #{_lambda_.5} parent=5 // pred_region
      // Predicated region
      $region25: #{_lambda_.5} parent=23 // pred_check
        %p128 = pneg %p29
      $region26: #{_lambda_.5} parent=23 // pred_check_branch
        %130 = sbr.rel (%p128) target = $region28
      $region27: #{_lambda_.5} parent=23 // pred_region
        %s131 = smul.u32 128, %s9
        %p132 = scmp.lt.s32.totalorder %s131, 255
        %s133 = scalar_select %p132, %s131, 255
        %s134 = smul.addr %s133, 3
        %s135 = smul.addr %s134, 4
        %s136 = scalar_lea.vmem %s0, %s135
        %s137 = smul.u32 128, %s9
      $region28: #{_lambda_.5} parent=23 // pred_fallthru
        _
    $region24: #{_lambda_.5} parent=5 // pred_fallthru
      _
    %p138 = scmp.le.s32.totalorder 1, %s9
    %p139 = scmp.lt.s32.totalorder %s9, 3
    %p140 = pnand %p138, %p139
    %p141 = pneg %p140
    // Predicated region
    $region29: #{_lambda_.5} parent=5 // pred_check
      _
    $region30: #{_lambda_.5} parent=5 // pred_check_branch
      %143 = sbr.rel (%p140) target = $region32
    $region31: #{_lambda_.5} parent=5 // pred_region
      %s144 = ssub.s32 %s9, 1
      %s145 = smul.u32 128, %s14
      %p146 = scmp.lt.s32.totalorder %s145, 255
      %s147 = scalar_select %p146, %s145, 255
      %s148 = smul.addr %s147, 3
      %s149 = smul.addr %s148, 4
      %s150 = scalar_lea.vmem %s0, %s149
      %p151 = pneg %p35
      %p152 = pneg %p32
      %p153 = pneg %p56
      %p154 = pneg %p53
      %p155 = pneg %p77
      %p156 = pneg %p74
      %p157 = pneg %p103
      %p158 = pneg %p100
      %s159 = smul.u32 128, %s14
      %p160 = scmp.lt.s32.totalorder %s159, 255
      %s161 = scalar_select %p160, %s159, 255
      %s162 = smul.addr %s161, 4
      %s163 = scalar_lea.vmem %s3, %s162
      %s164 = smul.u32 128, %s14
      %p165 = scmp.lt.s32.totalorder %s164, 255
      %s166 = scalar_select %p165, %s164, 255
      %s167 = smul.addr %s166, 3
      %s168 = smul.addr %s167, 4
      %s169 = scalar_lea.vmem %s0, %s168
      %s170 = smul.u32 128, %s14
      %s171 = smul.u32 128, %s14
      %p172 = scmp.lt.s32.totalorder %s171, 255
      %s173 = scalar_select %p172, %s171, 255
      %s174 = smul.addr %s173, 4
      %s175 = scalar_lea.vmem %s3, %s174
      %s176 = smul.u32 128, %s14
      %v178 = vld [vmem:[%s169] sm:$0xff]
      %v179 = vld [vmem:[%s169 + $0x8] sm:$0xf]
      %v180 = vld [vmem:[%s169 + $0xc] sm:$0xff]
      %v181 = vld [vmem:[%s169 + $0x14] sm:$0xf]
      %v182 = vld [vmem:[%s169 + $0x18] sm:$0xff]
      %v183 = vld [vmem:[%s169 + $0x20] sm:$0xf]
      %v184 = vld [vmem:[%s169 + $0x24] sm:$0xff]
      %v185 = vld [vmem:[%s169 + $0x2c] sm:$0xf]
      %v186 = vld [vmem:[%s169 + $0x30] sm:$0xff]
      %v187 = vld [vmem:[%s169 + $0x38] sm:$0xf]
      %v188 = vld [vmem:[%s169 + $0x3c] sm:$0xff]
      %v189 = vld [vmem:[%s169 + $0x44] sm:$0xf]
      %v190 = vld [vmem:[%s169 + $0x48] sm:$0xff]
      %v191 = vld [vmem:[%s169 + $0x50] sm:$0xf]
      %v192 = vld [vmem:[%s169 + $0x54] sm:$0xff]
      %v193 = vld [vmem:[%s169 + $0x5c] sm:$0xf]
      %v194 = vld [vmem:[%s169 + $0x60] sm:$0xff]
      %v195 = vld [vmem:[%s169 + $0x68] sm:$0xf]
      %v196 = vld [vmem:[%s169 + $0x6c] sm:$0xff]
      %v197 = vld [vmem:[%s169 + $0x74] sm:$0xf]
      %v198 = vld [vmem:[%s169 + $0x78] sm:$0xff]
      %v199 = vld [vmem:[%s169 + $0x80] sm:$0xf]
      %v200 = vld [vmem:[%s169 + $0x84] sm:$0xff]
      %v201 = vld [vmem:[%s169 + $0x8c] sm:$0xf]
      %v202 = vld [vmem:[%s169 + $0x90] sm:$0xff]
      %v203 = vld [vmem:[%s169 + $0x98] sm:$0xf]
      %v204 = vld [vmem:[%s169 + $0x9c] sm:$0xff]
      %v205 = vld [vmem:[%s169 + $0xa4] sm:$0xf]
      %v206 = vld [vmem:[%s169 + $0xa8] sm:$0xff]
      %v207 = vld [vmem:[%s169 + $0xb0] sm:$0xf]
      %v208 = vld [vmem:[%s169 + $0xb4] sm:$0xff]
      %v209 = vld [vmem:[%s169 + $0xbc] sm:$0xf]
      %v210 = vld [vmem:[%s169 + $0xc0] sm:$0xff]
      %v211 = vld [vmem:[%s169 + $0xc8] sm:$0xf]
      %v212 = vld [vmem:[%s169 + $0xcc] sm:$0xff]
      %v213 = vld [vmem:[%s169 + $0xd4] sm:$0xf]
      %v214 = vld [vmem:[%s169 + $0xd8] sm:$0xff]
      %v215 = vld [vmem:[%s169 + $0xe0] sm:$0xf]
      %v216 = vld [vmem:[%s169 + $0xe4] sm:$0xff]
      %v217 = vld [vmem:[%s169 + $0xec] sm:$0xf]
      %v218 = vld [vmem:[%s169 + $0xf0] sm:$0xff]
      %v219 = vld [vmem:[%s169 + $0xf8] sm:$0xf]
      %v220 = vld [vmem:[%s169 + $0xfc] sm:$0xff]
      %v221 = vld [vmem:[%s169 + $0x104] sm:$0xf]
      %v222 = vld [vmem:[%s169 + $0x108] sm:$0xff]
      %v223 = vld [vmem:[%s169 + $0x110] sm:$0xf]
      %v224 = vld [vmem:[%s169 + $0x114] sm:$0xff]
      %v225 = vld [vmem:[%s169 + $0x11c] sm:$0xf]
      %v226 = vld [vmem:[%s169 + $0x120] sm:$0xff]
      %v227 = vld [vmem:[%s169 + $0x128] sm:$0xf]
      %v228 = vld [vmem:[%s169 + $0x12c] sm:$0xff]
      %v229 = vld [vmem:[%s169 + $0x134] sm:$0xf]
      %v230 = vld [vmem:[%s169 + $0x138] sm:$0xff]
      %v231 = vld [vmem:[%s169 + $0x140] sm:$0xf]
      %v232 = vld [vmem:[%s169 + $0x144] sm:$0xff]
      %v233 = vld [vmem:[%s169 + $0x14c] sm:$0xf]
      %v234 = vld [vmem:[%s169 + $0x150] sm:$0xff]
      %v235 = vld [vmem:[%s169 + $0x158] sm:$0xf]
      %v236 = vld [vmem:[%s169 + $0x15c] sm:$0xff]
      %v237 = vld [vmem:[%s169 + $0x164] sm:$0xf]
      %v238 = vld [vmem:[%s169 + $0x168] sm:$0xff]
      %v239 = vld [vmem:[%s169 + $0x170] sm:$0xf]
      %v240 = vld [vmem:[%s169 + $0x174] sm:$0xff]
      %v241 = vld [vmem:[%s169 + $0x17c] sm:$0xf]
      %v242 = vld [vmem:[%s169 + $0x180] sm:$0xff]
      %v243 = vld [vmem:[%s169 + $0x188] sm:$0xf]
      %v244 = vld [vmem:[%s169 + $0x18c] sm:$0xff]
      %v245 = vld [vmem:[%s169 + $0x194] sm:$0xf]
      %v246 = vld [vmem:[%s169 + $0x198] sm:$0xff]
      %v247 = vld [vmem:[%s169 + $0x1a0] sm:$0xf]
      %v248 = vld [vmem:[%s169 + $0x1a4] sm:$0xff]
      %v249 = vld [vmem:[%s169 + $0x1ac] sm:$0xf]
      %v250 = vld [vmem:[%s169 + $0x1b0] sm:$0xff]
      %v251 = vld [vmem:[%s169 + $0x1b8] sm:$0xf]
      %v252 = vld [vmem:[%s169 + $0x1bc] sm:$0xff]
      %v253 = vld [vmem:[%s169 + $0x1c4] sm:$0xf]
      %v254 = vld [vmem:[%s169 + $0x1c8] sm:$0xff]
      %v255 = vld [vmem:[%s169 + $0x1d0] sm:$0xf]
      %v256 = vld [vmem:[%s169 + $0x1d4] sm:$0xff]
      %v257 = vld [vmem:[%s169 + $0x1dc] sm:$0xf]
      %v258 = vld [vmem:[%s169 + $0x1e0] sm:$0xff]
      %v259 = vld [vmem:[%s169 + $0x1e8] sm:$0xf]
      %v260 = vld [vmem:[%s169 + $0x1ec] sm:$0xff]
      %v261 = vld [vmem:[%s169 + $0x1f4] sm:$0xf]
      %v262 = vld [vmem:[%s169 + $0x1f8] sm:$0xff]
      %v263 = vld [vmem:[%s169 + $0x200] sm:$0xf]
      %v264 = vld [vmem:[%s169 + $0x204] sm:$0xff]
      %v265 = vld [vmem:[%s169 + $0x20c] sm:$0xf]
      %v266 = vld [vmem:[%s169 + $0x210] sm:$0xff]
      %v267 = vld [vmem:[%s169 + $0x218] sm:$0xf]
      %v268 = vld [vmem:[%s169 + $0x21c] sm:$0xff]
      %v269 = vld [vmem:[%s169 + $0x224] sm:$0xf]
      %v270 = vld [vmem:[%s169 + $0x228] sm:$0xff]
      %v271 = vld [vmem:[%s169 + $0x230] sm:$0xf]
      %v272 = vld [vmem:[%s169 + $0x234] sm:$0xff]
      %v273 = vld [vmem:[%s169 + $0x23c] sm:$0xf]
      %v274 = vld [vmem:[%s169 + $0x240] sm:$0xff]
      %v275 = vld [vmem:[%s169 + $0x248] sm:$0xf]
      %v276 = vld [vmem:[%s169 + $0x24c] sm:$0xff]
      %v277 = vld [vmem:[%s169 + $0x254] sm:$0xf]
      %v278 = vld [vmem:[%s169 + $0x258] sm:$0xff]
      %v279 = vld [vmem:[%s169 + $0x260] sm:$0xf]
      %v280 = vld [vmem:[%s169 + $0x264] sm:$0xff]
      %v281 = vld [vmem:[%s169 + $0x26c] sm:$0xf]
      %v282 = vld [vmem:[%s169 + $0x270] sm:$0xff]
      %v283 = vld [vmem:[%s169 + $0x278] sm:$0xf]
      %v284 = vld [vmem:[%s169 + $0x27c] sm:$0xff]
      %v285 = vld [vmem:[%s169 + $0x284] sm:$0xf]
      %v286 = vld [vmem:[%s169 + $0x288] sm:$0xff]
      %v287 = vld [vmem:[%s169 + $0x290] sm:$0xf]
      %v288 = vld [vmem:[%s169 + $0x294] sm:$0xff]
      %v289 = vld [vmem:[%s169 + $0x29c] sm:$0xf]
      %v290 = vld [vmem:[%s169 + $0x2a0] sm:$0xff]
      %v291 = vld [vmem:[%s169 + $0x2a8] sm:$0xf]
      %v292 = vld [vmem:[%s169 + $0x2ac] sm:$0xff]
      %v293 = vld [vmem:[%s169 + $0x2b4] sm:$0xf]
      %v294 = vld [vmem:[%s169 + $0x2b8] sm:$0xff]
      %v295 = vld [vmem:[%s169 + $0x2c0] sm:$0xf]
      %v296 = vld [vmem:[%s169 + $0x2c4] sm:$0xff]
      %v297 = vld [vmem:[%s169 + $0x2cc] sm:$0xf]
      %v298 = vld [vmem:[%s169 + $0x2d0] sm:$0xff]
      %v299 = vld [vmem:[%s169 + $0x2d8] sm:$0xf]
      %v300 = vld [vmem:[%s169 + $0x2dc] sm:$0xff]
      %v301 = vld [vmem:[%s169 + $0x2e4] sm:$0xf]
      %v302 = vld [vmem:[%s169 + $0x2e8] sm:$0xff]
      %v303 = vld [vmem:[%s169 + $0x2f0] sm:$0xf]
      %v304 = vld [vmem:[%s169 + $0x2f4] sm:$0xff]
      %v305 = vld [vmem:[%s169 + $0x2fc] sm:$0xf]
      %v306 = vld [vmem:[%s169 + $0x300] sm:$0xff]
      %v307 = vld [vmem:[%s169 + $0x308] sm:$0xf]
      %v308 = vld [vmem:[%s169 + $0x30c] sm:$0xff]
      %v309 = vld [vmem:[%s169 + $0x314] sm:$0xf]
      %v310 = vld [vmem:[%s169 + $0x318] sm:$0xff]
      %v311 = vld [vmem:[%s169 + $0x320] sm:$0xf]
      %v312 = vld [vmem:[%s169 + $0x324] sm:$0xff]
      %v313 = vld [vmem:[%s169 + $0x32c] sm:$0xf]
      %v314 = vld [vmem:[%s169 + $0x330] sm:$0xff]
      %v315 = vld [vmem:[%s169 + $0x338] sm:$0xf]
      %v316 = vld [vmem:[%s169 + $0x33c] sm:$0xff]
      %v317 = vld [vmem:[%s169 + $0x344] sm:$0xf]
      %v318 = vld [vmem:[%s169 + $0x348] sm:$0xff]
      %v319 = vld [vmem:[%s169 + $0x350] sm:$0xf]
      %v320 = vld [vmem:[%s169 + $0x354] sm:$0xff]
      %v321 = vld [vmem:[%s169 + $0x35c] sm:$0xf]
      %v322 = vld [vmem:[%s169 + $0x360] sm:$0xff]
      %v323 = vld [vmem:[%s169 + $0x368] sm:$0xf]
      %v324 = vld [vmem:[%s169 + $0x36c] sm:$0xff]
      %v325 = vld [vmem:[%s169 + $0x374] sm:$0xf]
      %v326 = vld [vmem:[%s169 + $0x378] sm:$0xff]
      %v327 = vld [vmem:[%s169 + $0x380] sm:$0xf]
      %v328 = vld [vmem:[%s169 + $0x384] sm:$0xff]
      %v329 = vld [vmem:[%s169 + $0x38c] sm:$0xf]
      %v330 = vld [vmem:[%s169 + $0x390] sm:$0xff]
      %v331 = vld [vmem:[%s169 + $0x398] sm:$0xf]
      %v332 = vld [vmem:[%s169 + $0x39c] sm:$0xff]
      %v333 = vld [vmem:[%s169 + $0x3a4] sm:$0xf]
      %v334 = vld [vmem:[%s169 + $0x3a8] sm:$0xff]
      %v335 = vld [vmem:[%s169 + $0x3b0] sm:$0xf]
      %v336 = vld [vmem:[%s169 + $0x3b4] sm:$0xff]
      %v337 = vld [vmem:[%s169 + $0x3bc] sm:$0xf]
      %v338 = vld [vmem:[%s169 + $0x3c0] sm:$0xff]
      %v339 = vld [vmem:[%s169 + $0x3c8] sm:$0xf]
      %v340 = vld [vmem:[%s169 + $0x3cc] sm:$0xff]
      %v341 = vld [vmem:[%s169 + $0x3d4] sm:$0xf]
      %v342 = vld [vmem:[%s169 + $0x3d8] sm:$0xff]
      %v343 = vld [vmem:[%s169 + $0x3e0] sm:$0xf]
      %v344 = vld [vmem:[%s169 + $0x3e4] sm:$0xff]
      %v345 = vld [vmem:[%s169 + $0x3ec] sm:$0xf]
      %v346 = vld [vmem:[%s169 + $0x3f0] sm:$0xff]
      %v347 = vld [vmem:[%s169 + $0x3f8] sm:$0xf]
      %v348 = vld [vmem:[%s169 + $0x3fc] sm:$0xff]
      %v349 = vld [vmem:[%s169 + $0x404] sm:$0xf]
      %v350 = vld [vmem:[%s169 + $0x408] sm:$0xff]
      %v351 = vld [vmem:[%s169 + $0x410] sm:$0xf]
      %v352 = vld [vmem:[%s169 + $0x414] sm:$0xff]
      %v353 = vld [vmem:[%s169 + $0x41c] sm:$0xf]
      %v354 = vld [vmem:[%s169 + $0x420] sm:$0xff]
      %v355 = vld [vmem:[%s169 + $0x428] sm:$0xf]
      %v356 = vld [vmem:[%s169 + $0x42c] sm:$0xff]
      %v357 = vld [vmem:[%s169 + $0x434] sm:$0xf]
      %v358 = vld [vmem:[%s169 + $0x438] sm:$0xff]
      %v359 = vld [vmem:[%s169 + $0x440] sm:$0xf]
      %v360 = vld [vmem:[%s169 + $0x444] sm:$0xff]
      %v361 = vld [vmem:[%s169 + $0x44c] sm:$0xf]
      %v362 = vld [vmem:[%s169 + $0x450] sm:$0xff]
      %v363 = vld [vmem:[%s169 + $0x458] sm:$0xf]
      %v364 = vld [vmem:[%s169 + $0x45c] sm:$0xff]
      %v365 = vld [vmem:[%s169 + $0x464] sm:$0xf]
      %v366 = vld [vmem:[%s169 + $0x468] sm:$0xff]
      %v367 = vld [vmem:[%s169 + $0x470] sm:$0xf]
      %v368 = vld [vmem:[%s169 + $0x474] sm:$0xff]
      %v369 = vld [vmem:[%s169 + $0x47c] sm:$0xf]
      %v370 = vld [vmem:[%s169 + $0x480] sm:$0xff]
      %v371 = vld [vmem:[%s169 + $0x488] sm:$0xf]
      %v372 = vld [vmem:[%s169 + $0x48c] sm:$0xff]
      %v373 = vld [vmem:[%s169 + $0x494] sm:$0xf]
      %v374 = vld [vmem:[%s169 + $0x498] sm:$0xff]
      %v375 = vld [vmem:[%s169 + $0x4a0] sm:$0xf]
      %v376 = vld [vmem:[%s169 + $0x4a4] sm:$0xff]
      %v377 = vld [vmem:[%s169 + $0x4ac] sm:$0xf]
      %v378 = vld [vmem:[%s169 + $0x4b0] sm:$0xff]
      %v379 = vld [vmem:[%s169 + $0x4b8] sm:$0xf]
      %v380 = vld [vmem:[%s169 + $0x4bc] sm:$0xff]
      %v381 = vld [vmem:[%s169 + $0x4c4] sm:$0xf]
      %v382 = vld [vmem:[%s169 + $0x4c8] sm:$0xff]
      %v383 = vld [vmem:[%s169 + $0x4d0] sm:$0xf]
      %v384 = vld [vmem:[%s169 + $0x4d4] sm:$0xff]
      %v385 = vld [vmem:[%s169 + $0x4dc] sm:$0xf]
      %v386 = vld [vmem:[%s169 + $0x4e0] sm:$0xff]
      %v387 = vld [vmem:[%s169 + $0x4e8] sm:$0xf]
      %v388 = vld [vmem:[%s169 + $0x4ec] sm:$0xff]
      %v389 = vld [vmem:[%s169 + $0x4f4] sm:$0xf]
      %v390 = vld [vmem:[%s169 + $0x4f8] sm:$0xff]
      %v391 = vld [vmem:[%s169 + $0x500] sm:$0xf]
      %v392 = vld [vmem:[%s169 + $0x504] sm:$0xff]
      %v393 = vld [vmem:[%s169 + $0x50c] sm:$0xf]
      %v394 = vld [vmem:[%s169 + $0x510] sm:$0xff]
      %v395 = vld [vmem:[%s169 + $0x518] sm:$0xf]
      %v396 = vld [vmem:[%s169 + $0x51c] sm:$0xff]
      %v397 = vld [vmem:[%s169 + $0x524] sm:$0xf]
      %v398 = vld [vmem:[%s169 + $0x528] sm:$0xff]
      %v399 = vld [vmem:[%s169 + $0x530] sm:$0xf]
      %v400 = vld [vmem:[%s169 + $0x534] sm:$0xff]
      %v401 = vld [vmem:[%s169 + $0x53c] sm:$0xf]
      %v402 = vld [vmem:[%s169 + $0x540] sm:$0xff]
      %v403 = vld [vmem:[%s169 + $0x548] sm:$0xf]
      %v404 = vld [vmem:[%s169 + $0x54c] sm:$0xff]
      %v405 = vld [vmem:[%s169 + $0x554] sm:$0xf]
      %v406 = vld [vmem:[%s169 + $0x558] sm:$0xff]
      %v407 = vld [vmem:[%s169 + $0x560] sm:$0xf]
      %v408 = vld [vmem:[%s169 + $0x564] sm:$0xff]
      %v409 = vld [vmem:[%s169 + $0x56c] sm:$0xf]
      %v410 = vld [vmem:[%s169 + $0x570] sm:$0xff]
      %v411 = vld [vmem:[%s169 + $0x578] sm:$0xf]
      %v412 = vld [vmem:[%s169 + $0x57c] sm:$0xff]
      %v413 = vld [vmem:[%s169 + $0x584] sm:$0xf]
      %v414 = vld [vmem:[%s169 + $0x588] sm:$0xff]
      %v415 = vld [vmem:[%s169 + $0x590] sm:$0xf]
      %v416 = vld [vmem:[%s169 + $0x594] sm:$0xff]
      %v417 = vld [vmem:[%s169 + $0x59c] sm:$0xf]
      %v418 = vld [vmem:[%s169 + $0x5a0] sm:$0xff]
      %v419 = vld [vmem:[%s169 + $0x5a8] sm:$0xf]
      %v420 = vld [vmem:[%s169 + $0x5ac] sm:$0xff]
      %v421 = vld [vmem:[%s169 + $0x5b4] sm:$0xf]
      %v422 = vld [vmem:[%s169 + $0x5b8] sm:$0xff]
      %v423 = vld [vmem:[%s169 + $0x5c0] sm:$0xf]
      %v424 = vld [vmem:[%s169 + $0x5c4] sm:$0xff]
      %v425 = vld [vmem:[%s169 + $0x5cc] sm:$0xf]
      %v426 = vld [vmem:[%s169 + $0x5d0] sm:$0xff]
      %v427 = vld [vmem:[%s169 + $0x5d8] sm:$0xf]
      %v428 = vld [vmem:[%s169 + $0x5dc] sm:$0xff]
      %v429 = vld [vmem:[%s169 + $0x5e4] sm:$0xf]
      %v430 = vld [vmem:[%s169 + $0x5e8] sm:$0xff]
      %v431 = vld [vmem:[%s169 + $0x5f0] sm:$0xf]
      %v432 = vld [vmem:[%s169 + $0x5f4] sm:$0xff]
      %v433 = vld [vmem:[%s169 + $0x5fc] sm:$0xf]
      %v434 = vld [vmem:[%s1] sm:$0xf]
      %v435 = vld [vmem:[%s1 + $0x4] sm:$0xf]
      %v436 = vld [vmem:[%s1 + $0x8] sm:$0xf]
      %v437 = vld [vmem:[%s1 + $0xc] sm:$0xf]
      %v438 = vld [vmem:[%s1 + $0x10] sm:$0xf]
      %v439 = vld [vmem:[%s1 + $0x14] sm:$0xf]
      %v440 = vld [vmem:[%s1 + $0x18] sm:$0xf]
      %v441 = vld [vmem:[%s1 + $0x1c] sm:$0xf]
      %v442 = vld [vmem:[%s1 + $0x20] sm:$0xf]
      %v443 = vld [vmem:[%s1 + $0x24] sm:$0xf]
      %v444 = vld [vmem:[%s1 + $0x28] sm:$0xf]
      %v445 = vld [vmem:[%s1 + $0x2c] sm:$0xf]
      %v446 = vld [vmem:[%s1 + $0x30] sm:$0xf]
      %v447 = vld [vmem:[%s1 + $0x34] sm:$0xf]
      %v448 = vld [vmem:[%s1 + $0x38] sm:$0xf]
      %v449 = vld [vmem:[%s1 + $0x3c] sm:$0xf]
      %v450 = vld [vmem:[%s1 + $0x40] sm:$0xf]
      %v451 = vld [vmem:[%s1 + $0x44] sm:$0xf]
      %v452 = vld [vmem:[%s1 + $0x48] sm:$0xf]
      %v453 = vld [vmem:[%s1 + $0x4c] sm:$0xf]
      %v454 = vld [vmem:[%s1 + $0x50] sm:$0xf]
      %v455 = vld [vmem:[%s1 + $0x54] sm:$0xf]
      %v456 = vld [vmem:[%s1 + $0x58] sm:$0xf]
      %v457 = vld [vmem:[%s1 + $0x5c] sm:$0xf]
      %v458 = vld [vmem:[%s1 + $0x60] sm:$0xf]
      %v459 = vld [vmem:[%s1 + $0x64] sm:$0xf]
      %v460 = vld [vmem:[%s1 + $0x68] sm:$0xf]
      %v461 = vld [vmem:[%s1 + $0x6c] sm:$0xf]
      %v462 = vld [vmem:[%s1 + $0x70] sm:$0xf]
      %v463 = vld [vmem:[%s1 + $0x74] sm:$0xf]
      %v464 = vld [vmem:[%s1 + $0x78] sm:$0xf]
      %v465 = vld [vmem:[%s1 + $0x7c] sm:$0xf]
      %v466 = vld [vmem:[%s1 + $0x80] sm:$0xf]
      %v467 = vld [vmem:[%s1 + $0x84] sm:$0xf]
      %v468 = vld [vmem:[%s1 + $0x88] sm:$0xf]
      %v469 = vld [vmem:[%s1 + $0x8c] sm:$0xf]
      %v470 = vld [vmem:[%s2] sm:$0x1]
      %v472 = vlaneseq
      %v473 = vshrl.u32 %v472, 7
      %v474 = vsub.s32 0, %v473
      %v475 = vrot.slane %v470, %v474
      %v733 = vunpack.c.l.b16 %v178
      %v734 = vunpack.c.h.b16 %v178
      %v735 = vunpack.c.l.b16 %v179
      %v736 = vunpack.c.l.b16 %v180
      %v737 = vunpack.c.h.b16 %v180
      %v738 = vunpack.c.l.b16 %v181
      %v739 = vunpack.c.l.b16 %v182
      %v740 = vunpack.c.h.b16 %v182
      %v741 = vunpack.c.l.b16 %v183
      %v742 = vunpack.c.l.b16 %v184
      %v743 = vunpack.c.h.b16 %v184
      %v744 = vunpack.c.l.b16 %v185
      %v745 = vunpack.c.l.b16 %v186
      %v746 = vunpack.c.h.b16 %v186
      %v747 = vunpack.c.l.b16 %v187
      %v748 = vunpack.c.l.b16 %v188
      %v749 = vunpack.c.h.b16 %v188
      %v750 = vunpack.c.l.b16 %v189
      %v751 = vunpack.c.l.b16 %v190
      %v752 = vunpack.c.h.b16 %v190
      %v753 = vunpack.c.l.b16 %v191
      %v754 = vunpack.c.l.b16 %v192
      %v755 = vunpack.c.h.b16 %v192
      %v756 = vunpack.c.l.b16 %v193
      %v757 = vunpack.c.l.b16 %v194
      %v758 = vunpack.c.h.b16 %v194
      %v759 = vunpack.c.l.b16 %v195
      %v760 = vunpack.c.l.b16 %v196
      %v761 = vunpack.c.h.b16 %v196
      %v762 = vunpack.c.l.b16 %v197
      %v763 = vunpack.c.l.b16 %v198
      %v764 = vunpack.c.h.b16 %v198
      %v765 = vunpack.c.l.b16 %v199
      %v766 = vunpack.c.l.b16 %v200
      %v767 = vunpack.c.h.b16 %v200
      %v768 = vunpack.c.l.b16 %v201
      %v769 = vunpack.c.l.b16 %v202
      %v770 = vunpack.c.h.b16 %v202
      %v771 = vunpack.c.l.b16 %v203
      %v772 = vunpack.c.l.b16 %v204
      %v773 = vunpack.c.h.b16 %v204
      %v774 = vunpack.c.l.b16 %v205
      %v775 = vunpack.c.l.b16 %v206
      %v776 = vunpack.c.h.b16 %v206
      %v777 = vunpack.c.l.b16 %v207
      %v778 = vunpack.c.l.b16 %v208
      %v779 = vunpack.c.h.b16 %v208
      %v780 = vunpack.c.l.b16 %v209
      %v781 = vunpack.c.l.b16 %v210
      %v782 = vunpack.c.h.b16 %v210
      %v783 = vunpack.c.l.b16 %v211
      %v784 = vunpack.c.l.b16 %v212
      %v785 = vunpack.c.h.b16 %v212
      %v786 = vunpack.c.l.b16 %v213
      %v787 = vunpack.c.l.b16 %v214
      %v788 = vunpack.c.h.b16 %v214
      %v789 = vunpack.c.l.b16 %v215
      %v790 = vunpack.c.l.b16 %v216
      %v791 = vunpack.c.h.b16 %v216
      %v792 = vunpack.c.l.b16 %v217
      %v793 = vunpack.c.l.b16 %v218
      %v794 = vunpack.c.h.b16 %v218
      %v795 = vunpack.c.l.b16 %v219
      %v796 = vunpack.c.l.b16 %v220
      %v797 = vunpack.c.h.b16 %v220
      %v798 = vunpack.c.l.b16 %v221
      %v799 = vunpack.c.l.b16 %v222
      %v800 = vunpack.c.h.b16 %v222
      %v801 = vunpack.c.l.b16 %v223
      %v802 = vunpack.c.l.b16 %v224
      %v803 = vunpack.c.h.b16 %v224
      %v804 = vunpack.c.l.b16 %v225
      %v805 = vunpack.c.l.b16 %v226
      %v806 = vunpack.c.h.b16 %v226
      %v807 = vunpack.c.l.b16 %v227
      %v808 = vunpack.c.l.b16 %v228
      %v809 = vunpack.c.h.b16 %v228
      %v810 = vunpack.c.l.b16 %v229
      %v811 = vunpack.c.l.b16 %v230
      %v812 = vunpack.c.h.b16 %v230
      %v813 = vunpack.c.l.b16 %v231
      %v814 = vunpack.c.l.b16 %v232
      %v815 = vunpack.c.h.b16 %v232
      %v816 = vunpack.c.l.b16 %v233
      %v817 = vunpack.c.l.b16 %v234
      %v818 = vunpack.c.h.b16 %v234
      %v819 = vunpack.c.l.b16 %v235
      %v820 = vunpack.c.l.b16 %v236
      %v821 = vunpack.c.h.b16 %v236
      %v822 = vunpack.c.l.b16 %v237
      %v823 = vunpack.c.l.b16 %v238
      %v824 = vunpack.c.h.b16 %v238
      %v825 = vunpack.c.l.b16 %v239
      %v826 = vunpack.c.l.b16 %v240
      %v827 = vunpack.c.h.b16 %v240
      %v828 = vunpack.c.l.b16 %v241
      %v829 = vunpack.c.l.b16 %v242
      %v830 = vunpack.c.h.b16 %v242
      %v831 = vunpack.c.l.b16 %v243
      %v832 = vunpack.c.l.b16 %v244
      %v833 = vunpack.c.h.b16 %v244
      %v834 = vunpack.c.l.b16 %v245
      %v835 = vunpack.c.l.b16 %v246
      %v836 = vunpack.c.h.b16 %v246
      %v837 = vunpack.c.l.b16 %v247
      %v838 = vunpack.c.l.b16 %v248
      %v839 = vunpack.c.h.b16 %v248
      %v840 = vunpack.c.l.b16 %v249
      %v841 = vunpack.c.l.b16 %v250
      %v842 = vunpack.c.h.b16 %v250
      %v843 = vunpack.c.l.b16 %v251
      %v844 = vunpack.c.l.b16 %v252
      %v845 = vunpack.c.h.b16 %v252
      %v846 = vunpack.c.l.b16 %v253
      %v847 = vunpack.c.l.b16 %v254
      %v848 = vunpack.c.h.b16 %v254
      %v849 = vunpack.c.l.b16 %v255
      %v850 = vunpack.c.l.b16 %v256
      %v851 = vunpack.c.h.b16 %v256
      %v852 = vunpack.c.l.b16 %v257
      %v853 = vunpack.c.l.b16 %v258
      %v854 = vunpack.c.h.b16 %v258
      %v855 = vunpack.c.l.b16 %v259
      %v856 = vunpack.c.l.b16 %v260
      %v857 = vunpack.c.h.b16 %v260
      %v858 = vunpack.c.l.b16 %v261
      %v859 = vunpack.c.l.b16 %v262
      %v860 = vunpack.c.h.b16 %v262
      %v861 = vunpack.c.l.b16 %v263
      %v862 = vunpack.c.l.b16 %v264
      %v863 = vunpack.c.h.b16 %v264
      %v864 = vunpack.c.l.b16 %v265
      %v865 = vunpack.c.l.b16 %v266
      %v866 = vunpack.c.h.b16 %v266
      %v867 = vunpack.c.l.b16 %v267
      %v868 = vunpack.c.l.b16 %v268
      %v869 = vunpack.c.h.b16 %v268
      %v870 = vunpack.c.l.b16 %v269
      %v871 = vunpack.c.l.b16 %v270
      %v872 = vunpack.c.h.b16 %v270
      %v873 = vunpack.c.l.b16 %v271
      %v874 = vunpack.c.l.b16 %v272
      %v875 = vunpack.c.h.b16 %v272
      %v876 = vunpack.c.l.b16 %v273
      %v877 = vunpack.c.l.b16 %v274
      %v878 = vunpack.c.h.b16 %v274
      %v879 = vunpack.c.l.b16 %v275
      %v880 = vunpack.c.l.b16 %v276
      %v881 = vunpack.c.h.b16 %v276
      %v882 = vunpack.c.l.b16 %v277
      %v883 = vunpack.c.l.b16 %v278
      %v884 = vunpack.c.h.b16 %v278
      %v885 = vunpack.c.l.b16 %v279
      %v886 = vunpack.c.l.b16 %v280
      %v887 = vunpack.c.h.b16 %v280
      %v888 = vunpack.c.l.b16 %v281
      %v889 = vunpack.c.l.b16 %v282
      %v890 = vunpack.c.h.b16 %v282
      %v891 = vunpack.c.l.b16 %v283
      %v892 = vunpack.c.l.b16 %v284
      %v893 = vunpack.c.h.b16 %v284
      %v894 = vunpack.c.l.b16 %v285
      %v895 = vunpack.c.l.b16 %v286
      %v896 = vunpack.c.h.b16 %v286
      %v897 = vunpack.c.l.b16 %v287
      %v898 = vunpack.c.l.b16 %v288
      %v899 = vunpack.c.h.b16 %v288
      %v900 = vunpack.c.l.b16 %v289
      %v901 = vunpack.c.l.b16 %v290
      %v902 = vunpack.c.h.b16 %v290
      %v903 = vunpack.c.l.b16 %v291
      %v904 = vunpack.c.l.b16 %v292
      %v905 = vunpack.c.h.b16 %v292
      %v906 = vunpack.c.l.b16 %v293
      %v907 = vunpack.c.l.b16 %v294
      %v908 = vunpack.c.h.b16 %v294
      %v909 = vunpack.c.l.b16 %v295
      %v910 = vunpack.c.l.b16 %v296
      %v911 = vunpack.c.h.b16 %v296
      %v912 = vunpack.c.l.b16 %v297
      %v913 = vunpack.c.l.b16 %v298
      %v914 = vunpack.c.h.b16 %v298
      %v915 = vunpack.c.l.b16 %v299
      %v916 = vunpack.c.l.b16 %v300
      %v917 = vunpack.c.h.b16 %v300
      %v918 = vunpack.c.l.b16 %v301
      %v919 = vunpack.c.l.b16 %v302
      %v920 = vunpack.c.h.b16 %v302
      %v921 = vunpack.c.l.b16 %v303
      %v922 = vunpack.c.l.b16 %v304
      %v923 = vunpack.c.h.b16 %v304
      %v924 = vunpack.c.l.b16 %v305
      %v925 = vunpack.c.l.b16 %v306
      %v926 = vunpack.c.h.b16 %v306
      %v927 = vunpack.c.l.b16 %v307
      %v928 = vunpack.c.l.b16 %v308
      %v929 = vunpack.c.h.b16 %v308
      %v930 = vunpack.c.l.b16 %v309
      %v931 = vunpack.c.l.b16 %v310
      %v932 = vunpack.c.h.b16 %v310
      %v933 = vunpack.c.l.b16 %v311
      %v934 = vunpack.c.l.b16 %v312
      %v935 = vunpack.c.h.b16 %v312
      %v936 = vunpack.c.l.b16 %v313
      %v937 = vunpack.c.l.b16 %v314
      %v938 = vunpack.c.h.b16 %v314
      %v939 = vunpack.c.l.b16 %v315
      %v940 = vunpack.c.l.b16 %v316
      %v941 = vunpack.c.h.b16 %v316
      %v942 = vunpack.c.l.b16 %v317
      %v943 = vunpack.c.l.b16 %v318
      %v944 = vunpack.c.h.b16 %v318
      %v945 = vunpack.c.l.b16 %v319
      %v946 = vunpack.c.l.b16 %v320
      %v947 = vunpack.c.h.b16 %v320
      %v948 = vunpack.c.l.b16 %v321
      %v949 = vunpack.c.l.b16 %v322
      %v950 = vunpack.c.h.b16 %v322
      %v951 = vunpack.c.l.b16 %v323
      %v952 = vunpack.c.l.b16 %v324
      %v953 = vunpack.c.h.b16 %v324
      %v954 = vunpack.c.l.b16 %v325
      %v955 = vunpack.c.l.b16 %v326
      %v956 = vunpack.c.h.b16 %v326
      %v957 = vunpack.c.l.b16 %v327
      %v958 = vunpack.c.l.b16 %v328
      %v959 = vunpack.c.h.b16 %v328
      %v960 = vunpack.c.l.b16 %v329
      %v961 = vunpack.c.l.b16 %v330
      %v962 = vunpack.c.h.b16 %v330
      %v963 = vunpack.c.l.b16 %v331
      %v964 = vunpack.c.l.b16 %v332
      %v965 = vunpack.c.h.b16 %v332
      %v966 = vunpack.c.l.b16 %v333
      %v967 = vunpack.c.l.b16 %v334
      %v968 = vunpack.c.h.b16 %v334
      %v969 = vunpack.c.l.b16 %v335
      %v970 = vunpack.c.l.b16 %v336
      %v971 = vunpack.c.h.b16 %v336
      %v972 = vunpack.c.l.b16 %v337
      %v973 = vunpack.c.l.b16 %v338
      %v974 = vunpack.c.h.b16 %v338
      %v975 = vunpack.c.l.b16 %v339
      %v976 = vunpack.c.l.b16 %v340
      %v977 = vunpack.c.h.b16 %v340
      %v978 = vunpack.c.l.b16 %v341
      %v979 = vunpack.c.l.b16 %v342
      %v980 = vunpack.c.h.b16 %v342
      %v981 = vunpack.c.l.b16 %v343
      %v982 = vunpack.c.l.b16 %v344
      %v983 = vunpack.c.h.b16 %v344
      %v984 = vunpack.c.l.b16 %v345
      %v985 = vunpack.c.l.b16 %v346
      %v986 = vunpack.c.h.b16 %v346
      %v987 = vunpack.c.l.b16 %v347
      %v988 = vunpack.c.l.b16 %v348
      %v989 = vunpack.c.h.b16 %v348
      %v990 = vunpack.c.l.b16 %v349
      %v991 = vunpack.c.l.b16 %v350
      %v992 = vunpack.c.h.b16 %v350
      %v993 = vunpack.c.l.b16 %v351
      %v994 = vunpack.c.l.b16 %v352
      %v995 = vunpack.c.h.b16 %v352
      %v996 = vunpack.c.l.b16 %v353
      %v997 = vunpack.c.l.b16 %v354
      %v998 = vunpack.c.h.b16 %v354
      %v999 = vunpack.c.l.b16 %v355
      %v1000 = vunpack.c.l.b16 %v356
      %v1001 = vunpack.c.h.b16 %v356
      %v1002 = vunpack.c.l.b16 %v357
      %v1003 = vunpack.c.l.b16 %v358
      %v1004 = vunpack.c.h.b16 %v358
      %v1005 = vunpack.c.l.b16 %v359
      %v1006 = vunpack.c.l.b16 %v360
      %v1007 = vunpack.c.h.b16 %v360
      %v1008 = vunpack.c.l.b16 %v361
      %v1009 = vunpack.c.l.b16 %v362
      %v1010 = vunpack.c.h.b16 %v362
      %v1011 = vunpack.c.l.b16 %v363
      %v1012 = vunpack.c.l.b16 %v364
      %v1013 = vunpack.c.h.b16 %v364
      %v1014 = vunpack.c.l.b16 %v365
      %v1015 = vunpack.c.l.b16 %v366
      %v1016 = vunpack.c.h.b16 %v366
      %v1017 = vunpack.c.l.b16 %v367
      %v1018 = vunpack.c.l.b16 %v368
      %v1019 = vunpack.c.h.b16 %v368
      %v1020 = vunpack.c.l.b16 %v369
      %v1021 = vunpack.c.l.b16 %v370
      %v1022 = vunpack.c.h.b16 %v370
      %v1023 = vunpack.c.l.b16 %v371
      %v1024 = vunpack.c.l.b16 %v372
      %v1025 = vunpack.c.h.b16 %v372
      %v1026 = vunpack.c.l.b16 %v373
      %v1027 = vunpack.c.l.b16 %v374
      %v1028 = vunpack.c.h.b16 %v374
      %v1029 = vunpack.c.l.b16 %v375
      %v1030 = vunpack.c.l.b16 %v376
      %v1031 = vunpack.c.h.b16 %v376
      %v1032 = vunpack.c.l.b16 %v377
      %v1033 = vunpack.c.l.b16 %v378
      %v1034 = vunpack.c.h.b16 %v378
      %v1035 = vunpack.c.l.b16 %v379
      %v1036 = vunpack.c.l.b16 %v380
      %v1037 = vunpack.c.h.b16 %v380
      %v1038 = vunpack.c.l.b16 %v381
      %v1039 = vunpack.c.l.b16 %v382
      %v1040 = vunpack.c.h.b16 %v382
      %v1041 = vunpack.c.l.b16 %v383
      %v1042 = vunpack.c.l.b16 %v384
      %v1043 = vunpack.c.h.b16 %v384
      %v1044 = vunpack.c.l.b16 %v385
      %v1045 = vunpack.c.l.b16 %v386
      %v1046 = vunpack.c.h.b16 %v386
      %v1047 = vunpack.c.l.b16 %v387
      %v1048 = vunpack.c.l.b16 %v388
      %v1049 = vunpack.c.h.b16 %v388
      %v1050 = vunpack.c.l.b16 %v389
      %v1051 = vunpack.c.l.b16 %v390
      %v1052 = vunpack.c.h.b16 %v390
      %v1053 = vunpack.c.l.b16 %v391
      %v1054 = vunpack.c.l.b16 %v392
      %v1055 = vunpack.c.h.b16 %v392
      %v1056 = vunpack.c.l.b16 %v393
      %v1057 = vunpack.c.l.b16 %v394
      %v1058 = vunpack.c.h.b16 %v394
      %v1059 = vunpack.c.l.b16 %v395
      %v1060 = vunpack.c.l.b16 %v396
      %v1061 = vunpack.c.h.b16 %v396
      %v1062 = vunpack.c.l.b16 %v397
      %v1063 = vunpack.c.l.b16 %v398
      %v1064 = vunpack.c.h.b16 %v398
      %v1065 = vunpack.c.l.b16 %v399
      %v1066 = vunpack.c.l.b16 %v400
      %v1067 = vunpack.c.h.b16 %v400
      %v1068 = vunpack.c.l.b16 %v401
      %v1069 = vunpack.c.l.b16 %v402
      %v1070 = vunpack.c.h.b16 %v402
      %v1071 = vunpack.c.l.b16 %v403
      %v1072 = vunpack.c.l.b16 %v404
      %v1073 = vunpack.c.h.b16 %v404
      %v1074 = vunpack.c.l.b16 %v405
      %v1075 = vunpack.c.l.b16 %v406
      %v1076 = vunpack.c.h.b16 %v406
      %v1077 = vunpack.c.l.b16 %v407
      %v1078 = vunpack.c.l.b16 %v408
      %v1079 = vunpack.c.h.b16 %v408
      %v1080 = vunpack.c.l.b16 %v409
      %v1081 = vunpack.c.l.b16 %v410
      %v1082 = vunpack.c.h.b16 %v410
      %v1083 = vunpack.c.l.b16 %v411
      %v1084 = vunpack.c.l.b16 %v412
      %v1085 = vunpack.c.h.b16 %v412
      %v1086 = vunpack.c.l.b16 %v413
      %v1087 = vunpack.c.l.b16 %v414
      %v1088 = vunpack.c.h.b16 %v414
      %v1089 = vunpack.c.l.b16 %v415
      %v1090 = vunpack.c.l.b16 %v416
      %v1091 = vunpack.c.h.b16 %v416
      %v1092 = vunpack.c.l.b16 %v417
      %v1093 = vunpack.c.l.b16 %v418
      %v1094 = vunpack.c.h.b16 %v418
      %v1095 = vunpack.c.l.b16 %v419
      %v1096 = vunpack.c.l.b16 %v420
      %v1097 = vunpack.c.h.b16 %v420
      %v1098 = vunpack.c.l.b16 %v421
      %v1099 = vunpack.c.l.b16 %v422
      %v1100 = vunpack.c.h.b16 %v422
      %v1101 = vunpack.c.l.b16 %v423
      %v1102 = vunpack.c.l.b16 %v424
      %v1103 = vunpack.c.h.b16 %v424
      %v1104 = vunpack.c.l.b16 %v425
      %v1105 = vunpack.c.l.b16 %v426
      %v1106 = vunpack.c.h.b16 %v426
      %v1107 = vunpack.c.l.b16 %v427
      %v1108 = vunpack.c.l.b16 %v428
      %v1109 = vunpack.c.h.b16 %v428
      %v1110 = vunpack.c.l.b16 %v429
      %v1111 = vunpack.c.l.b16 %v430
      %v1112 = vunpack.c.h.b16 %v430
      %v1113 = vunpack.c.l.b16 %v431
      %v1114 = vunpack.c.l.b16 %v432
      %v1115 = vunpack.c.h.b16 %v432
      %v1116 = vunpack.c.l.b16 %v433
      %v1117 = vpack.c.b16 %v736, %v733
      %v1118 = vpack.c.b16 %v737, %v734
      %v1119 = vpack.c.b16 %v738, %v735
      %v1120 = vpack.c.b16 %v742, %v739
      %v1121 = vpack.c.b16 %v743, %v740
      %v1122 = vpack.c.b16 %v744, %v741
      %v1123 = vpack.c.b16 %v748, %v745
      %v1124 = vpack.c.b16 %v749, %v746
      %v1125 = vpack.c.b16 %v750, %v747
      %v1126 = vpack.c.b16 %v754, %v751
      %v1127 = vpack.c.b16 %v755, %v752
      %v1128 = vpack.c.b16 %v756, %v753
      %v1129 = vpack.c.b16 %v760, %v757
      %v1130 = vpack.c.b16 %v761, %v758
      %v1131 = vpack.c.b16 %v762, %v759
      %v1132 = vpack.c.b16 %v766, %v763
      %v1133 = vpack.c.b16 %v767, %v764
      %v1134 = vpack.c.b16 %v768, %v765
      %v1135 = vpack.c.b16 %v772, %v769
      %v1136 = vpack.c.b16 %v773, %v770
      %v1137 = vpack.c.b16 %v774, %v771
      %v1138 = vpack.c.b16 %v778, %v775
      %v1139 = vpack.c.b16 %v779, %v776
      %v1140 = vpack.c.b16 %v780, %v777
      %v1141 = vpack.c.b16 %v784, %v781
      %v1142 = vpack.c.b16 %v785, %v782
      %v1143 = vpack.c.b16 %v786, %v783
      %v1144 = vpack.c.b16 %v790, %v787
      %v1145 = vpack.c.b16 %v791, %v788
      %v1146 = vpack.c.b16 %v792, %v789
      %v1147 = vpack.c.b16 %v796, %v793
      %v1148 = vpack.c.b16 %v797, %v794
      %v1149 = vpack.c.b16 %v798, %v795
      %v1150 = vpack.c.b16 %v802, %v799
      %v1151 = vpack.c.b16 %v803, %v800
      %v1152 = vpack.c.b16 %v804, %v801
      %v1153 = vpack.c.b16 %v808, %v805
      %v1154 = vpack.c.b16 %v809, %v806
      %v1155 = vpack.c.b16 %v810, %v807
      %v1156 = vpack.c.b16 %v814, %v811
      %v1157 = vpack.c.b16 %v815, %v812
      %v1158 = vpack.c.b16 %v816, %v813
      %v1159 = vpack.c.b16 %v820, %v817
      %v1160 = vpack.c.b16 %v821, %v818
      %v1161 = vpack.c.b16 %v822, %v819
      %v1162 = vpack.c.b16 %v826, %v823
      %v1163 = vpack.c.b16 %v827, %v824
      %v1164 = vpack.c.b16 %v828, %v825
      %v1165 = vpack.c.b16 %v832, %v829
      %v1166 = vpack.c.b16 %v833, %v830
      %v1167 = vpack.c.b16 %v834, %v831
      %v1168 = vpack.c.b16 %v838, %v835
      %v1169 = vpack.c.b16 %v839, %v836
      %v1170 = vpack.c.b16 %v840, %v837
      %v1171 = vpack.c.b16 %v844, %v841
      %v1172 = vpack.c.b16 %v845, %v842
      %v1173 = vpack.c.b16 %v846, %v843
      %v1174 = vpack.c.b16 %v850, %v847
      %v1175 = vpack.c.b16 %v851, %v848
      %v1176 = vpack.c.b16 %v852, %v849
      %v1177 = vpack.c.b16 %v856, %v853
      %v1178 = vpack.c.b16 %v857, %v854
      %v1179 = vpack.c.b16 %v858, %v855
      %v1180 = vpack.c.b16 %v862, %v859
      %v1181 = vpack.c.b16 %v863, %v860
      %v1182 = vpack.c.b16 %v864, %v861
      %v1183 = vpack.c.b16 %v868, %v865
      %v1184 = vpack.c.b16 %v869, %v866
      %v1185 = vpack.c.b16 %v870, %v867
      %v1186 = vpack.c.b16 %v874, %v871
      %v1187 = vpack.c.b16 %v875, %v872
      %v1188 = vpack.c.b16 %v876, %v873
      %v1189 = vpack.c.b16 %v880, %v877
      %v1190 = vpack.c.b16 %v881, %v878
      %v1191 = vpack.c.b16 %v882, %v879
      %v1192 = vpack.c.b16 %v886, %v883
      %v1193 = vpack.c.b16 %v887, %v884
      %v1194 = vpack.c.b16 %v888, %v885
      %v1195 = vpack.c.b16 %v892, %v889
      %v1196 = vpack.c.b16 %v893, %v890
      %v1197 = vpack.c.b16 %v894, %v891
      %v1198 = vpack.c.b16 %v898, %v895
      %v1199 = vpack.c.b16 %v899, %v896
      %v1200 = vpack.c.b16 %v900, %v897
      %v1201 = vpack.c.b16 %v904, %v901
      %v1202 = vpack.c.b16 %v905, %v902
      %v1203 = vpack.c.b16 %v906, %v903
      %v1204 = vpack.c.b16 %v910, %v907
      %v1205 = vpack.c.b16 %v911, %v908
      %v1206 = vpack.c.b16 %v912, %v909
      %v1207 = vpack.c.b16 %v916, %v913
      %v1208 = vpack.c.b16 %v917, %v914
      %v1209 = vpack.c.b16 %v918, %v915
      %v1210 = vpack.c.b16 %v922, %v919
      %v1211 = vpack.c.b16 %v923, %v920
      %v1212 = vpack.c.b16 %v924, %v921
      %v1213 = vpack.c.b16 %v928, %v925
      %v1214 = vpack.c.b16 %v929, %v926
      %v1215 = vpack.c.b16 %v930, %v927
      %v1216 = vpack.c.b16 %v934, %v931
      %v1217 = vpack.c.b16 %v935, %v932
      %v1218 = vpack.c.b16 %v936, %v933
      %v1219 = vpack.c.b16 %v940, %v937
      %v1220 = vpack.c.b16 %v941, %v938
      %v1221 = vpack.c.b16 %v942, %v939
      %v1222 = vpack.c.b16 %v946, %v943
      %v1223 = vpack.c.b16 %v947, %v944
      %v1224 = vpack.c.b16 %v948, %v945
      %v1225 = vpack.c.b16 %v952, %v949
      %v1226 = vpack.c.b16 %v953, %v950
      %v1227 = vpack.c.b16 %v954, %v951
      %v1228 = vpack.c.b16 %v958, %v955
      %v1229 = vpack.c.b16 %v959, %v956
      %v1230 = vpack.c.b16 %v960, %v957
      %v1231 = vpack.c.b16 %v964, %v961
      %v1232 = vpack.c.b16 %v965, %v962
      %v1233 = vpack.c.b16 %v966, %v963
      %v1234 = vpack.c.b16 %v970, %v967
      %v1235 = vpack.c.b16 %v971, %v968
      %v1236 = vpack.c.b16 %v972, %v969
      %v1237 = vpack.c.b16 %v976, %v973
      %v1238 = vpack.c.b16 %v977, %v974
      %v1239 = vpack.c.b16 %v978, %v975
      %v1240 = vpack.c.b16 %v982, %v979
      %v1241 = vpack.c.b16 %v983, %v980
      %v1242 = vpack.c.b16 %v984, %v981
      %v1243 = vpack.c.b16 %v988, %v985
      %v1244 = vpack.c.b16 %v989, %v986
      %v1245 = vpack.c.b16 %v990, %v987
      %v1246 = vpack.c.b16 %v994, %v991
      %v1247 = vpack.c.b16 %v995, %v992
      %v1248 = vpack.c.b16 %v996, %v993
      %v1249 = vpack.c.b16 %v1000, %v997
      %v1250 = vpack.c.b16 %v1001, %v998
      %v1251 = vpack.c.b16 %v1002, %v999
      %v1252 = vpack.c.b16 %v1006, %v1003
      %v1253 = vpack.c.b16 %v1007, %v1004
      %v1254 = vpack.c.b16 %v1008, %v1005
      %v1255 = vpack.c.b16 %v1012, %v1009
      %v1256 = vpack.c.b16 %v1013, %v1010
      %v1257 = vpack.c.b16 %v1014, %v1011
      %v1258 = vpack.c.b16 %v1018, %v1015
      %v1259 = vpack.c.b16 %v1019, %v1016
      %v1260 = vpack.c.b16 %v1020, %v1017
      %v1261 = vpack.c.b16 %v1024, %v1021
      %v1262 = vpack.c.b16 %v1025, %v1022
      %v1263 = vpack.c.b16 %v1026, %v1023
      %v1264 = vpack.c.b16 %v1030, %v1027
      %v1265 = vpack.c.b16 %v1031, %v1028
      %v1266 = vpack.c.b16 %v1032, %v1029
      %v1267 = vpack.c.b16 %v1036, %v1033
      %v1268 = vpack.c.b16 %v1037, %v1034
      %v1269 = vpack.c.b16 %v1038, %v1035
      %v1270 = vpack.c.b16 %v1042, %v1039
      %v1271 = vpack.c.b16 %v1043, %v1040
      %v1272 = vpack.c.b16 %v1044, %v1041
      %v1273 = vpack.c.b16 %v1048, %v1045
      %v1274 = vpack.c.b16 %v1049, %v1046
      %v1275 = vpack.c.b16 %v1050, %v1047
      %v1276 = vpack.c.b16 %v1054, %v1051
      %v1277 = vpack.c.b16 %v1055, %v1052
      %v1278 = vpack.c.b16 %v1056, %v1053
      %v1279 = vpack.c.b16 %v1060, %v1057
      %v1280 = vpack.c.b16 %v1061, %v1058
      %v1281 = vpack.c.b16 %v1062, %v1059
      %v1282 = vpack.c.b16 %v1066, %v1063
      %v1283 = vpack.c.b16 %v1067, %v1064
      %v1284 = vpack.c.b16 %v1068, %v1065
      %v1285 = vpack.c.b16 %v1072, %v1069
      %v1286 = vpack.c.b16 %v1073, %v1070
      %v1287 = vpack.c.b16 %v1074, %v1071
      %v1288 = vpack.c.b16 %v1078, %v1075
      %v1289 = vpack.c.b16 %v1079, %v1076
      %v1290 = vpack.c.b16 %v1080, %v1077
      %v1291 = vpack.c.b16 %v1084, %v1081
      %v1292 = vpack.c.b16 %v1085, %v1082
      %v1293 = vpack.c.b16 %v1086, %v1083
      %v1294 = vpack.c.b16 %v1090, %v1087
      %v1295 = vpack.c.b16 %v1091, %v1088
      %v1296 = vpack.c.b16 %v1092, %v1089
      %v1297 = vpack.c.b16 %v1096, %v1093
      %v1298 = vpack.c.b16 %v1097, %v1094
      %v1299 = vpack.c.b16 %v1098, %v1095
      %v1300 = vpack.c.b16 %v1102, %v1099
      %v1301 = vpack.c.b16 %v1103, %v1100
      %v1302 = vpack.c.b16 %v1104, %v1101
      %v1303 = vpack.c.b16 %v1108, %v1105
      %v1304 = vpack.c.b16 %v1109, %v1106
      %v1305 = vpack.c.b16 %v1110, %v1107
      %v1306 = vpack.c.b16 %v1114, %v1111
      %v1307 = vpack.c.b16 %v1115, %v1112
      %v1308 = vpack.c.b16 %v1116, %v1113
      %v1473 = vunpack.c.l.b16 %v434
      %v1474 = vunpack.c.l.b16 %v435
      %v1475 = vunpack.c.l.b16 %v436
      %v1476 = vunpack.c.l.b16 %v437
      %v1477 = vunpack.c.l.b16 %v438
      %v1478 = vunpack.c.l.b16 %v439
      %v1479 = vunpack.c.l.b16 %v440
      %v1480 = vunpack.c.l.b16 %v441
      %v1481 = vunpack.c.l.b16 %v442
      %v1482 = vunpack.c.l.b16 %v443
      %v1483 = vunpack.c.l.b16 %v444
      %v1484 = vunpack.c.l.b16 %v445
      %v1485 = vunpack.c.l.b16 %v446
      %v1486 = vunpack.c.l.b16 %v447
      %v1487 = vunpack.c.l.b16 %v448
      %v1488 = vunpack.c.l.b16 %v449
      %v1489 = vunpack.c.l.b16 %v450
      %v1490 = vunpack.c.l.b16 %v451
      %v1491 = vunpack.c.l.b16 %v452
      %v1492 = vunpack.c.l.b16 %v453
      %v1493 = vunpack.c.l.b16 %v454
      %v1494 = vunpack.c.l.b16 %v455
      %v1495 = vunpack.c.l.b16 %v456
      %v1496 = vunpack.c.l.b16 %v457
      %v1497 = vunpack.c.l.b16 %v458
      %v1498 = vunpack.c.l.b16 %v459
      %v1499 = vunpack.c.l.b16 %v460
      %v1500 = vunpack.c.l.b16 %v461
      %v1501 = vunpack.c.l.b16 %v462
      %v1502 = vunpack.c.l.b16 %v463
      %v1503 = vunpack.c.l.b16 %v464
      %v1504 = vunpack.c.l.b16 %v465
      %v1505 = vunpack.c.l.b16 %v466
      %v1506 = vunpack.c.l.b16 %v467
      %v1507 = vunpack.c.l.b16 %v468
      %v1508 = vunpack.c.l.b16 %v469
      %v1509 = vpack.c.b16 %v1474, %v1473
      %v1510 = vpack.c.b16 %v1476, %v1475
      %v1511 = vpack.c.b16 %v1478, %v1477
      %v1512 = vpack.c.b16 %v1480, %v1479
      %v1513 = vpack.c.b16 %v1482, %v1481
      %v1514 = vpack.c.b16 %v1484, %v1483
      %v1515 = vpack.c.b16 %v1486, %v1485
      %v1516 = vpack.c.b16 %v1488, %v1487
      %v1517 = vpack.c.b16 %v1490, %v1489
      %v1518 = vpack.c.b16 %v1492, %v1491
      %v1519 = vpack.c.b16 %v1494, %v1493
      %v1520 = vpack.c.b16 %v1496, %v1495
      %v1521 = vpack.c.b16 %v1498, %v1497
      %v1522 = vpack.c.b16 %v1500, %v1499
      %v1523 = vpack.c.b16 %v1502, %v1501
      %v1524 = vpack.c.b16 %v1504, %v1503
      %v1525 = vpack.c.b16 %v1506, %v1505
      %v1526 = vpack.c.b16 %v1508, %v1507
      %vm1545 = vcmask 261120
      %v1547 = vsel %vm1545, %v1119, 0
      %v1550 = vsel %vm1545, %v1122, 0
      %v1553 = vsel %vm1545, %v1125, 0
      %v1556 = vsel %vm1545, %v1128, 0
      %v1559 = vsel %vm1545, %v1131, 0
      %v1562 = vsel %vm1545, %v1134, 0
      %v1565 = vsel %vm1545, %v1137, 0
      %v1568 = vsel %vm1545, %v1140, 0
      %v1571 = vsel %vm1545, %v1143, 0
      %v1574 = vsel %vm1545, %v1146, 0
      %v1577 = vsel %vm1545, %v1149, 0
      %v1580 = vsel %vm1545, %v1152, 0
      %v1583 = vsel %vm1545, %v1155, 0
      %v1586 = vsel %vm1545, %v1158, 0
      %v1589 = vsel %vm1545, %v1161, 0
      %v1592 = vsel %vm1545, %v1164, 0
      %v1595 = vsel %vm1545, %v1167, 0
      %v1598 = vsel %vm1545, %v1170, 0
      %v1601 = vsel %vm1545, %v1173, 0
      %v1604 = vsel %vm1545, %v1176, 0
      %v1607 = vsel %vm1545, %v1179, 0
      %v1610 = vsel %vm1545, %v1182, 0
      %v1613 = vsel %vm1545, %v1185, 0
      %v1616 = vsel %vm1545, %v1188, 0
      %v1619 = vsel %vm1545, %v1191, 0
      %v1622 = vsel %vm1545, %v1194, 0
      %v1625 = vsel %vm1545, %v1197, 0
      %v1628 = vsel %vm1545, %v1200, 0
      %v1631 = vsel %vm1545, %v1203, 0
      %v1634 = vsel %vm1545, %v1206, 0
      %v1637 = vsel %vm1545, %v1209, 0
      %v1640 = vsel %vm1545, %v1212, 0
      %v1643 = vsel %vm1545, %v1215, 0
      %v1646 = vsel %vm1545, %v1218, 0
      %v1649 = vsel %vm1545, %v1221, 0
      %v1652 = vsel %vm1545, %v1224, 0
      %v1655 = vsel %vm1545, %v1227, 0
      %v1658 = vsel %vm1545, %v1230, 0
      %v1661 = vsel %vm1545, %v1233, 0
      %v1664 = vsel %vm1545, %v1236, 0
      %v1667 = vsel %vm1545, %v1239, 0
      %v1670 = vsel %vm1545, %v1242, 0
      %v1673 = vsel %vm1545, %v1245, 0
      %v1676 = vsel %vm1545, %v1248, 0
      %v1679 = vsel %vm1545, %v1251, 0
      %v1682 = vsel %vm1545, %v1254, 0
      %v1685 = vsel %vm1545, %v1257, 0
      %v1688 = vsel %vm1545, %v1260, 0
      %v1691 = vsel %vm1545, %v1263, 0
      %v1694 = vsel %vm1545, %v1266, 0
      %v1697 = vsel %vm1545, %v1269, 0
      %v1700 = vsel %vm1545, %v1272, 0
      %v1703 = vsel %vm1545, %v1275, 0
      %v1706 = vsel %vm1545, %v1278, 0
      %v1709 = vsel %vm1545, %v1281, 0
      %v1712 = vsel %vm1545, %v1284, 0
      %v1715 = vsel %vm1545, %v1287, 0
      %v1718 = vsel %vm1545, %v1290, 0
      %v1721 = vsel %vm1545, %v1293, 0
      %v1724 = vsel %vm1545, %v1296, 0
      %v1727 = vsel %vm1545, %v1299, 0
      %v1730 = vsel %vm1545, %v1302, 0
      %v1733 = vsel %vm1545, %v1305, 0
      %v1736 = vsel %vm1545, %v1308, 0
      %1738 = vmatprep.subr.bf16.mxu0 0
      %1739 = vmatpush1.bf16.msra.mxu0 %v1516
      %1740 = vmatprep.subr.bf16.mxu0 0
      %1741 = vmatpush1.bf16.msra.mxu0 %v1515
      %1742 = vmatprep.subr.bf16.mxu0 0
      %1743 = vmatpush1.bf16.msra.mxu0 %v1514
      %1744 = vmatprep.subr.bf16.mxu0 0
      %1745 = vmatpush1.bf16.msra.mxu0 %v1513
      %1746 = vmatprep.subr.bf16.mxu0 0
      %1747 = vmatpush1.bf16.msra.mxu0 %v1512
      %1748 = vmatprep.subr.bf16.mxu0 0
      %1749 = vmatpush1.bf16.msra.mxu0 %v1511
      %1750 = vmatprep.subr.bf16.mxu0 0
      %1751 = vmatpush1.bf16.msra.mxu0 %v1510
      %1752 = vmatprep.subr.bf16.mxu0 0
      %1753 = vmatpush1.bf16.msra.mxu0 %v1509
      %1754 = vmatprep.subr.bf16.mxu0 0
      %1755 = vmatpush2.bf16.msra.mxu0 %v1524
      %1756 = vmatprep.subr.bf16.mxu0 0
      %1757 = vmatpush2.bf16.msra.mxu0 %v1523
      %1758 = vmatprep.subr.bf16.mxu0 0
      %1759 = vmatpush2.bf16.msra.mxu0 %v1522
      %1760 = vmatprep.subr.bf16.mxu0 0
      %1761 = vmatpush2.bf16.msra.mxu0 %v1521
      %1762 = vmatprep.subr.bf16.mxu0 0
      %1763 = vmatpush2.bf16.msra.mxu0 %v1520
      %1764 = vmatprep.subr.bf16.mxu0 0
      %1765 = vmatpush2.bf16.msra.mxu0 %v1519
      %1766 = vmatprep.subr.bf16.mxu0 0
      %1767 = vmatpush2.bf16.msra.mxu0 %v1518
      %1768 = vmatprep.subr.bf16.mxu0 0
      %1769 = vmatpush2.bf16.msra.mxu0 %v1517
      %1770 = vmatprep.mubr.bf16.mxu0 %v1118
      %1771 = vmatmul.mubr.bf16.gmra.mxu0 %v1117
      %v1772 = vpop.f32.mrf.mxu0
      %v1773 = vadd.f32 %v475, %v1772
      %v1774 = vpop.f32.mrf.mxu0
      %v1775 = vpop.f32.mrf.mxu0
      %v1776 = vadd.f32 %v475, %v1775
      %v1777 = vpop.f32.mrf.mxu0
      %1778 = vmatprep.mubr.bf16.mxu0 %v1121
      %1779 = vmatmul.mubr.bf16.gmra.mxu0 %v1120
      %v1780 = vpop.f32.mrf.mxu0
      %v1781 = vadd.f32 %v475, %v1780
      %v1782 = vpop.f32.mrf.mxu0
      %v1783 = vpop.f32.mrf.mxu0
      %v1784 = vadd.f32 %v475, %v1783
      %v1785 = vpop.f32.mrf.mxu0
      %1786 = vmatprep.mubr.bf16.mxu0 %v1124
      %1787 = vmatmul.mubr.bf16.gmra.mxu0 %v1123
      %v1788 = vpop.f32.mrf.mxu0
      %v1789 = vadd.f32 %v475, %v1788
      %v1790 = vpop.f32.mrf.mxu0
      %v1791 = vpop.f32.mrf.mxu0
      %v1792 = vadd.f32 %v475, %v1791
      %v1793 = vpop.f32.mrf.mxu0
      %1794 = vmatprep.mubr.bf16.mxu0 %v1127
      %1795 = vmatmul.mubr.bf16.gmra.mxu0 %v1126
      %v1796 = vpop.f32.mrf.mxu0
      %v1797 = vadd.f32 %v475, %v1796
      %v1798 = vpop.f32.mrf.mxu0
      %v1799 = vpop.f32.mrf.mxu0
      %v1800 = vadd.f32 %v475, %v1799
      %v1801 = vpop.f32.mrf.mxu0
      %1802 = vmatprep.mubr.bf16.mxu0 %v1130
      %1803 = vmatmul.mubr.bf16.gmra.mxu0 %v1129
      %v1804 = vpop.f32.mrf.mxu0
      %v1805 = vadd.f32 %v475, %v1804
      %v1806 = vpop.f32.mrf.mxu0
      %v1807 = vpop.f32.mrf.mxu0
      %v1808 = vadd.f32 %v475, %v1807
      %v1809 = vpop.f32.mrf.mxu0
      %1810 = vmatprep.mubr.bf16.mxu0 %v1133
      %1811 = vmatmul.mubr.bf16.gmra.mxu0 %v1132
      %v1812 = vpop.f32.mrf.mxu0
      %v1813 = vadd.f32 %v475, %v1812
      %v1814 = vpop.f32.mrf.mxu0
      %v1815 = vpop.f32.mrf.mxu0
      %v1816 = vadd.f32 %v475, %v1815
      %v1817 = vpop.f32.mrf.mxu0
      %1818 = vmatprep.mubr.bf16.mxu0 %v1136
      %1819 = vmatmul.mubr.bf16.gmra.mxu0 %v1135
      %v1820 = vpop.f32.mrf.mxu0
      %v1821 = vadd.f32 %v475, %v1820
      %v1822 = vpop.f32.mrf.mxu0
      %v1823 = vpop.f32.mrf.mxu0
      %v1824 = vadd.f32 %v475, %v1823
      %v1825 = vpop.f32.mrf.mxu0
      %1826 = vmatprep.mubr.bf16.mxu0 %v1139
      %1827 = vmatmul.mubr.bf16.gmra.mxu0 %v1138
      %v1828 = vpop.f32.mrf.mxu0
      %v1829 = vadd.f32 %v475, %v1828
      %v1830 = vpop.f32.mrf.mxu0
      %v1831 = vpop.f32.mrf.mxu0
      %v1832 = vadd.f32 %v475, %v1831
      %v1833 = vpop.f32.mrf.mxu0
      %1834 = vmatprep.mubr.bf16.mxu0 %v1142
      %1835 = vmatmul.mubr.bf16.gmra.mxu0 %v1141
      %v1836 = vpop.f32.mrf.mxu0
      %v1837 = vadd.f32 %v475, %v1836
      %v1838 = vpop.f32.mrf.mxu0
      %v1839 = vpop.f32.mrf.mxu0
      %v1840 = vadd.f32 %v475, %v1839
      %v1841 = vpop.f32.mrf.mxu0
      %1842 = vmatprep.mubr.bf16.mxu0 %v1145
      %1843 = vmatmul.mubr.bf16.gmra.mxu0 %v1144
      %v1844 = vpop.f32.mrf.mxu0
      %v1845 = vadd.f32 %v475, %v1844
      %v1846 = vpop.f32.mrf.mxu0
      %v1847 = vpop.f32.mrf.mxu0
      %v1848 = vadd.f32 %v475, %v1847
      %v1849 = vpop.f32.mrf.mxu0
      %1850 = vmatprep.mubr.bf16.mxu0 %v1148
      %1851 = vmatmul.mubr.bf16.gmra.mxu0 %v1147
      %v1852 = vpop.f32.mrf.mxu0
      %v1853 = vadd.f32 %v475, %v1852
      %v1854 = vpop.f32.mrf.mxu0
      %v1855 = vpop.f32.mrf.mxu0
      %v1856 = vadd.f32 %v475, %v1855
      %v1857 = vpop.f32.mrf.mxu0
      %1858 = vmatprep.mubr.bf16.mxu0 %v1151
      %1859 = vmatmul.mubr.bf16.gmra.mxu0 %v1150
      %v1860 = vpop.f32.mrf.mxu0
      %v1861 = vadd.f32 %v475, %v1860
      %v1862 = vpop.f32.mrf.mxu0
      %v1863 = vpop.f32.mrf.mxu0
      %v1864 = vadd.f32 %v475, %v1863
      %v1865 = vpop.f32.mrf.mxu0
      %1866 = vmatprep.mubr.bf16.mxu0 %v1154
      %1867 = vmatmul.mubr.bf16.gmra.mxu0 %v1153
      %v1868 = vpop.f32.mrf.mxu0
      %v1869 = vadd.f32 %v475, %v1868
      %v1870 = vpop.f32.mrf.mxu0
      %v1871 = vpop.f32.mrf.mxu0
      %v1872 = vadd.f32 %v475, %v1871
      %v1873 = vpop.f32.mrf.mxu0
      %1874 = vmatprep.mubr.bf16.mxu0 %v1157
      %1875 = vmatmul.mubr.bf16.gmra.mxu0 %v1156
      %v1876 = vpop.f32.mrf.mxu0
      %v1877 = vadd.f32 %v475, %v1876
      %v1878 = vpop.f32.mrf.mxu0
      %v1879 = vpop.f32.mrf.mxu0
      %v1880 = vadd.f32 %v475, %v1879
      %v1881 = vpop.f32.mrf.mxu0
      %1882 = vmatprep.mubr.bf16.mxu0 %v1160
      %1883 = vmatmul.mubr.bf16.gmra.mxu0 %v1159
      %v1884 = vpop.f32.mrf.mxu0
      %v1885 = vadd.f32 %v475, %v1884
      %v1886 = vpop.f32.mrf.mxu0
      %v1887 = vpop.f32.mrf.mxu0
      %v1888 = vadd.f32 %v475, %v1887
      %v1889 = vpop.f32.mrf.mxu0
      %1890 = vmatprep.mubr.bf16.mxu0 %v1163
      %1891 = vmatmul.mubr.bf16.gmra.mxu0 %v1162
      %v1892 = vpop.f32.mrf.mxu0
      %v1893 = vadd.f32 %v475, %v1892
      %v1894 = vpop.f32.mrf.mxu0
      %v1895 = vpop.f32.mrf.mxu0
      %v1896 = vadd.f32 %v475, %v1895
      %v1897 = vpop.f32.mrf.mxu0
      %1898 = vmatprep.mubr.bf16.mxu0 %v1166
      %1899 = vmatmul.mubr.bf16.gmra.mxu0 %v1165
      %v1900 = vpop.f32.mrf.mxu0
      %v1901 = vadd.f32 %v475, %v1900
      %v1902 = vpop.f32.mrf.mxu0
      %v1903 = vpop.f32.mrf.mxu0
      %v1904 = vadd.f32 %v475, %v1903
      %v1905 = vpop.f32.mrf.mxu0
      %1906 = vmatprep.mubr.bf16.mxu0 %v1169
      %1907 = vmatmul.mubr.bf16.gmra.mxu0 %v1168
      %v1908 = vpop.f32.mrf.mxu0
      %v1909 = vadd.f32 %v475, %v1908
      %v1910 = vpop.f32.mrf.mxu0
      %v1911 = vpop.f32.mrf.mxu0
      %v1912 = vadd.f32 %v475, %v1911
      %v1913 = vpop.f32.mrf.mxu0
      %1914 = vmatprep.mubr.bf16.mxu0 %v1172
      %1915 = vmatmul.mubr.bf16.gmra.mxu0 %v1171
      %v1916 = vpop.f32.mrf.mxu0
      %v1917 = vadd.f32 %v475, %v1916
      %v1918 = vpop.f32.mrf.mxu0
      %v1919 = vpop.f32.mrf.mxu0
      %v1920 = vadd.f32 %v475, %v1919
      %v1921 = vpop.f32.mrf.mxu0
      %1922 = vmatprep.mubr.bf16.mxu0 %v1175
      %1923 = vmatmul.mubr.bf16.gmra.mxu0 %v1174
      %v1924 = vpop.f32.mrf.mxu0
      %v1925 = vadd.f32 %v475, %v1924
      %v1926 = vpop.f32.mrf.mxu0
      %v1927 = vpop.f32.mrf.mxu0
      %v1928 = vadd.f32 %v475, %v1927
      %v1929 = vpop.f32.mrf.mxu0
      %1930 = vmatprep.mubr.bf16.mxu0 %v1178
      %1931 = vmatmul.mubr.bf16.gmra.mxu0 %v1177
      %v1932 = vpop.f32.mrf.mxu0
      %v1933 = vadd.f32 %v475, %v1932
      %v1934 = vpop.f32.mrf.mxu0
      %v1935 = vpop.f32.mrf.mxu0
      %v1936 = vadd.f32 %v475, %v1935
      %v1937 = vpop.f32.mrf.mxu0
      %1938 = vmatprep.mubr.bf16.mxu0 %v1181
      %1939 = vmatmul.mubr.bf16.gmra.mxu0 %v1180
      %v1940 = vpop.f32.mrf.mxu0
      %v1941 = vadd.f32 %v475, %v1940
      %v1942 = vpop.f32.mrf.mxu0
      %v1943 = vpop.f32.mrf.mxu0
      %v1944 = vadd.f32 %v475, %v1943
      %v1945 = vpop.f32.mrf.mxu0
      %1946 = vmatprep.mubr.bf16.mxu0 %v1184
      %1947 = vmatmul.mubr.bf16.gmra.mxu0 %v1183
      %v1948 = vpop.f32.mrf.mxu0
      %v1949 = vadd.f32 %v475, %v1948
      %v1950 = vpop.f32.mrf.mxu0
      %v1951 = vpop.f32.mrf.mxu0
      %v1952 = vadd.f32 %v475, %v1951
      %v1953 = vpop.f32.mrf.mxu0
      %1954 = vmatprep.mubr.bf16.mxu0 %v1187
      %1955 = vmatmul.mubr.bf16.gmra.mxu0 %v1186
      %v1956 = vpop.f32.mrf.mxu0
      %v1957 = vadd.f32 %v475, %v1956
      %v1958 = vpop.f32.mrf.mxu0
      %v1959 = vpop.f32.mrf.mxu0
      %v1960 = vadd.f32 %v475, %v1959
      %v1961 = vpop.f32.mrf.mxu0
      %1962 = vmatprep.mubr.bf16.mxu0 %v1190
      %1963 = vmatmul.mubr.bf16.gmra.mxu0 %v1189
      %v1964 = vpop.f32.mrf.mxu0
      %v1965 = vadd.f32 %v475, %v1964
      %v1966 = vpop.f32.mrf.mxu0
      %v1967 = vpop.f32.mrf.mxu0
      %v1968 = vadd.f32 %v475, %v1967
      %v1969 = vpop.f32.mrf.mxu0
      %1970 = vmatprep.mubr.bf16.mxu0 %v1193
      %1971 = vmatmul.mubr.bf16.gmra.mxu0 %v1192
      %v1972 = vpop.f32.mrf.mxu0
      %v1973 = vadd.f32 %v475, %v1972
      %v1974 = vpop.f32.mrf.mxu0
      %v1975 = vpop.f32.mrf.mxu0
      %v1976 = vadd.f32 %v475, %v1975
      %v1977 = vpop.f32.mrf.mxu0
      %1978 = vmatprep.mubr.bf16.mxu0 %v1196
      %1979 = vmatmul.mubr.bf16.gmra.mxu0 %v1195
      %v1980 = vpop.f32.mrf.mxu0
      %v1981 = vadd.f32 %v475, %v1980
      %v1982 = vpop.f32.mrf.mxu0
      %v1983 = vpop.f32.mrf.mxu0
      %v1984 = vadd.f32 %v475, %v1983
      %v1985 = vpop.f32.mrf.mxu0
      %1986 = vmatprep.mubr.bf16.mxu0 %v1199
      %1987 = vmatmul.mubr.bf16.gmra.mxu0 %v1198
      %v1988 = vpop.f32.mrf.mxu0
      %v1989 = vadd.f32 %v475, %v1988
      %v1990 = vpop.f32.mrf.mxu0
      %v1991 = vpop.f32.mrf.mxu0
      %v1992 = vadd.f32 %v475, %v1991
      %v1993 = vpop.f32.mrf.mxu0
      %1994 = vmatprep.mubr.bf16.mxu0 %v1202
      %1995 = vmatmul.mubr.bf16.gmra.mxu0 %v1201
      %v1996 = vpop.f32.mrf.mxu0
      %v1997 = vadd.f32 %v475, %v1996
      %v1998 = vpop.f32.mrf.mxu0
      %v1999 = vpop.f32.mrf.mxu0
      %v2000 = vadd.f32 %v475, %v1999
      %v2001 = vpop.f32.mrf.mxu0
      %2002 = vmatprep.mubr.bf16.mxu0 %v1205
      %2003 = vmatmul.mubr.bf16.gmra.mxu0 %v1204
      %v2004 = vpop.f32.mrf.mxu0
      %v2005 = vadd.f32 %v475, %v2004
      %v2006 = vpop.f32.mrf.mxu0
      %v2007 = vpop.f32.mrf.mxu0
      %v2008 = vadd.f32 %v475, %v2007
      %v2009 = vpop.f32.mrf.mxu0
      %2010 = vmatprep.mubr.bf16.mxu0 %v1208
      %2011 = vmatmul.mubr.bf16.gmra.mxu0 %v1207
      %v2012 = vpop.f32.mrf.mxu0
      %v2013 = vadd.f32 %v475, %v2012
      %v2014 = vpop.f32.mrf.mxu0
      %v2015 = vpop.f32.mrf.mxu0
      %v2016 = vadd.f32 %v475, %v2015
      %v2017 = vpop.f32.mrf.mxu0
      %2018 = vmatprep.mubr.bf16.mxu0 %v1211
      %2019 = vmatmul.mubr.bf16.gmra.mxu0 %v1210
      %v2020 = vpop.f32.mrf.mxu0
      %v2021 = vadd.f32 %v475, %v2020
      %v2022 = vpop.f32.mrf.mxu0
      %v2023 = vpop.f32.mrf.mxu0
      %v2024 = vadd.f32 %v475, %v2023
      %v2025 = vpop.f32.mrf.mxu0
      %2026 = vmatprep.mubr.bf16.mxu0 %v1214
      %2027 = vmatmul.mubr.bf16.gmra.mxu0 %v1213
      %v2028 = vpop.f32.mrf.mxu0
      %v2029 = vadd.f32 %v475, %v2028
      %v2030 = vpop.f32.mrf.mxu0
      %v2031 = vpop.f32.mrf.mxu0
      %v2032 = vadd.f32 %v475, %v2031
      %v2033 = vpop.f32.mrf.mxu0
      %2034 = vmatprep.mubr.bf16.mxu0 %v1217
      %2035 = vmatmul.mubr.bf16.gmra.mxu0 %v1216
      %v2036 = vpop.f32.mrf.mxu0
      %v2037 = vadd.f32 %v475, %v2036
      %v2038 = vpop.f32.mrf.mxu0
      %v2039 = vpop.f32.mrf.mxu0
      %v2040 = vadd.f32 %v475, %v2039
      %v2041 = vpop.f32.mrf.mxu0
      %2042 = vmatprep.mubr.bf16.mxu0 %v1220
      %2043 = vmatmul.mubr.bf16.gmra.mxu0 %v1219
      %v2044 = vpop.f32.mrf.mxu0
      %v2045 = vadd.f32 %v475, %v2044
      %v2046 = vpop.f32.mrf.mxu0
      %v2047 = vpop.f32.mrf.mxu0
      %v2048 = vadd.f32 %v475, %v2047
      %v2049 = vpop.f32.mrf.mxu0
      %2050 = vmatprep.mubr.bf16.mxu0 %v1223
      %2051 = vmatmul.mubr.bf16.gmra.mxu0 %v1222
      %v2052 = vpop.f32.mrf.mxu0
      %v2053 = vadd.f32 %v475, %v2052
      %v2054 = vpop.f32.mrf.mxu0
      %v2055 = vpop.f32.mrf.mxu0
      %v2056 = vadd.f32 %v475, %v2055
      %v2057 = vpop.f32.mrf.mxu0
      %2058 = vmatprep.mubr.bf16.mxu0 %v1226
      %2059 = vmatmul.mubr.bf16.gmra.mxu0 %v1225
      %v2060 = vpop.f32.mrf.mxu0
      %v2061 = vadd.f32 %v475, %v2060
      %v2062 = vpop.f32.mrf.mxu0
      %v2063 = vpop.f32.mrf.mxu0
      %v2064 = vadd.f32 %v475, %v2063
      %v2065 = vpop.f32.mrf.mxu0
      %2066 = vmatprep.mubr.bf16.mxu0 %v1229
      %2067 = vmatmul.mubr.bf16.gmra.mxu0 %v1228
      %v2068 = vpop.f32.mrf.mxu0
      %v2069 = vadd.f32 %v475, %v2068
      %v2070 = vpop.f32.mrf.mxu0
      %v2071 = vpop.f32.mrf.mxu0
      %v2072 = vadd.f32 %v475, %v2071
      %v2073 = vpop.f32.mrf.mxu0
      %2074 = vmatprep.mubr.bf16.mxu0 %v1232
      %2075 = vmatmul.mubr.bf16.gmra.mxu0 %v1231
      %v2076 = vpop.f32.mrf.mxu0
      %v2077 = vadd.f32 %v475, %v2076
      %v2078 = vpop.f32.mrf.mxu0
      %v2079 = vpop.f32.mrf.mxu0
      %v2080 = vadd.f32 %v475, %v2079
      %v2081 = vpop.f32.mrf.mxu0
      %2082 = vmatprep.mubr.bf16.mxu0 %v1235
      %2083 = vmatmul.mubr.bf16.gmra.mxu0 %v1234
      %v2084 = vpop.f32.mrf.mxu0
      %v2085 = vadd.f32 %v475, %v2084
      %v2086 = vpop.f32.mrf.mxu0
      %v2087 = vpop.f32.mrf.mxu0
      %v2088 = vadd.f32 %v475, %v2087
      %v2089 = vpop.f32.mrf.mxu0
      %2090 = vmatprep.mubr.bf16.mxu0 %v1238
      %2091 = vmatmul.mubr.bf16.gmra.mxu0 %v1237
      %v2092 = vpop.f32.mrf.mxu0
      %v2093 = vadd.f32 %v475, %v2092
      %v2094 = vpop.f32.mrf.mxu0
      %v2095 = vpop.f32.mrf.mxu0
      %v2096 = vadd.f32 %v475, %v2095
      %v2097 = vpop.f32.mrf.mxu0
      %2098 = vmatprep.mubr.bf16.mxu0 %v1241
      %2099 = vmatmul.mubr.bf16.gmra.mxu0 %v1240
      %v2100 = vpop.f32.mrf.mxu0
      %v2101 = vadd.f32 %v475, %v2100
      %v2102 = vpop.f32.mrf.mxu0
      %v2103 = vpop.f32.mrf.mxu0
      %v2104 = vadd.f32 %v475, %v2103
      %v2105 = vpop.f32.mrf.mxu0
      %2106 = vmatprep.mubr.bf16.mxu0 %v1244
      %2107 = vmatmul.mubr.bf16.gmra.mxu0 %v1243
      %v2108 = vpop.f32.mrf.mxu0
      %v2109 = vadd.f32 %v475, %v2108
      %v2110 = vpop.f32.mrf.mxu0
      %v2111 = vpop.f32.mrf.mxu0
      %v2112 = vadd.f32 %v475, %v2111
      %v2113 = vpop.f32.mrf.mxu0
      %2114 = vmatprep.mubr.bf16.mxu0 %v1247
      %2115 = vmatmul.mubr.bf16.gmra.mxu0 %v1246
      %v2116 = vpop.f32.mrf.mxu0
      %v2117 = vadd.f32 %v475, %v2116
      %v2118 = vpop.f32.mrf.mxu0
      %v2119 = vpop.f32.mrf.mxu0
      %v2120 = vadd.f32 %v475, %v2119
      %v2121 = vpop.f32.mrf.mxu0
      %2122 = vmatprep.mubr.bf16.mxu0 %v1250
      %2123 = vmatmul.mubr.bf16.gmra.mxu0 %v1249
      %v2124 = vpop.f32.mrf.mxu0
      %v2125 = vadd.f32 %v475, %v2124
      %v2126 = vpop.f32.mrf.mxu0
      %v2127 = vpop.f32.mrf.mxu0
      %v2128 = vadd.f32 %v475, %v2127
      %v2129 = vpop.f32.mrf.mxu0
      %2130 = vmatprep.mubr.bf16.mxu0 %v1253
      %2131 = vmatmul.mubr.bf16.gmra.mxu0 %v1252
      %v2132 = vpop.f32.mrf.mxu0
      %v2133 = vadd.f32 %v475, %v2132
      %v2134 = vpop.f32.mrf.mxu0
      %v2135 = vpop.f32.mrf.mxu0
      %v2136 = vadd.f32 %v475, %v2135
      %v2137 = vpop.f32.mrf.mxu0
      %2138 = vmatprep.mubr.bf16.mxu0 %v1256
      %2139 = vmatmul.mubr.bf16.gmra.mxu0 %v1255
      %v2140 = vpop.f32.mrf.mxu0
      %v2141 = vadd.f32 %v475, %v2140
      %v2142 = vpop.f32.mrf.mxu0
      %v2143 = vpop.f32.mrf.mxu0
      %v2144 = vadd.f32 %v475, %v2143
      %v2145 = vpop.f32.mrf.mxu0
      %2146 = vmatprep.mubr.bf16.mxu0 %v1259
      %2147 = vmatmul.mubr.bf16.gmra.mxu0 %v1258
      %v2148 = vpop.f32.mrf.mxu0
      %v2149 = vadd.f32 %v475, %v2148
      %v2150 = vpop.f32.mrf.mxu0
      %v2151 = vpop.f32.mrf.mxu0
      %v2152 = vadd.f32 %v475, %v2151
      %v2153 = vpop.f32.mrf.mxu0
      %2154 = vmatprep.mubr.bf16.mxu0 %v1262
      %2155 = vmatmul.mubr.bf16.gmra.mxu0 %v1261
      %v2156 = vpop.f32.mrf.mxu0
      %v2157 = vadd.f32 %v475, %v2156
      %v2158 = vpop.f32.mrf.mxu0
      %v2159 = vpop.f32.mrf.mxu0
      %v2160 = vadd.f32 %v475, %v2159
      %v2161 = vpop.f32.mrf.mxu0
      %2162 = vmatprep.mubr.bf16.mxu0 %v1265
      %2163 = vmatmul.mubr.bf16.gmra.mxu0 %v1264
      %v2164 = vpop.f32.mrf.mxu0
      %v2165 = vadd.f32 %v475, %v2164
      %v2166 = vpop.f32.mrf.mxu0
      %v2167 = vpop.f32.mrf.mxu0
      %v2168 = vadd.f32 %v475, %v2167
      %v2169 = vpop.f32.mrf.mxu0
      %2170 = vmatprep.mubr.bf16.mxu0 %v1268
      %2171 = vmatmul.mubr.bf16.gmra.mxu0 %v1267
      %v2172 = vpop.f32.mrf.mxu0
      %v2173 = vadd.f32 %v475, %v2172
      %v2174 = vpop.f32.mrf.mxu0
      %v2175 = vpop.f32.mrf.mxu0
      %v2176 = vadd.f32 %v475, %v2175
      %v2177 = vpop.f32.mrf.mxu0
      %2178 = vmatprep.mubr.bf16.mxu0 %v1271
      %2179 = vmatmul.mubr.bf16.gmra.mxu0 %v1270
      %v2180 = vpop.f32.mrf.mxu0
      %v2181 = vadd.f32 %v475, %v2180
      %v2182 = vpop.f32.mrf.mxu0
      %v2183 = vpop.f32.mrf.mxu0
      %v2184 = vadd.f32 %v475, %v2183
      %v2185 = vpop.f32.mrf.mxu0
      %2186 = vmatprep.mubr.bf16.mxu0 %v1274
      %2187 = vmatmul.mubr.bf16.gmra.mxu0 %v1273
      %v2188 = vpop.f32.mrf.mxu0
      %v2189 = vadd.f32 %v475, %v2188
      %v2190 = vpop.f32.mrf.mxu0
      %v2191 = vpop.f32.mrf.mxu0
      %v2192 = vadd.f32 %v475, %v2191
      %v2193 = vpop.f32.mrf.mxu0
      %2194 = vmatprep.mubr.bf16.mxu0 %v1277
      %2195 = vmatmul.mubr.bf16.gmra.mxu0 %v1276
      %v2196 = vpop.f32.mrf.mxu0
      %v2197 = vadd.f32 %v475, %v2196
      %v2198 = vpop.f32.mrf.mxu0
      %v2199 = vpop.f32.mrf.mxu0
      %v2200 = vadd.f32 %v475, %v2199
      %v2201 = vpop.f32.mrf.mxu0
      %2202 = vmatprep.mubr.bf16.mxu0 %v1280
      %2203 = vmatmul.mubr.bf16.gmra.mxu0 %v1279
      %v2204 = vpop.f32.mrf.mxu0
      %v2205 = vadd.f32 %v475, %v2204
      %v2206 = vpop.f32.mrf.mxu0
      %v2207 = vpop.f32.mrf.mxu0
      %v2208 = vadd.f32 %v475, %v2207
      %v2209 = vpop.f32.mrf.mxu0
      %2210 = vmatprep.mubr.bf16.mxu0 %v1283
      %2211 = vmatmul.mubr.bf16.gmra.mxu0 %v1282
      %v2212 = vpop.f32.mrf.mxu0
      %v2213 = vadd.f32 %v475, %v2212
      %v2214 = vpop.f32.mrf.mxu0
      %v2215 = vpop.f32.mrf.mxu0
      %v2216 = vadd.f32 %v475, %v2215
      %v2217 = vpop.f32.mrf.mxu0
      %2218 = vmatprep.mubr.bf16.mxu0 %v1286
      %2219 = vmatmul.mubr.bf16.gmra.mxu0 %v1285
      %v2220 = vpop.f32.mrf.mxu0
      %v2221 = vadd.f32 %v475, %v2220
      %v2222 = vpop.f32.mrf.mxu0
      %v2223 = vpop.f32.mrf.mxu0
      %v2224 = vadd.f32 %v475, %v2223
      %v2225 = vpop.f32.mrf.mxu0
      %2226 = vmatprep.mubr.bf16.mxu0 %v1289
      %2227 = vmatmul.mubr.bf16.gmra.mxu0 %v1288
      %v2228 = vpop.f32.mrf.mxu0
      %v2229 = vadd.f32 %v475, %v2228
      %v2230 = vpop.f32.mrf.mxu0
      %v2231 = vpop.f32.mrf.mxu0
      %v2232 = vadd.f32 %v475, %v2231
      %v2233 = vpop.f32.mrf.mxu0
      %2234 = vmatprep.mubr.bf16.mxu0 %v1292
      %2235 = vmatmul.mubr.bf16.gmra.mxu0 %v1291
      %v2236 = vpop.f32.mrf.mxu0
      %v2237 = vadd.f32 %v475, %v2236
      %v2238 = vpop.f32.mrf.mxu0
      %v2239 = vpop.f32.mrf.mxu0
      %v2240 = vadd.f32 %v475, %v2239
      %v2241 = vpop.f32.mrf.mxu0
      %2242 = vmatprep.mubr.bf16.mxu0 %v1295
      %2243 = vmatmul.mubr.bf16.gmra.mxu0 %v1294
      %v2244 = vpop.f32.mrf.mxu0
      %v2245 = vadd.f32 %v475, %v2244
      %v2246 = vpop.f32.mrf.mxu0
      %v2247 = vpop.f32.mrf.mxu0
      %v2248 = vadd.f32 %v475, %v2247
      %v2249 = vpop.f32.mrf.mxu0
      %2250 = vmatprep.mubr.bf16.mxu0 %v1298
      %2251 = vmatmul.mubr.bf16.gmra.mxu0 %v1297
      %v2252 = vpop.f32.mrf.mxu0
      %v2253 = vadd.f32 %v475, %v2252
      %v2254 = vpop.f32.mrf.mxu0
      %v2255 = vpop.f32.mrf.mxu0
      %v2256 = vadd.f32 %v475, %v2255
      %v2257 = vpop.f32.mrf.mxu0
      %2258 = vmatprep.mubr.bf16.mxu0 %v1301
      %2259 = vmatmul.mubr.bf16.gmra.mxu0 %v1300
      %v2260 = vpop.f32.mrf.mxu0
      %v2261 = vadd.f32 %v475, %v2260
      %v2262 = vpop.f32.mrf.mxu0
      %v2263 = vpop.f32.mrf.mxu0
      %v2264 = vadd.f32 %v475, %v2263
      %v2265 = vpop.f32.mrf.mxu0
      %2266 = vmatprep.mubr.bf16.mxu0 %v1304
      %2267 = vmatmul.mubr.bf16.gmra.mxu0 %v1303
      %v2268 = vpop.f32.mrf.mxu0
      %v2269 = vadd.f32 %v475, %v2268
      %v2270 = vpop.f32.mrf.mxu0
      %v2271 = vpop.f32.mrf.mxu0
      %v2272 = vadd.f32 %v475, %v2271
      %v2273 = vpop.f32.mrf.mxu0
      %2274 = vmatprep.mubr.bf16.mxu0 %v1307
      %2275 = vmatmul.mubr.bf16.gmra.mxu0 %v1306
      %v2276 = vpop.f32.mrf.mxu0
      %v2277 = vadd.f32 %v475, %v2276
      %v2278 = vpop.f32.mrf.mxu0
      %v2279 = vpop.f32.mrf.mxu0
      %v2280 = vadd.f32 %v475, %v2279
      %v2281 = vpop.f32.mrf.mxu0
      %2282 = vdwg.mxu0
      %2283 = vmatprep.subr.bf16.mxu0 0
      %2284 = vmatpush1.bf16.msra.mxu0 0
      %2285 = vmatprep.subr.bf16.mxu0 0
      %2286 = vmatpush1.bf16.msra.mxu0 0
      %2287 = vmatprep.subr.bf16.mxu0 0
      %2288 = vmatpush1.bf16.msra.mxu0 0
      %2289 = vmatprep.subr.bf16.mxu0 0
      %2290 = vmatpush1.bf16.msra.mxu0 0
      %2291 = vmatprep.subr.bf16.mxu0 0
      %2292 = vmatpush1.bf16.msra.mxu0 0
      %2293 = vmatprep.subr.bf16.mxu0 0
      %2294 = vmatpush1.bf16.msra.mxu0 0
      %2295 = vmatprep.subr.bf16.mxu0 0
      %2296 = vmatpush1.bf16.msra.mxu0 %v1526
      %2297 = vmatprep.subr.bf16.mxu0 0
      %2298 = vmatpush1.bf16.msra.mxu0 %v1525
      %2299 = vmatprep.subr.bf16.mxu0 0
      %2300 = vmatpush2.bf16.msra.mxu0 0
      %2301 = vmatprep.subr.bf16.mxu0 0
      %2302 = vmatpush2.bf16.msra.mxu0 0
      %2303 = vmatprep.subr.bf16.mxu0 0
      %2304 = vmatpush2.bf16.msra.mxu0 0
      %2305 = vmatprep.subr.bf16.mxu0 0
      %2306 = vmatpush2.bf16.msra.mxu0 0
      %2307 = vmatprep.subr.bf16.mxu0 0
      %2308 = vmatpush2.bf16.msra.mxu0 0
      %2309 = vmatprep.subr.bf16.mxu0 0
      %2310 = vmatpush2.bf16.msra.mxu0 0
      %2311 = vmatprep.subr.bf16.mxu0 0
      %2312 = vmatpush2.bf16.msra.mxu0 0
      %2313 = vmatprep.subr.bf16.mxu0 0
      %2314 = vmatpush2.bf16.msra.mxu0 0
      %2315 = vmatprep.mubr.bf16.mxu0 0
      %2316 = vmatmul.mubr.bf16.gmra.mxu0 %v1547
      %v2317 = vpop.f32.mrf.mxu0
      %v2318 = vadd.f32 %v1773, %v2317
      %v2319 = vpop.f32.mrf.mxu0
      %v2320 = vpop.f32.mrf.mxu0
      %v2321 = vadd.f32 %v1776, %v2320
      %v2322 = vpop.f32.mrf.mxu0
      %2323 = vmatprep.mubr.bf16.mxu0 0
      %2324 = vmatmul.mubr.bf16.gmra.mxu0 %v1550
      %v2325 = vpop.f32.mrf.mxu0
      %v2326 = vadd.f32 %v1781, %v2325
      %v2327 = vpop.f32.mrf.mxu0
      %v2328 = vpop.f32.mrf.mxu0
      %v2329 = vadd.f32 %v1784, %v2328
      %v2330 = vpop.f32.mrf.mxu0
      %2331 = vmatprep.mubr.bf16.mxu0 0
      %2332 = vmatmul.mubr.bf16.gmra.mxu0 %v1553
      %v2333 = vpop.f32.mrf.mxu0
      %v2334 = vadd.f32 %v1789, %v2333
      %v2335 = vpop.f32.mrf.mxu0
      %v2336 = vpop.f32.mrf.mxu0
      %v2337 = vadd.f32 %v1792, %v2336
      %v2338 = vpop.f32.mrf.mxu0
      %2339 = vmatprep.mubr.bf16.mxu0 0
      %2340 = vmatmul.mubr.bf16.gmra.mxu0 %v1556
      %v2341 = vpop.f32.mrf.mxu0
      %v2342 = vadd.f32 %v1797, %v2341
      %v2343 = vpop.f32.mrf.mxu0
      %v2344 = vpop.f32.mrf.mxu0
      %v2345 = vadd.f32 %v1800, %v2344
      %v2346 = vpop.f32.mrf.mxu0
      %2347 = vmatprep.mubr.bf16.mxu0 0
      %2348 = vmatmul.mubr.bf16.gmra.mxu0 %v1559
      %v2349 = vpop.f32.mrf.mxu0
      %v2350 = vadd.f32 %v1805, %v2349
      %v2351 = vpop.f32.mrf.mxu0
      %v2352 = vpop.f32.mrf.mxu0
      %v2353 = vadd.f32 %v1808, %v2352
      %v2354 = vpop.f32.mrf.mxu0
      %2355 = vmatprep.mubr.bf16.mxu0 0
      %2356 = vmatmul.mubr.bf16.gmra.mxu0 %v1562
      %v2357 = vpop.f32.mrf.mxu0
      %v2358 = vadd.f32 %v1813, %v2357
      %v2359 = vpop.f32.mrf.mxu0
      %v2360 = vpop.f32.mrf.mxu0
      %v2361 = vadd.f32 %v1816, %v2360
      %v2362 = vpop.f32.mrf.mxu0
      %2363 = vmatprep.mubr.bf16.mxu0 0
      %2364 = vmatmul.mubr.bf16.gmra.mxu0 %v1565
      %v2365 = vpop.f32.mrf.mxu0
      %v2366 = vadd.f32 %v1821, %v2365
      %v2367 = vpop.f32.mrf.mxu0
      %v2368 = vpop.f32.mrf.mxu0
      %v2369 = vadd.f32 %v1824, %v2368
      %v2370 = vpop.f32.mrf.mxu0
      %2371 = vmatprep.mubr.bf16.mxu0 0
      %2372 = vmatmul.mubr.bf16.gmra.mxu0 %v1568
      %v2373 = vpop.f32.mrf.mxu0
      %v2374 = vadd.f32 %v1829, %v2373
      %v2375 = vpop.f32.mrf.mxu0
      %v2376 = vpop.f32.mrf.mxu0
      %v2377 = vadd.f32 %v1832, %v2376
      %v2378 = vpop.f32.mrf.mxu0
      %2379 = vmatprep.mubr.bf16.mxu0 0
      %2380 = vmatmul.mubr.bf16.gmra.mxu0 %v1571
      %v2381 = vpop.f32.mrf.mxu0
      %v2382 = vadd.f32 %v1837, %v2381
      %v2383 = vpop.f32.mrf.mxu0
      %v2384 = vpop.f32.mrf.mxu0
      %v2385 = vadd.f32 %v1840, %v2384
      %v2386 = vpop.f32.mrf.mxu0
      %2387 = vmatprep.mubr.bf16.mxu0 0
      %2388 = vmatmul.mubr.bf16.gmra.mxu0 %v1574
      %v2389 = vpop.f32.mrf.mxu0
      %v2390 = vadd.f32 %v1845, %v2389
      %v2391 = vpop.f32.mrf.mxu0
      %v2392 = vpop.f32.mrf.mxu0
      %v2393 = vadd.f32 %v1848, %v2392
      %v2394 = vpop.f32.mrf.mxu0
      %2395 = vmatprep.mubr.bf16.mxu0 0
      %2396 = vmatmul.mubr.bf16.gmra.mxu0 %v1577
      %v2397 = vpop.f32.mrf.mxu0
      %v2398 = vadd.f32 %v1853, %v2397
      %v2399 = vpop.f32.mrf.mxu0
      %v2400 = vpop.f32.mrf.mxu0
      %v2401 = vadd.f32 %v1856, %v2400
      %v2402 = vpop.f32.mrf.mxu0
      %2403 = vmatprep.mubr.bf16.mxu0 0
      %2404 = vmatmul.mubr.bf16.gmra.mxu0 %v1580
      %v2405 = vpop.f32.mrf.mxu0
      %v2406 = vadd.f32 %v1861, %v2405
      %v2407 = vpop.f32.mrf.mxu0
      %v2408 = vpop.f32.mrf.mxu0
      %v2409 = vadd.f32 %v1864, %v2408
      %v2410 = vpop.f32.mrf.mxu0
      %2411 = vmatprep.mubr.bf16.mxu0 0
      %2412 = vmatmul.mubr.bf16.gmra.mxu0 %v1583
      %v2413 = vpop.f32.mrf.mxu0
      %v2414 = vadd.f32 %v1869, %v2413
      %v2415 = vpop.f32.mrf.mxu0
      %v2416 = vpop.f32.mrf.mxu0
      %v2417 = vadd.f32 %v1872, %v2416
      %v2418 = vpop.f32.mrf.mxu0
      %2419 = vmatprep.mubr.bf16.mxu0 0
      %2420 = vmatmul.mubr.bf16.gmra.mxu0 %v1586
      %v2421 = vpop.f32.mrf.mxu0
      %v2422 = vadd.f32 %v1877, %v2421
      %v2423 = vpop.f32.mrf.mxu0
      %v2424 = vpop.f32.mrf.mxu0
      %v2425 = vadd.f32 %v1880, %v2424
      %v2426 = vpop.f32.mrf.mxu0
      %2427 = vmatprep.mubr.bf16.mxu0 0
      %2428 = vmatmul.mubr.bf16.gmra.mxu0 %v1589
      %v2429 = vpop.f32.mrf.mxu0
      %v2430 = vadd.f32 %v1885, %v2429
      %v2431 = vpop.f32.mrf.mxu0
      %v2432 = vpop.f32.mrf.mxu0
      %v2433 = vadd.f32 %v1888, %v2432
      %v2434 = vpop.f32.mrf.mxu0
      %2435 = vmatprep.mubr.bf16.mxu0 0
      %2436 = vmatmul.mubr.bf16.gmra.mxu0 %v1592
      %v2437 = vpop.f32.mrf.mxu0
      %v2438 = vadd.f32 %v1893, %v2437
      %v2439 = vpop.f32.mrf.mxu0
      %v2440 = vpop.f32.mrf.mxu0
      %v2441 = vadd.f32 %v1896, %v2440
      %v2442 = vpop.f32.mrf.mxu0
      %2443 = vmatprep.mubr.bf16.mxu0 0
      %2444 = vmatmul.mubr.bf16.gmra.mxu0 %v1595
      %v2445 = vpop.f32.mrf.mxu0
      %v2446 = vadd.f32 %v1901, %v2445
      %v2447 = vpop.f32.mrf.mxu0
      %v2448 = vpop.f32.mrf.mxu0
      %v2449 = vadd.f32 %v1904, %v2448
      %v2450 = vpop.f32.mrf.mxu0
      %2451 = vmatprep.mubr.bf16.mxu0 0
      %2452 = vmatmul.mubr.bf16.gmra.mxu0 %v1598
      %v2453 = vpop.f32.mrf.mxu0
      %v2454 = vadd.f32 %v1909, %v2453
      %v2455 = vpop.f32.mrf.mxu0
      %v2456 = vpop.f32.mrf.mxu0
      %v2457 = vadd.f32 %v1912, %v2456
      %v2458 = vpop.f32.mrf.mxu0
      %2459 = vmatprep.mubr.bf16.mxu0 0
      %2460 = vmatmul.mubr.bf16.gmra.mxu0 %v1601
      %v2461 = vpop.f32.mrf.mxu0
      %v2462 = vadd.f32 %v1917, %v2461
      %v2463 = vpop.f32.mrf.mxu0
      %v2464 = vpop.f32.mrf.mxu0
      %v2465 = vadd.f32 %v1920, %v2464
      %v2466 = vpop.f32.mrf.mxu0
      %2467 = vmatprep.mubr.bf16.mxu0 0
      %2468 = vmatmul.mubr.bf16.gmra.mxu0 %v1604
      %v2469 = vpop.f32.mrf.mxu0
      %v2470 = vadd.f32 %v1925, %v2469
      %v2471 = vpop.f32.mrf.mxu0
      %v2472 = vpop.f32.mrf.mxu0
      %v2473 = vadd.f32 %v1928, %v2472
      %v2474 = vpop.f32.mrf.mxu0
      %2475 = vmatprep.mubr.bf16.mxu0 0
      %2476 = vmatmul.mubr.bf16.gmra.mxu0 %v1607
      %v2477 = vpop.f32.mrf.mxu0
      %v2478 = vadd.f32 %v1933, %v2477
      %v2479 = vpop.f32.mrf.mxu0
      %v2480 = vpop.f32.mrf.mxu0
      %v2481 = vadd.f32 %v1936, %v2480
      %v2482 = vpop.f32.mrf.mxu0
      %2483 = vmatprep.mubr.bf16.mxu0 0
      %2484 = vmatmul.mubr.bf16.gmra.mxu0 %v1610
      %v2485 = vpop.f32.mrf.mxu0
      %v2486 = vadd.f32 %v1941, %v2485
      %v2487 = vpop.f32.mrf.mxu0
      %v2488 = vpop.f32.mrf.mxu0
      %v2489 = vadd.f32 %v1944, %v2488
      %v2490 = vpop.f32.mrf.mxu0
      %2491 = vmatprep.mubr.bf16.mxu0 0
      %2492 = vmatmul.mubr.bf16.gmra.mxu0 %v1613
      %v2493 = vpop.f32.mrf.mxu0
      %v2494 = vadd.f32 %v1949, %v2493
      %v2495 = vpop.f32.mrf.mxu0
      %v2496 = vpop.f32.mrf.mxu0
      %v2497 = vadd.f32 %v1952, %v2496
      %v2498 = vpop.f32.mrf.mxu0
      %2499 = vmatprep.mubr.bf16.mxu0 0
      %2500 = vmatmul.mubr.bf16.gmra.mxu0 %v1616
      %v2501 = vpop.f32.mrf.mxu0
      %v2502 = vadd.f32 %v1957, %v2501
      %v2503 = vpop.f32.mrf.mxu0
      %v2504 = vpop.f32.mrf.mxu0
      %v2505 = vadd.f32 %v1960, %v2504
      %v2506 = vpop.f32.mrf.mxu0
      %2507 = vmatprep.mubr.bf16.mxu0 0
      %2508 = vmatmul.mubr.bf16.gmra.mxu0 %v1619
      %v2509 = vpop.f32.mrf.mxu0
      %v2510 = vadd.f32 %v1965, %v2509
      %v2511 = vpop.f32.mrf.mxu0
      %v2512 = vpop.f32.mrf.mxu0
      %v2513 = vadd.f32 %v1968, %v2512
      %v2514 = vpop.f32.mrf.mxu0
      %2515 = vmatprep.mubr.bf16.mxu0 0
      %2516 = vmatmul.mubr.bf16.gmra.mxu0 %v1622
      %v2517 = vpop.f32.mrf.mxu0
      %v2518 = vadd.f32 %v1973, %v2517
      %v2519 = vpop.f32.mrf.mxu0
      %v2520 = vpop.f32.mrf.mxu0
      %v2521 = vadd.f32 %v1976, %v2520
      %v2522 = vpop.f32.mrf.mxu0
      %2523 = vmatprep.mubr.bf16.mxu0 0
      %2524 = vmatmul.mubr.bf16.gmra.mxu0 %v1625
      %v2525 = vpop.f32.mrf.mxu0
      %v2526 = vadd.f32 %v1981, %v2525
      %v2527 = vpop.f32.mrf.mxu0
      %v2528 = vpop.f32.mrf.mxu0
      %v2529 = vadd.f32 %v1984, %v2528
      %v2530 = vpop.f32.mrf.mxu0
      %2531 = vmatprep.mubr.bf16.mxu0 0
      %2532 = vmatmul.mubr.bf16.gmra.mxu0 %v1628
      %v2533 = vpop.f32.mrf.mxu0
      %v2534 = vadd.f32 %v1989, %v2533
      %v2535 = vpop.f32.mrf.mxu0
      %v2536 = vpop.f32.mrf.mxu0
      %v2537 = vadd.f32 %v1992, %v2536
      %v2538 = vpop.f32.mrf.mxu0
      %2539 = vmatprep.mubr.bf16.mxu0 0
      %2540 = vmatmul.mubr.bf16.gmra.mxu0 %v1631
      %v2541 = vpop.f32.mrf.mxu0
      %v2542 = vadd.f32 %v1997, %v2541
      %v2543 = vpop.f32.mrf.mxu0
      %v2544 = vpop.f32.mrf.mxu0
      %v2545 = vadd.f32 %v2000, %v2544
      %v2546 = vpop.f32.mrf.mxu0
      %2547 = vmatprep.mubr.bf16.mxu0 0
      %2548 = vmatmul.mubr.bf16.gmra.mxu0 %v1634
      %v2549 = vpop.f32.mrf.mxu0
      %v2550 = vadd.f32 %v2005, %v2549
      %v2551 = vpop.f32.mrf.mxu0
      %v2552 = vpop.f32.mrf.mxu0
      %v2553 = vadd.f32 %v2008, %v2552
      %v2554 = vpop.f32.mrf.mxu0
      %2555 = vmatprep.mubr.bf16.mxu0 0
      %2556 = vmatmul.mubr.bf16.gmra.mxu0 %v1637
      %v2557 = vpop.f32.mrf.mxu0
      %v2558 = vadd.f32 %v2013, %v2557
      %v2559 = vpop.f32.mrf.mxu0
      %v2560 = vpop.f32.mrf.mxu0
      %v2561 = vadd.f32 %v2016, %v2560
      %v2562 = vpop.f32.mrf.mxu0
      %2563 = vmatprep.mubr.bf16.mxu0 0
      %2564 = vmatmul.mubr.bf16.gmra.mxu0 %v1640
      %v2565 = vpop.f32.mrf.mxu0
      %v2566 = vadd.f32 %v2021, %v2565
      %v2567 = vpop.f32.mrf.mxu0
      %v2568 = vpop.f32.mrf.mxu0
      %v2569 = vadd.f32 %v2024, %v2568
      %v2570 = vpop.f32.mrf.mxu0
      %2571 = vmatprep.mubr.bf16.mxu0 0
      %2572 = vmatmul.mubr.bf16.gmra.mxu0 %v1643
      %v2573 = vpop.f32.mrf.mxu0
      %v2574 = vadd.f32 %v2029, %v2573
      %v2575 = vpop.f32.mrf.mxu0
      %v2576 = vpop.f32.mrf.mxu0
      %v2577 = vadd.f32 %v2032, %v2576
      %v2578 = vpop.f32.mrf.mxu0
      %2579 = vmatprep.mubr.bf16.mxu0 0
      %2580 = vmatmul.mubr.bf16.gmra.mxu0 %v1646
      %v2581 = vpop.f32.mrf.mxu0
      %v2582 = vadd.f32 %v2037, %v2581
      %v2583 = vpop.f32.mrf.mxu0
      %v2584 = vpop.f32.mrf.mxu0
      %v2585 = vadd.f32 %v2040, %v2584
      %v2586 = vpop.f32.mrf.mxu0
      %2587 = vmatprep.mubr.bf16.mxu0 0
      %2588 = vmatmul.mubr.bf16.gmra.mxu0 %v1649
      %v2589 = vpop.f32.mrf.mxu0
      %v2590 = vadd.f32 %v2045, %v2589
      %v2591 = vpop.f32.mrf.mxu0
      %v2592 = vpop.f32.mrf.mxu0
      %v2593 = vadd.f32 %v2048, %v2592
      %v2594 = vpop.f32.mrf.mxu0
      %2595 = vmatprep.mubr.bf16.mxu0 0
      %2596 = vmatmul.mubr.bf16.gmra.mxu0 %v1652
      %v2597 = vpop.f32.mrf.mxu0
      %v2598 = vadd.f32 %v2053, %v2597
      %v2599 = vpop.f32.mrf.mxu0
      %v2600 = vpop.f32.mrf.mxu0
      %v2601 = vadd.f32 %v2056, %v2600
      %v2602 = vpop.f32.mrf.mxu0
      %2603 = vmatprep.mubr.bf16.mxu0 0
      %2604 = vmatmul.mubr.bf16.gmra.mxu0 %v1655
      %v2605 = vpop.f32.mrf.mxu0
      %v2606 = vadd.f32 %v2061, %v2605
      %v2607 = vpop.f32.mrf.mxu0
      %v2608 = vpop.f32.mrf.mxu0
      %v2609 = vadd.f32 %v2064, %v2608
      %v2610 = vpop.f32.mrf.mxu0
      %2611 = vmatprep.mubr.bf16.mxu0 0
      %2612 = vmatmul.mubr.bf16.gmra.mxu0 %v1658
      %v2613 = vpop.f32.mrf.mxu0
      %v2614 = vadd.f32 %v2069, %v2613
      %v2615 = vpop.f32.mrf.mxu0
      %v2616 = vpop.f32.mrf.mxu0
      %v2617 = vadd.f32 %v2072, %v2616
      %v2618 = vpop.f32.mrf.mxu0
      %2619 = vmatprep.mubr.bf16.mxu0 0
      %2620 = vmatmul.mubr.bf16.gmra.mxu0 %v1661
      %v2621 = vpop.f32.mrf.mxu0
      %v2622 = vadd.f32 %v2077, %v2621
      %v2623 = vpop.f32.mrf.mxu0
      %v2624 = vpop.f32.mrf.mxu0
      %v2625 = vadd.f32 %v2080, %v2624
      %v2626 = vpop.f32.mrf.mxu0
      %2627 = vmatprep.mubr.bf16.mxu0 0
      %2628 = vmatmul.mubr.bf16.gmra.mxu0 %v1664
      %v2629 = vpop.f32.mrf.mxu0
      %v2630 = vadd.f32 %v2085, %v2629
      %v2631 = vpop.f32.mrf.mxu0
      %v2632 = vpop.f32.mrf.mxu0
      %v2633 = vadd.f32 %v2088, %v2632
      %v2634 = vpop.f32.mrf.mxu0
      %2635 = vmatprep.mubr.bf16.mxu0 0
      %2636 = vmatmul.mubr.bf16.gmra.mxu0 %v1667
      %v2637 = vpop.f32.mrf.mxu0
      %v2638 = vadd.f32 %v2093, %v2637
      %v2639 = vpop.f32.mrf.mxu0
      %v2640 = vpop.f32.mrf.mxu0
      %v2641 = vadd.f32 %v2096, %v2640
      %v2642 = vpop.f32.mrf.mxu0
      %2643 = vmatprep.mubr.bf16.mxu0 0
      %2644 = vmatmul.mubr.bf16.gmra.mxu0 %v1670
      %v2645 = vpop.f32.mrf.mxu0
      %v2646 = vadd.f32 %v2101, %v2645
      %v2647 = vpop.f32.mrf.mxu0
      %v2648 = vpop.f32.mrf.mxu0
      %v2649 = vadd.f32 %v2104, %v2648
      %v2650 = vpop.f32.mrf.mxu0
      %2651 = vmatprep.mubr.bf16.mxu0 0
      %2652 = vmatmul.mubr.bf16.gmra.mxu0 %v1673
      %v2653 = vpop.f32.mrf.mxu0
      %v2654 = vadd.f32 %v2109, %v2653
      %v2655 = vpop.f32.mrf.mxu0
      %v2656 = vpop.f32.mrf.mxu0
      %v2657 = vadd.f32 %v2112, %v2656
      %v2658 = vpop.f32.mrf.mxu0
      %2659 = vmatprep.mubr.bf16.mxu0 0
      %2660 = vmatmul.mubr.bf16.gmra.mxu0 %v1676
      %v2661 = vpop.f32.mrf.mxu0
      %v2662 = vadd.f32 %v2117, %v2661
      %v2663 = vpop.f32.mrf.mxu0
      %v2664 = vpop.f32.mrf.mxu0
      %v2665 = vadd.f32 %v2120, %v2664
      %v2666 = vpop.f32.mrf.mxu0
      %2667 = vmatprep.mubr.bf16.mxu0 0
      %2668 = vmatmul.mubr.bf16.gmra.mxu0 %v1679
      %v2669 = vpop.f32.mrf.mxu0
      %v2670 = vadd.f32 %v2125, %v2669
      %v2671 = vpop.f32.mrf.mxu0
      %v2672 = vpop.f32.mrf.mxu0
      %v2673 = vadd.f32 %v2128, %v2672
      %v2674 = vpop.f32.mrf.mxu0
      %2675 = vmatprep.mubr.bf16.mxu0 0
      %2676 = vmatmul.mubr.bf16.gmra.mxu0 %v1682
      %v2677 = vpop.f32.mrf.mxu0
      %v2678 = vadd.f32 %v2133, %v2677
      %v2679 = vpop.f32.mrf.mxu0
      %v2680 = vpop.f32.mrf.mxu0
      %v2681 = vadd.f32 %v2136, %v2680
      %v2682 = vpop.f32.mrf.mxu0
      %2683 = vmatprep.mubr.bf16.mxu0 0
      %2684 = vmatmul.mubr.bf16.gmra.mxu0 %v1685
      %v2685 = vpop.f32.mrf.mxu0
      %v2686 = vadd.f32 %v2141, %v2685
      %v2687 = vpop.f32.mrf.mxu0
      %v2688 = vpop.f32.mrf.mxu0
      %v2689 = vadd.f32 %v2144, %v2688
      %v2690 = vpop.f32.mrf.mxu0
      %2691 = vmatprep.mubr.bf16.mxu0 0
      %2692 = vmatmul.mubr.bf16.gmra.mxu0 %v1688
      %v2693 = vpop.f32.mrf.mxu0
      %v2694 = vadd.f32 %v2149, %v2693
      %v2695 = vpop.f32.mrf.mxu0
      %v2696 = vpop.f32.mrf.mxu0
      %v2697 = vadd.f32 %v2152, %v2696
      %v2698 = vpop.f32.mrf.mxu0
      %2699 = vmatprep.mubr.bf16.mxu0 0
      %2700 = vmatmul.mubr.bf16.gmra.mxu0 %v1691
      %v2701 = vpop.f32.mrf.mxu0
      %v2702 = vadd.f32 %v2157, %v2701
      %v2703 = vpop.f32.mrf.mxu0
      %v2704 = vpop.f32.mrf.mxu0
      %v2705 = vadd.f32 %v2160, %v2704
      %v2706 = vpop.f32.mrf.mxu0
      %2707 = vmatprep.mubr.bf16.mxu0 0
      %2708 = vmatmul.mubr.bf16.gmra.mxu0 %v1694
      %v2709 = vpop.f32.mrf.mxu0
      %v2710 = vadd.f32 %v2165, %v2709
      %v2711 = vpop.f32.mrf.mxu0
      %v2712 = vpop.f32.mrf.mxu0
      %v2713 = vadd.f32 %v2168, %v2712
      %v2714 = vpop.f32.mrf.mxu0
      %2715 = vmatprep.mubr.bf16.mxu0 0
      %2716 = vmatmul.mubr.bf16.gmra.mxu0 %v1697
      %v2717 = vpop.f32.mrf.mxu0
      %v2718 = vadd.f32 %v2173, %v2717
      %v2719 = vpop.f32.mrf.mxu0
      %v2720 = vpop.f32.mrf.mxu0
      %v2721 = vadd.f32 %v2176, %v2720
      %v2722 = vpop.f32.mrf.mxu0
      %2723 = vmatprep.mubr.bf16.mxu0 0
      %2724 = vmatmul.mubr.bf16.gmra.mxu0 %v1700
      %v2725 = vpop.f32.mrf.mxu0
      %v2726 = vadd.f32 %v2181, %v2725
      %v2727 = vpop.f32.mrf.mxu0
      %v2728 = vpop.f32.mrf.mxu0
      %v2729 = vadd.f32 %v2184, %v2728
      %v2730 = vpop.f32.mrf.mxu0
      %2731 = vmatprep.mubr.bf16.mxu0 0
      %2732 = vmatmul.mubr.bf16.gmra.mxu0 %v1703
      %v2733 = vpop.f32.mrf.mxu0
      %v2734 = vadd.f32 %v2189, %v2733
      %v2735 = vpop.f32.mrf.mxu0
      %v2736 = vpop.f32.mrf.mxu0
      %v2737 = vadd.f32 %v2192, %v2736
      %v2738 = vpop.f32.mrf.mxu0
      %2739 = vmatprep.mubr.bf16.mxu0 0
      %2740 = vmatmul.mubr.bf16.gmra.mxu0 %v1706
      %v2741 = vpop.f32.mrf.mxu0
      %v2742 = vadd.f32 %v2197, %v2741
      %v2743 = vpop.f32.mrf.mxu0
      %v2744 = vpop.f32.mrf.mxu0
      %v2745 = vadd.f32 %v2200, %v2744
      %v2746 = vpop.f32.mrf.mxu0
      %2747 = vmatprep.mubr.bf16.mxu0 0
      %2748 = vmatmul.mubr.bf16.gmra.mxu0 %v1709
      %v2749 = vpop.f32.mrf.mxu0
      %v2750 = vadd.f32 %v2205, %v2749
      %v2751 = vpop.f32.mrf.mxu0
      %v2752 = vpop.f32.mrf.mxu0
      %v2753 = vadd.f32 %v2208, %v2752
      %v2754 = vpop.f32.mrf.mxu0
      %2755 = vmatprep.mubr.bf16.mxu0 0
      %2756 = vmatmul.mubr.bf16.gmra.mxu0 %v1712
      %v2757 = vpop.f32.mrf.mxu0
      %v2758 = vadd.f32 %v2213, %v2757
      %v2759 = vpop.f32.mrf.mxu0
      %v2760 = vpop.f32.mrf.mxu0
      %v2761 = vadd.f32 %v2216, %v2760
      %v2762 = vpop.f32.mrf.mxu0
      %2763 = vmatprep.mubr.bf16.mxu0 0
      %2764 = vmatmul.mubr.bf16.gmra.mxu0 %v1715
      %v2765 = vpop.f32.mrf.mxu0
      %v2766 = vadd.f32 %v2221, %v2765
      %v2767 = vpop.f32.mrf.mxu0
      %v2768 = vpop.f32.mrf.mxu0
      %v2769 = vadd.f32 %v2224, %v2768
      %v2770 = vpop.f32.mrf.mxu0
      %2771 = vmatprep.mubr.bf16.mxu0 0
      %2772 = vmatmul.mubr.bf16.gmra.mxu0 %v1718
      %v2773 = vpop.f32.mrf.mxu0
      %v2774 = vadd.f32 %v2229, %v2773
      %v2775 = vpop.f32.mrf.mxu0
      %v2776 = vpop.f32.mrf.mxu0
      %v2777 = vadd.f32 %v2232, %v2776
      %v2778 = vpop.f32.mrf.mxu0
      %2779 = vmatprep.mubr.bf16.mxu0 0
      %2780 = vmatmul.mubr.bf16.gmra.mxu0 %v1721
      %v2781 = vpop.f32.mrf.mxu0
      %v2782 = vadd.f32 %v2237, %v2781
      %v2783 = vpop.f32.mrf.mxu0
      %v2784 = vpop.f32.mrf.mxu0
      %v2785 = vadd.f32 %v2240, %v2784
      %v2786 = vpop.f32.mrf.mxu0
      %2787 = vmatprep.mubr.bf16.mxu0 0
      %2788 = vmatmul.mubr.bf16.gmra.mxu0 %v1724
      %v2789 = vpop.f32.mrf.mxu0
      %v2790 = vadd.f32 %v2245, %v2789
      %v2791 = vpop.f32.mrf.mxu0
      %v2792 = vpop.f32.mrf.mxu0
      %v2793 = vadd.f32 %v2248, %v2792
      %v2794 = vpop.f32.mrf.mxu0
      %2795 = vmatprep.mubr.bf16.mxu0 0
      %2796 = vmatmul.mubr.bf16.gmra.mxu0 %v1727
      %v2797 = vpop.f32.mrf.mxu0
      %v2798 = vadd.f32 %v2253, %v2797
      %v2799 = vpop.f32.mrf.mxu0
      %v2800 = vpop.f32.mrf.mxu0
      %v2801 = vadd.f32 %v2256, %v2800
      %v2802 = vpop.f32.mrf.mxu0
      %2803 = vmatprep.mubr.bf16.mxu0 0
      %2804 = vmatmul.mubr.bf16.gmra.mxu0 %v1730
      %v2805 = vpop.f32.mrf.mxu0
      %v2806 = vadd.f32 %v2261, %v2805
      %v2807 = vpop.f32.mrf.mxu0
      %v2808 = vpop.f32.mrf.mxu0
      %v2809 = vadd.f32 %v2264, %v2808
      %v2810 = vpop.f32.mrf.mxu0
      %2811 = vmatprep.mubr.bf16.mxu0 0
      %2812 = vmatmul.mubr.bf16.gmra.mxu0 %v1733
      %v2813 = vpop.f32.mrf.mxu0
      %v2814 = vadd.f32 %v2269, %v2813
      %v2815 = vpop.f32.mrf.mxu0
      %v2816 = vpop.f32.mrf.mxu0
      %v2817 = vadd.f32 %v2272, %v2816
      %v2818 = vpop.f32.mrf.mxu0
      %2819 = vmatprep.mubr.bf16.mxu0 0
      %2820 = vmatmul.mubr.bf16.gmra.mxu0 %v1736
      %v2821 = vpop.f32.mrf.mxu0
      %v2822 = vadd.f32 %v2277, %v2821
      %v2823 = vpop.f32.mrf.mxu0
      %v2824 = vpop.f32.mrf.mxu0
      %v2825 = vadd.f32 %v2280, %v2824
      %v2826 = vpop.f32.mrf.mxu0
      %2827 = vdwg.mxu0
      %v2828 = vmax.f32 %v2318, 0.0
      %v2829 = vmax.f32 %v2321, 0.0
      %v2830 = vmax.f32 %v2326, 0.0
      %v2831 = vmax.f32 %v2329, 0.0
      %v2832 = vmax.f32 %v2334, 0.0
      %v2833 = vmax.f32 %v2337, 0.0
      %v2834 = vmax.f32 %v2342, 0.0
      %v2835 = vmax.f32 %v2345, 0.0
      %v2836 = vmax.f32 %v2350, 0.0
      %v2837 = vmax.f32 %v2353, 0.0
      %v2838 = vmax.f32 %v2358, 0.0
      %v2839 = vmax.f32 %v2361, 0.0
      %v2840 = vmax.f32 %v2366, 0.0
      %v2841 = vmax.f32 %v2369, 0.0
      %v2842 = vmax.f32 %v2374, 0.0
      %v2843 = vmax.f32 %v2377, 0.0
      %v2844 = vmax.f32 %v2382, 0.0
      %v2845 = vmax.f32 %v2385, 0.0
      %v2846 = vmax.f32 %v2390, 0.0
      %v2847 = vmax.f32 %v2393, 0.0
      %v2848 = vmax.f32 %v2398, 0.0
      %v2849 = vmax.f32 %v2401, 0.0
      %v2850 = vmax.f32 %v2406, 0.0
      %v2851 = vmax.f32 %v2409, 0.0
      %v2852 = vmax.f32 %v2414, 0.0
      %v2853 = vmax.f32 %v2417, 0.0
      %v2854 = vmax.f32 %v2422, 0.0
      %v2855 = vmax.f32 %v2425, 0.0
      %v2856 = vmax.f32 %v2430, 0.0
      %v2857 = vmax.f32 %v2433, 0.0
      %v2858 = vmax.f32 %v2438, 0.0
      %v2859 = vmax.f32 %v2441, 0.0
      %v2860 = vmax.f32 %v2446, 0.0
      %v2861 = vmax.f32 %v2449, 0.0
      %v2862 = vmax.f32 %v2454, 0.0
      %v2863 = vmax.f32 %v2457, 0.0
      %v2864 = vmax.f32 %v2462, 0.0
      %v2865 = vmax.f32 %v2465, 0.0
      %v2866 = vmax.f32 %v2470, 0.0
      %v2867 = vmax.f32 %v2473, 0.0
      %v2868 = vmax.f32 %v2478, 0.0
      %v2869 = vmax.f32 %v2481, 0.0
      %v2870 = vmax.f32 %v2486, 0.0
      %v2871 = vmax.f32 %v2489, 0.0
      %v2872 = vmax.f32 %v2494, 0.0
      %v2873 = vmax.f32 %v2497, 0.0
      %v2874 = vmax.f32 %v2502, 0.0
      %v2875 = vmax.f32 %v2505, 0.0
      %v2876 = vmax.f32 %v2510, 0.0
      %v2877 = vmax.f32 %v2513, 0.0
      %v2878 = vmax.f32 %v2518, 0.0
      %v2879 = vmax.f32 %v2521, 0.0
      %v2880 = vmax.f32 %v2526, 0.0
      %v2881 = vmax.f32 %v2529, 0.0
      %v2882 = vmax.f32 %v2534, 0.0
      %v2883 = vmax.f32 %v2537, 0.0
      %v2884 = vmax.f32 %v2542, 0.0
      %v2885 = vmax.f32 %v2545, 0.0
      %v2886 = vmax.f32 %v2550, 0.0
      %v2887 = vmax.f32 %v2553, 0.0
      %v2888 = vmax.f32 %v2558, 0.0
      %v2889 = vmax.f32 %v2561, 0.0
      %v2890 = vmax.f32 %v2566, 0.0
      %v2891 = vmax.f32 %v2569, 0.0
      %v2892 = vmax.f32 %v2574, 0.0
      %v2893 = vmax.f32 %v2577, 0.0
      %v2894 = vmax.f32 %v2582, 0.0
      %v2895 = vmax.f32 %v2585, 0.0
      %v2896 = vmax.f32 %v2590, 0.0
      %v2897 = vmax.f32 %v2593, 0.0
      %v2898 = vmax.f32 %v2598, 0.0
      %v2899 = vmax.f32 %v2601, 0.0
      %v2900 = vmax.f32 %v2606, 0.0
      %v2901 = vmax.f32 %v2609, 0.0
      %v2902 = vmax.f32 %v2614, 0.0
      %v2903 = vmax.f32 %v2617, 0.0
      %v2904 = vmax.f32 %v2622, 0.0
      %v2905 = vmax.f32 %v2625, 0.0
      %v2906 = vmax.f32 %v2630, 0.0
      %v2907 = vmax.f32 %v2633, 0.0
      %v2908 = vmax.f32 %v2638, 0.0
      %v2909 = vmax.f32 %v2641, 0.0
      %v2910 = vmax.f32 %v2646, 0.0
      %v2911 = vmax.f32 %v2649, 0.0
      %v2912 = vmax.f32 %v2654, 0.0
      %v2913 = vmax.f32 %v2657, 0.0
      %v2914 = vmax.f32 %v2662, 0.0
      %v2915 = vmax.f32 %v2665, 0.0
      %v2916 = vmax.f32 %v2670, 0.0
      %v2917 = vmax.f32 %v2673, 0.0
      %v2918 = vmax.f32 %v2678, 0.0
      %v2919 = vmax.f32 %v2681, 0.0
      %v2920 = vmax.f32 %v2686, 0.0
      %v2921 = vmax.f32 %v2689, 0.0
      %v2922 = vmax.f32 %v2694, 0.0
      %v2923 = vmax.f32 %v2697, 0.0
      %v2924 = vmax.f32 %v2702, 0.0
      %v2925 = vmax.f32 %v2705, 0.0
      %v2926 = vmax.f32 %v2710, 0.0
      %v2927 = vmax.f32 %v2713, 0.0
      %v2928 = vmax.f32 %v2718, 0.0
      %v2929 = vmax.f32 %v2721, 0.0
      %v2930 = vmax.f32 %v2726, 0.0
      %v2931 = vmax.f32 %v2729, 0.0
      %v2932 = vmax.f32 %v2734, 0.0
      %v2933 = vmax.f32 %v2737, 0.0
      %v2934 = vmax.f32 %v2742, 0.0
      %v2935 = vmax.f32 %v2745, 0.0
      %v2936 = vmax.f32 %v2750, 0.0
      %v2937 = vmax.f32 %v2753, 0.0
      %v2938 = vmax.f32 %v2758, 0.0
      %v2939 = vmax.f32 %v2761, 0.0
      %v2940 = vmax.f32 %v2766, 0.0
      %v2941 = vmax.f32 %v2769, 0.0
      %v2942 = vmax.f32 %v2774, 0.0
      %v2943 = vmax.f32 %v2777, 0.0
      %v2944 = vmax.f32 %v2782, 0.0
      %v2945 = vmax.f32 %v2785, 0.0
      %v2946 = vmax.f32 %v2790, 0.0
      %v2947 = vmax.f32 %v2793, 0.0
      %v2948 = vmax.f32 %v2798, 0.0
      %v2949 = vmax.f32 %v2801, 0.0
      %v2950 = vmax.f32 %v2806, 0.0
      %v2951 = vmax.f32 %v2809, 0.0
      %v2952 = vmax.f32 %v2814, 0.0
      %v2953 = vmax.f32 %v2817, 0.0
      %v2954 = vmax.f32 %v2822, 0.0
      %v2955 = vmax.f32 %v2825, 0.0
      %v2956 = vpack.c.bf16 %v2829, %v2828
      %v2957 = vpack.c.bf16 %v2831, %v2830
      %v2958 = vpack.c.bf16 %v2833, %v2832
      %v2959 = vpack.c.bf16 %v2835, %v2834
      %v2960 = vpack.c.bf16 %v2837, %v2836
      %v2961 = vpack.c.bf16 %v2839, %v2838
      %v2962 = vpack.c.bf16 %v2841, %v2840
      %v2963 = vpack.c.bf16 %v2843, %v2842
      %v2964 = vpack.c.bf16 %v2845, %v2844
      %v2965 = vpack.c.bf16 %v2847, %v2846
      %v2966 = vpack.c.bf16 %v2849, %v2848
      %v2967 = vpack.c.bf16 %v2851, %v2850
      %v2968 = vpack.c.bf16 %v2853, %v2852
      %v2969 = vpack.c.bf16 %v2855, %v2854
      %v2970 = vpack.c.bf16 %v2857, %v2856
      %v2971 = vpack.c.bf16 %v2859, %v2858
      %v2972 = vpack.c.bf16 %v2861, %v2860
      %v2973 = vpack.c.bf16 %v2863, %v2862
      %v2974 = vpack.c.bf16 %v2865, %v2864
      %v2975 = vpack.c.bf16 %v2867, %v2866
      %v2976 = vpack.c.bf16 %v2869, %v2868
      %v2977 = vpack.c.bf16 %v2871, %v2870
      %v2978 = vpack.c.bf16 %v2873, %v2872
      %v2979 = vpack.c.bf16 %v2875, %v2874
      %v2980 = vpack.c.bf16 %v2877, %v2876
      %v2981 = vpack.c.bf16 %v2879, %v2878
      %v2982 = vpack.c.bf16 %v2881, %v2880
      %v2983 = vpack.c.bf16 %v2883, %v2882
      %v2984 = vpack.c.bf16 %v2885, %v2884
      %v2985 = vpack.c.bf16 %v2887, %v2886
      %v2986 = vpack.c.bf16 %v2889, %v2888
      %v2987 = vpack.c.bf16 %v2891, %v2890
      %v2988 = vpack.c.bf16 %v2893, %v2892
      %v2989 = vpack.c.bf16 %v2895, %v2894
      %v2990 = vpack.c.bf16 %v2897, %v2896
      %v2991 = vpack.c.bf16 %v2899, %v2898
      %v2992 = vpack.c.bf16 %v2901, %v2900
      %v2993 = vpack.c.bf16 %v2903, %v2902
      %v2994 = vpack.c.bf16 %v2905, %v2904
      %v2995 = vpack.c.bf16 %v2907, %v2906
      %v2996 = vpack.c.bf16 %v2909, %v2908
      %v2997 = vpack.c.bf16 %v2911, %v2910
      %v2998 = vpack.c.bf16 %v2913, %v2912
      %v2999 = vpack.c.bf16 %v2915, %v2914
      %v3000 = vpack.c.bf16 %v2917, %v2916
      %v3001 = vpack.c.bf16 %v2919, %v2918
      %v3002 = vpack.c.bf16 %v2921, %v2920
      %v3003 = vpack.c.bf16 %v2923, %v2922
      %v3004 = vpack.c.bf16 %v2925, %v2924
      %v3005 = vpack.c.bf16 %v2927, %v2926
      %v3006 = vpack.c.bf16 %v2929, %v2928
      %v3007 = vpack.c.bf16 %v2931, %v2930
      %v3008 = vpack.c.bf16 %v2933, %v2932
      %v3009 = vpack.c.bf16 %v2935, %v2934
      %v3010 = vpack.c.bf16 %v2937, %v2936
      %v3011 = vpack.c.bf16 %v2939, %v2938
      %v3012 = vpack.c.bf16 %v2941, %v2940
      %v3013 = vpack.c.bf16 %v2943, %v2942
      %v3014 = vpack.c.bf16 %v2945, %v2944
      %v3015 = vpack.c.bf16 %v2947, %v2946
      %v3016 = vpack.c.bf16 %v2949, %v2948
      %v3017 = vpack.c.bf16 %v2951, %v2950
      %v3018 = vpack.c.bf16 %v2953, %v2952
      %v3019 = vpack.c.bf16 %v2955, %v2954
      %v3084 = vunpack.c.l.b16 %v2956
      %v3085 = vunpack.c.h.b16 %v2956
      %v3086 = vunpack.c.l.b16 %v2957
      %v3087 = vunpack.c.h.b16 %v2957
      %v3088 = vunpack.c.l.b16 %v2958
      %v3089 = vunpack.c.h.b16 %v2958
      %v3090 = vunpack.c.l.b16 %v2959
      %v3091 = vunpack.c.h.b16 %v2959
      %v3092 = vunpack.c.l.b16 %v2960
      %v3093 = vunpack.c.h.b16 %v2960
      %v3094 = vunpack.c.l.b16 %v2961
      %v3095 = vunpack.c.h.b16 %v2961
      %v3096 = vunpack.c.l.b16 %v2962
      %v3097 = vunpack.c.h.b16 %v2962
      %v3098 = vunpack.c.l.b16 %v2963
      %v3099 = vunpack.c.h.b16 %v2963
      %v3100 = vunpack.c.l.b16 %v2964
      %v3101 = vunpack.c.h.b16 %v2964
      %v3102 = vunpack.c.l.b16 %v2965
      %v3103 = vunpack.c.h.b16 %v2965
      %v3104 = vunpack.c.l.b16 %v2966
      %v3105 = vunpack.c.h.b16 %v2966
      %v3106 = vunpack.c.l.b16 %v2967
      %v3107 = vunpack.c.h.b16 %v2967
      %v3108 = vunpack.c.l.b16 %v2968
      %v3109 = vunpack.c.h.b16 %v2968
      %v3110 = vunpack.c.l.b16 %v2969
      %v3111 = vunpack.c.h.b16 %v2969
      %v3112 = vunpack.c.l.b16 %v2970
      %v3113 = vunpack.c.h.b16 %v2970
      %v3114 = vunpack.c.l.b16 %v2971
      %v3115 = vunpack.c.h.b16 %v2971
      %v3116 = vunpack.c.l.b16 %v2972
      %v3117 = vunpack.c.h.b16 %v2972
      %v3118 = vunpack.c.l.b16 %v2973
      %v3119 = vunpack.c.h.b16 %v2973
      %v3120 = vunpack.c.l.b16 %v2974
      %v3121 = vunpack.c.h.b16 %v2974
      %v3122 = vunpack.c.l.b16 %v2975
      %v3123 = vunpack.c.h.b16 %v2975
      %v3124 = vunpack.c.l.b16 %v2976
      %v3125 = vunpack.c.h.b16 %v2976
      %v3126 = vunpack.c.l.b16 %v2977
      %v3127 = vunpack.c.h.b16 %v2977
      %v3128 = vunpack.c.l.b16 %v2978
      %v3129 = vunpack.c.h.b16 %v2978
      %v3130 = vunpack.c.l.b16 %v2979
      %v3131 = vunpack.c.h.b16 %v2979
      %v3132 = vunpack.c.l.b16 %v2980
      %v3133 = vunpack.c.h.b16 %v2980
      %v3134 = vunpack.c.l.b16 %v2981
      %v3135 = vunpack.c.h.b16 %v2981
      %v3136 = vunpack.c.l.b16 %v2982
      %v3137 = vunpack.c.h.b16 %v2982
      %v3138 = vunpack.c.l.b16 %v2983
      %v3139 = vunpack.c.h.b16 %v2983
      %v3140 = vunpack.c.l.b16 %v2984
      %v3141 = vunpack.c.h.b16 %v2984
      %v3142 = vunpack.c.l.b16 %v2985
      %v3143 = vunpack.c.h.b16 %v2985
      %v3144 = vunpack.c.l.b16 %v2986
      %v3145 = vunpack.c.h.b16 %v2986
      %v3146 = vunpack.c.l.b16 %v2987
      %v3147 = vunpack.c.h.b16 %v2987
      %v3148 = vunpack.c.l.b16 %v2988
      %v3149 = vunpack.c.h.b16 %v2988
      %v3150 = vunpack.c.l.b16 %v2989
      %v3151 = vunpack.c.h.b16 %v2989
      %v3152 = vunpack.c.l.b16 %v2990
      %v3153 = vunpack.c.h.b16 %v2990
      %v3154 = vunpack.c.l.b16 %v2991
      %v3155 = vunpack.c.h.b16 %v2991
      %v3156 = vunpack.c.l.b16 %v2992
      %v3157 = vunpack.c.h.b16 %v2992
      %v3158 = vunpack.c.l.b16 %v2993
      %v3159 = vunpack.c.h.b16 %v2993
      %v3160 = vunpack.c.l.b16 %v2994
      %v3161 = vunpack.c.h.b16 %v2994
      %v3162 = vunpack.c.l.b16 %v2995
      %v3163 = vunpack.c.h.b16 %v2995
      %v3164 = vunpack.c.l.b16 %v2996
      %v3165 = vunpack.c.h.b16 %v2996
      %v3166 = vunpack.c.l.b16 %v2997
      %v3167 = vunpack.c.h.b16 %v2997
      %v3168 = vunpack.c.l.b16 %v2998
      %v3169 = vunpack.c.h.b16 %v2998
      %v3170 = vunpack.c.l.b16 %v2999
      %v3171 = vunpack.c.h.b16 %v2999
      %v3172 = vunpack.c.l.b16 %v3000
      %v3173 = vunpack.c.h.b16 %v3000
      %v3174 = vunpack.c.l.b16 %v3001
      %v3175 = vunpack.c.h.b16 %v3001
      %v3176 = vunpack.c.l.b16 %v3002
      %v3177 = vunpack.c.h.b16 %v3002
      %v3178 = vunpack.c.l.b16 %v3003
      %v3179 = vunpack.c.h.b16 %v3003
      %v3180 = vunpack.c.l.b16 %v3004
      %v3181 = vunpack.c.h.b16 %v3004
      %v3182 = vunpack.c.l.b16 %v3005
      %v3183 = vunpack.c.h.b16 %v3005
      %v3184 = vunpack.c.l.b16 %v3006
      %v3185 = vunpack.c.h.b16 %v3006
      %v3186 = vunpack.c.l.b16 %v3007
      %v3187 = vunpack.c.h.b16 %v3007
      %v3188 = vunpack.c.l.b16 %v3008
      %v3189 = vunpack.c.h.b16 %v3008
      %v3190 = vunpack.c.l.b16 %v3009
      %v3191 = vunpack.c.h.b16 %v3009
      %v3192 = vunpack.c.l.b16 %v3010
      %v3193 = vunpack.c.h.b16 %v3010
      %v3194 = vunpack.c.l.b16 %v3011
      %v3195 = vunpack.c.h.b16 %v3011
      %v3196 = vunpack.c.l.b16 %v3012
      %v3197 = vunpack.c.h.b16 %v3012
      %v3198 = vunpack.c.l.b16 %v3013
      %v3199 = vunpack.c.h.b16 %v3013
      %v3200 = vunpack.c.l.b16 %v3014
      %v3201 = vunpack.c.h.b16 %v3014
      %v3202 = vunpack.c.l.b16 %v3015
      %v3203 = vunpack.c.h.b16 %v3015
      %v3204 = vunpack.c.l.b16 %v3016
      %v3205 = vunpack.c.h.b16 %v3016
      %v3206 = vunpack.c.l.b16 %v3017
      %v3207 = vunpack.c.h.b16 %v3017
      %v3208 = vunpack.c.l.b16 %v3018
      %v3209 = vunpack.c.h.b16 %v3018
      %v3210 = vunpack.c.l.b16 %v3019
      %v3211 = vunpack.c.h.b16 %v3019
      %v3212 = vpack.c.b16 %v3084, %v3084
      %v3213 = vpack.c.b16 %v3085, %v3085
      %v3214 = vpack.c.b16 %v3086, %v3086
      %v3215 = vpack.c.b16 %v3087, %v3087
      %v3216 = vpack.c.b16 %v3088, %v3088
      %v3217 = vpack.c.b16 %v3089, %v3089
      %v3218 = vpack.c.b16 %v3090, %v3090
      %v3219 = vpack.c.b16 %v3091, %v3091
      %v3220 = vpack.c.b16 %v3092, %v3092
      %v3221 = vpack.c.b16 %v3093, %v3093
      %v3222 = vpack.c.b16 %v3094, %v3094
      %v3223 = vpack.c.b16 %v3095, %v3095
      %v3224 = vpack.c.b16 %v3096, %v3096
      %v3225 = vpack.c.b16 %v3097, %v3097
      %v3226 = vpack.c.b16 %v3098, %v3098
      %v3227 = vpack.c.b16 %v3099, %v3099
      %v3228 = vpack.c.b16 %v3100, %v3100
      %v3229 = vpack.c.b16 %v3101, %v3101
      %v3230 = vpack.c.b16 %v3102, %v3102
      %v3231 = vpack.c.b16 %v3103, %v3103
      %v3232 = vpack.c.b16 %v3104, %v3104
      %v3233 = vpack.c.b16 %v3105, %v3105
      %v3234 = vpack.c.b16 %v3106, %v3106
      %v3235 = vpack.c.b16 %v3107, %v3107
      %v3236 = vpack.c.b16 %v3108, %v3108
      %v3237 = vpack.c.b16 %v3109, %v3109
      %v3238 = vpack.c.b16 %v3110, %v3110
      %v3239 = vpack.c.b16 %v3111, %v3111
      %v3240 = vpack.c.b16 %v3112, %v3112
      %v3241 = vpack.c.b16 %v3113, %v3113
      %v3242 = vpack.c.b16 %v3114, %v3114
      %v3243 = vpack.c.b16 %v3115, %v3115
      %v3244 = vpack.c.b16 %v3116, %v3116
      %v3245 = vpack.c.b16 %v3117, %v3117
      %v3246 = vpack.c.b16 %v3118, %v3118
      %v3247 = vpack.c.b16 %v3119, %v3119
      %v3248 = vpack.c.b16 %v3120, %v3120
      %v3249 = vpack.c.b16 %v3121, %v3121
      %v3250 = vpack.c.b16 %v3122, %v3122
      %v3251 = vpack.c.b16 %v3123, %v3123
      %v3252 = vpack.c.b16 %v3124, %v3124
      %v3253 = vpack.c.b16 %v3125, %v3125
      %v3254 = vpack.c.b16 %v3126, %v3126
      %v3255 = vpack.c.b16 %v3127, %v3127
      %v3256 = vpack.c.b16 %v3128, %v3128
      %v3257 = vpack.c.b16 %v3129, %v3129
      %v3258 = vpack.c.b16 %v3130, %v3130
      %v3259 = vpack.c.b16 %v3131, %v3131
      %v3260 = vpack.c.b16 %v3132, %v3132
      %v3261 = vpack.c.b16 %v3133, %v3133
      %v3262 = vpack.c.b16 %v3134, %v3134
      %v3263 = vpack.c.b16 %v3135, %v3135
      %v3264 = vpack.c.b16 %v3136, %v3136
      %v3265 = vpack.c.b16 %v3137, %v3137
      %v3266 = vpack.c.b16 %v3138, %v3138
      %v3267 = vpack.c.b16 %v3139, %v3139
      %v3268 = vpack.c.b16 %v3140, %v3140
      %v3269 = vpack.c.b16 %v3141, %v3141
      %v3270 = vpack.c.b16 %v3142, %v3142
      %v3271 = vpack.c.b16 %v3143, %v3143
      %v3272 = vpack.c.b16 %v3144, %v3144
      %v3273 = vpack.c.b16 %v3145, %v3145
      %v3274 = vpack.c.b16 %v3146, %v3146
      %v3275 = vpack.c.b16 %v3147, %v3147
      %v3276 = vpack.c.b16 %v3148, %v3148
      %v3277 = vpack.c.b16 %v3149, %v3149
      %v3278 = vpack.c.b16 %v3150, %v3150
      %v3279 = vpack.c.b16 %v3151, %v3151
      %v3280 = vpack.c.b16 %v3152, %v3152
      %v3281 = vpack.c.b16 %v3153, %v3153
      %v3282 = vpack.c.b16 %v3154, %v3154
      %v3283 = vpack.c.b16 %v3155, %v3155
      %v3284 = vpack.c.b16 %v3156, %v3156
      %v3285 = vpack.c.b16 %v3157, %v3157
      %v3286 = vpack.c.b16 %v3158, %v3158
      %v3287 = vpack.c.b16 %v3159, %v3159
      %v3288 = vpack.c.b16 %v3160, %v3160
      %v3289 = vpack.c.b16 %v3161, %v3161
      %v3290 = vpack.c.b16 %v3162, %v3162
      %v3291 = vpack.c.b16 %v3163, %v3163
      %v3292 = vpack.c.b16 %v3164, %v3164
      %v3293 = vpack.c.b16 %v3165, %v3165
      %v3294 = vpack.c.b16 %v3166, %v3166
      %v3295 = vpack.c.b16 %v3167, %v3167
      %v3296 = vpack.c.b16 %v3168, %v3168
      %v3297 = vpack.c.b16 %v3169, %v3169
      %v3298 = vpack.c.b16 %v3170, %v3170
      %v3299 = vpack.c.b16 %v3171, %v3171
      %v3300 = vpack.c.b16 %v3172, %v3172
      %v3301 = vpack.c.b16 %v3173, %v3173
      %v3302 = vpack.c.b16 %v3174, %v3174
      %v3303 = vpack.c.b16 %v3175, %v3175
      %v3304 = vpack.c.b16 %v3176, %v3176
      %v3305 = vpack.c.b16 %v3177, %v3177
      %v3306 = vpack.c.b16 %v3178, %v3178
      %v3307 = vpack.c.b16 %v3179, %v3179
      %v3308 = vpack.c.b16 %v3180, %v3180
      %v3309 = vpack.c.b16 %v3181, %v3181
      %v3310 = vpack.c.b16 %v3182, %v3182
      %v3311 = vpack.c.b16 %v3183, %v3183
      %v3312 = vpack.c.b16 %v3184, %v3184
      %v3313 = vpack.c.b16 %v3185, %v3185
      %v3314 = vpack.c.b16 %v3186, %v3186
      %v3315 = vpack.c.b16 %v3187, %v3187
      %v3316 = vpack.c.b16 %v3188, %v3188
      %v3317 = vpack.c.b16 %v3189, %v3189
      %v3318 = vpack.c.b16 %v3190, %v3190
      %v3319 = vpack.c.b16 %v3191, %v3191
      %v3320 = vpack.c.b16 %v3192, %v3192
      %v3321 = vpack.c.b16 %v3193, %v3193
      %v3322 = vpack.c.b16 %v3194, %v3194
      %v3323 = vpack.c.b16 %v3195, %v3195
      %v3324 = vpack.c.b16 %v3196, %v3196
      %v3325 = vpack.c.b16 %v3197, %v3197
      %v3326 = vpack.c.b16 %v3198, %v3198
      %v3327 = vpack.c.b16 %v3199, %v3199
      %v3328 = vpack.c.b16 %v3200, %v3200
      %v3329 = vpack.c.b16 %v3201, %v3201
      %v3330 = vpack.c.b16 %v3202, %v3202
      %v3331 = vpack.c.b16 %v3203, %v3203
      %v3332 = vpack.c.b16 %v3204, %v3204
      %v3333 = vpack.c.b16 %v3205, %v3205
      %v3334 = vpack.c.b16 %v3206, %v3206
      %v3335 = vpack.c.b16 %v3207, %v3207
      %v3336 = vpack.c.b16 %v3208, %v3208
      %v3337 = vpack.c.b16 %v3209, %v3209
      %v3338 = vpack.c.b16 %v3210, %v3210
      %v3339 = vpack.c.b16 %v3211, %v3211
      %vm3468 = vcmask 519168
      %3469 = vst.msk [vmem:[%s175] sm:$0xf] %vm3468, %v3212
      %3470 = vst.msk [vmem:[%s175 + $0x4] sm:$0xf] %vm3468, %v3213
      %3471 = vst.msk [vmem:[%s175 + $0x8] sm:$0xf] %vm3468, %v3214
      %3472 = vst.msk [vmem:[%s175 + $0xc] sm:$0xf] %vm3468, %v3215
      %3473 = vst.msk [vmem:[%s175 + $0x10] sm:$0xf] %vm3468, %v3216
      %3474 = vst.msk [vmem:[%s175 + $0x14] sm:$0xf] %vm3468, %v3217
      %3475 = vst.msk [vmem:[%s175 + $0x18] sm:$0xf] %vm3468, %v3218
      %3476 = vst.msk [vmem:[%s175 + $0x1c] sm:$0xf] %vm3468, %v3219
      %3477 = vst.msk [vmem:[%s175 + $0x20] sm:$0xf] %vm3468, %v3220
      %3478 = vst.msk [vmem:[%s175 + $0x24] sm:$0xf] %vm3468, %v3221
      %3479 = vst.msk [vmem:[%s175 + $0x28] sm:$0xf] %vm3468, %v3222
      %3480 = vst.msk [vmem:[%s175 + $0x2c] sm:$0xf] %vm3468, %v3223
      %3481 = vst.msk [vmem:[%s175 + $0x30] sm:$0xf] %vm3468, %v3224
      %3482 = vst.msk [vmem:[%s175 + $0x34] sm:$0xf] %vm3468, %v3225
      %3483 = vst.msk [vmem:[%s175 + $0x38] sm:$0xf] %vm3468, %v3226
      %3484 = vst.msk [vmem:[%s175 + $0x3c] sm:$0xf] %vm3468, %v3227
      %3485 = vst.msk [vmem:[%s175 + $0x40] sm:$0xf] %vm3468, %v3228
      %3486 = vst.msk [vmem:[%s175 + $0x44] sm:$0xf] %vm3468, %v3229
      %3487 = vst.msk [vmem:[%s175 + $0x48] sm:$0xf] %vm3468, %v3230
      %3488 = vst.msk [vmem:[%s175 + $0x4c] sm:$0xf] %vm3468, %v3231
      %3489 = vst.msk [vmem:[%s175 + $0x50] sm:$0xf] %vm3468, %v3232
      %3490 = vst.msk [vmem:[%s175 + $0x54] sm:$0xf] %vm3468, %v3233
      %3491 = vst.msk [vmem:[%s175 + $0x58] sm:$0xf] %vm3468, %v3234
      %3492 = vst.msk [vmem:[%s175 + $0x5c] sm:$0xf] %vm3468, %v3235
      %3493 = vst.msk [vmem:[%s175 + $0x60] sm:$0xf] %vm3468, %v3236
      %3494 = vst.msk [vmem:[%s175 + $0x64] sm:$0xf] %vm3468, %v3237
      %3495 = vst.msk [vmem:[%s175 + $0x68] sm:$0xf] %vm3468, %v3238
      %3496 = vst.msk [vmem:[%s175 + $0x6c] sm:$0xf] %vm3468, %v3239
      %3497 = vst.msk [vmem:[%s175 + $0x70] sm:$0xf] %vm3468, %v3240
      %3498 = vst.msk [vmem:[%s175 + $0x74] sm:$0xf] %vm3468, %v3241
      %3499 = vst.msk [vmem:[%s175 + $0x78] sm:$0xf] %vm3468, %v3242
      %3500 = vst.msk [vmem:[%s175 + $0x7c] sm:$0xf] %vm3468, %v3243
      %3501 = vst.msk [vmem:[%s175 + $0x80] sm:$0xf] %vm3468, %v3244
      %3502 = vst.msk [vmem:[%s175 + $0x84] sm:$0xf] %vm3468, %v3245
      %3503 = vst.msk [vmem:[%s175 + $0x88] sm:$0xf] %vm3468, %v3246
      %3504 = vst.msk [vmem:[%s175 + $0x8c] sm:$0xf] %vm3468, %v3247
      %3505 = vst.msk [vmem:[%s175 + $0x90] sm:$0xf] %vm3468, %v3248
      %3506 = vst.msk [vmem:[%s175 + $0x94] sm:$0xf] %vm3468, %v3249
      %3507 = vst.msk [vmem:[%s175 + $0x98] sm:$0xf] %vm3468, %v3250
      %3508 = vst.msk [vmem:[%s175 + $0x9c] sm:$0xf] %vm3468, %v3251
      %3509 = vst.msk [vmem:[%s175 + $0xa0] sm:$0xf] %vm3468, %v3252
      %3510 = vst.msk [vmem:[%s175 + $0xa4] sm:$0xf] %vm3468, %v3253
      %3511 = vst.msk [vmem:[%s175 + $0xa8] sm:$0xf] %vm3468, %v3254
      %3512 = vst.msk [vmem:[%s175 + $0xac] sm:$0xf] %vm3468, %v3255
      %3513 = vst.msk [vmem:[%s175 + $0xb0] sm:$0xf] %vm3468, %v3256
      %3514 = vst.msk [vmem:[%s175 + $0xb4] sm:$0xf] %vm3468, %v3257
      %3515 = vst.msk [vmem:[%s175 + $0xb8] sm:$0xf] %vm3468, %v3258
      %3516 = vst.msk [vmem:[%s175 + $0xbc] sm:$0xf] %vm3468, %v3259
      %3517 = vst.msk [vmem:[%s175 + $0xc0] sm:$0xf] %vm3468, %v3260
      %3518 = vst.msk [vmem:[%s175 + $0xc4] sm:$0xf] %vm3468, %v3261
      %3519 = vst.msk [vmem:[%s175 + $0xc8] sm:$0xf] %vm3468, %v3262
      %3520 = vst.msk [vmem:[%s175 + $0xcc] sm:$0xf] %vm3468, %v3263
      %3521 = vst.msk [vmem:[%s175 + $0xd0] sm:$0xf] %vm3468, %v3264
      %3522 = vst.msk [vmem:[%s175 + $0xd4] sm:$0xf] %vm3468, %v3265
      %3523 = vst.msk [vmem:[%s175 + $0xd8] sm:$0xf] %vm3468, %v3266
      %3524 = vst.msk [vmem:[%s175 + $0xdc] sm:$0xf] %vm3468, %v3267
      %3525 = vst.msk [vmem:[%s175 + $0xe0] sm:$0xf] %vm3468, %v3268
      %3526 = vst.msk [vmem:[%s175 + $0xe4] sm:$0xf] %vm3468, %v3269
      %3527 = vst.msk [vmem:[%s175 + $0xe8] sm:$0xf] %vm3468, %v3270
      %3528 = vst.msk [vmem:[%s175 + $0xec] sm:$0xf] %vm3468, %v3271
      %3529 = vst.msk [vmem:[%s175 + $0xf0] sm:$0xf] %vm3468, %v3272
      %3530 = vst.msk [vmem:[%s175 + $0xf4] sm:$0xf] %vm3468, %v3273
      %3531 = vst.msk [vmem:[%s175 + $0xf8] sm:$0xf] %vm3468, %v3274
      %3532 = vst.msk [vmem:[%s175 + $0xfc] sm:$0xf] %vm3468, %v3275
      %3533 = vst.msk [vmem:[%s175 + $0x100] sm:$0xf] %vm3468, %v3276
      %3534 = vst.msk [vmem:[%s175 + $0x104] sm:$0xf] %vm3468, %v3277
      %3535 = vst.msk [vmem:[%s175 + $0x108] sm:$0xf] %vm3468, %v3278
      %3536 = vst.msk [vmem:[%s175 + $0x10c] sm:$0xf] %vm3468, %v3279
      %3537 = vst.msk [vmem:[%s175 + $0x110] sm:$0xf] %vm3468, %v3280
      %3538 = vst.msk [vmem:[%s175 + $0x114] sm:$0xf] %vm3468, %v3281
      %3539 = vst.msk [vmem:[%s175 + $0x118] sm:$0xf] %vm3468, %v3282
      %3540 = vst.msk [vmem:[%s175 + $0x11c] sm:$0xf] %vm3468, %v3283
      %3541 = vst.msk [vmem:[%s175 + $0x120] sm:$0xf] %vm3468, %v3284
      %3542 = vst.msk [vmem:[%s175 + $0x124] sm:$0xf] %vm3468, %v3285
      %3543 = vst.msk [vmem:[%s175 + $0x128] sm:$0xf] %vm3468, %v3286
      %3544 = vst.msk [vmem:[%s175 + $0x12c] sm:$0xf] %vm3468, %v3287
      %3545 = vst.msk [vmem:[%s175 + $0x130] sm:$0xf] %vm3468, %v3288
      %3546 = vst.msk [vmem:[%s175 + $0x134] sm:$0xf] %vm3468, %v3289
      %3547 = vst.msk [vmem:[%s175 + $0x138] sm:$0xf] %vm3468, %v3290
      %3548 = vst.msk [vmem:[%s175 + $0x13c] sm:$0xf] %vm3468, %v3291
      %3549 = vst.msk [vmem:[%s175 + $0x140] sm:$0xf] %vm3468, %v3292
      %3550 = vst.msk [vmem:[%s175 + $0x144] sm:$0xf] %vm3468, %v3293
      %3551 = vst.msk [vmem:[%s175 + $0x148] sm:$0xf] %vm3468, %v3294
      %3552 = vst.msk [vmem:[%s175 + $0x14c] sm:$0xf] %vm3468, %v3295
      %3553 = vst.msk [vmem:[%s175 + $0x150] sm:$0xf] %vm3468, %v3296
      %3554 = vst.msk [vmem:[%s175 + $0x154] sm:$0xf] %vm3468, %v3297
      %3555 = vst.msk [vmem:[%s175 + $0x158] sm:$0xf] %vm3468, %v3298
      %3556 = vst.msk [vmem:[%s175 + $0x15c] sm:$0xf] %vm3468, %v3299
      %3557 = vst.msk [vmem:[%s175 + $0x160] sm:$0xf] %vm3468, %v3300
      %3558 = vst.msk [vmem:[%s175 + $0x164] sm:$0xf] %vm3468, %v3301
      %3559 = vst.msk [vmem:[%s175 + $0x168] sm:$0xf] %vm3468, %v3302
      %3560 = vst.msk [vmem:[%s175 + $0x16c] sm:$0xf] %vm3468, %v3303
      %3561 = vst.msk [vmem:[%s175 + $0x170] sm:$0xf] %vm3468, %v3304
      %3562 = vst.msk [vmem:[%s175 + $0x174] sm:$0xf] %vm3468, %v3305
      %3563 = vst.msk [vmem:[%s175 + $0x178] sm:$0xf] %vm3468, %v3306
      %3564 = vst.msk [vmem:[%s175 + $0x17c] sm:$0xf] %vm3468, %v3307
      %3565 = vst.msk [vmem:[%s175 + $0x180] sm:$0xf] %vm3468, %v3308
      %3566 = vst.msk [vmem:[%s175 + $0x184] sm:$0xf] %vm3468, %v3309
      %3567 = vst.msk [vmem:[%s175 + $0x188] sm:$0xf] %vm3468, %v3310
      %3568 = vst.msk [vmem:[%s175 + $0x18c] sm:$0xf] %vm3468, %v3311
      %3569 = vst.msk [vmem:[%s175 + $0x190] sm:$0xf] %vm3468, %v3312
      %3570 = vst.msk [vmem:[%s175 + $0x194] sm:$0xf] %vm3468, %v3313
      %3571 = vst.msk [vmem:[%s175 + $0x198] sm:$0xf] %vm3468, %v3314
      %3572 = vst.msk [vmem:[%s175 + $0x19c] sm:$0xf] %vm3468, %v3315
      %3573 = vst.msk [vmem:[%s175 + $0x1a0] sm:$0xf] %vm3468, %v3316
      %3574 = vst.msk [vmem:[%s175 + $0x1a4] sm:$0xf] %vm3468, %v3317
      %3575 = vst.msk [vmem:[%s175 + $0x1a8] sm:$0xf] %vm3468, %v3318
      %3576 = vst.msk [vmem:[%s175 + $0x1ac] sm:$0xf] %vm3468, %v3319
      %3577 = vst.msk [vmem:[%s175 + $0x1b0] sm:$0xf] %vm3468, %v3320
      %3578 = vst.msk [vmem:[%s175 + $0x1b4] sm:$0xf] %vm3468, %v3321
      %3579 = vst.msk [vmem:[%s175 + $0x1b8] sm:$0xf] %vm3468, %v3322
      %3580 = vst.msk [vmem:[%s175 + $0x1bc] sm:$0xf] %vm3468, %v3323
      %3581 = vst.msk [vmem:[%s175 + $0x1c0] sm:$0xf] %vm3468, %v3324
      %3582 = vst.msk [vmem:[%s175 + $0x1c4] sm:$0xf] %vm3468, %v3325
      %3583 = vst.msk [vmem:[%s175 + $0x1c8] sm:$0xf] %vm3468, %v3326
      %3584 = vst.msk [vmem:[%s175 + $0x1cc] sm:$0xf] %vm3468, %v3327
      %3585 = vst.msk [vmem:[%s175 + $0x1d0] sm:$0xf] %vm3468, %v3328
      %3586 = vst.msk [vmem:[%s175 + $0x1d4] sm:$0xf] %vm3468, %v3329
      %3587 = vst.msk [vmem:[%s175 + $0x1d8] sm:$0xf] %vm3468, %v3330
      %3588 = vst.msk [vmem:[%s175 + $0x1dc] sm:$0xf] %vm3468, %v3331
      %3589 = vst.msk [vmem:[%s175 + $0x1e0] sm:$0xf] %vm3468, %v3332
      %3590 = vst.msk [vmem:[%s175 + $0x1e4] sm:$0xf] %vm3468, %v3333
      %3591 = vst.msk [vmem:[%s175 + $0x1e8] sm:$0xf] %vm3468, %v3334
      %3592 = vst.msk [vmem:[%s175 + $0x1ec] sm:$0xf] %vm3468, %v3335
      %3593 = vst.msk [vmem:[%s175 + $0x1f0] sm:$0xf] %vm3468, %v3336
      %3594 = vst.msk [vmem:[%s175 + $0x1f4] sm:$0xf] %vm3468, %v3337
      %3595 = vst.msk [vmem:[%s175 + $0x1f8] sm:$0xf] %vm3468, %v3338
      %3596 = vst.msk [vmem:[%s175 + $0x1fc] sm:$0xf] %vm3468, %v3339
      %s3597 = smul.u32 128, %s14
      %p3598 = scmp.lt.s32.totalorder %s3597, 255
      %s3599 = scalar_select %p3598, %s3597, 255
      %s3600 = smul.addr %s3599, 4
      %s3601 = scalar_lea.vmem %s3, %s3600
      // Predicated region
      $region33: #{_lambda_.5} parent=31 // pred_check
        %p3602 = pneg %p100
      $region34: #{_lambda_.5} parent=31 // pred_check_branch
        %3604 = sbr.rel (%p3602) target = $region36
      $region35: #{_lambda_.5} parent=31 // pred_region
        %s3605 = smul.u32 128, %s14
      $region36: #{_lambda_.5} parent=31 // pred_fallthru
        _
    $region32: #{_lambda_.5} parent=5 // pred_fallthru
      _
    %p3606 = scmp.le.s32.totalorder 2, %s9
    // Predicated region
    $region37: #{_lambda_.5} parent=5 // pred_check
      %p3607 = pneg %p3606
    $region38: #{_lambda_.5} parent=5 // pred_check_branch
      %3609 = sbr.rel (%p3607) target = $region40
    $region39: #{_lambda_.5} parent=5 // pred_region
      %s3610 = ssub.s32 %s9, 2
      // Predicated region
      $region41: #{_lambda_.5} parent=39 // pred_check
        %p3611 = pneg %p106
      $region42: #{_lambda_.5} parent=39 // pred_check_branch
        %3613 = sbr.rel (%p3611) target = $region44
      $region43: #{_lambda_.5} parent=39 // pred_region
        %s3614 = smul.u32 128, %s15
        %p3615 = scmp.lt.s32.totalorder %s3614, 255
        %s3616 = scalar_select %p3615, %s3614, 255
        %s3617 = smul.addr %s3616, 4
        %s3618 = scalar_lea.vmem %s3, %s3617
      $region44: #{_lambda_.5} parent=39 // pred_fallthru
        _
    $region40: #{_lambda_.5} parent=5 // pred_fallthru
      _
  $region6: #{_lambda_.5} parent=0 // loop_footer
    %s13 = sadd.s32 1, %s9
  $region7: #{_lambda_.5} parent=0 // loop_footer_branch
    %8 = sbr.rel target = $region3
  $region8: #{_lambda_.5} parent=0 // loop_exit
    _

// kernel: _lambda_.6
$region0: #{_lambda_.6}
  #allocation0 [shape = 'u32[]', space=smem, size = 0x4, offset = 0x4, fixed_abs, tag = 'smem constant byte address 0x4 - core index']
  #allocation1 [shape = 'u32[144,128]{1,0:T(1,128)}', space=vmem, size = 0x12000, scoped, tag = 'internal scratch']
  %s0 = inlined_call_operand.vmem [shape: bf16[512,576], index: 0, kind: input, shape index: {}]
  %s1 = inlined_call_operand.vmem [shape: bf16[576,64], index: 1, kind: input, shape index: {}]
  %s2 = inlined_call_operand.vmem [shape: f32[1,64], index: 2, kind: input, shape index: {}]
  %s3 = inlined_call_operand.vmem [shape: bf16[512,64], index: 3, kind: output, shape index: {}]
  %s4 = sld [smem:[#allocation0]]
  $region45: #{_lambda_.6} parent=0
    _
  %s6 = ssub.s32 1, %s4
  %s7 = scalar_select 0, %s6, %s4
  loop: start=0, step=1, limit=4
  $region2: #{_lambda_.6} parent=0 // loop_pre_header
    _
  $region3: #{_lambda_.6} parent=0 // loop_header
    %s9 = sphi 0, %s13
    %p10 = scmp.ge.s32.totalorder %s9, 4
    %s19 = sphi 0, %s21
    %s22 = sphi 0, %s19
    %s23 = sphi 0, %s22
    %s39 = sphi 0, %s23
    %s43 = sphi 0, %s43
    %s45 = sphi 0, %s43
    %s46 = sphi 0, %s45
    %s60 = sphi 0, %s46
    %s64 = sphi 0, %s64
    %s66 = sphi 0, %s64
    %s67 = sphi 0, %s66
    %s81 = sphi 0, %s67
    %s87 = sphi 0, %s89
    %s90 = sphi 0, %s87
    %s91 = sphi 0, %s90
    %s107 = sphi 0, %s91
  $region4: #{_lambda_.6} parent=0 // loop_header_branch
    %12 = sbr.rel (%p10) target = $region8
  $region5: #{_lambda_.6} parent=0 // loop_body
    %s14 = ssub.s32 %s9, 1
    %s15 = ssub.s32 %s9, 2
    %s16 = sadd.s32 %s9, 1
    %s17 = ssub.s32 %s9, %s16
    %p18 = scmp.eq.s32.totalorder %s17, 0
    %s20 = sadd.s32 %s19, 1
    %s21 = scalar_select %p18, %s19, %s20
    %p24 = pneg %p18
    %p25 = scmp.eq.s32.totalorder %s9, 1
    %p26 = por %p24, %p25
    %p27 = scmp.ne.s32.totalorder %s19, %s22
    %p28 = scmp.eq.s32.totalorder %s9, 0
    %p29 = por %p27, %p28
    %p30 = scmp.ne.s32.totalorder %s19, %s22
    %p31 = scmp.eq.s32.totalorder %s14, 1
    %p32 = por %p30, %p31
    %p33 = scmp.ne.s32.totalorder %s22, %s23
    %p34 = scmp.eq.s32.totalorder %s14, 0
    %p35 = por %p33, %p34
    %p36 = scmp.ne.s32.totalorder %s22, %s23
    %p37 = scmp.eq.s32.totalorder %s15, 1
    %p38 = por %p36, %p37
    %p40 = scmp.ne.s32.totalorder %s23, %s39
    %p41 = scmp.eq.s32.totalorder %s15, 0
    %p42 = por %p40, %p41
    %s44 = sadd.s32 %s43, 1
    %p47 = scmp.eq.s32.totalorder %s9, 1
    %p48 = scmp.ne.s32.totalorder %s43, %s45
    %p49 = scmp.eq.s32.totalorder %s9, 0
    %p50 = por %p48, %p49
    %p51 = scmp.ne.s32.totalorder %s43, %s45
    %p52 = scmp.eq.s32.totalorder %s14, 1
    %p53 = por %p51, %p52
    %p54 = scmp.ne.s32.totalorder %s45, %s46
    %p55 = scmp.eq.s32.totalorder %s14, 0
    %p56 = por %p54, %p55
    %p57 = scmp.ne.s32.totalorder %s45, %s46
    %p58 = scmp.eq.s32.totalorder %s15, 1
    %p59 = por %p57, %p58
    %p61 = scmp.ne.s32.totalorder %s46, %s60
    %p62 = scmp.eq.s32.totalorder %s15, 0
    %p63 = por %p61, %p62
    %s65 = sadd.s32 %s64, 1
    %p68 = scmp.eq.s32.totalorder %s9, 1
    %p69 = scmp.ne.s32.totalorder %s64, %s66
    %p70 = scmp.eq.s32.totalorder %s9, 0
    %p71 = por %p69, %p70
    %p72 = scmp.ne.s32.totalorder %s64, %s66
    %p73 = scmp.eq.s32.totalorder %s14, 1
    %p74 = por %p72, %p73
    %p75 = scmp.ne.s32.totalorder %s66, %s67
    %p76 = scmp.eq.s32.totalorder %s14, 0
    %p77 = por %p75, %p76
    %p78 = scmp.ne.s32.totalorder %s66, %s67
    %p79 = scmp.eq.s32.totalorder %s15, 1
    %p80 = por %p78, %p79
    %p82 = scmp.ne.s32.totalorder %s67, %s81
    %p83 = scmp.eq.s32.totalorder %s15, 0
    %p84 = por %p82, %p83
    %s85 = ssub.s32 %s9, %s16
    %p86 = scmp.eq.s32.totalorder %s85, 0
    %s88 = sadd.s32 %s87, 1
    %s89 = scalar_select %p86, %s87, %s88
    %p92 = pneg %p86
    %p93 = scmp.eq.s32.totalorder %s9, 1
    %p94 = por %p92, %p93
    %p95 = scmp.ne.s32.totalorder %s87, %s90
    %p96 = scmp.eq.s32.totalorder %s9, 0
    %p97 = por %p95, %p96
    %p98 = scmp.ne.s32.totalorder %s87, %s90
    %p99 = scmp.eq.s32.totalorder %s14, 1
    %p100 = por %p98, %p99
    %p101 = scmp.ne.s32.totalorder %s90, %s91
    %p102 = scmp.eq.s32.totalorder %s14, 0
    %p103 = por %p101, %p102
    %p104 = scmp.ne.s32.totalorder %s90, %s91
    %p105 = scmp.eq.s32.totalorder %s15, 1
    %p106 = por %p104, %p105
    %p108 = scmp.ne.s32.totalorder %s91, %s107
    %p109 = scmp.eq.s32.totalorder %s15, 0
    %p110 = por %p108, %p109
    %p111 = scmp.le.s32.totalorder 1, %s9
    %p112 = scmp.lt.s32.totalorder %s9, 3
    %p113 = pnand %p111, %p112
    %p114 = pneg %p113
    // Predicated region
    $region9: #{_lambda_.6} parent=5 // pred_check
      _
    $region10: #{_lambda_.6} parent=5 // pred_check_branch
      %116 = sbr.rel (%p113) target = $region12
    $region11: #{_lambda_.6} parent=5 // pred_region
      %s117 = ssub.s32 %s9, 1
      // Predicated region
      $region13: #{_lambda_.6} parent=11 // pred_check
        %p118 = pneg %p56
      $region14: #{_lambda_.6} parent=11 // pred_check_branch
        %120 = sbr.rel (%p118) target = $region16
      $region15: #{_lambda_.6} parent=11 // pred_region
        _
      $region16: #{_lambda_.6} parent=11 // pred_fallthru
        _
      // Predicated region
      $region17: #{_lambda_.6} parent=11 // pred_check
        %p121 = pneg %p77
      $region18: #{_lambda_.6} parent=11 // pred_check_branch
        %123 = sbr.rel (%p121) target = $region20
      $region19: #{_lambda_.6} parent=11 // pred_region
        _
      $region20: #{_lambda_.6} parent=11 // pred_fallthru
        _
    $region12: #{_lambda_.6} parent=5 // pred_fallthru
      _
    %p124 = scmp.lt.s32.totalorder %s9, 2
    // Predicated region
    $region21: #{_lambda_.6} parent=5 // pred_check
      %p125 = pneg %p124
    $region22: #{_lambda_.6} parent=5 // pred_check_branch
      %127 = sbr.rel (%p125) target = $region24
    $region23: #{_lambda_.6} parent=5 // pred_region
      // Predicated region
      $region25: #{_lambda_.6} parent=23 // pred_check
        %p128 = pneg %p29
      $region26: #{_lambda_.6} parent=23 // pred_check_branch
        %130 = sbr.rel (%p128) target = $region28
      $region27: #{_lambda_.6} parent=23 // pred_region
        %s131 = smul.u32 32, %s9
        %p132 = scmp.lt.s32.totalorder %s131, 63
        %s133 = scalar_select %p132, %s131, 63
        %s134 = smul.addr %s133, 5
        %s135 = smul.addr %s134, 4
        %s136 = scalar_lea.vmem %s0, %s135
        %s137 = smul.u32 32, %s9
      $region28: #{_lambda_.6} parent=23 // pred_fallthru
        _
    $region24: #{_lambda_.6} parent=5 // pred_fallthru
      _
    %p138 = scmp.le.s32.totalorder 1, %s9
    %p139 = scmp.lt.s32.totalorder %s9, 3
    %p140 = pnand %p138, %p139
    %p141 = pneg %p140
    // Predicated region
    $region29: #{_lambda_.6} parent=5 // pred_check
      _
    $region30: #{_lambda_.6} parent=5 // pred_check_branch
      %143 = sbr.rel (%p140) target = $region32
    $region31: #{_lambda_.6} parent=5 // pred_region
      %s144 = ssub.s32 %s9, 1
      %s145 = smul.u32 32, %s14
      %p146 = scmp.lt.s32.totalorder %s145, 63
      %s147 = scalar_select %p146, %s145, 63
      %s148 = smul.addr %s147, 5
      %s149 = smul.addr %s148, 4
      %s150 = scalar_lea.vmem %s0, %s149
      %p151 = pneg %p35
      %p152 = pneg %p32
      %p153 = pneg %p56
      %p154 = pneg %p53
      %p155 = pneg %p77
      %p156 = pneg %p74
      %p157 = pneg %p103
      %p158 = pneg %p100
      %s159 = smul.u32 32, %s14
      %p160 = scmp.lt.s32.totalorder %s159, 63
      %s161 = scalar_select %p160, %s159, 63
      %s162 = smul.addr %s161, 4
      %s163 = scalar_lea.vmem %s3, %s162
      %s164 = smul.u32 32, %s14
      %p165 = scmp.lt.s32.totalorder %s164, 63
      %s166 = scalar_select %p165, %s164, 63
      %s167 = smul.addr %s166, 5
      %s168 = smul.addr %s167, 4
      %s169 = scalar_lea.vmem %s0, %s168
      %s170 = smul.u32 32, %s14
      %s171 = smul.u32 32, %s14
      %p172 = scmp.lt.s32.totalorder %s171, 63
      %s173 = scalar_select %p172, %s171, 63
      %s174 = smul.addr %s173, 4
      %s175 = scalar_lea.vmem %s3, %s174
      %s176 = smul.u32 32, %s14
      %v178 = vld [vmem:[%s169] sm:$0xff]
      %v179 = vld [vmem:[%s169 + $0x8] sm:$0xff]
      %v180 = vld [vmem:[%s169 + $0x10] sm:$0xf]
      %v181 = vld [vmem:[%s169 + $0x14] sm:$0xff]
      %v182 = vld [vmem:[%s169 + $0x1c] sm:$0xff]
      %v183 = vld [vmem:[%s169 + $0x24] sm:$0xf]
      %v184 = vld [vmem:[%s169 + $0x28] sm:$0xff]
      %v185 = vld [vmem:[%s169 + $0x30] sm:$0xff]
      %v186 = vld [vmem:[%s169 + $0x38] sm:$0xf]
      %v187 = vld [vmem:[%s169 + $0x3c] sm:$0xff]
      %v188 = vld [vmem:[%s169 + $0x44] sm:$0xff]
      %v189 = vld [vmem:[%s169 + $0x4c] sm:$0xf]
      %v190 = vld [vmem:[%s169 + $0x50] sm:$0xff]
      %v191 = vld [vmem:[%s169 + $0x58] sm:$0xff]
      %v192 = vld [vmem:[%s169 + $0x60] sm:$0xf]
      %v193 = vld [vmem:[%s169 + $0x64] sm:$0xff]
      %v194 = vld [vmem:[%s169 + $0x6c] sm:$0xff]
      %v195 = vld [vmem:[%s169 + $0x74] sm:$0xf]
      %v196 = vld [vmem:[%s169 + $0x78] sm:$0xff]
      %v197 = vld [vmem:[%s169 + $0x80] sm:$0xff]
      %v198 = vld [vmem:[%s169 + $0x88] sm:$0xf]
      %v199 = vld [vmem:[%s169 + $0x8c] sm:$0xff]
      %v200 = vld [vmem:[%s169 + $0x94] sm:$0xff]
      %v201 = vld [vmem:[%s169 + $0x9c] sm:$0xf]
      %v202 = vld [vmem:[%s169 + $0xa0] sm:$0xff]
      %v203 = vld [vmem:[%s169 + $0xa8] sm:$0xff]
      %v204 = vld [vmem:[%s169 + $0xb0] sm:$0xf]
      %v205 = vld [vmem:[%s169 + $0xb4] sm:$0xff]
      %v206 = vld [vmem:[%s169 + $0xbc] sm:$0xff]
      %v207 = vld [vmem:[%s169 + $0xc4] sm:$0xf]
      %v208 = vld [vmem:[%s169 + $0xc8] sm:$0xff]
      %v209 = vld [vmem:[%s169 + $0xd0] sm:$0xff]
      %v210 = vld [vmem:[%s169 + $0xd8] sm:$0xf]
      %v211 = vld [vmem:[%s169 + $0xdc] sm:$0xff]
      %v212 = vld [vmem:[%s169 + $0xe4] sm:$0xff]
      %v213 = vld [vmem:[%s169 + $0xec] sm:$0xf]
      %v214 = vld [vmem:[%s169 + $0xf0] sm:$0xff]
      %v215 = vld [vmem:[%s169 + $0xf8] sm:$0xff]
      %v216 = vld [vmem:[%s169 + $0x100] sm:$0xf]
      %v217 = vld [vmem:[%s169 + $0x104] sm:$0xff]
      %v218 = vld [vmem:[%s169 + $0x10c] sm:$0xff]
      %v219 = vld [vmem:[%s169 + $0x114] sm:$0xf]
      %v220 = vld [vmem:[%s169 + $0x118] sm:$0xff]
      %v221 = vld [vmem:[%s169 + $0x120] sm:$0xff]
      %v222 = vld [vmem:[%s169 + $0x128] sm:$0xf]
      %v223 = vld [vmem:[%s169 + $0x12c] sm:$0xff]
      %v224 = vld [vmem:[%s169 + $0x134] sm:$0xff]
      %v225 = vld [vmem:[%s169 + $0x13c] sm:$0xf]
      %v226 = vld [vmem:[%s169 + $0x140] sm:$0xff]
      %v227 = vld [vmem:[%s169 + $0x148] sm:$0xff]
      %v228 = vld [vmem:[%s169 + $0x150] sm:$0xf]
      %v229 = vld [vmem:[%s169 + $0x154] sm:$0xff]
      %v230 = vld [vmem:[%s169 + $0x15c] sm:$0xff]
      %v231 = vld [vmem:[%s169 + $0x164] sm:$0xf]
      %v232 = vld [vmem:[%s169 + $0x168] sm:$0xff]
      %v233 = vld [vmem:[%s169 + $0x170] sm:$0xff]
      %v234 = vld [vmem:[%s169 + $0x178] sm:$0xf]
      %v235 = vld [vmem:[%s169 + $0x17c] sm:$0xff]
      %v236 = vld [vmem:[%s169 + $0x184] sm:$0xff]
      %v237 = vld [vmem:[%s169 + $0x18c] sm:$0xf]
      %v238 = vld [vmem:[%s169 + $0x190] sm:$0xff]
      %v239 = vld [vmem:[%s169 + $0x198] sm:$0xff]
      %v240 = vld [vmem:[%s169 + $0x1a0] sm:$0xf]
      %v241 = vld [vmem:[%s169 + $0x1a4] sm:$0xff]
      %v242 = vld [vmem:[%s169 + $0x1ac] sm:$0xff]
      %v243 = vld [vmem:[%s169 + $0x1b4] sm:$0xf]
      %v244 = vld [vmem:[%s169 + $0x1b8] sm:$0xff]
      %v245 = vld [vmem:[%s169 + $0x1c0] sm:$0xff]
      %v246 = vld [vmem:[%s169 + $0x1c8] sm:$0xf]
      %v247 = vld [vmem:[%s169 + $0x1cc] sm:$0xff]
      %v248 = vld [vmem:[%s169 + $0x1d4] sm:$0xff]
      %v249 = vld [vmem:[%s169 + $0x1dc] sm:$0xf]
      %v250 = vld [vmem:[%s169 + $0x1e0] sm:$0xff]
      %v251 = vld [vmem:[%s169 + $0x1e8] sm:$0xff]
      %v252 = vld [vmem:[%s169 + $0x1f0] sm:$0xf]
      %v253 = vld [vmem:[%s169 + $0x1f4] sm:$0xff]
      %v254 = vld [vmem:[%s169 + $0x1fc] sm:$0xff]
      %v255 = vld [vmem:[%s169 + $0x204] sm:$0xf]
      %v256 = vld [vmem:[%s169 + $0x208] sm:$0xff]
      %v257 = vld [vmem:[%s169 + $0x210] sm:$0xff]
      %v258 = vld [vmem:[%s169 + $0x218] sm:$0xf]
      %v259 = vld [vmem:[%s169 + $0x21c] sm:$0xff]
      %v260 = vld [vmem:[%s169 + $0x224] sm:$0xff]
      %v261 = vld [vmem:[%s169 + $0x22c] sm:$0xf]
      %v262 = vld [vmem:[%s169 + $0x230] sm:$0xff]
      %v263 = vld [vmem:[%s169 + $0x238] sm:$0xff]
      %v264 = vld [vmem:[%s169 + $0x240] sm:$0xf]
      %v265 = vld [vmem:[%s169 + $0x244] sm:$0xff]
      %v266 = vld [vmem:[%s169 + $0x24c] sm:$0xff]
      %v267 = vld [vmem:[%s169 + $0x254] sm:$0xf]
      %v268 = vld [vmem:[%s169 + $0x258] sm:$0xff]
      %v269 = vld [vmem:[%s169 + $0x260] sm:$0xff]
      %v270 = vld [vmem:[%s169 + $0x268] sm:$0xf]
      %v271 = vld [vmem:[%s169 + $0x26c] sm:$0xff]
      %v272 = vld [vmem:[%s169 + $0x274] sm:$0xff]
      %v273 = vld [vmem:[%s169 + $0x27c] sm:$0xf]
      %v274 = vld [vmem:[%s1] sm:$0xf]
      %v275 = vld [vmem:[%s1 + $0x4] sm:$0xf]
      %v276 = vld [vmem:[%s1 + $0x8] sm:$0xf]
      %v277 = vld [vmem:[%s1 + $0xc] sm:$0xf]
      %v278 = vld [vmem:[%s1 + $0x10] sm:$0xf]
      %v279 = vld [vmem:[%s1 + $0x14] sm:$0xf]
      %v280 = vld [vmem:[%s1 + $0x18] sm:$0xf]
      %v281 = vld [vmem:[%s1 + $0x1c] sm:$0xf]
      %v282 = vld [vmem:[%s1 + $0x20] sm:$0xf]
      %v283 = vld [vmem:[%s1 + $0x24] sm:$0xf]
      %v284 = vld [vmem:[%s1 + $0x28] sm:$0xf]
      %v285 = vld [vmem:[%s1 + $0x2c] sm:$0xf]
      %v286 = vld [vmem:[%s1 + $0x30] sm:$0xf]
      %v287 = vld [vmem:[%s1 + $0x34] sm:$0xf]
      %v288 = vld [vmem:[%s1 + $0x38] sm:$0xf]
      %v289 = vld [vmem:[%s1 + $0x3c] sm:$0xf]
      %v290 = vld [vmem:[%s1 + $0x40] sm:$0xf]
      %v291 = vld [vmem:[%s1 + $0x44] sm:$0xf]
      %v292 = vld [vmem:[%s1 + $0x48] sm:$0xf]
      %v293 = vld [vmem:[%s1 + $0x4c] sm:$0xf]
      %v294 = vld [vmem:[%s1 + $0x50] sm:$0xf]
      %v295 = vld [vmem:[%s1 + $0x54] sm:$0xf]
      %v296 = vld [vmem:[%s1 + $0x58] sm:$0xf]
      %v297 = vld [vmem:[%s1 + $0x5c] sm:$0xf]
      %v298 = vld [vmem:[%s1 + $0x60] sm:$0xf]
      %v299 = vld [vmem:[%s1 + $0x64] sm:$0xf]
      %v300 = vld [vmem:[%s1 + $0x68] sm:$0xf]
      %v301 = vld [vmem:[%s1 + $0x6c] sm:$0xf]
      %v302 = vld [vmem:[%s1 + $0x70] sm:$0xf]
      %v303 = vld [vmem:[%s1 + $0x74] sm:$0xf]
      %v304 = vld [vmem:[%s1 + $0x78] sm:$0xf]
      %v305 = vld [vmem:[%s1 + $0x7c] sm:$0xf]
      %v306 = vld [vmem:[%s1 + $0x80] sm:$0xf]
      %v307 = vld [vmem:[%s1 + $0x84] sm:$0xf]
      %v308 = vld [vmem:[%s1 + $0x88] sm:$0xf]
      %v309 = vld [vmem:[%s1 + $0x8c] sm:$0xf]
      %v310 = vld [vmem:[%s1 + $0x90] sm:$0xf]
      %v311 = vld [vmem:[%s1 + $0x94] sm:$0xf]
      %v312 = vld [vmem:[%s1 + $0x98] sm:$0xf]
      %v313 = vld [vmem:[%s1 + $0x9c] sm:$0xf]
      %v314 = vld [vmem:[%s1 + $0xa0] sm:$0xf]
      %v315 = vld [vmem:[%s1 + $0xa4] sm:$0xf]
      %v316 = vld [vmem:[%s1 + $0xa8] sm:$0xf]
      %v317 = vld [vmem:[%s1 + $0xac] sm:$0xf]
      %v318 = vld [vmem:[%s1 + $0xb0] sm:$0xf]
      %v319 = vld [vmem:[%s1 + $0xb4] sm:$0xf]
      %v320 = vld [vmem:[%s1 + $0xb8] sm:$0xf]
      %v321 = vld [vmem:[%s1 + $0xbc] sm:$0xf]
      %v322 = vld [vmem:[%s1 + $0xc0] sm:$0xf]
      %v323 = vld [vmem:[%s1 + $0xc4] sm:$0xf]
      %v324 = vld [vmem:[%s1 + $0xc8] sm:$0xf]
      %v325 = vld [vmem:[%s1 + $0xcc] sm:$0xf]
      %v326 = vld [vmem:[%s1 + $0xd0] sm:$0xf]
      %v327 = vld [vmem:[%s1 + $0xd4] sm:$0xf]
      %v328 = vld [vmem:[%s1 + $0xd8] sm:$0xf]
      %v329 = vld [vmem:[%s1 + $0xdc] sm:$0xf]
      %v330 = vld [vmem:[%s1 + $0xe0] sm:$0xf]
      %v331 = vld [vmem:[%s1 + $0xe4] sm:$0xf]
      %v332 = vld [vmem:[%s1 + $0xe8] sm:$0xf]
      %v333 = vld [vmem:[%s1 + $0xec] sm:$0xf]
      %v334 = vld [vmem:[%s1 + $0xf0] sm:$0xf]
      %v335 = vld [vmem:[%s1 + $0xf4] sm:$0xf]
      %v336 = vld [vmem:[%s1 + $0xf8] sm:$0xf]
      %v337 = vld [vmem:[%s1 + $0xfc] sm:$0xf]
      %v338 = vld [vmem:[%s1 + $0x100] sm:$0xf]
      %v339 = vld [vmem:[%s1 + $0x104] sm:$0xf]
      %v340 = vld [vmem:[%s1 + $0x108] sm:$0xf]
      %v341 = vld [vmem:[%s1 + $0x10c] sm:$0xf]
      %v342 = vld [vmem:[%s1 + $0x110] sm:$0xf]
      %v343 = vld [vmem:[%s1 + $0x114] sm:$0xf]
      %v344 = vld [vmem:[%s1 + $0x118] sm:$0xf]
      %v345 = vld [vmem:[%s1 + $0x11c] sm:$0xf]
      %v346 = vld [vmem:[%s2] sm:$0x1]
      %v348 = vlaneseq
      %v349 = vshrl.u32 %v348, 7
      %v350 = vsub.s32 0, %v349
      %v351 = vrot.slane %v346, %v350
      %v449 = vunpack.c.l.b16 %v178
      %v450 = vunpack.c.h.b16 %v178
      %v451 = vunpack.c.l.b16 %v179
      %v452 = vunpack.c.h.b16 %v179
      %v453 = vunpack.c.l.b16 %v180
      %v454 = vunpack.c.l.b16 %v181
      %v455 = vunpack.c.h.b16 %v181
      %v456 = vunpack.c.l.b16 %v182
      %v457 = vunpack.c.h.b16 %v182
      %v458 = vunpack.c.l.b16 %v183
      %v459 = vunpack.c.l.b16 %v184
      %v460 = vunpack.c.h.b16 %v184
      %v461 = vunpack.c.l.b16 %v185
      %v462 = vunpack.c.h.b16 %v185
      %v463 = vunpack.c.l.b16 %v186
      %v464 = vunpack.c.l.b16 %v187
      %v465 = vunpack.c.h.b16 %v187
      %v466 = vunpack.c.l.b16 %v188
      %v467 = vunpack.c.h.b16 %v188
      %v468 = vunpack.c.l.b16 %v189
      %v469 = vunpack.c.l.b16 %v190
      %v470 = vunpack.c.h.b16 %v190
      %v471 = vunpack.c.l.b16 %v191
      %v472 = vunpack.c.h.b16 %v191
      %v473 = vunpack.c.l.b16 %v192
      %v474 = vunpack.c.l.b16 %v193
      %v475 = vunpack.c.h.b16 %v193
      %v476 = vunpack.c.l.b16 %v194
      %v477 = vunpack.c.h.b16 %v194
      %v478 = vunpack.c.l.b16 %v195
      %v479 = vunpack.c.l.b16 %v196
      %v480 = vunpack.c.h.b16 %v196
      %v481 = vunpack.c.l.b16 %v197
      %v482 = vunpack.c.h.b16 %v197
      %v483 = vunpack.c.l.b16 %v198
      %v484 = vunpack.c.l.b16 %v199
      %v485 = vunpack.c.h.b16 %v199
      %v486 = vunpack.c.l.b16 %v200
      %v487 = vunpack.c.h.b16 %v200
      %v488 = vunpack.c.l.b16 %v201
      %v489 = vunpack.c.l.b16 %v202
      %v490 = vunpack.c.h.b16 %v202
      %v491 = vunpack.c.l.b16 %v203
      %v492 = vunpack.c.h.b16 %v203
      %v493 = vunpack.c.l.b16 %v204
      %v494 = vunpack.c.l.b16 %v205
      %v495 = vunpack.c.h.b16 %v205
      %v496 = vunpack.c.l.b16 %v206
      %v497 = vunpack.c.h.b16 %v206
      %v498 = vunpack.c.l.b16 %v207
      %v499 = vunpack.c.l.b16 %v208
      %v500 = vunpack.c.h.b16 %v208
      %v501 = vunpack.c.l.b16 %v209
      %v502 = vunpack.c.h.b16 %v209
      %v503 = vunpack.c.l.b16 %v210
      %v504 = vunpack.c.l.b16 %v211
      %v505 = vunpack.c.h.b16 %v211
      %v506 = vunpack.c.l.b16 %v212
      %v507 = vunpack.c.h.b16 %v212
      %v508 = vunpack.c.l.b16 %v213
      %v509 = vunpack.c.l.b16 %v214
      %v510 = vunpack.c.h.b16 %v214
      %v511 = vunpack.c.l.b16 %v215
      %v512 = vunpack.c.h.b16 %v215
      %v513 = vunpack.c.l.b16 %v216
      %v514 = vunpack.c.l.b16 %v217
      %v515 = vunpack.c.h.b16 %v217
      %v516 = vunpack.c.l.b16 %v218
      %v517 = vunpack.c.h.b16 %v218
      %v518 = vunpack.c.l.b16 %v219
      %v519 = vunpack.c.l.b16 %v220
      %v520 = vunpack.c.h.b16 %v220
      %v521 = vunpack.c.l.b16 %v221
      %v522 = vunpack.c.h.b16 %v221
      %v523 = vunpack.c.l.b16 %v222
      %v524 = vunpack.c.l.b16 %v223
      %v525 = vunpack.c.h.b16 %v223
      %v526 = vunpack.c.l.b16 %v224
      %v527 = vunpack.c.h.b16 %v224
      %v528 = vunpack.c.l.b16 %v225
      %v529 = vunpack.c.l.b16 %v226
      %v530 = vunpack.c.h.b16 %v226
      %v531 = vunpack.c.l.b16 %v227
      %v532 = vunpack.c.h.b16 %v227
      %v533 = vunpack.c.l.b16 %v228
      %v534 = vunpack.c.l.b16 %v229
      %v535 = vunpack.c.h.b16 %v229
      %v536 = vunpack.c.l.b16 %v230
      %v537 = vunpack.c.h.b16 %v230
      %v538 = vunpack.c.l.b16 %v231
      %v539 = vunpack.c.l.b16 %v232
      %v540 = vunpack.c.h.b16 %v232
      %v541 = vunpack.c.l.b16 %v233
      %v542 = vunpack.c.h.b16 %v233
      %v543 = vunpack.c.l.b16 %v234
      %v544 = vunpack.c.l.b16 %v235
      %v545 = vunpack.c.h.b16 %v235
      %v546 = vunpack.c.l.b16 %v236
      %v547 = vunpack.c.h.b16 %v236
      %v548 = vunpack.c.l.b16 %v237
      %v549 = vunpack.c.l.b16 %v238
      %v550 = vunpack.c.h.b16 %v238
      %v551 = vunpack.c.l.b16 %v239
      %v552 = vunpack.c.h.b16 %v239
      %v553 = vunpack.c.l.b16 %v240
      %v554 = vunpack.c.l.b16 %v241
      %v555 = vunpack.c.h.b16 %v241
      %v556 = vunpack.c.l.b16 %v242
      %v557 = vunpack.c.h.b16 %v242
      %v558 = vunpack.c.l.b16 %v243
      %v559 = vunpack.c.l.b16 %v244
      %v560 = vunpack.c.h.b16 %v244
      %v561 = vunpack.c.l.b16 %v245
      %v562 = vunpack.c.h.b16 %v245
      %v563 = vunpack.c.l.b16 %v246
      %v564 = vunpack.c.l.b16 %v247
      %v565 = vunpack.c.h.b16 %v247
      %v566 = vunpack.c.l.b16 %v248
      %v567 = vunpack.c.h.b16 %v248
      %v568 = vunpack.c.l.b16 %v249
      %v569 = vunpack.c.l.b16 %v250
      %v570 = vunpack.c.h.b16 %v250
      %v571 = vunpack.c.l.b16 %v251
      %v572 = vunpack.c.h.b16 %v251
      %v573 = vunpack.c.l.b16 %v252
      %v574 = vunpack.c.l.b16 %v253
      %v575 = vunpack.c.h.b16 %v253
      %v576 = vunpack.c.l.b16 %v254
      %v577 = vunpack.c.h.b16 %v254
      %v578 = vunpack.c.l.b16 %v255
      %v579 = vunpack.c.l.b16 %v256
      %v580 = vunpack.c.h.b16 %v256
      %v581 = vunpack.c.l.b16 %v257
      %v582 = vunpack.c.h.b16 %v257
      %v583 = vunpack.c.l.b16 %v258
      %v584 = vunpack.c.l.b16 %v259
      %v585 = vunpack.c.h.b16 %v259
      %v586 = vunpack.c.l.b16 %v260
      %v587 = vunpack.c.h.b16 %v260
      %v588 = vunpack.c.l.b16 %v261
      %v589 = vunpack.c.l.b16 %v262
      %v590 = vunpack.c.h.b16 %v262
      %v591 = vunpack.c.l.b16 %v263
      %v592 = vunpack.c.h.b16 %v263
      %v593 = vunpack.c.l.b16 %v264
      %v594 = vunpack.c.l.b16 %v265
      %v595 = vunpack.c.h.b16 %v265
      %v596 = vunpack.c.l.b16 %v266
      %v597 = vunpack.c.h.b16 %v266
      %v598 = vunpack.c.l.b16 %v267
      %v599 = vunpack.c.l.b16 %v268
      %v600 = vunpack.c.h.b16 %v268
      %v601 = vunpack.c.l.b16 %v269
      %v602 = vunpack.c.h.b16 %v269
      %v603 = vunpack.c.l.b16 %v270
      %v604 = vunpack.c.l.b16 %v271
      %v605 = vunpack.c.h.b16 %v271
      %v606 = vunpack.c.l.b16 %v272
      %v607 = vunpack.c.h.b16 %v272
      %v608 = vunpack.c.l.b16 %v273
      %v609 = vpack.c.b16 %v454, %v449
      %v610 = vpack.c.b16 %v455, %v450
      %v611 = vpack.c.b16 %v456, %v451
      %v612 = vpack.c.b16 %v457, %v452
      %v613 = vpack.c.b16 %v458, %v453
      %v614 = vpack.c.b16 %v464, %v459
      %v615 = vpack.c.b16 %v465, %v460
      %v616 = vpack.c.b16 %v466, %v461
      %v617 = vpack.c.b16 %v467, %v462
      %v618 = vpack.c.b16 %v468, %v463
      %v619 = vpack.c.b16 %v474, %v469
      %v620 = vpack.c.b16 %v475, %v470
      %v621 = vpack.c.b16 %v476, %v471
      %v622 = vpack.c.b16 %v477, %v472
      %v623 = vpack.c.b16 %v478, %v473
      %v624 = vpack.c.b16 %v484, %v479
      %v625 = vpack.c.b16 %v485, %v480
      %v626 = vpack.c.b16 %v486, %v481
      %v627 = vpack.c.b16 %v487, %v482
      %v628 = vpack.c.b16 %v488, %v483
      %v629 = vpack.c.b16 %v494, %v489
      %v630 = vpack.c.b16 %v495, %v490
      %v631 = vpack.c.b16 %v496, %v491
      %v632 = vpack.c.b16 %v497, %v492
      %v633 = vpack.c.b16 %v498, %v493
      %v634 = vpack.c.b16 %v504, %v499
      %v635 = vpack.c.b16 %v505, %v500
      %v636 = vpack.c.b16 %v506, %v501
      %v637 = vpack.c.b16 %v507, %v502
      %v638 = vpack.c.b16 %v508, %v503
      %v639 = vpack.c.b16 %v514, %v509
      %v640 = vpack.c.b16 %v515, %v510
      %v641 = vpack.c.b16 %v516, %v511
      %v642 = vpack.c.b16 %v517, %v512
      %v643 = vpack.c.b16 %v518, %v513
      %v644 = vpack.c.b16 %v524, %v519
      %v645 = vpack.c.b16 %v525, %v520
      %v646 = vpack.c.b16 %v526, %v521
      %v647 = vpack.c.b16 %v527, %v522
      %v648 = vpack.c.b16 %v528, %v523
      %v649 = vpack.c.b16 %v534, %v529
      %v650 = vpack.c.b16 %v535, %v530
      %v651 = vpack.c.b16 %v536, %v531
      %v652 = vpack.c.b16 %v537, %v532
      %v653 = vpack.c.b16 %v538, %v533
      %v654 = vpack.c.b16 %v544, %v539
      %v655 = vpack.c.b16 %v545, %v540
      %v656 = vpack.c.b16 %v546, %v541
      %v657 = vpack.c.b16 %v547, %v542
      %v658 = vpack.c.b16 %v548, %v543
      %v659 = vpack.c.b16 %v554, %v549
      %v660 = vpack.c.b16 %v555, %v550
      %v661 = vpack.c.b16 %v556, %v551
      %v662 = vpack.c.b16 %v557, %v552
      %v663 = vpack.c.b16 %v558, %v553
      %v664 = vpack.c.b16 %v564, %v559
      %v665 = vpack.c.b16 %v565, %v560
      %v666 = vpack.c.b16 %v566, %v561
      %v667 = vpack.c.b16 %v567, %v562
      %v668 = vpack.c.b16 %v568, %v563
      %v669 = vpack.c.b16 %v574, %v569
      %v670 = vpack.c.b16 %v575, %v570
      %v671 = vpack.c.b16 %v576, %v571
      %v672 = vpack.c.b16 %v577, %v572
      %v673 = vpack.c.b16 %v578, %v573
      %v674 = vpack.c.b16 %v584, %v579
      %v675 = vpack.c.b16 %v585, %v580
      %v676 = vpack.c.b16 %v586, %v581
      %v677 = vpack.c.b16 %v587, %v582
      %v678 = vpack.c.b16 %v588, %v583
      %v679 = vpack.c.b16 %v594, %v589
      %v680 = vpack.c.b16 %v595, %v590
      %v681 = vpack.c.b16 %v596, %v591
      %v682 = vpack.c.b16 %v597, %v592
      %v683 = vpack.c.b16 %v598, %v593
      %v684 = vpack.c.b16 %v604, %v599
      %v685 = vpack.c.b16 %v605, %v600
      %v686 = vpack.c.b16 %v606, %v601
      %v687 = vpack.c.b16 %v607, %v602
      %v688 = vpack.c.b16 %v608, %v603
      %v825 = vunpack.c.l.b16 %v274
      %v826 = vunpack.c.l.b16 %v275
      %v827 = vunpack.c.l.b16 %v276
      %v828 = vunpack.c.l.b16 %v277
      %v829 = vunpack.c.l.b16 %v278
      %v830 = vunpack.c.l.b16 %v279
      %v831 = vunpack.c.l.b16 %v280
      %v832 = vunpack.c.l.b16 %v281
      %v833 = vunpack.c.l.b16 %v282
      %v834 = vunpack.c.l.b16 %v283
      %v835 = vunpack.c.l.b16 %v284
      %v836 = vunpack.c.l.b16 %v285
      %v837 = vunpack.c.l.b16 %v286
      %v838 = vunpack.c.l.b16 %v287
      %v839 = vunpack.c.l.b16 %v288
      %v840 = vunpack.c.l.b16 %v289
      %v841 = vunpack.c.l.b16 %v290
      %v842 = vunpack.c.l.b16 %v291
      %v843 = vunpack.c.l.b16 %v292
      %v844 = vunpack.c.l.b16 %v293
      %v845 = vunpack.c.l.b16 %v294
      %v846 = vunpack.c.l.b16 %v295
      %v847 = vunpack.c.l.b16 %v296
      %v848 = vunpack.c.l.b16 %v297
      %v849 = vunpack.c.l.b16 %v298
      %v850 = vunpack.c.l.b16 %v299
      %v851 = vunpack.c.l.b16 %v300
      %v852 = vunpack.c.l.b16 %v301
      %v853 = vunpack.c.l.b16 %v302
      %v854 = vunpack.c.l.b16 %v303
      %v855 = vunpack.c.l.b16 %v304
      %v856 = vunpack.c.l.b16 %v305
      %v857 = vunpack.c.l.b16 %v306
      %v858 = vunpack.c.l.b16 %v307
      %v859 = vunpack.c.l.b16 %v308
      %v860 = vunpack.c.l.b16 %v309
      %v861 = vunpack.c.l.b16 %v310
      %v862 = vunpack.c.l.b16 %v311
      %v863 = vunpack.c.l.b16 %v312
      %v864 = vunpack.c.l.b16 %v313
      %v865 = vunpack.c.l.b16 %v314
      %v866 = vunpack.c.l.b16 %v315
      %v867 = vunpack.c.l.b16 %v316
      %v868 = vunpack.c.l.b16 %v317
      %v869 = vunpack.c.l.b16 %v318
      %v870 = vunpack.c.l.b16 %v319
      %v871 = vunpack.c.l.b16 %v320
      %v872 = vunpack.c.l.b16 %v321
      %v873 = vunpack.c.l.b16 %v322
      %v874 = vunpack.c.l.b16 %v323
      %v875 = vunpack.c.l.b16 %v324
      %v876 = vunpack.c.l.b16 %v325
      %v877 = vunpack.c.l.b16 %v326
      %v878 = vunpack.c.l.b16 %v327
      %v879 = vunpack.c.l.b16 %v328
      %v880 = vunpack.c.l.b16 %v329
      %v881 = vunpack.c.l.b16 %v330
      %v882 = vunpack.c.l.b16 %v331
      %v883 = vunpack.c.l.b16 %v332
      %v884 = vunpack.c.l.b16 %v333
      %v885 = vunpack.c.l.b16 %v334
      %v886 = vunpack.c.l.b16 %v335
      %v887 = vunpack.c.l.b16 %v336
      %v888 = vunpack.c.l.b16 %v337
      %v889 = vunpack.c.l.b16 %v338
      %v890 = vunpack.c.l.b16 %v339
      %v891 = vunpack.c.l.b16 %v340
      %v892 = vunpack.c.l.b16 %v341
      %v893 = vunpack.c.l.b16 %v342
      %v894 = vunpack.c.l.b16 %v343
      %v895 = vunpack.c.l.b16 %v344
      %v896 = vunpack.c.l.b16 %v345
      %v897 = vpack.c.b16 %v826, %v825
      %v898 = vpack.c.b16 %v828, %v827
      %v899 = vpack.c.b16 %v830, %v829
      %v900 = vpack.c.b16 %v832, %v831
      %v901 = vpack.c.b16 %v834, %v833
      %v902 = vpack.c.b16 %v836, %v835
      %v903 = vpack.c.b16 %v838, %v837
      %v904 = vpack.c.b16 %v840, %v839
      %v905 = vpack.c.b16 %v842, %v841
      %v906 = vpack.c.b16 %v844, %v843
      %v907 = vpack.c.b16 %v846, %v845
      %v908 = vpack.c.b16 %v848, %v847
      %v909 = vpack.c.b16 %v850, %v849
      %v910 = vpack.c.b16 %v852, %v851
      %v911 = vpack.c.b16 %v854, %v853
      %v912 = vpack.c.b16 %v856, %v855
      %v913 = vpack.c.b16 %v858, %v857
      %v914 = vpack.c.b16 %v860, %v859
      %v915 = vpack.c.b16 %v862, %v861
      %v916 = vpack.c.b16 %v864, %v863
      %v917 = vpack.c.b16 %v866, %v865
      %v918 = vpack.c.b16 %v868, %v867
      %v919 = vpack.c.b16 %v870, %v869
      %v920 = vpack.c.b16 %v872, %v871
      %v921 = vpack.c.b16 %v874, %v873
      %v922 = vpack.c.b16 %v876, %v875
      %v923 = vpack.c.b16 %v878, %v877
      %v924 = vpack.c.b16 %v880, %v879
      %v925 = vpack.c.b16 %v882, %v881
      %v926 = vpack.c.b16 %v884, %v883
      %v927 = vpack.c.b16 %v886, %v885
      %v928 = vpack.c.b16 %v888, %v887
      %v929 = vpack.c.b16 %v890, %v889
      %v930 = vpack.c.b16 %v892, %v891
      %v931 = vpack.c.b16 %v894, %v893
      %v932 = vpack.c.b16 %v896, %v895
      %vm969 = vcmask 523264
      %v971 = vsel %vm969, %v613, 0
      %v974 = vsel %vm969, %v618, 0
      %v977 = vsel %vm969, %v623, 0
      %v980 = vsel %vm969, %v628, 0
      %v983 = vsel %vm969, %v633, 0
      %v986 = vsel %vm969, %v638, 0
      %v989 = vsel %vm969, %v643, 0
      %v992 = vsel %vm969, %v648, 0
      %v995 = vsel %vm969, %v653, 0
      %v998 = vsel %vm969, %v658, 0
      %v1001 = vsel %vm969, %v663, 0
      %v1004 = vsel %vm969, %v668, 0
      %v1007 = vsel %vm969, %v673, 0
      %v1010 = vsel %vm969, %v678, 0
      %v1013 = vsel %vm969, %v683, 0
      %v1016 = vsel %vm969, %v688, 0
      %1018 = vmatprep.subr.bf16.mxu0 0
      %1019 = vmatpush1.bf16.msra.mxu0 %v904
      %1020 = vmatprep.subr.bf16.mxu0 0
      %1021 = vmatpush1.bf16.msra.mxu0 %v903
      %1022 = vmatprep.subr.bf16.mxu0 0
      %1023 = vmatpush1.bf16.msra.mxu0 %v902
      %1024 = vmatprep.subr.bf16.mxu0 0
      %1025 = vmatpush1.bf16.msra.mxu0 %v901
      %1026 = vmatprep.subr.bf16.mxu0 0
      %1027 = vmatpush1.bf16.msra.mxu0 %v900
      %1028 = vmatprep.subr.bf16.mxu0 0
      %1029 = vmatpush1.bf16.msra.mxu0 %v899
      %1030 = vmatprep.subr.bf16.mxu0 0
      %1031 = vmatpush1.bf16.msra.mxu0 %v898
      %1032 = vmatprep.subr.bf16.mxu0 0
      %1033 = vmatpush1.bf16.msra.mxu0 %v897
      %1034 = vmatprep.subr.bf16.mxu0 0
      %1035 = vmatpush2.bf16.msra.mxu0 %v912
      %1036 = vmatprep.subr.bf16.mxu0 0
      %1037 = vmatpush2.bf16.msra.mxu0 %v911
      %1038 = vmatprep.subr.bf16.mxu0 0
      %1039 = vmatpush2.bf16.msra.mxu0 %v910
      %1040 = vmatprep.subr.bf16.mxu0 0
      %1041 = vmatpush2.bf16.msra.mxu0 %v909
      %1042 = vmatprep.subr.bf16.mxu0 0
      %1043 = vmatpush2.bf16.msra.mxu0 %v908
      %1044 = vmatprep.subr.bf16.mxu0 0
      %1045 = vmatpush2.bf16.msra.mxu0 %v907
      %1046 = vmatprep.subr.bf16.mxu0 0
      %1047 = vmatpush2.bf16.msra.mxu0 %v906
      %1048 = vmatprep.subr.bf16.mxu0 0
      %1049 = vmatpush2.bf16.msra.mxu0 %v905
      %1050 = vmatprep.mubr.bf16.mxu0 %v610
      %1051 = vmatmul.mubr.bf16.gmra.mxu0 %v609
      %v1052 = vpop.f32.mrf.mxu0
      %v1053 = vadd.f32 %v351, %v1052
      %v1054 = vpop.f32.mrf.mxu0
      %v1055 = vpop.f32.mrf.mxu0
      %v1056 = vadd.f32 %v351, %v1055
      %v1057 = vpop.f32.mrf.mxu0
      %1058 = vmatprep.mubr.bf16.mxu0 %v615
      %1059 = vmatmul.mubr.bf16.gmra.mxu0 %v614
      %v1060 = vpop.f32.mrf.mxu0
      %v1061 = vadd.f32 %v351, %v1060
      %v1062 = vpop.f32.mrf.mxu0
      %v1063 = vpop.f32.mrf.mxu0
      %v1064 = vadd.f32 %v351, %v1063
      %v1065 = vpop.f32.mrf.mxu0
      %1066 = vmatprep.mubr.bf16.mxu0 %v620
      %1067 = vmatmul.mubr.bf16.gmra.mxu0 %v619
      %v1068 = vpop.f32.mrf.mxu0
      %v1069 = vadd.f32 %v351, %v1068
      %v1070 = vpop.f32.mrf.mxu0
      %v1071 = vpop.f32.mrf.mxu0
      %v1072 = vadd.f32 %v351, %v1071
      %v1073 = vpop.f32.mrf.mxu0
      %1074 = vmatprep.mubr.bf16.mxu0 %v625
      %1075 = vmatmul.mubr.bf16.gmra.mxu0 %v624
      %v1076 = vpop.f32.mrf.mxu0
      %v1077 = vadd.f32 %v351, %v1076
      %v1078 = vpop.f32.mrf.mxu0
      %v1079 = vpop.f32.mrf.mxu0
      %v1080 = vadd.f32 %v351, %v1079
      %v1081 = vpop.f32.mrf.mxu0
      %1082 = vmatprep.mubr.bf16.mxu0 %v630
      %1083 = vmatmul.mubr.bf16.gmra.mxu0 %v629
      %v1084 = vpop.f32.mrf.mxu0
      %v1085 = vadd.f32 %v351, %v1084
      %v1086 = vpop.f32.mrf.mxu0
      %v1087 = vpop.f32.mrf.mxu0
      %v1088 = vadd.f32 %v351, %v1087
      %v1089 = vpop.f32.mrf.mxu0
      %1090 = vmatprep.mubr.bf16.mxu0 %v635
      %1091 = vmatmul.mubr.bf16.gmra.mxu0 %v634
      %v1092 = vpop.f32.mrf.mxu0
      %v1093 = vadd.f32 %v351, %v1092
      %v1094 = vpop.f32.mrf.mxu0
      %v1095 = vpop.f32.mrf.mxu0
      %v1096 = vadd.f32 %v351, %v1095
      %v1097 = vpop.f32.mrf.mxu0
      %1098 = vmatprep.mubr.bf16.mxu0 %v640
      %1099 = vmatmul.mubr.bf16.gmra.mxu0 %v639
      %v1100 = vpop.f32.mrf.mxu0
      %v1101 = vadd.f32 %v351, %v1100
      %v1102 = vpop.f32.mrf.mxu0
      %v1103 = vpop.f32.mrf.mxu0
      %v1104 = vadd.f32 %v351, %v1103
      %v1105 = vpop.f32.mrf.mxu0
      %1106 = vmatprep.mubr.bf16.mxu0 %v645
      %1107 = vmatmul.mubr.bf16.gmra.mxu0 %v644
      %v1108 = vpop.f32.mrf.mxu0
      %v1109 = vadd.f32 %v351, %v1108
      %v1110 = vpop.f32.mrf.mxu0
      %v1111 = vpop.f32.mrf.mxu0
      %v1112 = vadd.f32 %v351, %v1111
      %v1113 = vpop.f32.mrf.mxu0
      %1114 = vmatprep.mubr.bf16.mxu0 %v650
      %1115 = vmatmul.mubr.bf16.gmra.mxu0 %v649
      %v1116 = vpop.f32.mrf.mxu0
      %v1117 = vadd.f32 %v351, %v1116
      %v1118 = vpop.f32.mrf.mxu0
      %v1119 = vpop.f32.mrf.mxu0
      %v1120 = vadd.f32 %v351, %v1119
      %v1121 = vpop.f32.mrf.mxu0
      %1122 = vmatprep.mubr.bf16.mxu0 %v655
      %1123 = vmatmul.mubr.bf16.gmra.mxu0 %v654
      %v1124 = vpop.f32.mrf.mxu0
      %v1125 = vadd.f32 %v351, %v1124
      %v1126 = vpop.f32.mrf.mxu0
      %v1127 = vpop.f32.mrf.mxu0
      %v1128 = vadd.f32 %v351, %v1127
      %v1129 = vpop.f32.mrf.mxu0
      %1130 = vmatprep.mubr.bf16.mxu0 %v660
      %1131 = vmatmul.mubr.bf16.gmra.mxu0 %v659
      %v1132 = vpop.f32.mrf.mxu0
      %v1133 = vadd.f32 %v351, %v1132
      %v1134 = vpop.f32.mrf.mxu0
      %v1135 = vpop.f32.mrf.mxu0
      %v1136 = vadd.f32 %v351, %v1135
      %v1137 = vpop.f32.mrf.mxu0
      %1138 = vmatprep.mubr.bf16.mxu0 %v665
      %1139 = vmatmul.mubr.bf16.gmra.mxu0 %v664
      %v1140 = vpop.f32.mrf.mxu0
      %v1141 = vadd.f32 %v351, %v1140
      %v1142 = vpop.f32.mrf.mxu0
      %v1143 = vpop.f32.mrf.mxu0
      %v1144 = vadd.f32 %v351, %v1143
      %v1145 = vpop.f32.mrf.mxu0
      %1146 = vmatprep.mubr.bf16.mxu0 %v670
      %1147 = vmatmul.mubr.bf16.gmra.mxu0 %v669
      %v1148 = vpop.f32.mrf.mxu0
      %v1149 = vadd.f32 %v351, %v1148
      %v1150 = vpop.f32.mrf.mxu0
      %v1151 = vpop.f32.mrf.mxu0
      %v1152 = vadd.f32 %v351, %v1151
      %v1153 = vpop.f32.mrf.mxu0
      %1154 = vmatprep.mubr.bf16.mxu0 %v675
      %1155 = vmatmul.mubr.bf16.gmra.mxu0 %v674
      %v1156 = vpop.f32.mrf.mxu0
      %v1157 = vadd.f32 %v351, %v1156
      %v1158 = vpop.f32.mrf.mxu0
      %v1159 = vpop.f32.mrf.mxu0
      %v1160 = vadd.f32 %v351, %v1159
      %v1161 = vpop.f32.mrf.mxu0
      %1162 = vmatprep.mubr.bf16.mxu0 %v680
      %1163 = vmatmul.mubr.bf16.gmra.mxu0 %v679
      %v1164 = vpop.f32.mrf.mxu0
      %v1165 = vadd.f32 %v351, %v1164
      %v1166 = vpop.f32.mrf.mxu0
      %v1167 = vpop.f32.mrf.mxu0
      %v1168 = vadd.f32 %v351, %v1167
      %v1169 = vpop.f32.mrf.mxu0
      %1170 = vmatprep.mubr.bf16.mxu0 %v685
      %1171 = vmatmul.mubr.bf16.gmra.mxu0 %v684
      %v1172 = vpop.f32.mrf.mxu0
      %v1173 = vadd.f32 %v351, %v1172
      %v1174 = vpop.f32.mrf.mxu0
      %v1175 = vpop.f32.mrf.mxu0
      %v1176 = vadd.f32 %v351, %v1175
      %v1177 = vpop.f32.mrf.mxu0
      %1178 = vdwg.mxu0
      %1179 = vmatprep.subr.bf16.mxu0 0
      %1180 = vmatpush1.bf16.msra.mxu0 %v920
      %1181 = vmatprep.subr.bf16.mxu0 0
      %1182 = vmatpush1.bf16.msra.mxu0 %v919
      %1183 = vmatprep.subr.bf16.mxu0 0
      %1184 = vmatpush1.bf16.msra.mxu0 %v918
      %1185 = vmatprep.subr.bf16.mxu0 0
      %1186 = vmatpush1.bf16.msra.mxu0 %v917
      %1187 = vmatprep.subr.bf16.mxu0 0
      %1188 = vmatpush1.bf16.msra.mxu0 %v916
      %1189 = vmatprep.subr.bf16.mxu0 0
      %1190 = vmatpush1.bf16.msra.mxu0 %v915
      %1191 = vmatprep.subr.bf16.mxu0 0
      %1192 = vmatpush1.bf16.msra.mxu0 %v914
      %1193 = vmatprep.subr.bf16.mxu0 0
      %1194 = vmatpush1.bf16.msra.mxu0 %v913
      %1195 = vmatprep.subr.bf16.mxu0 0
      %1196 = vmatpush2.bf16.msra.mxu0 %v928
      %1197 = vmatprep.subr.bf16.mxu0 0
      %1198 = vmatpush2.bf16.msra.mxu0 %v927
      %1199 = vmatprep.subr.bf16.mxu0 0
      %1200 = vmatpush2.bf16.msra.mxu0 %v926
      %1201 = vmatprep.subr.bf16.mxu0 0
      %1202 = vmatpush2.bf16.msra.mxu0 %v925
      %1203 = vmatprep.subr.bf16.mxu0 0
      %1204 = vmatpush2.bf16.msra.mxu0 %v924
      %1205 = vmatprep.subr.bf16.mxu0 0
      %1206 = vmatpush2.bf16.msra.mxu0 %v923
      %1207 = vmatprep.subr.bf16.mxu0 0
      %1208 = vmatpush2.bf16.msra.mxu0 %v922
      %1209 = vmatprep.subr.bf16.mxu0 0
      %1210 = vmatpush2.bf16.msra.mxu0 %v921
      %1211 = vmatprep.mubr.bf16.mxu0 %v612
      %1212 = vmatmul.mubr.bf16.gmra.mxu0 %v611
      %v1213 = vpop.f32.mrf.mxu0
      %v1214 = vadd.f32 %v1053, %v1213
      %v1215 = vpop.f32.mrf.mxu0
      %v1216 = vpop.f32.mrf.mxu0
      %v1217 = vadd.f32 %v1056, %v1216
      %v1218 = vpop.f32.mrf.mxu0
      %1219 = vmatprep.mubr.bf16.mxu0 %v617
      %1220 = vmatmul.mubr.bf16.gmra.mxu0 %v616
      %v1221 = vpop.f32.mrf.mxu0
      %v1222 = vadd.f32 %v1061, %v1221
      %v1223 = vpop.f32.mrf.mxu0
      %v1224 = vpop.f32.mrf.mxu0
      %v1225 = vadd.f32 %v1064, %v1224
      %v1226 = vpop.f32.mrf.mxu0
      %1227 = vmatprep.mubr.bf16.mxu0 %v622
      %1228 = vmatmul.mubr.bf16.gmra.mxu0 %v621
      %v1229 = vpop.f32.mrf.mxu0
      %v1230 = vadd.f32 %v1069, %v1229
      %v1231 = vpop.f32.mrf.mxu0
      %v1232 = vpop.f32.mrf.mxu0
      %v1233 = vadd.f32 %v1072, %v1232
      %v1234 = vpop.f32.mrf.mxu0
      %1235 = vmatprep.mubr.bf16.mxu0 %v627
      %1236 = vmatmul.mubr.bf16.gmra.mxu0 %v626
      %v1237 = vpop.f32.mrf.mxu0
      %v1238 = vadd.f32 %v1077, %v1237
      %v1239 = vpop.f32.mrf.mxu0
      %v1240 = vpop.f32.mrf.mxu0
      %v1241 = vadd.f32 %v1080, %v1240
      %v1242 = vpop.f32.mrf.mxu0
      %1243 = vmatprep.mubr.bf16.mxu0 %v632
      %1244 = vmatmul.mubr.bf16.gmra.mxu0 %v631
      %v1245 = vpop.f32.mrf.mxu0
      %v1246 = vadd.f32 %v1085, %v1245
      %v1247 = vpop.f32.mrf.mxu0
      %v1248 = vpop.f32.mrf.mxu0
      %v1249 = vadd.f32 %v1088, %v1248
      %v1250 = vpop.f32.mrf.mxu0
      %1251 = vmatprep.mubr.bf16.mxu0 %v637
      %1252 = vmatmul.mubr.bf16.gmra.mxu0 %v636
      %v1253 = vpop.f32.mrf.mxu0
      %v1254 = vadd.f32 %v1093, %v1253
      %v1255 = vpop.f32.mrf.mxu0
      %v1256 = vpop.f32.mrf.mxu0
      %v1257 = vadd.f32 %v1096, %v1256
      %v1258 = vpop.f32.mrf.mxu0
      %1259 = vmatprep.mubr.bf16.mxu0 %v642
      %1260 = vmatmul.mubr.bf16.gmra.mxu0 %v641
      %v1261 = vpop.f32.mrf.mxu0
      %v1262 = vadd.f32 %v1101, %v1261
      %v1263 = vpop.f32.mrf.mxu0
      %v1264 = vpop.f32.mrf.mxu0
      %v1265 = vadd.f32 %v1104, %v1264
      %v1266 = vpop.f32.mrf.mxu0
      %1267 = vmatprep.mubr.bf16.mxu0 %v647
      %1268 = vmatmul.mubr.bf16.gmra.mxu0 %v646
      %v1269 = vpop.f32.mrf.mxu0
      %v1270 = vadd.f32 %v1109, %v1269
      %v1271 = vpop.f32.mrf.mxu0
      %v1272 = vpop.f32.mrf.mxu0
      %v1273 = vadd.f32 %v1112, %v1272
      %v1274 = vpop.f32.mrf.mxu0
      %1275 = vmatprep.mubr.bf16.mxu0 %v652
      %1276 = vmatmul.mubr.bf16.gmra.mxu0 %v651
      %v1277 = vpop.f32.mrf.mxu0
      %v1278 = vadd.f32 %v1117, %v1277
      %v1279 = vpop.f32.mrf.mxu0
      %v1280 = vpop.f32.mrf.mxu0
      %v1281 = vadd.f32 %v1120, %v1280
      %v1282 = vpop.f32.mrf.mxu0
      %1283 = vmatprep.mubr.bf16.mxu0 %v657
      %1284 = vmatmul.mubr.bf16.gmra.mxu0 %v656
      %v1285 = vpop.f32.mrf.mxu0
      %v1286 = vadd.f32 %v1125, %v1285
      %v1287 = vpop.f32.mrf.mxu0
      %v1288 = vpop.f32.mrf.mxu0
      %v1289 = vadd.f32 %v1128, %v1288
      %v1290 = vpop.f32.mrf.mxu0
      %1291 = vmatprep.mubr.bf16.mxu0 %v662
      %1292 = vmatmul.mubr.bf16.gmra.mxu0 %v661
      %v1293 = vpop.f32.mrf.mxu0
      %v1294 = vadd.f32 %v1133, %v1293
      %v1295 = vpop.f32.mrf.mxu0
      %v1296 = vpop.f32.mrf.mxu0
      %v1297 = vadd.f32 %v1136, %v1296
      %v1298 = vpop.f32.mrf.mxu0
      %1299 = vmatprep.mubr.bf16.mxu0 %v667
      %1300 = vmatmul.mubr.bf16.gmra.mxu0 %v666
      %v1301 = vpop.f32.mrf.mxu0
      %v1302 = vadd.f32 %v1141, %v1301
      %v1303 = vpop.f32.mrf.mxu0
      %v1304 = vpop.f32.mrf.mxu0
      %v1305 = vadd.f32 %v1144, %v1304
      %v1306 = vpop.f32.mrf.mxu0
      %1307 = vmatprep.mubr.bf16.mxu0 %v672
      %1308 = vmatmul.mubr.bf16.gmra.mxu0 %v671
      %v1309 = vpop.f32.mrf.mxu0
      %v1310 = vadd.f32 %v1149, %v1309
      %v1311 = vpop.f32.mrf.mxu0
      %v1312 = vpop.f32.mrf.mxu0
      %v1313 = vadd.f32 %v1152, %v1312
      %v1314 = vpop.f32.mrf.mxu0
      %1315 = vmatprep.mubr.bf16.mxu0 %v677
      %1316 = vmatmul.mubr.bf16.gmra.mxu0 %v676
      %v1317 = vpop.f32.mrf.mxu0
      %v1318 = vadd.f32 %v1157, %v1317
      %v1319 = vpop.f32.mrf.mxu0
      %v1320 = vpop.f32.mrf.mxu0
      %v1321 = vadd.f32 %v1160, %v1320
      %v1322 = vpop.f32.mrf.mxu0
      %1323 = vmatprep.mubr.bf16.mxu0 %v682
      %1324 = vmatmul.mubr.bf16.gmra.mxu0 %v681
      %v1325 = vpop.f32.mrf.mxu0
      %v1326 = vadd.f32 %v1165, %v1325
      %v1327 = vpop.f32.mrf.mxu0
      %v1328 = vpop.f32.mrf.mxu0
      %v1329 = vadd.f32 %v1168, %v1328
      %v1330 = vpop.f32.mrf.mxu0
      %1331 = vmatprep.mubr.bf16.mxu0 %v687
      %1332 = vmatmul.mubr.bf16.gmra.mxu0 %v686
      %v1333 = vpop.f32.mrf.mxu0
      %v1334 = vadd.f32 %v1173, %v1333
      %v1335 = vpop.f32.mrf.mxu0
      %v1336 = vpop.f32.mrf.mxu0
      %v1337 = vadd.f32 %v1176, %v1336
      %v1338 = vpop.f32.mrf.mxu0
      %1339 = vdwg.mxu0
      %1340 = vmatprep.subr.bf16.mxu0 0
      %1341 = vmatpush1.bf16.msra.mxu0 0
      %1342 = vmatprep.subr.bf16.mxu0 0
      %1343 = vmatpush1.bf16.msra.mxu0 0
      %1344 = vmatprep.subr.bf16.mxu0 0
      %1345 = vmatpush1.bf16.msra.mxu0 0
      %1346 = vmatprep.subr.bf16.mxu0 0
      %1347 = vmatpush1.bf16.msra.mxu0 0
      %1348 = vmatprep.subr.bf16.mxu0 0
      %1349 = vmatpush1.bf16.msra.mxu0 %v932
      %1350 = vmatprep.subr.bf16.mxu0 0
      %1351 = vmatpush1.bf16.msra.mxu0 %v931
      %1352 = vmatprep.subr.bf16.mxu0 0
      %1353 = vmatpush1.bf16.msra.mxu0 %v930
      %1354 = vmatprep.subr.bf16.mxu0 0
      %1355 = vmatpush1.bf16.msra.mxu0 %v929
      %1356 = vmatprep.subr.bf16.mxu0 0
      %1357 = vmatpush2.bf16.msra.mxu0 0
      %1358 = vmatprep.subr.bf16.mxu0 0
      %1359 = vmatpush2.bf16.msra.mxu0 0
      %1360 = vmatprep.subr.bf16.mxu0 0
      %1361 = vmatpush2.bf16.msra.mxu0 0
      %1362 = vmatprep.subr.bf16.mxu0 0
      %1363 = vmatpush2.bf16.msra.mxu0 0
      %1364 = vmatprep.subr.bf16.mxu0 0
      %1365 = vmatpush2.bf16.msra.mxu0 0
      %1366 = vmatprep.subr.bf16.mxu0 0
      %1367 = vmatpush2.bf16.msra.mxu0 0
      %1368 = vmatprep.subr.bf16.mxu0 0
      %1369 = vmatpush2.bf16.msra.mxu0 0
      %1370 = vmatprep.subr.bf16.mxu0 0
      %1371 = vmatpush2.bf16.msra.mxu0 0
      %1372 = vmatprep.mubr.bf16.mxu0 0
      %1373 = vmatmul.mubr.bf16.gmra.mxu0 %v971
      %v1374 = vpop.f32.mrf.mxu0
      %v1375 = vadd.f32 %v1214, %v1374
      %v1376 = vpop.f32.mrf.mxu0
      %v1377 = vpop.f32.mrf.mxu0
      %v1378 = vadd.f32 %v1217, %v1377
      %v1379 = vpop.f32.mrf.mxu0
      %1380 = vmatprep.mubr.bf16.mxu0 0
      %1381 = vmatmul.mubr.bf16.gmra.mxu0 %v974
      %v1382 = vpop.f32.mrf.mxu0
      %v1383 = vadd.f32 %v1222, %v1382
      %v1384 = vpop.f32.mrf.mxu0
      %v1385 = vpop.f32.mrf.mxu0
      %v1386 = vadd.f32 %v1225, %v1385
      %v1387 = vpop.f32.mrf.mxu0
      %1388 = vmatprep.mubr.bf16.mxu0 0
      %1389 = vmatmul.mubr.bf16.gmra.mxu0 %v977
      %v1390 = vpop.f32.mrf.mxu0
      %v1391 = vadd.f32 %v1230, %v1390
      %v1392 = vpop.f32.mrf.mxu0
      %v1393 = vpop.f32.mrf.mxu0
      %v1394 = vadd.f32 %v1233, %v1393
      %v1395 = vpop.f32.mrf.mxu0
      %1396 = vmatprep.mubr.bf16.mxu0 0
      %1397 = vmatmul.mubr.bf16.gmra.mxu0 %v980
      %v1398 = vpop.f32.mrf.mxu0
      %v1399 = vadd.f32 %v1238, %v1398
      %v1400 = vpop.f32.mrf.mxu0
      %v1401 = vpop.f32.mrf.mxu0
      %v1402 = vadd.f32 %v1241, %v1401
      %v1403 = vpop.f32.mrf.mxu0
      %1404 = vmatprep.mubr.bf16.mxu0 0
      %1405 = vmatmul.mubr.bf16.gmra.mxu0 %v983
      %v1406 = vpop.f32.mrf.mxu0
      %v1407 = vadd.f32 %v1246, %v1406
      %v1408 = vpop.f32.mrf.mxu0
      %v1409 = vpop.f32.mrf.mxu0
      %v1410 = vadd.f32 %v1249, %v1409
      %v1411 = vpop.f32.mrf.mxu0
      %1412 = vmatprep.mubr.bf16.mxu0 0
      %1413 = vmatmul.mubr.bf16.gmra.mxu0 %v986
      %v1414 = vpop.f32.mrf.mxu0
      %v1415 = vadd.f32 %v1254, %v1414
      %v1416 = vpop.f32.mrf.mxu0
      %v1417 = vpop.f32.mrf.mxu0
      %v1418 = vadd.f32 %v1257, %v1417
      %v1419 = vpop.f32.mrf.mxu0
      %1420 = vmatprep.mubr.bf16.mxu0 0
      %1421 = vmatmul.mubr.bf16.gmra.mxu0 %v989
      %v1422 = vpop.f32.mrf.mxu0
      %v1423 = vadd.f32 %v1262, %v1422
      %v1424 = vpop.f32.mrf.mxu0
      %v1425 = vpop.f32.mrf.mxu0
      %v1426 = vadd.f32 %v1265, %v1425
      %v1427 = vpop.f32.mrf.mxu0
      %1428 = vmatprep.mubr.bf16.mxu0 0
      %1429 = vmatmul.mubr.bf16.gmra.mxu0 %v992
      %v1430 = vpop.f32.mrf.mxu0
      %v1431 = vadd.f32 %v1270, %v1430
      %v1432 = vpop.f32.mrf.mxu0
      %v1433 = vpop.f32.mrf.mxu0
      %v1434 = vadd.f32 %v1273, %v1433
      %v1435 = vpop.f32.mrf.mxu0
      %1436 = vmatprep.mubr.bf16.mxu0 0
      %1437 = vmatmul.mubr.bf16.gmra.mxu0 %v995
      %v1438 = vpop.f32.mrf.mxu0
      %v1439 = vadd.f32 %v1278, %v1438
      %v1440 = vpop.f32.mrf.mxu0
      %v1441 = vpop.f32.mrf.mxu0
      %v1442 = vadd.f32 %v1281, %v1441
      %v1443 = vpop.f32.mrf.mxu0
      %1444 = vmatprep.mubr.bf16.mxu0 0
      %1445 = vmatmul.mubr.bf16.gmra.mxu0 %v998
      %v1446 = vpop.f32.mrf.mxu0
      %v1447 = vadd.f32 %v1286, %v1446
      %v1448 = vpop.f32.mrf.mxu0
      %v1449 = vpop.f32.mrf.mxu0
      %v1450 = vadd.f32 %v1289, %v1449
      %v1451 = vpop.f32.mrf.mxu0
      %1452 = vmatprep.mubr.bf16.mxu0 0
      %1453 = vmatmul.mubr.bf16.gmra.mxu0 %v1001
      %v1454 = vpop.f32.mrf.mxu0
      %v1455 = vadd.f32 %v1294, %v1454
      %v1456 = vpop.f32.mrf.mxu0
      %v1457 = vpop.f32.mrf.mxu0
      %v1458 = vadd.f32 %v1297, %v1457
      %v1459 = vpop.f32.mrf.mxu0
      %1460 = vmatprep.mubr.bf16.mxu0 0
      %1461 = vmatmul.mubr.bf16.gmra.mxu0 %v1004
      %v1462 = vpop.f32.mrf.mxu0
      %v1463 = vadd.f32 %v1302, %v1462
      %v1464 = vpop.f32.mrf.mxu0
      %v1465 = vpop.f32.mrf.mxu0
      %v1466 = vadd.f32 %v1305, %v1465
      %v1467 = vpop.f32.mrf.mxu0
      %1468 = vmatprep.mubr.bf16.mxu0 0
      %1469 = vmatmul.mubr.bf16.gmra.mxu0 %v1007
      %v1470 = vpop.f32.mrf.mxu0
      %v1471 = vadd.f32 %v1310, %v1470
      %v1472 = vpop.f32.mrf.mxu0
      %v1473 = vpop.f32.mrf.mxu0
      %v1474 = vadd.f32 %v1313, %v1473
      %v1475 = vpop.f32.mrf.mxu0
      %1476 = vmatprep.mubr.bf16.mxu0 0
      %1477 = vmatmul.mubr.bf16.gmra.mxu0 %v1010
      %v1478 = vpop.f32.mrf.mxu0
      %v1479 = vadd.f32 %v1318, %v1478
      %v1480 = vpop.f32.mrf.mxu0
      %v1481 = vpop.f32.mrf.mxu0
      %v1482 = vadd.f32 %v1321, %v1481
      %v1483 = vpop.f32.mrf.mxu0
      %1484 = vmatprep.mubr.bf16.mxu0 0
      %1485 = vmatmul.mubr.bf16.gmra.mxu0 %v1013
      %v1486 = vpop.f32.mrf.mxu0
      %v1487 = vadd.f32 %v1326, %v1486
      %v1488 = vpop.f32.mrf.mxu0
      %v1489 = vpop.f32.mrf.mxu0
      %v1490 = vadd.f32 %v1329, %v1489
      %v1491 = vpop.f32.mrf.mxu0
      %1492 = vmatprep.mubr.bf16.mxu0 0
      %1493 = vmatmul.mubr.bf16.gmra.mxu0 %v1016
      %v1494 = vpop.f32.mrf.mxu0
      %v1495 = vadd.f32 %v1334, %v1494
      %v1496 = vpop.f32.mrf.mxu0
      %v1497 = vpop.f32.mrf.mxu0
      %v1498 = vadd.f32 %v1337, %v1497
      %v1499 = vpop.f32.mrf.mxu0
      %1500 = vdwg.mxu0
      %v1501 = vmax.f32 %v1375, 0.0
      %v1502 = vmax.f32 %v1378, 0.0
      %v1503 = vmax.f32 %v1383, 0.0
      %v1504 = vmax.f32 %v1386, 0.0
      %v1505 = vmax.f32 %v1391, 0.0
      %v1506 = vmax.f32 %v1394, 0.0
      %v1507 = vmax.f32 %v1399, 0.0
      %v1508 = vmax.f32 %v1402, 0.0
      %v1509 = vmax.f32 %v1407, 0.0
      %v1510 = vmax.f32 %v1410, 0.0
      %v1511 = vmax.f32 %v1415, 0.0
      %v1512 = vmax.f32 %v1418, 0.0
      %v1513 = vmax.f32 %v1423, 0.0
      %v1514 = vmax.f32 %v1426, 0.0
      %v1515 = vmax.f32 %v1431, 0.0
      %v1516 = vmax.f32 %v1434, 0.0
      %v1517 = vmax.f32 %v1439, 0.0
      %v1518 = vmax.f32 %v1442, 0.0
      %v1519 = vmax.f32 %v1447, 0.0
      %v1520 = vmax.f32 %v1450, 0.0
      %v1521 = vmax.f32 %v1455, 0.0
      %v1522 = vmax.f32 %v1458, 0.0
      %v1523 = vmax.f32 %v1463, 0.0
      %v1524 = vmax.f32 %v1466, 0.0
      %v1525 = vmax.f32 %v1471, 0.0
      %v1526 = vmax.f32 %v1474, 0.0
      %v1527 = vmax.f32 %v1479, 0.0
      %v1528 = vmax.f32 %v1482, 0.0
      %v1529 = vmax.f32 %v1487, 0.0
      %v1530 = vmax.f32 %v1490, 0.0
      %v1531 = vmax.f32 %v1495, 0.0
      %v1532 = vmax.f32 %v1498, 0.0
      %v1533 = vpack.c.bf16 %v1502, %v1501
      %v1534 = vpack.c.bf16 %v1504, %v1503
      %v1535 = vpack.c.bf16 %v1506, %v1505
      %v1536 = vpack.c.bf16 %v1508, %v1507
      %v1537 = vpack.c.bf16 %v1510, %v1509
      %v1538 = vpack.c.bf16 %v1512, %v1511
      %v1539 = vpack.c.bf16 %v1514, %v1513
      %v1540 = vpack.c.bf16 %v1516, %v1515
      %v1541 = vpack.c.bf16 %v1518, %v1517
      %v1542 = vpack.c.bf16 %v1520, %v1519
      %v1543 = vpack.c.bf16 %v1522, %v1521
      %v1544 = vpack.c.bf16 %v1524, %v1523
      %v1545 = vpack.c.bf16 %v1526, %v1525
      %v1546 = vpack.c.bf16 %v1528, %v1527
      %v1547 = vpack.c.bf16 %v1530, %v1529
      %v1548 = vpack.c.bf16 %v1532, %v1531
      %v1565 = vunpack.c.l.b16 %v1533
      %v1566 = vunpack.c.h.b16 %v1533
      %v1567 = vunpack.c.l.b16 %v1534
      %v1568 = vunpack.c.h.b16 %v1534
      %v1569 = vunpack.c.l.b16 %v1535
      %v1570 = vunpack.c.h.b16 %v1535
      %v1571 = vunpack.c.l.b16 %v1536
      %v1572 = vunpack.c.h.b16 %v1536
      %v1573 = vunpack.c.l.b16 %v1537
      %v1574 = vunpack.c.h.b16 %v1537
      %v1575 = vunpack.c.l.b16 %v1538
      %v1576 = vunpack.c.h.b16 %v1538
      %v1577 = vunpack.c.l.b16 %v1539
      %v1578 = vunpack.c.h.b16 %v1539
      %v1579 = vunpack.c.l.b16 %v1540
      %v1580 = vunpack.c.h.b16 %v1540
      %v1581 = vunpack.c.l.b16 %v1541
      %v1582 = vunpack.c.h.b16 %v1541
      %v1583 = vunpack.c.l.b16 %v1542
      %v1584 = vunpack.c.h.b16 %v1542
      %v1585 = vunpack.c.l.b16 %v1543
      %v1586 = vunpack.c.h.b16 %v1543
      %v1587 = vunpack.c.l.b16 %v1544
      %v1588 = vunpack.c.h.b16 %v1544
      %v1589 = vunpack.c.l.b16 %v1545
      %v1590 = vunpack.c.h.b16 %v1545
      %v1591 = vunpack.c.l.b16 %v1546
      %v1592 = vunpack.c.h.b16 %v1546
      %v1593 = vunpack.c.l.b16 %v1547
      %v1594 = vunpack.c.h.b16 %v1547
      %v1595 = vunpack.c.l.b16 %v1548
      %v1596 = vunpack.c.h.b16 %v1548
      %v1597 = vpack.c.b16 %v1565, %v1565
      %v1598 = vpack.c.b16 %v1566, %v1566
      %v1599 = vpack.c.b16 %v1567, %v1567
      %v1600 = vpack.c.b16 %v1568, %v1568
      %v1601 = vpack.c.b16 %v1569, %v1569
      %v1602 = vpack.c.b16 %v1570, %v1570
      %v1603 = vpack.c.b16 %v1571, %v1571
      %v1604 = vpack.c.b16 %v1572, %v1572
      %v1605 = vpack.c.b16 %v1573, %v1573
      %v1606 = vpack.c.b16 %v1574, %v1574
      %v1607 = vpack.c.b16 %v1575, %v1575
      %v1608 = vpack.c.b16 %v1576, %v1576
      %v1609 = vpack.c.b16 %v1577, %v1577
      %v1610 = vpack.c.b16 %v1578, %v1578
      %v1611 = vpack.c.b16 %v1579, %v1579
      %v1612 = vpack.c.b16 %v1580, %v1580
      %v1613 = vpack.c.b16 %v1581, %v1581
      %v1614 = vpack.c.b16 %v1582, %v1582
      %v1615 = vpack.c.b16 %v1583, %v1583
      %v1616 = vpack.c.b16 %v1584, %v1584
      %v1617 = vpack.c.b16 %v1585, %v1585
      %v1618 = vpack.c.b16 %v1586, %v1586
      %v1619 = vpack.c.b16 %v1587, %v1587
      %v1620 = vpack.c.b16 %v1588, %v1588
      %v1621 = vpack.c.b16 %v1589, %v1589
      %v1622 = vpack.c.b16 %v1590, %v1590
      %v1623 = vpack.c.b16 %v1591, %v1591
      %v1624 = vpack.c.b16 %v1592, %v1592
      %v1625 = vpack.c.b16 %v1593, %v1593
      %v1626 = vpack.c.b16 %v1594, %v1594
      %v1627 = vpack.c.b16 %v1595, %v1595
      %v1628 = vpack.c.b16 %v1596, %v1596
      %vm1661 = vcmask 519168
      %1662 = vst.msk [vmem:[%s175] sm:$0xf] %vm1661, %v1597
      %1663 = vst.msk [vmem:[%s175 + $0x4] sm:$0xf] %vm1661, %v1598
      %1664 = vst.msk [vmem:[%s175 + $0x8] sm:$0xf] %vm1661, %v1599
      %1665 = vst.msk [vmem:[%s175 + $0xc] sm:$0xf] %vm1661, %v1600
      %1666 = vst.msk [vmem:[%s175 + $0x10] sm:$0xf] %vm1661, %v1601
      %1667 = vst.msk [vmem:[%s175 + $0x14] sm:$0xf] %vm1661, %v1602
      %1668 = vst.msk [vmem:[%s175 + $0x18] sm:$0xf] %vm1661, %v1603
      %1669 = vst.msk [vmem:[%s175 + $0x1c] sm:$0xf] %vm1661, %v1604
      %1670 = vst.msk [vmem:[%s175 + $0x20] sm:$0xf] %vm1661, %v1605
      %1671 = vst.msk [vmem:[%s175 + $0x24] sm:$0xf] %vm1661, %v1606
      %1672 = vst.msk [vmem:[%s175 + $0x28] sm:$0xf] %vm1661, %v1607
      %1673 = vst.msk [vmem:[%s175 + $0x2c] sm:$0xf] %vm1661, %v1608
      %1674 = vst.msk [vmem:[%s175 + $0x30] sm:$0xf] %vm1661, %v1609
      %1675 = vst.msk [vmem:[%s175 + $0x34] sm:$0xf] %vm1661, %v1610
      %1676 = vst.msk [vmem:[%s175 + $0x38] sm:$0xf] %vm1661, %v1611
      %1677 = vst.msk [vmem:[%s175 + $0x3c] sm:$0xf] %vm1661, %v1612
      %1678 = vst.msk [vmem:[%s175 + $0x40] sm:$0xf] %vm1661, %v1613
      %1679 = vst.msk [vmem:[%s175 + $0x44] sm:$0xf] %vm1661, %v1614
      %1680 = vst.msk [vmem:[%s175 + $0x48] sm:$0xf] %vm1661, %v1615
      %1681 = vst.msk [vmem:[%s175 + $0x4c] sm:$0xf] %vm1661, %v1616
      %1682 = vst.msk [vmem:[%s175 + $0x50] sm:$0xf] %vm1661, %v1617
      %1683 = vst.msk [vmem:[%s175 + $0x54] sm:$0xf] %vm1661, %v1618
      %1684 = vst.msk [vmem:[%s175 + $0x58] sm:$0xf] %vm1661, %v1619
      %1685 = vst.msk [vmem:[%s175 + $0x5c] sm:$0xf] %vm1661, %v1620
      %1686 = vst.msk [vmem:[%s175 + $0x60] sm:$0xf] %vm1661, %v1621
      %1687 = vst.msk [vmem:[%s175 + $0x64] sm:$0xf] %vm1661, %v1622
      %1688 = vst.msk [vmem:[%s175 + $0x68] sm:$0xf] %vm1661, %v1623
      %1689 = vst.msk [vmem:[%s175 + $0x6c] sm:$0xf] %vm1661, %v1624
      %1690 = vst.msk [vmem:[%s175 + $0x70] sm:$0xf] %vm1661, %v1625
      %1691 = vst.msk [vmem:[%s175 + $0x74] sm:$0xf] %vm1661, %v1626
      %1692 = vst.msk [vmem:[%s175 + $0x78] sm:$0xf] %vm1661, %v1627
      %1693 = vst.msk [vmem:[%s175 + $0x7c] sm:$0xf] %vm1661, %v1628
      %s1694 = smul.u32 32, %s14
      %p1695 = scmp.lt.s32.totalorder %s1694, 63
      %s1696 = scalar_select %p1695, %s1694, 63
      %s1697 = smul.addr %s1696, 4
      %s1698 = scalar_lea.vmem %s3, %s1697
      // Predicated region
      $region33: #{_lambda_.6} parent=31 // pred_check
        %p1699 = pneg %p100
      $region34: #{_lambda_.6} parent=31 // pred_check_branch
        %1701 = sbr.rel (%p1699) target = $region36
      $region35: #{_lambda_.6} parent=31 // pred_region
        %s1702 = smul.u32 32, %s14
      $region36: #{_lambda_.6} parent=31 // pred_fallthru
        _
    $region32: #{_lambda_.6} parent=5 // pred_fallthru
      _
    %p1703 = scmp.le.s32.totalorder 2, %s9
    // Predicated region
    $region37: #{_lambda_.6} parent=5 // pred_check
      %p1704 = pneg %p1703
    $region38: #{_lambda_.6} parent=5 // pred_check_branch
      %1706 = sbr.rel (%p1704) target = $region40
    $region39: #{_lambda_.6} parent=5 // pred_region
      %s1707 = ssub.s32 %s9, 2
      // Predicated region
      $region41: #{_lambda_.6} parent=39 // pred_check
        %p1708 = pneg %p106
      $region42: #{_lambda_.6} parent=39 // pred_check_branch
        %1710 = sbr.rel (%p1708) target = $region44
      $region43: #{_lambda_.6} parent=39 // pred_region
        %s1711 = smul.u32 32, %s15
        %p1712 = scmp.lt.s32.totalorder %s1711, 63
        %s1713 = scalar_select %p1712, %s1711, 63
        %s1714 = smul.addr %s1713, 4
        %s1715 = scalar_lea.vmem %s3, %s1714
      $region44: #{_lambda_.6} parent=39 // pred_fallthru
        _
    $region40: #{_lambda_.6} parent=5 // pred_fallthru
      _
  $region6: #{_lambda_.6} parent=0 // loop_footer
    %s13 = sadd.s32 1, %s9
  $region7: #{_lambda_.6} parent=0 // loop_footer_branch
    %8 = sbr.rel target = $region3
  $region8: #{_lambda_.6} parent=0 // loop_exit
    _

// kernel: _lambda_.7
$region0: #{_lambda_.7}
  #allocation0 [shape = 'u32[]', space=smem, size = 0x4, offset = 0x4, fixed_abs, tag = 'smem constant byte address 0x4 - core index']
  #allocation1 [shape = 'u32[144,128]{1,0:T(1,128)}', space=vmem, size = 0x12000, scoped, tag = 'internal scratch']
  #allocation2 [shape = 'f32[2,128]{1,0:T(2,128)}', space=vmem, size = 0x400, scoped, tag = 'scratch operand']
  %s0 = inlined_call_operand.vmem [shape: bf16[2,16384], index: 0, kind: input, shape index: {}]
  %s1 = inlined_call_operand.vmem [shape: bf16[16384,128], index: 1, kind: input, shape index: {}]
  %s2 = inlined_call_operand.vmem [shape: f32[1,128], index: 2, kind: input, shape index: {}]
  %s3 = inlined_call_operand.vmem [shape: bf16[128,128], index: 3, kind: input, shape index: {}]
  %s4 = inlined_call_operand.vmem [shape: f32[1,128], index: 4, kind: input, shape index: {}]
  %s5 = inlined_call_operand.hbm [shape: f32[2,128], index: 5, kind: output, shape index: {}]
  %s6 = sld [smem:[#allocation0]]
  $region61: #{_lambda_.7} parent=0
    _
  %s8 = ssub.s32 1, %s6
  %s9 = scalar_select 0, %s8, %s6
  $region1: #{_lambda_.7} parent=0
    #allocation3 [shape = 'u8[1024]{0}', space=vmem, size = 0x400, scoped, tag = 'output window, operand 0, single buffered']
    #allocation4 [shape = 's32[2]{0}', space=sflag, size = 0x8, scoped, tag = 'scoped memory for _lambda_.7']
    %10 = vsyncpa [#allocation4], 0
    loop: start=0, step=1, limit=6
    $region2: #{_lambda_.7} parent=1 // loop_pre_header
      _
    $region3: #{_lambda_.7} parent=1 // loop_header
      %s12 = sphi 0, %s16
      %p13 = scmp.ge.s32.totalorder %s12, 6
      %s22 = sphi 0, %s24
      %s25 = sphi 0, %s22
      %s26 = sphi 0, %s25
      %s42 = sphi 0, %s26
      %s48 = sphi 0, %s50
      %s51 = sphi 0, %s48
      %s52 = sphi 0, %s51
      %s68 = sphi 0, %s52
      %s72 = sphi 0, %s72
      %s74 = sphi 0, %s72
      %s75 = sphi 0, %s74
      %s89 = sphi 0, %s75
      %s93 = sphi 0, %s93
      %s95 = sphi 0, %s93
      %s96 = sphi 0, %s95
      %s110 = sphi 0, %s96
      %s114 = sphi 0, %s114
      %s116 = sphi 0, %s114
      %s117 = sphi 0, %s116
      %s131 = sphi 0, %s117
      %s135 = sphi 0, %s135
      %s137 = sphi 0, %s135
      %s138 = sphi 0, %s137
      %s152 = sphi 0, %s138
    $region4: #{_lambda_.7} parent=1 // loop_header_branch
      %15 = sbr.rel (%p13) target = $region8
    $region5: #{_lambda_.7} parent=1 // loop_body
      %s17 = ssub.s32 %s12, 1
      %s18 = ssub.s32 %s12, 2
      %s19 = sadd.s32 %s12, 1
      %s20 = ssub.s32 %s12, %s19
      %p21 = scmp.eq.s32.totalorder %s20, 0
      %s23 = sadd.s32 %s22, 1
      %s24 = scalar_select %p21, %s22, %s23
      %p27 = pneg %p21
      %p28 = scmp.eq.s32.totalorder %s12, 3
      %p29 = por %p27, %p28
      %p30 = scmp.ne.s32.totalorder %s22, %s25
      %p31 = scmp.eq.s32.totalorder %s12, 0
      %p32 = por %p30, %p31
      %p33 = scmp.ne.s32.totalorder %s22, %s25
      %p34 = scmp.eq.s32.totalorder %s17, 3
      %p35 = por %p33, %p34
      %p36 = scmp.ne.s32.totalorder %s25, %s26
      %p37 = scmp.eq.s32.totalorder %s17, 0
      %p38 = por %p36, %p37
      %p39 = scmp.ne.s32.totalorder %s25, %s26
      %p40 = scmp.eq.s32.totalorder %s18, 3
      %p41 = por %p39, %p40
      %p43 = scmp.ne.s32.totalorder %s26, %s42
      %p44 = scmp.eq.s32.totalorder %s18, 0
      %p45 = por %p43, %p44
      %s46 = ssub.s32 %s12, %s19
      %p47 = scmp.eq.s32.totalorder %s46, 0
      %s49 = sadd.s32 %s48, 1
      %s50 = scalar_select %p47, %s48, %s49
      %p53 = pneg %p47
      %p54 = scmp.eq.s32.totalorder %s12, 3
      %p55 = por %p53, %p54
      %p56 = scmp.ne.s32.totalorder %s48, %s51
      %p57 = scmp.eq.s32.totalorder %s12, 0
      %p58 = por %p56, %p57
      %p59 = scmp.ne.s32.totalorder %s48, %s51
      %p60 = scmp.eq.s32.totalorder %s17, 3
      %p61 = por %p59, %p60
      %p62 = scmp.ne.s32.totalorder %s51, %s52
      %p63 = scmp.eq.s32.totalorder %s17, 0
      %p64 = por %p62, %p63
      %p65 = scmp.ne.s32.totalorder %s51, %s52
      %p66 = scmp.eq.s32.totalorder %s18, 3
      %p67 = por %p65, %p66
      %p69 = scmp.ne.s32.totalorder %s52, %s68
      %p70 = scmp.eq.s32.totalorder %s18, 0
      %p71 = por %p69, %p70
      %s73 = sadd.s32 %s72, 1
      %p76 = scmp.eq.s32.totalorder %s12, 3
      %p77 = scmp.ne.s32.totalorder %s72, %s74
      %p78 = scmp.eq.s32.totalorder %s12, 0
      %p79 = por %p77, %p78
      %p80 = scmp.ne.s32.totalorder %s72, %s74
      %p81 = scmp.eq.s32.totalorder %s17, 3
      %p82 = por %p80, %p81
      %p83 = scmp.ne.s32.totalorder %s74, %s75
      %p84 = scmp.eq.s32.totalorder %s17, 0
      %p85 = por %p83, %p84
      %p86 = scmp.ne.s32.totalorder %s74, %s75
      %p87 = scmp.eq.s32.totalorder %s18, 3
      %p88 = por %p86, %p87
      %p90 = scmp.ne.s32.totalorder %s75, %s89
      %p91 = scmp.eq.s32.totalorder %s18, 0
      %p92 = por %p90, %p91
      %s94 = sadd.s32 %s93, 1
      %p97 = scmp.eq.s32.totalorder %s12, 3
      %p98 = scmp.ne.s32.totalorder %s93, %s95
      %p99 = scmp.eq.s32.totalorder %s12, 0
      %p100 = por %p98, %p99
      %p101 = scmp.ne.s32.totalorder %s93, %s95
      %p102 = scmp.eq.s32.totalorder %s17, 3
      %p103 = por %p101, %p102
      %p104 = scmp.ne.s32.totalorder %s95, %s96
      %p105 = scmp.eq.s32.totalorder %s17, 0
      %p106 = por %p104, %p105
      %p107 = scmp.ne.s32.totalorder %s95, %s96
      %p108 = scmp.eq.s32.totalorder %s18, 3
      %p109 = por %p107, %p108
      %p111 = scmp.ne.s32.totalorder %s96, %s110
      %p112 = scmp.eq.s32.totalorder %s18, 0
      %p113 = por %p111, %p112
      %s115 = sadd.s32 %s114, 1
      %p118 = scmp.eq.s32.totalorder %s12, 3
      %p119 = scmp.ne.s32.totalorder %s114, %s116
      %p120 = scmp.eq.s32.totalorder %s12, 0
      %p121 = por %p119, %p120
      %p122 = scmp.ne.s32.totalorder %s114, %s116
      %p123 = scmp.eq.s32.totalorder %s17, 3
      %p124 = por %p122, %p123
      %p125 = scmp.ne.s32.totalorder %s116, %s117
      %p126 = scmp.eq.s32.totalorder %s17, 0
      %p127 = por %p125, %p126
      %p128 = scmp.ne.s32.totalorder %s116, %s117
      %p129 = scmp.eq.s32.totalorder %s18, 3
      %p130 = por %p128, %p129
      %p132 = scmp.ne.s32.totalorder %s117, %s131
      %p133 = scmp.eq.s32.totalorder %s18, 0
      %p134 = por %p132, %p133
      %s136 = sadd.s32 %s135, 1
      %p139 = scmp.eq.s32.totalorder %s12, 3
      %p140 = scmp.ne.s32.totalorder %s135, %s137
      %p141 = scmp.eq.s32.totalorder %s12, 0
      %p142 = por %p140, %p141
      %p143 = scmp.ne.s32.totalorder %s135, %s137
      %p144 = scmp.eq.s32.totalorder %s17, 3
      %p145 = por %p143, %p144
      %p146 = scmp.ne.s32.totalorder %s137, %s138
      %p147 = scmp.eq.s32.totalorder %s17, 0
      %p148 = por %p146, %p147
      %p149 = scmp.ne.s32.totalorder %s137, %s138
      %p150 = scmp.eq.s32.totalorder %s18, 3
      %p151 = por %p149, %p150
      %p153 = scmp.ne.s32.totalorder %s138, %s152
      %p154 = scmp.eq.s32.totalorder %s18, 0
      %p155 = por %p153, %p154
      %p156 = scmp.le.s32.totalorder 1, %s12
      %p157 = scmp.lt.s32.totalorder %s12, 5
      %p158 = pnand %p156, %p157
      %p159 = pneg %p158
      // Predicated region
      $region9: #{_lambda_.7} parent=5 // pred_check
        _
      $region10: #{_lambda_.7} parent=5 // pred_check_branch
        %161 = sbr.rel (%p158) target = $region12
      $region11: #{_lambda_.7} parent=5 // pred_region
        %s162 = ssub.s32 %s12, 1
        // Predicated region
        $region13: #{_lambda_.7} parent=11 // pred_check
          %p163 = pneg %p85
        $region14: #{_lambda_.7} parent=11 // pred_check_branch
          %165 = sbr.rel (%p163) target = $region16
        $region15: #{_lambda_.7} parent=11 // pred_region
          _
        $region16: #{_lambda_.7} parent=11 // pred_fallthru
          _
        // Predicated region
        $region17: #{_lambda_.7} parent=11 // pred_check
          %p166 = pneg %p106
        $region18: #{_lambda_.7} parent=11 // pred_check_branch
          %168 = sbr.rel (%p166) target = $region20
        $region19: #{_lambda_.7} parent=11 // pred_region
          _
        $region20: #{_lambda_.7} parent=11 // pred_fallthru
          _
        // Predicated region
        $region21: #{_lambda_.7} parent=11 // pred_check
          %p169 = pneg %p127
        $region22: #{_lambda_.7} parent=11 // pred_check_branch
          %171 = sbr.rel (%p169) target = $region24
        $region23: #{_lambda_.7} parent=11 // pred_region
          _
        $region24: #{_lambda_.7} parent=11 // pred_fallthru
          _
      $region12: #{_lambda_.7} parent=5 // pred_fallthru
        _
      %p172 = scmp.lt.s32.totalorder %s12, 4
      // Predicated region
      $region25: #{_lambda_.7} parent=5 // pred_check
        %p173 = pneg %p172
      $region26: #{_lambda_.7} parent=5 // pred_check_branch
        %175 = sbr.rel (%p173) target = $region28
      $region27: #{_lambda_.7} parent=5 // pred_region
        // Predicated region
        $region29: #{_lambda_.7} parent=27 // pred_check
          %p176 = pneg %p32
        $region30: #{_lambda_.7} parent=27 // pred_check_branch
          %178 = sbr.rel (%p176) target = $region32
        $region31: #{_lambda_.7} parent=27 // pred_region
          %s179 = smul.u32 32, %s12
          %p180 = scmp.lt.s32.totalorder %s179, 127
          %s181 = scalar_select %p180, %s179, 127
          %s182 = scalar_lea.vmem %s0, %s181
          %s183 = smul.u32 32, %s12
        $region32: #{_lambda_.7} parent=27 // pred_fallthru
          _
        // Predicated region
        $region33: #{_lambda_.7} parent=27 // pred_check
          %p184 = pneg %p58
        $region34: #{_lambda_.7} parent=27 // pred_check_branch
          %186 = sbr.rel (%p184) target = $region36
        $region35: #{_lambda_.7} parent=27 // pred_region
          %s187 = smul.u32 512, %s12
          %p188 = scmp.lt.s32.totalorder %s187, 2047
          %s189 = scalar_select %p188, %s187, 2047
          %s190 = smul.addr %s189, 4
          %s191 = scalar_lea.vmem %s1, %s190
          %s192 = smul.u32 512, %s12
        $region36: #{_lambda_.7} parent=27 // pred_fallthru
          _
      $region28: #{_lambda_.7} parent=5 // pred_fallthru
        _
      %p193 = scmp.le.s32.totalorder 1, %s12
      %p194 = scmp.lt.s32.totalorder %s12, 5
      %p195 = pnand %p193, %p194
      %p196 = pneg %p195
      // Predicated region
      $region37: #{_lambda_.7} parent=5 // pred_check
        _
      $region38: #{_lambda_.7} parent=5 // pred_check_branch
        %198 = sbr.rel (%p195) target = $region40
      $region39: #{_lambda_.7} parent=5 // pred_region
        %s199 = ssub.s32 %s12, 1
        %s200 = smul.u32 32, %s17
        %p201 = scmp.lt.s32.totalorder %s200, 127
        %s202 = scalar_select %p201, %s200, 127
        %s203 = scalar_lea.vmem %s0, %s202
        %p204 = pneg %p38
        %p205 = pneg %p35
        %s206 = smul.u32 512, %s17
        %p207 = scmp.lt.s32.totalorder %s206, 2047
        %s208 = scalar_select %p207, %s206, 2047
        %s209 = smul.addr %s208, 4
        %s210 = scalar_lea.vmem %s1, %s209
        %p211 = pneg %p64
        %p212 = pneg %p61
        %p213 = pneg %p85
        %p214 = pneg %p82
        %p215 = pneg %p106
        %p216 = pneg %p103
        %p217 = pneg %p127
        %p218 = pneg %p124
        %p219 = pneg %p148
        %p220 = pneg %p145
        %s221 = smul.u32 32, %s17
        %p222 = scmp.lt.s32.totalorder %s221, 127
        %s223 = scalar_select %p222, %s221, 127
        %s224 = scalar_lea.vmem %s0, %s223
        %s225 = smul.u32 32, %s17
        %s226 = smul.u32 512, %s17
        %p227 = scmp.lt.s32.totalorder %s226, 2047
        %s228 = scalar_select %p227, %s226, 2047
        %s229 = smul.addr %s228, 4
        %s230 = scalar_lea.vmem %s1, %s229
        %s231 = smul.u32 512, %s17
        %p233 = scmp.eq.s32.totalorder %s17, 0
        // Predicated region
        $region41: #{_lambda_.7} parent=39 // pred_check
          %p234 = pneg %p233
        $region42: #{_lambda_.7} parent=39 // pred_check_branch
          %236 = sbr.rel (%p234) target = $region44
        $region43: #{_lambda_.7} parent=39 // pred_region
          %237 = vst [vmem:[#allocation2] sm:$0x3] 0.0
        $region44: #{_lambda_.7} parent=39 // pred_fallthru
          _
        %v238 = vld [vmem:[#allocation2] sm:$0x3]
        %v239 = vld [vmem:[%s224] sm:$0xff]
        %v240 = vld [vmem:[%s224 + $0x8] sm:$0xff]
        %v241 = vld [vmem:[%s224 + $0x10] sm:$0xff]
        %v242 = vld [vmem:[%s224 + $0x18] sm:$0xff]
        %v243 = vld [vmem:[%s230] sm:$0xf]
        %v244 = vld [vmem:[%s230 + $0x4] sm:$0xf]
        %v245 = vld [vmem:[%s230 + $0x8] sm:$0xf]
        %v246 = vld [vmem:[%s230 + $0xc] sm:$0xf]
        %v247 = vld [vmem:[%s230 + $0x10] sm:$0xf]
        %v248 = vld [vmem:[%s230 + $0x14] sm:$0xf]
        %v249 = vld [vmem:[%s230 + $0x18] sm:$0xf]
        %v250 = vld [vmem:[%s230 + $0x1c] sm:$0xf]
        %v251 = vld [vmem:[%s230 + $0x20] sm:$0xf]
        %v252 = vld [vmem:[%s230 + $0x24] sm:$0xf]
        %v253 = vld [vmem:[%s230 + $0x28] sm:$0xf]
        %v254 = vld [vmem:[%s230 + $0x2c] sm:$0xf]
        %v255 = vld [vmem:[%s230 + $0x30] sm:$0xf]
        %v256 = vld [vmem:[%s230 + $0x34] sm:$0xf]
        %v257 = vld [vmem:[%s230 + $0x38] sm:$0xf]
        %v258 = vld [vmem:[%s230 + $0x3c] sm:$0xf]
        %v259 = vld [vmem:[%s230 + $0x40] sm:$0xf]
        %v260 = vld [vmem:[%s230 + $0x44] sm:$0xf]
        %v261 = vld [vmem:[%s230 + $0x48] sm:$0xf]
        %v262 = vld [vmem:[%s230 + $0x4c] sm:$0xf]
        %v263 = vld [vmem:[%s230 + $0x50] sm:$0xf]
        %v264 = vld [vmem:[%s230 + $0x54] sm:$0xf]
        %v265 = vld [vmem:[%s230 + $0x58] sm:$0xf]
        %v266 = vld [vmem:[%s230 + $0x5c] sm:$0xf]
        %v267 = vld [vmem:[%s230 + $0x60] sm:$0xf]
        %v268 = vld [vmem:[%s230 + $0x64] sm:$0xf]
        %v269 = vld [vmem:[%s230 + $0x68] sm:$0xf]
        %v270 = vld [vmem:[%s230 + $0x6c] sm:$0xf]
        %v271 = vld [vmem:[%s230 + $0x70] sm:$0xf]
        %v272 = vld [vmem:[%s230 + $0x74] sm:$0xf]
        %v273 = vld [vmem:[%s230 + $0x78] sm:$0xf]
        %v274 = vld [vmem:[%s230 + $0x7c] sm:$0xf]
        %v275 = vld [vmem:[%s230 + $0x80] sm:$0xf]
        %v276 = vld [vmem:[%s230 + $0x84] sm:$0xf]
        %v277 = vld [vmem:[%s230 + $0x88] sm:$0xf]
        %v278 = vld [vmem:[%s230 + $0x8c] sm:$0xf]
        %v279 = vld [vmem:[%s230 + $0x90] sm:$0xf]
        %v280 = vld [vmem:[%s230 + $0x94] sm:$0xf]
        %v281 = vld [vmem:[%s230 + $0x98] sm:$0xf]
        %v282 = vld [vmem:[%s230 + $0x9c] sm:$0xf]
        %v283 = vld [vmem:[%s230 + $0xa0] sm:$0xf]
        %v284 = vld [vmem:[%s230 + $0xa4] sm:$0xf]
        %v285 = vld [vmem:[%s230 + $0xa8] sm:$0xf]
        %v286 = vld [vmem:[%s230 + $0xac] sm:$0xf]
        %v287 = vld [vmem:[%s230 + $0xb0] sm:$0xf]
        %v288 = vld [vmem:[%s230 + $0xb4] sm:$0xf]
        %v289 = vld [vmem:[%s230 + $0xb8] sm:$0xf]
        %v290 = vld [vmem:[%s230 + $0xbc] sm:$0xf]
        %v291 = vld [vmem:[%s230 + $0xc0] sm:$0xf]
        %v292 = vld [vmem:[%s230 + $0xc4] sm:$0xf]
        %v293 = vld [vmem:[%s230 + $0xc8] sm:$0xf]
        %v294 = vld [vmem:[%s230 + $0xcc] sm:$0xf]
        %v295 = vld [vmem:[%s230 + $0xd0] sm:$0xf]
        %v296 = vld [vmem:[%s230 + $0xd4] sm:$0xf]
        %v297 = vld [vmem:[%s230 + $0xd8] sm:$0xf]
        %v298 = vld [vmem:[%s230 + $0xdc] sm:$0xf]
        %v299 = vld [vmem:[%s230 + $0xe0] sm:$0xf]
        %v300 = vld [vmem:[%s230 + $0xe4] sm:$0xf]
        %v301 = vld [vmem:[%s230 + $0xe8] sm:$0xf]
        %v302 = vld [vmem:[%s230 + $0xec] sm:$0xf]
        %v303 = vld [vmem:[%s230 + $0xf0] sm:$0xf]
        %v304 = vld [vmem:[%s230 + $0xf4] sm:$0xf]
        %v305 = vld [vmem:[%s230 + $0xf8] sm:$0xf]
        %v306 = vld [vmem:[%s230 + $0xfc] sm:$0xf]
        %v307 = vld [vmem:[%s230 + $0x100] sm:$0xf]
        %v308 = vld [vmem:[%s230 + $0x104] sm:$0xf]
        %v309 = vld [vmem:[%s230 + $0x108] sm:$0xf]
        %v310 = vld [vmem:[%s230 + $0x10c] sm:$0xf]
        %v311 = vld [vmem:[%s230 + $0x110] sm:$0xf]
        %v312 = vld [vmem:[%s230 + $0x114] sm:$0xf]
        %v313 = vld [vmem:[%s230 + $0x118] sm:$0xf]
        %v314 = vld [vmem:[%s230 + $0x11c] sm:$0xf]
        %v315 = vld [vmem:[%s230 + $0x120] sm:$0xf]
        %v316 = vld [vmem:[%s230 + $0x124] sm:$0xf]
        %v317 = vld [vmem:[%s230 + $0x128] sm:$0xf]
        %v318 = vld [vmem:[%s230 + $0x12c] sm:$0xf]
        %v319 = vld [vmem:[%s230 + $0x130] sm:$0xf]
        %v320 = vld [vmem:[%s230 + $0x134] sm:$0xf]
        %v321 = vld [vmem:[%s230 + $0x138] sm:$0xf]
        %v322 = vld [vmem:[%s230 + $0x13c] sm:$0xf]
        %v323 = vld [vmem:[%s230 + $0x140] sm:$0xf]
        %v324 = vld [vmem:[%s230 + $0x144] sm:$0xf]
        %v325 = vld [vmem:[%s230 + $0x148] sm:$0xf]
        %v326 = vld [vmem:[%s230 + $0x14c] sm:$0xf]
        %v327 = vld [vmem:[%s230 + $0x150] sm:$0xf]
        %v328 = vld [vmem:[%s230 + $0x154] sm:$0xf]
        %v329 = vld [vmem:[%s230 + $0x158] sm:$0xf]
        %v330 = vld [vmem:[%s230 + $0x15c] sm:$0xf]
        %v331 = vld [vmem:[%s230 + $0x160] sm:$0xf]
        %v332 = vld [vmem:[%s230 + $0x164] sm:$0xf]
        %v333 = vld [vmem:[%s230 + $0x168] sm:$0xf]
        %v334 = vld [vmem:[%s230 + $0x16c] sm:$0xf]
        %v335 = vld [vmem:[%s230 + $0x170] sm:$0xf]
        %v336 = vld [vmem:[%s230 + $0x174] sm:$0xf]
        %v337 = vld [vmem:[%s230 + $0x178] sm:$0xf]
        %v338 = vld [vmem:[%s230 + $0x17c] sm:$0xf]
        %v339 = vld [vmem:[%s230 + $0x180] sm:$0xf]
        %v340 = vld [vmem:[%s230 + $0x184] sm:$0xf]
        %v341 = vld [vmem:[%s230 + $0x188] sm:$0xf]
        %v342 = vld [vmem:[%s230 + $0x18c] sm:$0xf]
        %v343 = vld [vmem:[%s230 + $0x190] sm:$0xf]
        %v344 = vld [vmem:[%s230 + $0x194] sm:$0xf]
        %v345 = vld [vmem:[%s230 + $0x198] sm:$0xf]
        %v346 = vld [vmem:[%s230 + $0x19c] sm:$0xf]
        %v347 = vld [vmem:[%s230 + $0x1a0] sm:$0xf]
        %v348 = vld [vmem:[%s230 + $0x1a4] sm:$0xf]
        %v349 = vld [vmem:[%s230 + $0x1a8] sm:$0xf]
        %v350 = vld [vmem:[%s230 + $0x1ac] sm:$0xf]
        %v351 = vld [vmem:[%s230 + $0x1b0] sm:$0xf]
        %v352 = vld [vmem:[%s230 + $0x1b4] sm:$0xf]
        %v353 = vld [vmem:[%s230 + $0x1b8] sm:$0xf]
        %v354 = vld [vmem:[%s230 + $0x1bc] sm:$0xf]
        %v355 = vld [vmem:[%s230 + $0x1c0] sm:$0xf]
        %v356 = vld [vmem:[%s230 + $0x1c4] sm:$0xf]
        %v357 = vld [vmem:[%s230 + $0x1c8] sm:$0xf]
        %v358 = vld [vmem:[%s230 + $0x1cc] sm:$0xf]
        %v359 = vld [vmem:[%s230 + $0x1d0] sm:$0xf]
        %v360 = vld [vmem:[%s230 + $0x1d4] sm:$0xf]
        %v361 = vld [vmem:[%s230 + $0x1d8] sm:$0xf]
        %v362 = vld [vmem:[%s230 + $0x1dc] sm:$0xf]
        %v363 = vld [vmem:[%s230 + $0x1e0] sm:$0xf]
        %v364 = vld [vmem:[%s230 + $0x1e4] sm:$0xf]
        %v365 = vld [vmem:[%s230 + $0x1e8] sm:$0xf]
        %v366 = vld [vmem:[%s230 + $0x1ec] sm:$0xf]
        %v367 = vld [vmem:[%s230 + $0x1f0] sm:$0xf]
        %v368 = vld [vmem:[%s230 + $0x1f4] sm:$0xf]
        %v369 = vld [vmem:[%s230 + $0x1f8] sm:$0xf]
        %v370 = vld [vmem:[%s230 + $0x1fc] sm:$0xf]
        %v371 = vld [vmem:[%s230 + $0x200] sm:$0xf]
        %v372 = vld [vmem:[%s230 + $0x204] sm:$0xf]
        %v373 = vld [vmem:[%s230 + $0x208] sm:$0xf]
        %v374 = vld [vmem:[%s230 + $0x20c] sm:$0xf]
        %v375 = vld [vmem:[%s230 + $0x210] sm:$0xf]
        %v376 = vld [vmem:[%s230 + $0x214] sm:$0xf]
        %v377 = vld [vmem:[%s230 + $0x218] sm:$0xf]
        %v378 = vld [vmem:[%s230 + $0x21c] sm:$0xf]
        %v379 = vld [vmem:[%s230 + $0x220] sm:$0xf]
        %v380 = vld [vmem:[%s230 + $0x224] sm:$0xf]
        %v381 = vld [vmem:[%s230 + $0x228] sm:$0xf]
        %v382 = vld [vmem:[%s230 + $0x22c] sm:$0xf]
        %v383 = vld [vmem:[%s230 + $0x230] sm:$0xf]
        %v384 = vld [vmem:[%s230 + $0x234] sm:$0xf]
        %v385 = vld [vmem:[%s230 + $0x238] sm:$0xf]
        %v386 = vld [vmem:[%s230 + $0x23c] sm:$0xf]
        %v387 = vld [vmem:[%s230 + $0x240] sm:$0xf]
        %v388 = vld [vmem:[%s230 + $0x244] sm:$0xf]
        %v389 = vld [vmem:[%s230 + $0x248] sm:$0xf]
        %v390 = vld [vmem:[%s230 + $0x24c] sm:$0xf]
        %v391 = vld [vmem:[%s230 + $0x250] sm:$0xf]
        %v392 = vld [vmem:[%s230 + $0x254] sm:$0xf]
        %v393 = vld [vmem:[%s230 + $0x258] sm:$0xf]
        %v394 = vld [vmem:[%s230 + $0x25c] sm:$0xf]
        %v395 = vld [vmem:[%s230 + $0x260] sm:$0xf]
        %v396 = vld [vmem:[%s230 + $0x264] sm:$0xf]
        %v397 = vld [vmem:[%s230 + $0x268] sm:$0xf]
        %v398 = vld [vmem:[%s230 + $0x26c] sm:$0xf]
        %v399 = vld [vmem:[%s230 + $0x270] sm:$0xf]
        %v400 = vld [vmem:[%s230 + $0x274] sm:$0xf]
        %v401 = vld [vmem:[%s230 + $0x278] sm:$0xf]
        %v402 = vld [vmem:[%s230 + $0x27c] sm:$0xf]
        %v403 = vld [vmem:[%s230 + $0x280] sm:$0xf]
        %v404 = vld [vmem:[%s230 + $0x284] sm:$0xf]
        %v405 = vld [vmem:[%s230 + $0x288] sm:$0xf]
        %v406 = vld [vmem:[%s230 + $0x28c] sm:$0xf]
        %v407 = vld [vmem:[%s230 + $0x290] sm:$0xf]
        %v408 = vld [vmem:[%s230 + $0x294] sm:$0xf]
        %v409 = vld [vmem:[%s230 + $0x298] sm:$0xf]
        %v410 = vld [vmem:[%s230 + $0x29c] sm:$0xf]
        %v411 = vld [vmem:[%s230 + $0x2a0] sm:$0xf]
        %v412 = vld [vmem:[%s230 + $0x2a4] sm:$0xf]
        %v413 = vld [vmem:[%s230 + $0x2a8] sm:$0xf]
        %v414 = vld [vmem:[%s230 + $0x2ac] sm:$0xf]
        %v415 = vld [vmem:[%s230 + $0x2b0] sm:$0xf]
        %v416 = vld [vmem:[%s230 + $0x2b4] sm:$0xf]
        %v417 = vld [vmem:[%s230 + $0x2b8] sm:$0xf]
        %v418 = vld [vmem:[%s230 + $0x2bc] sm:$0xf]
        %v419 = vld [vmem:[%s230 + $0x2c0] sm:$0xf]
        %v420 = vld [vmem:[%s230 + $0x2c4] sm:$0xf]
        %v421 = vld [vmem:[%s230 + $0x2c8] sm:$0xf]
        %v422 = vld [vmem:[%s230 + $0x2cc] sm:$0xf]
        %v423 = vld [vmem:[%s230 + $0x2d0] sm:$0xf]
        %v424 = vld [vmem:[%s230 + $0x2d4] sm:$0xf]
        %v425 = vld [vmem:[%s230 + $0x2d8] sm:$0xf]
        %v426 = vld [vmem:[%s230 + $0x2dc] sm:$0xf]
        %v427 = vld [vmem:[%s230 + $0x2e0] sm:$0xf]
        %v428 = vld [vmem:[%s230 + $0x2e4] sm:$0xf]
        %v429 = vld [vmem:[%s230 + $0x2e8] sm:$0xf]
        %v430 = vld [vmem:[%s230 + $0x2ec] sm:$0xf]
        %v431 = vld [vmem:[%s230 + $0x2f0] sm:$0xf]
        %v432 = vld [vmem:[%s230 + $0x2f4] sm:$0xf]
        %v433 = vld [vmem:[%s230 + $0x2f8] sm:$0xf]
        %v434 = vld [vmem:[%s230 + $0x2fc] sm:$0xf]
        %v435 = vld [vmem:[%s230 + $0x300] sm:$0xf]
        %v436 = vld [vmem:[%s230 + $0x304] sm:$0xf]
        %v437 = vld [vmem:[%s230 + $0x308] sm:$0xf]
        %v438 = vld [vmem:[%s230 + $0x30c] sm:$0xf]
        %v439 = vld [vmem:[%s230 + $0x310] sm:$0xf]
        %v440 = vld [vmem:[%s230 + $0x314] sm:$0xf]
        %v441 = vld [vmem:[%s230 + $0x318] sm:$0xf]
        %v442 = vld [vmem:[%s230 + $0x31c] sm:$0xf]
        %v443 = vld [vmem:[%s230 + $0x320] sm:$0xf]
        %v444 = vld [vmem:[%s230 + $0x324] sm:$0xf]
        %v445 = vld [vmem:[%s230 + $0x328] sm:$0xf]
        %v446 = vld [vmem:[%s230 + $0x32c] sm:$0xf]
        %v447 = vld [vmem:[%s230 + $0x330] sm:$0xf]
        %v448 = vld [vmem:[%s230 + $0x334] sm:$0xf]
        %v449 = vld [vmem:[%s230 + $0x338] sm:$0xf]
        %v450 = vld [vmem:[%s230 + $0x33c] sm:$0xf]
        %v451 = vld [vmem:[%s230 + $0x340] sm:$0xf]
        %v452 = vld [vmem:[%s230 + $0x344] sm:$0xf]
        %v453 = vld [vmem:[%s230 + $0x348] sm:$0xf]
        %v454 = vld [vmem:[%s230 + $0x34c] sm:$0xf]
        %v455 = vld [vmem:[%s230 + $0x350] sm:$0xf]
        %v456 = vld [vmem:[%s230 + $0x354] sm:$0xf]
        %v457 = vld [vmem:[%s230 + $0x358] sm:$0xf]
        %v458 = vld [vmem:[%s230 + $0x35c] sm:$0xf]
        %v459 = vld [vmem:[%s230 + $0x360] sm:$0xf]
        %v460 = vld [vmem:[%s230 + $0x364] sm:$0xf]
        %v461 = vld [vmem:[%s230 + $0x368] sm:$0xf]
        %v462 = vld [vmem:[%s230 + $0x36c] sm:$0xf]
        %v463 = vld [vmem:[%s230 + $0x370] sm:$0xf]
        %v464 = vld [vmem:[%s230 + $0x374] sm:$0xf]
        %v465 = vld [vmem:[%s230 + $0x378] sm:$0xf]
        %v466 = vld [vmem:[%s230 + $0x37c] sm:$0xf]
        %v467 = vld [vmem:[%s230 + $0x380] sm:$0xf]
        %v468 = vld [vmem:[%s230 + $0x384] sm:$0xf]
        %v469 = vld [vmem:[%s230 + $0x388] sm:$0xf]
        %v470 = vld [vmem:[%s230 + $0x38c] sm:$0xf]
        %v471 = vld [vmem:[%s230 + $0x390] sm:$0xf]
        %v472 = vld [vmem:[%s230 + $0x394] sm:$0xf]
        %v473 = vld [vmem:[%s230 + $0x398] sm:$0xf]
        %v474 = vld [vmem:[%s230 + $0x39c] sm:$0xf]
        %v475 = vld [vmem:[%s230 + $0x3a0] sm:$0xf]
        %v476 = vld [vmem:[%s230 + $0x3a4] sm:$0xf]
        %v477 = vld [vmem:[%s230 + $0x3a8] sm:$0xf]
        %v478 = vld [vmem:[%s230 + $0x3ac] sm:$0xf]
        %v479 = vld [vmem:[%s230 + $0x3b0] sm:$0xf]
        %v480 = vld [vmem:[%s230 + $0x3b4] sm:$0xf]
        %v481 = vld [vmem:[%s230 + $0x3b8] sm:$0xf]
        %v482 = vld [vmem:[%s230 + $0x3bc] sm:$0xf]
        %v483 = vld [vmem:[%s230 + $0x3c0] sm:$0xf]
        %v484 = vld [vmem:[%s230 + $0x3c4] sm:$0xf]
        %v485 = vld [vmem:[%s230 + $0x3c8] sm:$0xf]
        %v486 = vld [vmem:[%s230 + $0x3cc] sm:$0xf]
        %v487 = vld [vmem:[%s230 + $0x3d0] sm:$0xf]
        %v488 = vld [vmem:[%s230 + $0x3d4] sm:$0xf]
        %v489 = vld [vmem:[%s230 + $0x3d8] sm:$0xf]
        %v490 = vld [vmem:[%s230 + $0x3dc] sm:$0xf]
        %v491 = vld [vmem:[%s230 + $0x3e0] sm:$0xf]
        %v492 = vld [vmem:[%s230 + $0x3e4] sm:$0xf]
        %v493 = vld [vmem:[%s230 + $0x3e8] sm:$0xf]
        %v494 = vld [vmem:[%s230 + $0x3ec] sm:$0xf]
        %v495 = vld [vmem:[%s230 + $0x3f0] sm:$0xf]
        %v496 = vld [vmem:[%s230 + $0x3f4] sm:$0xf]
        %v497 = vld [vmem:[%s230 + $0x3f8] sm:$0xf]
        %v498 = vld [vmem:[%s230 + $0x3fc] sm:$0xf]
        %v499 = vld [vmem:[%s230 + $0x400] sm:$0xf]
        %v500 = vld [vmem:[%s230 + $0x404] sm:$0xf]
        %v501 = vld [vmem:[%s230 + $0x408] sm:$0xf]
        %v502 = vld [vmem:[%s230 + $0x40c] sm:$0xf]
        %v503 = vld [vmem:[%s230 + $0x410] sm:$0xf]
        %v504 = vld [vmem:[%s230 + $0x414] sm:$0xf]
        %v505 = vld [vmem:[%s230 + $0x418] sm:$0xf]
        %v506 = vld [vmem:[%s230 + $0x41c] sm:$0xf]
        %v507 = vld [vmem:[%s230 + $0x420] sm:$0xf]
        %v508 = vld [vmem:[%s230 + $0x424] sm:$0xf]
        %v509 = vld [vmem:[%s230 + $0x428] sm:$0xf]
        %v510 = vld [vmem:[%s230 + $0x42c] sm:$0xf]
        %v511 = vld [vmem:[%s230 + $0x430] sm:$0xf]
        %v512 = vld [vmem:[%s230 + $0x434] sm:$0xf]
        %v513 = vld [vmem:[%s230 + $0x438] sm:$0xf]
        %v514 = vld [vmem:[%s230 + $0x43c] sm:$0xf]
        %v515 = vld [vmem:[%s230 + $0x440] sm:$0xf]
        %v516 = vld [vmem:[%s230 + $0x444] sm:$0xf]
        %v517 = vld [vmem:[%s230 + $0x448] sm:$0xf]
        %v518 = vld [vmem:[%s230 + $0x44c] sm:$0xf]
        %v519 = vld [vmem:[%s230 + $0x450] sm:$0xf]
        %v520 = vld [vmem:[%s230 + $0x454] sm:$0xf]
        %v521 = vld [vmem:[%s230 + $0x458] sm:$0xf]
        %v522 = vld [vmem:[%s230 + $0x45c] sm:$0xf]
        %v523 = vld [vmem:[%s230 + $0x460] sm:$0xf]
        %v524 = vld [vmem:[%s230 + $0x464] sm:$0xf]
        %v525 = vld [vmem:[%s230 + $0x468] sm:$0xf]
        %v526 = vld [vmem:[%s230 + $0x46c] sm:$0xf]
        %v527 = vld [vmem:[%s230 + $0x470] sm:$0xf]
        %v528 = vld [vmem:[%s230 + $0x474] sm:$0xf]
        %v529 = vld [vmem:[%s230 + $0x478] sm:$0xf]
        %v530 = vld [vmem:[%s230 + $0x47c] sm:$0xf]
        %v531 = vld [vmem:[%s230 + $0x480] sm:$0xf]
        %v532 = vld [vmem:[%s230 + $0x484] sm:$0xf]
        %v533 = vld [vmem:[%s230 + $0x488] sm:$0xf]
        %v534 = vld [vmem:[%s230 + $0x48c] sm:$0xf]
        %v535 = vld [vmem:[%s230 + $0x490] sm:$0xf]
        %v536 = vld [vmem:[%s230 + $0x494] sm:$0xf]
        %v537 = vld [vmem:[%s230 + $0x498] sm:$0xf]
        %v538 = vld [vmem:[%s230 + $0x49c] sm:$0xf]
        %v539 = vld [vmem:[%s230 + $0x4a0] sm:$0xf]
        %v540 = vld [vmem:[%s230 + $0x4a4] sm:$0xf]
        %v541 = vld [vmem:[%s230 + $0x4a8] sm:$0xf]
        %v542 = vld [vmem:[%s230 + $0x4ac] sm:$0xf]
        %v543 = vld [vmem:[%s230 + $0x4b0] sm:$0xf]
        %v544 = vld [vmem:[%s230 + $0x4b4] sm:$0xf]
        %v545 = vld [vmem:[%s230 + $0x4b8] sm:$0xf]
        %v546 = vld [vmem:[%s230 + $0x4bc] sm:$0xf]
        %v547 = vld [vmem:[%s230 + $0x4c0] sm:$0xf]
        %v548 = vld [vmem:[%s230 + $0x4c4] sm:$0xf]
        %v549 = vld [vmem:[%s230 + $0x4c8] sm:$0xf]
        %v550 = vld [vmem:[%s230 + $0x4cc] sm:$0xf]
        %v551 = vld [vmem:[%s230 + $0x4d0] sm:$0xf]
        %v552 = vld [vmem:[%s230 + $0x4d4] sm:$0xf]
        %v553 = vld [vmem:[%s230 + $0x4d8] sm:$0xf]
        %v554 = vld [vmem:[%s230 + $0x4dc] sm:$0xf]
        %v555 = vld [vmem:[%s230 + $0x4e0] sm:$0xf]
        %v556 = vld [vmem:[%s230 + $0x4e4] sm:$0xf]
        %v557 = vld [vmem:[%s230 + $0x4e8] sm:$0xf]
        %v558 = vld [vmem:[%s230 + $0x4ec] sm:$0xf]
        %v559 = vld [vmem:[%s230 + $0x4f0] sm:$0xf]
        %v560 = vld [vmem:[%s230 + $0x4f4] sm:$0xf]
        %v561 = vld [vmem:[%s230 + $0x4f8] sm:$0xf]
        %v562 = vld [vmem:[%s230 + $0x4fc] sm:$0xf]
        %v563 = vld [vmem:[%s230 + $0x500] sm:$0xf]
        %v564 = vld [vmem:[%s230 + $0x504] sm:$0xf]
        %v565 = vld [vmem:[%s230 + $0x508] sm:$0xf]
        %v566 = vld [vmem:[%s230 + $0x50c] sm:$0xf]
        %v567 = vld [vmem:[%s230 + $0x510] sm:$0xf]
        %v568 = vld [vmem:[%s230 + $0x514] sm:$0xf]
        %v569 = vld [vmem:[%s230 + $0x518] sm:$0xf]
        %v570 = vld [vmem:[%s230 + $0x51c] sm:$0xf]
        %v571 = vld [vmem:[%s230 + $0x520] sm:$0xf]
        %v572 = vld [vmem:[%s230 + $0x524] sm:$0xf]
        %v573 = vld [vmem:[%s230 + $0x528] sm:$0xf]
        %v574 = vld [vmem:[%s230 + $0x52c] sm:$0xf]
        %v575 = vld [vmem:[%s230 + $0x530] sm:$0xf]
        %v576 = vld [vmem:[%s230 + $0x534] sm:$0xf]
        %v577 = vld [vmem:[%s230 + $0x538] sm:$0xf]
        %v578 = vld [vmem:[%s230 + $0x53c] sm:$0xf]
        %v579 = vld [vmem:[%s230 + $0x540] sm:$0xf]
        %v580 = vld [vmem:[%s230 + $0x544] sm:$0xf]
        %v581 = vld [vmem:[%s230 + $0x548] sm:$0xf]
        %v582 = vld [vmem:[%s230 + $0x54c] sm:$0xf]
        %v583 = vld [vmem:[%s230 + $0x550] sm:$0xf]
        %v584 = vld [vmem:[%s230 + $0x554] sm:$0xf]
        %v585 = vld [vmem:[%s230 + $0x558] sm:$0xf]
        %v586 = vld [vmem:[%s230 + $0x55c] sm:$0xf]
        %v587 = vld [vmem:[%s230 + $0x560] sm:$0xf]
        %v588 = vld [vmem:[%s230 + $0x564] sm:$0xf]
        %v589 = vld [vmem:[%s230 + $0x568] sm:$0xf]
        %v590 = vld [vmem:[%s230 + $0x56c] sm:$0xf]
        %v591 = vld [vmem:[%s230 + $0x570] sm:$0xf]
        %v592 = vld [vmem:[%s230 + $0x574] sm:$0xf]
        %v593 = vld [vmem:[%s230 + $0x578] sm:$0xf]
        %v594 = vld [vmem:[%s230 + $0x57c] sm:$0xf]
        %v595 = vld [vmem:[%s230 + $0x580] sm:$0xf]
        %v596 = vld [vmem:[%s230 + $0x584] sm:$0xf]
        %v597 = vld [vmem:[%s230 + $0x588] sm:$0xf]
        %v598 = vld [vmem:[%s230 + $0x58c] sm:$0xf]
        %v599 = vld [vmem:[%s230 + $0x590] sm:$0xf]
        %v600 = vld [vmem:[%s230 + $0x594] sm:$0xf]
        %v601 = vld [vmem:[%s230 + $0x598] sm:$0xf]
        %v602 = vld [vmem:[%s230 + $0x59c] sm:$0xf]
        %v603 = vld [vmem:[%s230 + $0x5a0] sm:$0xf]
        %v604 = vld [vmem:[%s230 + $0x5a4] sm:$0xf]
        %v605 = vld [vmem:[%s230 + $0x5a8] sm:$0xf]
        %v606 = vld [vmem:[%s230 + $0x5ac] sm:$0xf]
        %v607 = vld [vmem:[%s230 + $0x5b0] sm:$0xf]
        %v608 = vld [vmem:[%s230 + $0x5b4] sm:$0xf]
        %v609 = vld [vmem:[%s230 + $0x5b8] sm:$0xf]
        %v610 = vld [vmem:[%s230 + $0x5bc] sm:$0xf]
        %v611 = vld [vmem:[%s230 + $0x5c0] sm:$0xf]
        %v612 = vld [vmem:[%s230 + $0x5c4] sm:$0xf]
        %v613 = vld [vmem:[%s230 + $0x5c8] sm:$0xf]
        %v614 = vld [vmem:[%s230 + $0x5cc] sm:$0xf]
        %v615 = vld [vmem:[%s230 + $0x5d0] sm:$0xf]
        %v616 = vld [vmem:[%s230 + $0x5d4] sm:$0xf]
        %v617 = vld [vmem:[%s230 + $0x5d8] sm:$0xf]
        %v618 = vld [vmem:[%s230 + $0x5dc] sm:$0xf]
        %v619 = vld [vmem:[%s230 + $0x5e0] sm:$0xf]
        %v620 = vld [vmem:[%s230 + $0x5e4] sm:$0xf]
        %v621 = vld [vmem:[%s230 + $0x5e8] sm:$0xf]
        %v622 = vld [vmem:[%s230 + $0x5ec] sm:$0xf]
        %v623 = vld [vmem:[%s230 + $0x5f0] sm:$0xf]
        %v624 = vld [vmem:[%s230 + $0x5f4] sm:$0xf]
        %v625 = vld [vmem:[%s230 + $0x5f8] sm:$0xf]
        %v626 = vld [vmem:[%s230 + $0x5fc] sm:$0xf]
        %v627 = vld [vmem:[%s230 + $0x600] sm:$0xf]
        %v628 = vld [vmem:[%s230 + $0x604] sm:$0xf]
        %v629 = vld [vmem:[%s230 + $0x608] sm:$0xf]
        %v630 = vld [vmem:[%s230 + $0x60c] sm:$0xf]
        %v631 = vld [vmem:[%s230 + $0x610] sm:$0xf]
        %v632 = vld [vmem:[%s230 + $0x614] sm:$0xf]
        %v633 = vld [vmem:[%s230 + $0x618] sm:$0xf]
        %v634 = vld [vmem:[%s230 + $0x61c] sm:$0xf]
        %v635 = vld [vmem:[%s230 + $0x620] sm:$0xf]
        %v636 = vld [vmem:[%s230 + $0x624] sm:$0xf]
        %v637 = vld [vmem:[%s230 + $0x628] sm:$0xf]
        %v638 = vld [vmem:[%s230 + $0x62c] sm:$0xf]
        %v639 = vld [vmem:[%s230 + $0x630] sm:$0xf]
        %v640 = vld [vmem:[%s230 + $0x634] sm:$0xf]
        %v641 = vld [vmem:[%s230 + $0x638] sm:$0xf]
        %v642 = vld [vmem:[%s230 + $0x63c] sm:$0xf]
        %v643 = vld [vmem:[%s230 + $0x640] sm:$0xf]
        %v644 = vld [vmem:[%s230 + $0x644] sm:$0xf]
        %v645 = vld [vmem:[%s230 + $0x648] sm:$0xf]
        %v646 = vld [vmem:[%s230 + $0x64c] sm:$0xf]
        %v647 = vld [vmem:[%s230 + $0x650] sm:$0xf]
        %v648 = vld [vmem:[%s230 + $0x654] sm:$0xf]
        %v649 = vld [vmem:[%s230 + $0x658] sm:$0xf]
        %v650 = vld [vmem:[%s230 + $0x65c] sm:$0xf]
        %v651 = vld [vmem:[%s230 + $0x660] sm:$0xf]
        %v652 = vld [vmem:[%s230 + $0x664] sm:$0xf]
        %v653 = vld [vmem:[%s230 + $0x668] sm:$0xf]
        %v654 = vld [vmem:[%s230 + $0x66c] sm:$0xf]
        %v655 = vld [vmem:[%s230 + $0x670] sm:$0xf]
        %v656 = vld [vmem:[%s230 + $0x674] sm:$0xf]
        %v657 = vld [vmem:[%s230 + $0x678] sm:$0xf]
        %v658 = vld [vmem:[%s230 + $0x67c] sm:$0xf]
        %v659 = vld [vmem:[%s230 + $0x680] sm:$0xf]
        %v660 = vld [vmem:[%s230 + $0x684] sm:$0xf]
        %v661 = vld [vmem:[%s230 + $0x688] sm:$0xf]
        %v662 = vld [vmem:[%s230 + $0x68c] sm:$0xf]
        %v663 = vld [vmem:[%s230 + $0x690] sm:$0xf]
        %v664 = vld [vmem:[%s230 + $0x694] sm:$0xf]
        %v665 = vld [vmem:[%s230 + $0x698] sm:$0xf]
        %v666 = vld [vmem:[%s230 + $0x69c] sm:$0xf]
        %v667 = vld [vmem:[%s230 + $0x6a0] sm:$0xf]
        %v668 = vld [vmem:[%s230 + $0x6a4] sm:$0xf]
        %v669 = vld [vmem:[%s230 + $0x6a8] sm:$0xf]
        %v670 = vld [vmem:[%s230 + $0x6ac] sm:$0xf]
        %v671 = vld [vmem:[%s230 + $0x6b0] sm:$0xf]
        %v672 = vld [vmem:[%s230 + $0x6b4] sm:$0xf]
        %v673 = vld [vmem:[%s230 + $0x6b8] sm:$0xf]
        %v674 = vld [vmem:[%s230 + $0x6bc] sm:$0xf]
        %v675 = vld [vmem:[%s230 + $0x6c0] sm:$0xf]
        %v676 = vld [vmem:[%s230 + $0x6c4] sm:$0xf]
        %v677 = vld [vmem:[%s230 + $0x6c8] sm:$0xf]
        %v678 = vld [vmem:[%s230 + $0x6cc] sm:$0xf]
        %v679 = vld [vmem:[%s230 + $0x6d0] sm:$0xf]
        %v680 = vld [vmem:[%s230 + $0x6d4] sm:$0xf]
        %v681 = vld [vmem:[%s230 + $0x6d8] sm:$0xf]
        %v682 = vld [vmem:[%s230 + $0x6dc] sm:$0xf]
        %v683 = vld [vmem:[%s230 + $0x6e0] sm:$0xf]
        %v684 = vld [vmem:[%s230 + $0x6e4] sm:$0xf]
        %v685 = vld [vmem:[%s230 + $0x6e8] sm:$0xf]
        %v686 = vld [vmem:[%s230 + $0x6ec] sm:$0xf]
        %v687 = vld [vmem:[%s230 + $0x6f0] sm:$0xf]
        %v688 = vld [vmem:[%s230 + $0x6f4] sm:$0xf]
        %v689 = vld [vmem:[%s230 + $0x6f8] sm:$0xf]
        %v690 = vld [vmem:[%s230 + $0x6fc] sm:$0xf]
        %v691 = vld [vmem:[%s230 + $0x700] sm:$0xf]
        %v692 = vld [vmem:[%s230 + $0x704] sm:$0xf]
        %v693 = vld [vmem:[%s230 + $0x708] sm:$0xf]
        %v694 = vld [vmem:[%s230 + $0x70c] sm:$0xf]
        %v695 = vld [vmem:[%s230 + $0x710] sm:$0xf]
        %v696 = vld [vmem:[%s230 + $0x714] sm:$0xf]
        %v697 = vld [vmem:[%s230 + $0x718] sm:$0xf]
        %v698 = vld [vmem:[%s230 + $0x71c] sm:$0xf]
        %v699 = vld [vmem:[%s230 + $0x720] sm:$0xf]
        %v700 = vld [vmem:[%s230 + $0x724] sm:$0xf]
        %v701 = vld [vmem:[%s230 + $0x728] sm:$0xf]
        %v702 = vld [vmem:[%s230 + $0x72c] sm:$0xf]
        %v703 = vld [vmem:[%s230 + $0x730] sm:$0xf]
        %v704 = vld [vmem:[%s230 + $0x734] sm:$0xf]
        %v705 = vld [vmem:[%s230 + $0x738] sm:$0xf]
        %v706 = vld [vmem:[%s230 + $0x73c] sm:$0xf]
        %v707 = vld [vmem:[%s230 + $0x740] sm:$0xf]
        %v708 = vld [vmem:[%s230 + $0x744] sm:$0xf]
        %v709 = vld [vmem:[%s230 + $0x748] sm:$0xf]
        %v710 = vld [vmem:[%s230 + $0x74c] sm:$0xf]
        %v711 = vld [vmem:[%s230 + $0x750] sm:$0xf]
        %v712 = vld [vmem:[%s230 + $0x754] sm:$0xf]
        %v713 = vld [vmem:[%s230 + $0x758] sm:$0xf]
        %v714 = vld [vmem:[%s230 + $0x75c] sm:$0xf]
        %v715 = vld [vmem:[%s230 + $0x760] sm:$0xf]
        %v716 = vld [vmem:[%s230 + $0x764] sm:$0xf]
        %v717 = vld [vmem:[%s230 + $0x768] sm:$0xf]
        %v718 = vld [vmem:[%s230 + $0x76c] sm:$0xf]
        %v719 = vld [vmem:[%s230 + $0x770] sm:$0xf]
        %v720 = vld [vmem:[%s230 + $0x774] sm:$0xf]
        %v721 = vld [vmem:[%s230 + $0x778] sm:$0xf]
        %v722 = vld [vmem:[%s230 + $0x77c] sm:$0xf]
        %v723 = vld [vmem:[%s230 + $0x780] sm:$0xf]
        %v724 = vld [vmem:[%s230 + $0x784] sm:$0xf]
        %v725 = vld [vmem:[%s230 + $0x788] sm:$0xf]
        %v726 = vld [vmem:[%s230 + $0x78c] sm:$0xf]
        %v727 = vld [vmem:[%s230 + $0x790] sm:$0xf]
        %v728 = vld [vmem:[%s230 + $0x794] sm:$0xf]
        %v729 = vld [vmem:[%s230 + $0x798] sm:$0xf]
        %v730 = vld [vmem:[%s230 + $0x79c] sm:$0xf]
        %v731 = vld [vmem:[%s230 + $0x7a0] sm:$0xf]
        %v732 = vld [vmem:[%s230 + $0x7a4] sm:$0xf]
        %v733 = vld [vmem:[%s230 + $0x7a8] sm:$0xf]
        %v734 = vld [vmem:[%s230 + $0x7ac] sm:$0xf]
        %v735 = vld [vmem:[%s230 + $0x7b0] sm:$0xf]
        %v736 = vld [vmem:[%s230 + $0x7b4] sm:$0xf]
        %v737 = vld [vmem:[%s230 + $0x7b8] sm:$0xf]
        %v738 = vld [vmem:[%s230 + $0x7bc] sm:$0xf]
        %v739 = vld [vmem:[%s230 + $0x7c0] sm:$0xf]
        %v740 = vld [vmem:[%s230 + $0x7c4] sm:$0xf]
        %v741 = vld [vmem:[%s230 + $0x7c8] sm:$0xf]
        %v742 = vld [vmem:[%s230 + $0x7cc] sm:$0xf]
        %v743 = vld [vmem:[%s230 + $0x7d0] sm:$0xf]
        %v744 = vld [vmem:[%s230 + $0x7d4] sm:$0xf]
        %v745 = vld [vmem:[%s230 + $0x7d8] sm:$0xf]
        %v746 = vld [vmem:[%s230 + $0x7dc] sm:$0xf]
        %v747 = vld [vmem:[%s230 + $0x7e0] sm:$0xf]
        %v748 = vld [vmem:[%s230 + $0x7e4] sm:$0xf]
        %v749 = vld [vmem:[%s230 + $0x7e8] sm:$0xf]
        %v750 = vld [vmem:[%s230 + $0x7ec] sm:$0xf]
        %v751 = vld [vmem:[%s230 + $0x7f0] sm:$0xf]
        %v752 = vld [vmem:[%s230 + $0x7f4] sm:$0xf]
        %v753 = vld [vmem:[%s230 + $0x7f8] sm:$0xf]
        %v754 = vld [vmem:[%s230 + $0x7fc] sm:$0xf]
        %v759 = vcombine.high %v239, %v239
        %v761 = vunpack.c.l.s4 1966171168
        %v762 = vunpack.c.0.s8 %v761
        %v763 = vlaneseq
        %v764 = vshrl.u32 %v763, 7
        %v765 = vsub.s32 %v762, %v764
        %v766 = vrot.slane %v239, %v765
        %v768 = vunpack.c.l.s4 1966171168
        %v769 = vunpack.c.0.s8 %v768
        %v770 = vlaneseq
        %v771 = vshrl.u32 %v770, 7
        %v772 = vsub.s32 %v769, %v771
        %v773 = vrot.slane %v759, %v772
        %v774 = vcombine.high %v766, %v766
        %v775 = vcombine.high %v773, %v773
        %v777 = vunpack.c.l.s4 1966171168
        %v778 = vunpack.c.0.s8 %v777
        %v779 = vlaneseq
        %v780 = vshrl.u32 %v779, 7
        %v781 = vsub.s32 %v778, %v780
        %v782 = vrot.slane %v766, %v781
        %v784 = vunpack.c.l.s4 1966171168
        %v785 = vunpack.c.0.s8 %v784
        %v786 = vlaneseq
        %v787 = vshrl.u32 %v786, 7
        %v788 = vsub.s32 %v785, %v787
        %v789 = vrot.slane %v773, %v788
        %v791 = vunpack.c.l.s4 1966171168
        %v792 = vunpack.c.0.s8 %v791
        %v793 = vlaneseq
        %v794 = vshrl.u32 %v793, 7
        %v795 = vsub.s32 %v792, %v794
        %v796 = vrot.slane %v774, %v795
        %v798 = vunpack.c.l.s4 1966171168
        %v799 = vunpack.c.0.s8 %v798
        %v800 = vlaneseq
        %v801 = vshrl.u32 %v800, 7
        %v802 = vsub.s32 %v799, %v801
        %v803 = vrot.slane %v775, %v802
        %v804 = vcombine.high %v782, %v782
        %v805 = vcombine.high %v789, %v789
        %v806 = vcombine.high %v796, %v796
        %v807 = vcombine.high %v803, %v803
        %v808 = vcombine.high %v240, %v240
        %v810 = vunpack.c.l.s4 1966171168
        %v811 = vunpack.c.0.s8 %v810
        %v812 = vlaneseq
        %v813 = vshrl.u32 %v812, 7
        %v814 = vsub.s32 %v811, %v813
        %v815 = vrot.slane %v240, %v814
        %v817 = vunpack.c.l.s4 1966171168
        %v818 = vunpack.c.0.s8 %v817
        %v819 = vlaneseq
        %v820 = vshrl.u32 %v819, 7
        %v821 = vsub.s32 %v818, %v820
        %v822 = vrot.slane %v808, %v821
        %v823 = vcombine.high %v815, %v815
        %v824 = vcombine.high %v822, %v822
        %v826 = vunpack.c.l.s4 1966171168
        %v827 = vunpack.c.0.s8 %v826
        %v828 = vlaneseq
        %v829 = vshrl.u32 %v828, 7
        %v830 = vsub.s32 %v827, %v829
        %v831 = vrot.slane %v815, %v830
        %v833 = vunpack.c.l.s4 1966171168
        %v834 = vunpack.c.0.s8 %v833
        %v835 = vlaneseq
        %v836 = vshrl.u32 %v835, 7
        %v837 = vsub.s32 %v834, %v836
        %v838 = vrot.slane %v822, %v837
        %v840 = vunpack.c.l.s4 1966171168
        %v841 = vunpack.c.0.s8 %v840
        %v842 = vlaneseq
        %v843 = vshrl.u32 %v842, 7
        %v844 = vsub.s32 %v841, %v843
        %v845 = vrot.slane %v823, %v844
        %v847 = vunpack.c.l.s4 1966171168
        %v848 = vunpack.c.0.s8 %v847
        %v849 = vlaneseq
        %v850 = vshrl.u32 %v849, 7
        %v851 = vsub.s32 %v848, %v850
        %v852 = vrot.slane %v824, %v851
        %v853 = vcombine.high %v831, %v831
        %v854 = vcombine.high %v838, %v838
        %v855 = vcombine.high %v845, %v845
        %v856 = vcombine.high %v852, %v852
        %v857 = vcombine.high %v241, %v241
        %v859 = vunpack.c.l.s4 1966171168
        %v860 = vunpack.c.0.s8 %v859
        %v861 = vlaneseq
        %v862 = vshrl.u32 %v861, 7
        %v863 = vsub.s32 %v860, %v862
        %v864 = vrot.slane %v241, %v863
        %v866 = vunpack.c.l.s4 1966171168
        %v867 = vunpack.c.0.s8 %v866
        %v868 = vlaneseq
        %v869 = vshrl.u32 %v868, 7
        %v870 = vsub.s32 %v867, %v869
        %v871 = vrot.slane %v857, %v870
        %v872 = vcombine.high %v864, %v864
        %v873 = vcombine.high %v871, %v871
        %v875 = vunpack.c.l.s4 1966171168
        %v876 = vunpack.c.0.s8 %v875
        %v877 = vlaneseq
        %v878 = vshrl.u32 %v877, 7
        %v879 = vsub.s32 %v876, %v878
        %v880 = vrot.slane %v864, %v879
        %v882 = vunpack.c.l.s4 1966171168
        %v883 = vunpack.c.0.s8 %v882
        %v884 = vlaneseq
        %v885 = vshrl.u32 %v884, 7
        %v886 = vsub.s32 %v883, %v885
        %v887 = vrot.slane %v871, %v886
        %v889 = vunpack.c.l.s4 1966171168
        %v890 = vunpack.c.0.s8 %v889
        %v891 = vlaneseq
        %v892 = vshrl.u32 %v891, 7
        %v893 = vsub.s32 %v890, %v892
        %v894 = vrot.slane %v872, %v893
        %v896 = vunpack.c.l.s4 1966171168
        %v897 = vunpack.c.0.s8 %v896
        %v898 = vlaneseq
        %v899 = vshrl.u32 %v898, 7
        %v900 = vsub.s32 %v897, %v899
        %v901 = vrot.slane %v873, %v900
        %v902 = vcombine.high %v880, %v880
        %v903 = vcombine.high %v887, %v887
        %v904 = vcombine.high %v894, %v894
        %v905 = vcombine.high %v901, %v901
        %v906 = vcombine.high %v242, %v242
        %v908 = vunpack.c.l.s4 1966171168
        %v909 = vunpack.c.0.s8 %v908
        %v910 = vlaneseq
        %v911 = vshrl.u32 %v910, 7
        %v912 = vsub.s32 %v909, %v911
        %v913 = vrot.slane %v242, %v912
        %v915 = vunpack.c.l.s4 1966171168
        %v916 = vunpack.c.0.s8 %v915
        %v917 = vlaneseq
        %v918 = vshrl.u32 %v917, 7
        %v919 = vsub.s32 %v916, %v918
        %v920 = vrot.slane %v906, %v919
        %v921 = vcombine.high %v913, %v913
        %v922 = vcombine.high %v920, %v920
        %v924 = vunpack.c.l.s4 1966171168
        %v925 = vunpack.c.0.s8 %v924
        %v926 = vlaneseq
        %v927 = vshrl.u32 %v926, 7
        %v928 = vsub.s32 %v925, %v927
        %v929 = vrot.slane %v913, %v928
        %v931 = vunpack.c.l.s4 1966171168
        %v932 = vunpack.c.0.s8 %v931
        %v933 = vlaneseq
        %v934 = vshrl.u32 %v933, 7
        %v935 = vsub.s32 %v932, %v934
        %v936 = vrot.slane %v920, %v935
        %v938 = vunpack.c.l.s4 1966171168
        %v939 = vunpack.c.0.s8 %v938
        %v940 = vlaneseq
        %v941 = vshrl.u32 %v940, 7
        %v942 = vsub.s32 %v939, %v941
        %v943 = vrot.slane %v921, %v942
        %v945 = vunpack.c.l.s4 1966171168
        %v946 = vunpack.c.0.s8 %v945
        %v947 = vlaneseq
        %v948 = vshrl.u32 %v947, 7
        %v949 = vsub.s32 %v946, %v948
        %v950 = vrot.slane %v922, %v949
        %v951 = vcombine.high %v929, %v929
        %v952 = vcombine.high %v936, %v936
        %v953 = vcombine.high %v943, %v943
        %v954 = vcombine.high %v950, %v950
        %v1499 = vunpack.c.l.b16 %v243
        %v1500 = vunpack.c.l.b16 %v244
        %v1501 = vunpack.c.l.b16 %v245
        %v1502 = vunpack.c.l.b16 %v246
        %v1503 = vunpack.c.l.b16 %v247
        %v1504 = vunpack.c.l.b16 %v248
        %v1505 = vunpack.c.l.b16 %v249
        %v1506 = vunpack.c.l.b16 %v250
        %v1507 = vunpack.c.l.b16 %v251
        %v1508 = vunpack.c.l.b16 %v252
        %v1509 = vunpack.c.l.b16 %v253
        %v1510 = vunpack.c.l.b16 %v254
        %v1511 = vunpack.c.l.b16 %v255
        %v1512 = vunpack.c.l.b16 %v256
        %v1513 = vunpack.c.l.b16 %v257
        %v1514 = vunpack.c.l.b16 %v258
        %v1515 = vunpack.c.l.b16 %v259
        %v1516 = vunpack.c.l.b16 %v260
        %v1517 = vunpack.c.l.b16 %v261
        %v1518 = vunpack.c.l.b16 %v262
        %v1519 = vunpack.c.l.b16 %v263
        %v1520 = vunpack.c.l.b16 %v264
        %v1521 = vunpack.c.l.b16 %v265
        %v1522 = vunpack.c.l.b16 %v266
        %v1523 = vunpack.c.l.b16 %v267
        %v1524 = vunpack.c.l.b16 %v268
        %v1525 = vunpack.c.l.b16 %v269
        %v1526 = vunpack.c.l.b16 %v270
        %v1527 = vunpack.c.l.b16 %v271
        %v1528 = vunpack.c.l.b16 %v272
        %v1529 = vunpack.c.l.b16 %v273
        %v1530 = vunpack.c.l.b16 %v274
        %v1531 = vunpack.c.l.b16 %v275
        %v1532 = vunpack.c.l.b16 %v276
        %v1533 = vunpack.c.l.b16 %v277
        %v1534 = vunpack.c.l.b16 %v278
        %v1535 = vunpack.c.l.b16 %v279
        %v1536 = vunpack.c.l.b16 %v280
        %v1537 = vunpack.c.l.b16 %v281
        %v1538 = vunpack.c.l.b16 %v282
        %v1539 = vunpack.c.l.b16 %v283
        %v1540 = vunpack.c.l.b16 %v284
        %v1541 = vunpack.c.l.b16 %v285
        %v1542 = vunpack.c.l.b16 %v286
        %v1543 = vunpack.c.l.b16 %v287
        %v1544 = vunpack.c.l.b16 %v288
        %v1545 = vunpack.c.l.b16 %v289
        %v1546 = vunpack.c.l.b16 %v290
        %v1547 = vunpack.c.l.b16 %v291
        %v1548 = vunpack.c.l.b16 %v292
        %v1549 = vunpack.c.l.b16 %v293
        %v1550 = vunpack.c.l.b16 %v294
        %v1551 = vunpack.c.l.b16 %v295
        %v1552 = vunpack.c.l.b16 %v296
        %v1553 = vunpack.c.l.b16 %v297
        %v1554 = vunpack.c.l.b16 %v298
        %v1555 = vunpack.c.l.b16 %v299
        %v1556 = vunpack.c.l.b16 %v300
        %v1557 = vunpack.c.l.b16 %v301
        %v1558 = vunpack.c.l.b16 %v302
        %v1559 = vunpack.c.l.b16 %v303
        %v1560 = vunpack.c.l.b16 %v304
        %v1561 = vunpack.c.l.b16 %v305
        %v1562 = vunpack.c.l.b16 %v306
        %v1563 = vunpack.c.l.b16 %v307
        %v1564 = vunpack.c.l.b16 %v308
        %v1565 = vunpack.c.l.b16 %v309
        %v1566 = vunpack.c.l.b16 %v310
        %v1567 = vunpack.c.l.b16 %v311
        %v1568 = vunpack.c.l.b16 %v312
        %v1569 = vunpack.c.l.b16 %v313
        %v1570 = vunpack.c.l.b16 %v314
        %v1571 = vunpack.c.l.b16 %v315
        %v1572 = vunpack.c.l.b16 %v316
        %v1573 = vunpack.c.l.b16 %v317
        %v1574 = vunpack.c.l.b16 %v318
        %v1575 = vunpack.c.l.b16 %v319
        %v1576 = vunpack.c.l.b16 %v320
        %v1577 = vunpack.c.l.b16 %v321
        %v1578 = vunpack.c.l.b16 %v322
        %v1579 = vunpack.c.l.b16 %v323
        %v1580 = vunpack.c.l.b16 %v324
        %v1581 = vunpack.c.l.b16 %v325
        %v1582 = vunpack.c.l.b16 %v326
        %v1583 = vunpack.c.l.b16 %v327
        %v1584 = vunpack.c.l.b16 %v328
        %v1585 = vunpack.c.l.b16 %v329
        %v1586 = vunpack.c.l.b16 %v330
        %v1587 = vunpack.c.l.b16 %v331
        %v1588 = vunpack.c.l.b16 %v332
        %v1589 = vunpack.c.l.b16 %v333
        %v1590 = vunpack.c.l.b16 %v334
        %v1591 = vunpack.c.l.b16 %v335
        %v1592 = vunpack.c.l.b16 %v336
        %v1593 = vunpack.c.l.b16 %v337
        %v1594 = vunpack.c.l.b16 %v338
        %v1595 = vunpack.c.l.b16 %v339
        %v1596 = vunpack.c.l.b16 %v340
        %v1597 = vunpack.c.l.b16 %v341
        %v1598 = vunpack.c.l.b16 %v342
        %v1599 = vunpack.c.l.b16 %v343
        %v1600 = vunpack.c.l.b16 %v344
        %v1601 = vunpack.c.l.b16 %v345
        %v1602 = vunpack.c.l.b16 %v346
        %v1603 = vunpack.c.l.b16 %v347
        %v1604 = vunpack.c.l.b16 %v348
        %v1605 = vunpack.c.l.b16 %v349
        %v1606 = vunpack.c.l.b16 %v350
        %v1607 = vunpack.c.l.b16 %v351
        %v1608 = vunpack.c.l.b16 %v352
        %v1609 = vunpack.c.l.b16 %v353
        %v1610 = vunpack.c.l.b16 %v354
        %v1611 = vunpack.c.l.b16 %v355
        %v1612 = vunpack.c.l.b16 %v356
        %v1613 = vunpack.c.l.b16 %v357
        %v1614 = vunpack.c.l.b16 %v358
        %v1615 = vunpack.c.l.b16 %v359
        %v1616 = vunpack.c.l.b16 %v360
        %v1617 = vunpack.c.l.b16 %v361
        %v1618 = vunpack.c.l.b16 %v362
        %v1619 = vunpack.c.l.b16 %v363
        %v1620 = vunpack.c.l.b16 %v364
        %v1621 = vunpack.c.l.b16 %v365
        %v1622 = vunpack.c.l.b16 %v366
        %v1623 = vunpack.c.l.b16 %v367
        %v1624 = vunpack.c.l.b16 %v368
        %v1625 = vunpack.c.l.b16 %v369
        %v1626 = vunpack.c.l.b16 %v370
        %v1627 = vunpack.c.l.b16 %v371
        %v1628 = vunpack.c.l.b16 %v372
        %v1629 = vunpack.c.l.b16 %v373
        %v1630 = vunpack.c.l.b16 %v374
        %v1631 = vunpack.c.l.b16 %v375
        %v1632 = vunpack.c.l.b16 %v376
        %v1633 = vunpack.c.l.b16 %v377
        %v1634 = vunpack.c.l.b16 %v378
        %v1635 = vunpack.c.l.b16 %v379
        %v1636 = vunpack.c.l.b16 %v380
        %v1637 = vunpack.c.l.b16 %v381
        %v1638 = vunpack.c.l.b16 %v382
        %v1639 = vunpack.c.l.b16 %v383
        %v1640 = vunpack.c.l.b16 %v384
        %v1641 = vunpack.c.l.b16 %v385
        %v1642 = vunpack.c.l.b16 %v386
        %v1643 = vunpack.c.l.b16 %v387
        %v1644 = vunpack.c.l.b16 %v388
        %v1645 = vunpack.c.l.b16 %v389
        %v1646 = vunpack.c.l.b16 %v390
        %v1647 = vunpack.c.l.b16 %v391
        %v1648 = vunpack.c.l.b16 %v392
        %v1649 = vunpack.c.l.b16 %v393
        %v1650 = vunpack.c.l.b16 %v394
        %v1651 = vunpack.c.l.b16 %v395
        %v1652 = vunpack.c.l.b16 %v396
        %v1653 = vunpack.c.l.b16 %v397
        %v1654 = vunpack.c.l.b16 %v398
        %v1655 = vunpack.c.l.b16 %v399
        %v1656 = vunpack.c.l.b16 %v400
        %v1657 = vunpack.c.l.b16 %v401
        %v1658 = vunpack.c.l.b16 %v402
        %v1659 = vunpack.c.l.b16 %v403
        %v1660 = vunpack.c.l.b16 %v404
        %v1661 = vunpack.c.l.b16 %v405
        %v1662 = vunpack.c.l.b16 %v406
        %v1663 = vunpack.c.l.b16 %v407
        %v1664 = vunpack.c.l.b16 %v408
        %v1665 = vunpack.c.l.b16 %v409
        %v1666 = vunpack.c.l.b16 %v410
        %v1667 = vunpack.c.l.b16 %v411
        %v1668 = vunpack.c.l.b16 %v412
        %v1669 = vunpack.c.l.b16 %v413
        %v1670 = vunpack.c.l.b16 %v414
        %v1671 = vunpack.c.l.b16 %v415
        %v1672 = vunpack.c.l.b16 %v416
        %v1673 = vunpack.c.l.b16 %v417
        %v1674 = vunpack.c.l.b16 %v418
        %v1675 = vunpack.c.l.b16 %v419
        %v1676 = vunpack.c.l.b16 %v420
        %v1677 = vunpack.c.l.b16 %v421
        %v1678 = vunpack.c.l.b16 %v422
        %v1679 = vunpack.c.l.b16 %v423
        %v1680 = vunpack.c.l.b16 %v424
        %v1681 = vunpack.c.l.b16 %v425
        %v1682 = vunpack.c.l.b16 %v426
        %v1683 = vunpack.c.l.b16 %v427
        %v1684 = vunpack.c.l.b16 %v428
        %v1685 = vunpack.c.l.b16 %v429
        %v1686 = vunpack.c.l.b16 %v430
        %v1687 = vunpack.c.l.b16 %v431
        %v1688 = vunpack.c.l.b16 %v432
        %v1689 = vunpack.c.l.b16 %v433
        %v1690 = vunpack.c.l.b16 %v434
        %v1691 = vunpack.c.l.b16 %v435
        %v1692 = vunpack.c.l.b16 %v436
        %v1693 = vunpack.c.l.b16 %v437
        %v1694 = vunpack.c.l.b16 %v438
        %v1695 = vunpack.c.l.b16 %v439
        %v1696 = vunpack.c.l.b16 %v440
        %v1697 = vunpack.c.l.b16 %v441
        %v1698 = vunpack.c.l.b16 %v442
        %v1699 = vunpack.c.l.b16 %v443
        %v1700 = vunpack.c.l.b16 %v444
        %v1701 = vunpack.c.l.b16 %v445
        %v1702 = vunpack.c.l.b16 %v446
        %v1703 = vunpack.c.l.b16 %v447
        %v1704 = vunpack.c.l.b16 %v448
        %v1705 = vunpack.c.l.b16 %v449
        %v1706 = vunpack.c.l.b16 %v450
        %v1707 = vunpack.c.l.b16 %v451
        %v1708 = vunpack.c.l.b16 %v452
        %v1709 = vunpack.c.l.b16 %v453
        %v1710 = vunpack.c.l.b16 %v454
        %v1711 = vunpack.c.l.b16 %v455
        %v1712 = vunpack.c.l.b16 %v456
        %v1713 = vunpack.c.l.b16 %v457
        %v1714 = vunpack.c.l.b16 %v458
        %v1715 = vunpack.c.l.b16 %v459
        %v1716 = vunpack.c.l.b16 %v460
        %v1717 = vunpack.c.l.b16 %v461
        %v1718 = vunpack.c.l.b16 %v462
        %v1719 = vunpack.c.l.b16 %v463
        %v1720 = vunpack.c.l.b16 %v464
        %v1721 = vunpack.c.l.b16 %v465
        %v1722 = vunpack.c.l.b16 %v466
        %v1723 = vunpack.c.l.b16 %v467
        %v1724 = vunpack.c.l.b16 %v468
        %v1725 = vunpack.c.l.b16 %v469
        %v1726 = vunpack.c.l.b16 %v470
        %v1727 = vunpack.c.l.b16 %v471
        %v1728 = vunpack.c.l.b16 %v472
        %v1729 = vunpack.c.l.b16 %v473
        %v1730 = vunpack.c.l.b16 %v474
        %v1731 = vunpack.c.l.b16 %v475
        %v1732 = vunpack.c.l.b16 %v476
        %v1733 = vunpack.c.l.b16 %v477
        %v1734 = vunpack.c.l.b16 %v478
        %v1735 = vunpack.c.l.b16 %v479
        %v1736 = vunpack.c.l.b16 %v480
        %v1737 = vunpack.c.l.b16 %v481
        %v1738 = vunpack.c.l.b16 %v482
        %v1739 = vunpack.c.l.b16 %v483
        %v1740 = vunpack.c.l.b16 %v484
        %v1741 = vunpack.c.l.b16 %v485
        %v1742 = vunpack.c.l.b16 %v486
        %v1743 = vunpack.c.l.b16 %v487
        %v1744 = vunpack.c.l.b16 %v488
        %v1745 = vunpack.c.l.b16 %v489
        %v1746 = vunpack.c.l.b16 %v490
        %v1747 = vunpack.c.l.b16 %v491
        %v1748 = vunpack.c.l.b16 %v492
        %v1749 = vunpack.c.l.b16 %v493
        %v1750 = vunpack.c.l.b16 %v494
        %v1751 = vunpack.c.l.b16 %v495
        %v1752 = vunpack.c.l.b16 %v496
        %v1753 = vunpack.c.l.b16 %v497
        %v1754 = vunpack.c.l.b16 %v498
        %v1755 = vunpack.c.l.b16 %v499
        %v1756 = vunpack.c.l.b16 %v500
        %v1757 = vunpack.c.l.b16 %v501
        %v1758 = vunpack.c.l.b16 %v502
        %v1759 = vunpack.c.l.b16 %v503
        %v1760 = vunpack.c.l.b16 %v504
        %v1761 = vunpack.c.l.b16 %v505
        %v1762 = vunpack.c.l.b16 %v506
        %v1763 = vunpack.c.l.b16 %v507
        %v1764 = vunpack.c.l.b16 %v508
        %v1765 = vunpack.c.l.b16 %v509
        %v1766 = vunpack.c.l.b16 %v510
        %v1767 = vunpack.c.l.b16 %v511
        %v1768 = vunpack.c.l.b16 %v512
        %v1769 = vunpack.c.l.b16 %v513
        %v1770 = vunpack.c.l.b16 %v514
        %v1771 = vunpack.c.l.b16 %v515
        %v1772 = vunpack.c.l.b16 %v516
        %v1773 = vunpack.c.l.b16 %v517
        %v1774 = vunpack.c.l.b16 %v518
        %v1775 = vunpack.c.l.b16 %v519
        %v1776 = vunpack.c.l.b16 %v520
        %v1777 = vunpack.c.l.b16 %v521
        %v1778 = vunpack.c.l.b16 %v522
        %v1779 = vunpack.c.l.b16 %v523
        %v1780 = vunpack.c.l.b16 %v524
        %v1781 = vunpack.c.l.b16 %v525
        %v1782 = vunpack.c.l.b16 %v526
        %v1783 = vunpack.c.l.b16 %v527
        %v1784 = vunpack.c.l.b16 %v528
        %v1785 = vunpack.c.l.b16 %v529
        %v1786 = vunpack.c.l.b16 %v530
        %v1787 = vunpack.c.l.b16 %v531
        %v1788 = vunpack.c.l.b16 %v532
        %v1789 = vunpack.c.l.b16 %v533
        %v1790 = vunpack.c.l.b16 %v534
        %v1791 = vunpack.c.l.b16 %v535
        %v1792 = vunpack.c.l.b16 %v536
        %v1793 = vunpack.c.l.b16 %v537
        %v1794 = vunpack.c.l.b16 %v538
        %v1795 = vunpack.c.l.b16 %v539
        %v1796 = vunpack.c.l.b16 %v540
        %v1797 = vunpack.c.l.b16 %v541
        %v1798 = vunpack.c.l.b16 %v542
        %v1799 = vunpack.c.l.b16 %v543
        %v1800 = vunpack.c.l.b16 %v544
        %v1801 = vunpack.c.l.b16 %v545
        %v1802 = vunpack.c.l.b16 %v546
        %v1803 = vunpack.c.l.b16 %v547
        %v1804 = vunpack.c.l.b16 %v548
        %v1805 = vunpack.c.l.b16 %v549
        %v1806 = vunpack.c.l.b16 %v550
        %v1807 = vunpack.c.l.b16 %v551
        %v1808 = vunpack.c.l.b16 %v552
        %v1809 = vunpack.c.l.b16 %v553
        %v1810 = vunpack.c.l.b16 %v554
        %v1811 = vunpack.c.l.b16 %v555
        %v1812 = vunpack.c.l.b16 %v556
        %v1813 = vunpack.c.l.b16 %v557
        %v1814 = vunpack.c.l.b16 %v558
        %v1815 = vunpack.c.l.b16 %v559
        %v1816 = vunpack.c.l.b16 %v560
        %v1817 = vunpack.c.l.b16 %v561
        %v1818 = vunpack.c.l.b16 %v562
        %v1819 = vunpack.c.l.b16 %v563
        %v1820 = vunpack.c.l.b16 %v564
        %v1821 = vunpack.c.l.b16 %v565
        %v1822 = vunpack.c.l.b16 %v566
        %v1823 = vunpack.c.l.b16 %v567
        %v1824 = vunpack.c.l.b16 %v568
        %v1825 = vunpack.c.l.b16 %v569
        %v1826 = vunpack.c.l.b16 %v570
        %v1827 = vunpack.c.l.b16 %v571
        %v1828 = vunpack.c.l.b16 %v572
        %v1829 = vunpack.c.l.b16 %v573
        %v1830 = vunpack.c.l.b16 %v574
        %v1831 = vunpack.c.l.b16 %v575
        %v1832 = vunpack.c.l.b16 %v576
        %v1833 = vunpack.c.l.b16 %v577
        %v1834 = vunpack.c.l.b16 %v578
        %v1835 = vunpack.c.l.b16 %v579
        %v1836 = vunpack.c.l.b16 %v580
        %v1837 = vunpack.c.l.b16 %v581
        %v1838 = vunpack.c.l.b16 %v582
        %v1839 = vunpack.c.l.b16 %v583
        %v1840 = vunpack.c.l.b16 %v584
        %v1841 = vunpack.c.l.b16 %v585
        %v1842 = vunpack.c.l.b16 %v586
        %v1843 = vunpack.c.l.b16 %v587
        %v1844 = vunpack.c.l.b16 %v588
        %v1845 = vunpack.c.l.b16 %v589
        %v1846 = vunpack.c.l.b16 %v590
        %v1847 = vunpack.c.l.b16 %v591
        %v1848 = vunpack.c.l.b16 %v592
        %v1849 = vunpack.c.l.b16 %v593
        %v1850 = vunpack.c.l.b16 %v594
        %v1851 = vunpack.c.l.b16 %v595
        %v1852 = vunpack.c.l.b16 %v596
        %v1853 = vunpack.c.l.b16 %v597
        %v1854 = vunpack.c.l.b16 %v598
        %v1855 = vunpack.c.l.b16 %v599
        %v1856 = vunpack.c.l.b16 %v600
        %v1857 = vunpack.c.l.b16 %v601
        %v1858 = vunpack.c.l.b16 %v602
        %v1859 = vunpack.c.l.b16 %v603
        %v1860 = vunpack.c.l.b16 %v604
        %v1861 = vunpack.c.l.b16 %v605
        %v1862 = vunpack.c.l.b16 %v606
        %v1863 = vunpack.c.l.b16 %v607
        %v1864 = vunpack.c.l.b16 %v608
        %v1865 = vunpack.c.l.b16 %v609
        %v1866 = vunpack.c.l.b16 %v610
        %v1867 = vunpack.c.l.b16 %v611
        %v1868 = vunpack.c.l.b16 %v612
        %v1869 = vunpack.c.l.b16 %v613
        %v1870 = vunpack.c.l.b16 %v614
        %v1871 = vunpack.c.l.b16 %v615
        %v1872 = vunpack.c.l.b16 %v616
        %v1873 = vunpack.c.l.b16 %v617
        %v1874 = vunpack.c.l.b16 %v618
        %v1875 = vunpack.c.l.b16 %v619
        %v1876 = vunpack.c.l.b16 %v620
        %v1877 = vunpack.c.l.b16 %v621
        %v1878 = vunpack.c.l.b16 %v622
        %v1879 = vunpack.c.l.b16 %v623
        %v1880 = vunpack.c.l.b16 %v624
        %v1881 = vunpack.c.l.b16 %v625
        %v1882 = vunpack.c.l.b16 %v626
        %v1883 = vunpack.c.l.b16 %v627
        %v1884 = vunpack.c.l.b16 %v628
        %v1885 = vunpack.c.l.b16 %v629
        %v1886 = vunpack.c.l.b16 %v630
        %v1887 = vunpack.c.l.b16 %v631
        %v1888 = vunpack.c.l.b16 %v632
        %v1889 = vunpack.c.l.b16 %v633
        %v1890 = vunpack.c.l.b16 %v634
        %v1891 = vunpack.c.l.b16 %v635
        %v1892 = vunpack.c.l.b16 %v636
        %v1893 = vunpack.c.l.b16 %v637
        %v1894 = vunpack.c.l.b16 %v638
        %v1895 = vunpack.c.l.b16 %v639
        %v1896 = vunpack.c.l.b16 %v640
        %v1897 = vunpack.c.l.b16 %v641
        %v1898 = vunpack.c.l.b16 %v642
        %v1899 = vunpack.c.l.b16 %v643
        %v1900 = vunpack.c.l.b16 %v644
        %v1901 = vunpack.c.l.b16 %v645
        %v1902 = vunpack.c.l.b16 %v646
        %v1903 = vunpack.c.l.b16 %v647
        %v1904 = vunpack.c.l.b16 %v648
        %v1905 = vunpack.c.l.b16 %v649
        %v1906 = vunpack.c.l.b16 %v650
        %v1907 = vunpack.c.l.b16 %v651
        %v1908 = vunpack.c.l.b16 %v652
        %v1909 = vunpack.c.l.b16 %v653
        %v1910 = vunpack.c.l.b16 %v654
        %v1911 = vunpack.c.l.b16 %v655
        %v1912 = vunpack.c.l.b16 %v656
        %v1913 = vunpack.c.l.b16 %v657
        %v1914 = vunpack.c.l.b16 %v658
        %v1915 = vunpack.c.l.b16 %v659
        %v1916 = vunpack.c.l.b16 %v660
        %v1917 = vunpack.c.l.b16 %v661
        %v1918 = vunpack.c.l.b16 %v662
        %v1919 = vunpack.c.l.b16 %v663
        %v1920 = vunpack.c.l.b16 %v664
        %v1921 = vunpack.c.l.b16 %v665
        %v1922 = vunpack.c.l.b16 %v666
        %v1923 = vunpack.c.l.b16 %v667
        %v1924 = vunpack.c.l.b16 %v668
        %v1925 = vunpack.c.l.b16 %v669
        %v1926 = vunpack.c.l.b16 %v670
        %v1927 = vunpack.c.l.b16 %v671
        %v1928 = vunpack.c.l.b16 %v672
        %v1929 = vunpack.c.l.b16 %v673
        %v1930 = vunpack.c.l.b16 %v674
        %v1931 = vunpack.c.l.b16 %v675
        %v1932 = vunpack.c.l.b16 %v676
        %v1933 = vunpack.c.l.b16 %v677
        %v1934 = vunpack.c.l.b16 %v678
        %v1935 = vunpack.c.l.b16 %v679
        %v1936 = vunpack.c.l.b16 %v680
        %v1937 = vunpack.c.l.b16 %v681
        %v1938 = vunpack.c.l.b16 %v682
        %v1939 = vunpack.c.l.b16 %v683
        %v1940 = vunpack.c.l.b16 %v684
        %v1941 = vunpack.c.l.b16 %v685
        %v1942 = vunpack.c.l.b16 %v686
        %v1943 = vunpack.c.l.b16 %v687
        %v1944 = vunpack.c.l.b16 %v688
        %v1945 = vunpack.c.l.b16 %v689
        %v1946 = vunpack.c.l.b16 %v690
        %v1947 = vunpack.c.l.b16 %v691
        %v1948 = vunpack.c.l.b16 %v692
        %v1949 = vunpack.c.l.b16 %v693
        %v1950 = vunpack.c.l.b16 %v694
        %v1951 = vunpack.c.l.b16 %v695
        %v1952 = vunpack.c.l.b16 %v696
        %v1953 = vunpack.c.l.b16 %v697
        %v1954 = vunpack.c.l.b16 %v698
        %v1955 = vunpack.c.l.b16 %v699
        %v1956 = vunpack.c.l.b16 %v700
        %v1957 = vunpack.c.l.b16 %v701
        %v1958 = vunpack.c.l.b16 %v702
        %v1959 = vunpack.c.l.b16 %v703
        %v1960 = vunpack.c.l.b16 %v704
        %v1961 = vunpack.c.l.b16 %v705
        %v1962 = vunpack.c.l.b16 %v706
        %v1963 = vunpack.c.l.b16 %v707
        %v1964 = vunpack.c.l.b16 %v708
        %v1965 = vunpack.c.l.b16 %v709
        %v1966 = vunpack.c.l.b16 %v710
        %v1967 = vunpack.c.l.b16 %v711
        %v1968 = vunpack.c.l.b16 %v712
        %v1969 = vunpack.c.l.b16 %v713
        %v1970 = vunpack.c.l.b16 %v714
        %v1971 = vunpack.c.l.b16 %v715
        %v1972 = vunpack.c.l.b16 %v716
        %v1973 = vunpack.c.l.b16 %v717
        %v1974 = vunpack.c.l.b16 %v718
        %v1975 = vunpack.c.l.b16 %v719
        %v1976 = vunpack.c.l.b16 %v720
        %v1977 = vunpack.c.l.b16 %v721
        %v1978 = vunpack.c.l.b16 %v722
        %v1979 = vunpack.c.l.b16 %v723
        %v1980 = vunpack.c.l.b16 %v724
        %v1981 = vunpack.c.l.b16 %v725
        %v1982 = vunpack.c.l.b16 %v726
        %v1983 = vunpack.c.l.b16 %v727
        %v1984 = vunpack.c.l.b16 %v728
        %v1985 = vunpack.c.l.b16 %v729
        %v1986 = vunpack.c.l.b16 %v730
        %v1987 = vunpack.c.l.b16 %v731
        %v1988 = vunpack.c.l.b16 %v732
        %v1989 = vunpack.c.l.b16 %v733
        %v1990 = vunpack.c.l.b16 %v734
        %v1991 = vunpack.c.l.b16 %v735
        %v1992 = vunpack.c.l.b16 %v736
        %v1993 = vunpack.c.l.b16 %v737
        %v1994 = vunpack.c.l.b16 %v738
        %v1995 = vunpack.c.l.b16 %v739
        %v1996 = vunpack.c.l.b16 %v740
        %v1997 = vunpack.c.l.b16 %v741
        %v1998 = vunpack.c.l.b16 %v742
        %v1999 = vunpack.c.l.b16 %v743
        %v2000 = vunpack.c.l.b16 %v744
        %v2001 = vunpack.c.l.b16 %v745
        %v2002 = vunpack.c.l.b16 %v746
        %v2003 = vunpack.c.l.b16 %v747
        %v2004 = vunpack.c.l.b16 %v748
        %v2005 = vunpack.c.l.b16 %v749
        %v2006 = vunpack.c.l.b16 %v750
        %v2007 = vunpack.c.l.b16 %v751
        %v2008 = vunpack.c.l.b16 %v752
        %v2009 = vunpack.c.l.b16 %v753
        %v2010 = vunpack.c.l.b16 %v754
        %v2011 = vpack.c.b16 %v1500, %v1499
        %v2012 = vpack.c.b16 %v1502, %v1501
        %v2013 = vpack.c.b16 %v1504, %v1503
        %v2014 = vpack.c.b16 %v1506, %v1505
        %v2015 = vpack.c.b16 %v1508, %v1507
        %v2016 = vpack.c.b16 %v1510, %v1509
        %v2017 = vpack.c.b16 %v1512, %v1511
        %v2018 = vpack.c.b16 %v1514, %v1513
        %v2019 = vpack.c.b16 %v1516, %v1515
        %v2020 = vpack.c.b16 %v1518, %v1517
        %v2021 = vpack.c.b16 %v1520, %v1519
        %v2022 = vpack.c.b16 %v1522, %v1521
        %v2023 = vpack.c.b16 %v1524, %v1523
        %v2024 = vpack.c.b16 %v1526, %v1525
        %v2025 = vpack.c.b16 %v1528, %v1527
        %v2026 = vpack.c.b16 %v1530, %v1529
        %v2027 = vpack.c.b16 %v1532, %v1531
        %v2028 = vpack.c.b16 %v1534, %v1533
        %v2029 = vpack.c.b16 %v1536, %v1535
        %v2030 = vpack.c.b16 %v1538, %v1537
        %v2031 = vpack.c.b16 %v1540, %v1539
        %v2032 = vpack.c.b16 %v1542, %v1541
        %v2033 = vpack.c.b16 %v1544, %v1543
        %v2034 = vpack.c.b16 %v1546, %v1545
        %v2035 = vpack.c.b16 %v1548, %v1547
        %v2036 = vpack.c.b16 %v1550, %v1549
        %v2037 = vpack.c.b16 %v1552, %v1551
        %v2038 = vpack.c.b16 %v1554, %v1553
        %v2039 = vpack.c.b16 %v1556, %v1555
        %v2040 = vpack.c.b16 %v1558, %v1557
        %v2041 = vpack.c.b16 %v1560, %v1559
        %v2042 = vpack.c.b16 %v1562, %v1561
        %v2043 = vpack.c.b16 %v1564, %v1563
        %v2044 = vpack.c.b16 %v1566, %v1565
        %v2045 = vpack.c.b16 %v1568, %v1567
        %v2046 = vpack.c.b16 %v1570, %v1569
        %v2047 = vpack.c.b16 %v1572, %v1571
        %v2048 = vpack.c.b16 %v1574, %v1573
        %v2049 = vpack.c.b16 %v1576, %v1575
        %v2050 = vpack.c.b16 %v1578, %v1577
        %v2051 = vpack.c.b16 %v1580, %v1579
        %v2052 = vpack.c.b16 %v1582, %v1581
        %v2053 = vpack.c.b16 %v1584, %v1583
        %v2054 = vpack.c.b16 %v1586, %v1585
        %v2055 = vpack.c.b16 %v1588, %v1587
        %v2056 = vpack.c.b16 %v1590, %v1589
        %v2057 = vpack.c.b16 %v1592, %v1591
        %v2058 = vpack.c.b16 %v1594, %v1593
        %v2059 = vpack.c.b16 %v1596, %v1595
        %v2060 = vpack.c.b16 %v1598, %v1597
        %v2061 = vpack.c.b16 %v1600, %v1599
        %v2062 = vpack.c.b16 %v1602, %v1601
        %v2063 = vpack.c.b16 %v1604, %v1603
        %v2064 = vpack.c.b16 %v1606, %v1605
        %v2065 = vpack.c.b16 %v1608, %v1607
        %v2066 = vpack.c.b16 %v1610, %v1609
        %v2067 = vpack.c.b16 %v1612, %v1611
        %v2068 = vpack.c.b16 %v1614, %v1613
        %v2069 = vpack.c.b16 %v1616, %v1615
        %v2070 = vpack.c.b16 %v1618, %v1617
        %v2071 = vpack.c.b16 %v1620, %v1619
        %v2072 = vpack.c.b16 %v1622, %v1621
        %v2073 = vpack.c.b16 %v1624, %v1623
        %v2074 = vpack.c.b16 %v1626, %v1625
        %v2075 = vpack.c.b16 %v1628, %v1627
        %v2076 = vpack.c.b16 %v1630, %v1629
        %v2077 = vpack.c.b16 %v1632, %v1631
        %v2078 = vpack.c.b16 %v1634, %v1633
        %v2079 = vpack.c.b16 %v1636, %v1635
        %v2080 = vpack.c.b16 %v1638, %v1637
        %v2081 = vpack.c.b16 %v1640, %v1639
        %v2082 = vpack.c.b16 %v1642, %v1641
        %v2083 = vpack.c.b16 %v1644, %v1643
        %v2084 = vpack.c.b16 %v1646, %v1645
        %v2085 = vpack.c.b16 %v1648, %v1647
        %v2086 = vpack.c.b16 %v1650, %v1649
        %v2087 = vpack.c.b16 %v1652, %v1651
        %v2088 = vpack.c.b16 %v1654, %v1653
        %v2089 = vpack.c.b16 %v1656, %v1655
        %v2090 = vpack.c.b16 %v1658, %v1657
        %v2091 = vpack.c.b16 %v1660, %v1659
        %v2092 = vpack.c.b16 %v1662, %v1661
        %v2093 = vpack.c.b16 %v1664, %v1663
        %v2094 = vpack.c.b16 %v1666, %v1665
        %v2095 = vpack.c.b16 %v1668, %v1667
        %v2096 = vpack.c.b16 %v1670, %v1669
        %v2097 = vpack.c.b16 %v1672, %v1671
        %v2098 = vpack.c.b16 %v1674, %v1673
        %v2099 = vpack.c.b16 %v1676, %v1675
        %v2100 = vpack.c.b16 %v1678, %v1677
        %v2101 = vpack.c.b16 %v1680, %v1679
        %v2102 = vpack.c.b16 %v1682, %v1681
        %v2103 = vpack.c.b16 %v1684, %v1683
        %v2104 = vpack.c.b16 %v1686, %v1685
        %v2105 = vpack.c.b16 %v1688, %v1687
        %v2106 = vpack.c.b16 %v1690, %v1689
        %v2107 = vpack.c.b16 %v1692, %v1691
        %v2108 = vpack.c.b16 %v1694, %v1693
        %v2109 = vpack.c.b16 %v1696, %v1695
        %v2110 = vpack.c.b16 %v1698, %v1697
        %v2111 = vpack.c.b16 %v1700, %v1699
        %v2112 = vpack.c.b16 %v1702, %v1701
        %v2113 = vpack.c.b16 %v1704, %v1703
        %v2114 = vpack.c.b16 %v1706, %v1705
        %v2115 = vpack.c.b16 %v1708, %v1707
        %v2116 = vpack.c.b16 %v1710, %v1709
        %v2117 = vpack.c.b16 %v1712, %v1711
        %v2118 = vpack.c.b16 %v1714, %v1713
        %v2119 = vpack.c.b16 %v1716, %v1715
        %v2120 = vpack.c.b16 %v1718, %v1717
        %v2121 = vpack.c.b16 %v1720, %v1719
        %v2122 = vpack.c.b16 %v1722, %v1721
        %v2123 = vpack.c.b16 %v1724, %v1723
        %v2124 = vpack.c.b16 %v1726, %v1725
        %v2125 = vpack.c.b16 %v1728, %v1727
        %v2126 = vpack.c.b16 %v1730, %v1729
        %v2127 = vpack.c.b16 %v1732, %v1731
        %v2128 = vpack.c.b16 %v1734, %v1733
        %v2129 = vpack.c.b16 %v1736, %v1735
        %v2130 = vpack.c.b16 %v1738, %v1737
        %v2131 = vpack.c.b16 %v1740, %v1739
        %v2132 = vpack.c.b16 %v1742, %v1741
        %v2133 = vpack.c.b16 %v1744, %v1743
        %v2134 = vpack.c.b16 %v1746, %v1745
        %v2135 = vpack.c.b16 %v1748, %v1747
        %v2136 = vpack.c.b16 %v1750, %v1749
        %v2137 = vpack.c.b16 %v1752, %v1751
        %v2138 = vpack.c.b16 %v1754, %v1753
        %v2139 = vpack.c.b16 %v1756, %v1755
        %v2140 = vpack.c.b16 %v1758, %v1757
        %v2141 = vpack.c.b16 %v1760, %v1759
        %v2142 = vpack.c.b16 %v1762, %v1761
        %v2143 = vpack.c.b16 %v1764, %v1763
        %v2144 = vpack.c.b16 %v1766, %v1765
        %v2145 = vpack.c.b16 %v1768, %v1767
        %v2146 = vpack.c.b16 %v1770, %v1769
        %v2147 = vpack.c.b16 %v1772, %v1771
        %v2148 = vpack.c.b16 %v1774, %v1773
        %v2149 = vpack.c.b16 %v1776, %v1775
        %v2150 = vpack.c.b16 %v1778, %v1777
        %v2151 = vpack.c.b16 %v1780, %v1779
        %v2152 = vpack.c.b16 %v1782, %v1781
        %v2153 = vpack.c.b16 %v1784, %v1783
        %v2154 = vpack.c.b16 %v1786, %v1785
        %v2155 = vpack.c.b16 %v1788, %v1787
        %v2156 = vpack.c.b16 %v1790, %v1789
        %v2157 = vpack.c.b16 %v1792, %v1791
        %v2158 = vpack.c.b16 %v1794, %v1793
        %v2159 = vpack.c.b16 %v1796, %v1795
        %v2160 = vpack.c.b16 %v1798, %v1797
        %v2161 = vpack.c.b16 %v1800, %v1799
        %v2162 = vpack.c.b16 %v1802, %v1801
        %v2163 = vpack.c.b16 %v1804, %v1803
        %v2164 = vpack.c.b16 %v1806, %v1805
        %v2165 = vpack.c.b16 %v1808, %v1807
        %v2166 = vpack.c.b16 %v1810, %v1809
        %v2167 = vpack.c.b16 %v1812, %v1811
        %v2168 = vpack.c.b16 %v1814, %v1813
        %v2169 = vpack.c.b16 %v1816, %v1815
        %v2170 = vpack.c.b16 %v1818, %v1817
        %v2171 = vpack.c.b16 %v1820, %v1819
        %v2172 = vpack.c.b16 %v1822, %v1821
        %v2173 = vpack.c.b16 %v1824, %v1823
        %v2174 = vpack.c.b16 %v1826, %v1825
        %v2175 = vpack.c.b16 %v1828, %v1827
        %v2176 = vpack.c.b16 %v1830, %v1829
        %v2177 = vpack.c.b16 %v1832, %v1831
        %v2178 = vpack.c.b16 %v1834, %v1833
        %v2179 = vpack.c.b16 %v1836, %v1835
        %v2180 = vpack.c.b16 %v1838, %v1837
        %v2181 = vpack.c.b16 %v1840, %v1839
        %v2182 = vpack.c.b16 %v1842, %v1841
        %v2183 = vpack.c.b16 %v1844, %v1843
        %v2184 = vpack.c.b16 %v1846, %v1845
        %v2185 = vpack.c.b16 %v1848, %v1847
        %v2186 = vpack.c.b16 %v1850, %v1849
        %v2187 = vpack.c.b16 %v1852, %v1851
        %v2188 = vpack.c.b16 %v1854, %v1853
        %v2189 = vpack.c.b16 %v1856, %v1855
        %v2190 = vpack.c.b16 %v1858, %v1857
        %v2191 = vpack.c.b16 %v1860, %v1859
        %v2192 = vpack.c.b16 %v1862, %v1861
        %v2193 = vpack.c.b16 %v1864, %v1863
        %v2194 = vpack.c.b16 %v1866, %v1865
        %v2195 = vpack.c.b16 %v1868, %v1867
        %v2196 = vpack.c.b16 %v1870, %v1869
        %v2197 = vpack.c.b16 %v1872, %v1871
        %v2198 = vpack.c.b16 %v1874, %v1873
        %v2199 = vpack.c.b16 %v1876, %v1875
        %v2200 = vpack.c.b16 %v1878, %v1877
        %v2201 = vpack.c.b16 %v1880, %v1879
        %v2202 = vpack.c.b16 %v1882, %v1881
        %v2203 = vpack.c.b16 %v1884, %v1883
        %v2204 = vpack.c.b16 %v1886, %v1885
        %v2205 = vpack.c.b16 %v1888, %v1887
        %v2206 = vpack.c.b16 %v1890, %v1889
        %v2207 = vpack.c.b16 %v1892, %v1891
        %v2208 = vpack.c.b16 %v1894, %v1893
        %v2209 = vpack.c.b16 %v1896, %v1895
        %v2210 = vpack.c.b16 %v1898, %v1897
        %v2211 = vpack.c.b16 %v1900, %v1899
        %v2212 = vpack.c.b16 %v1902, %v1901
        %v2213 = vpack.c.b16 %v1904, %v1903
        %v2214 = vpack.c.b16 %v1906, %v1905
        %v2215 = vpack.c.b16 %v1908, %v1907
        %v2216 = vpack.c.b16 %v1910, %v1909
        %v2217 = vpack.c.b16 %v1912, %v1911
        %v2218 = vpack.c.b16 %v1914, %v1913
        %v2219 = vpack.c.b16 %v1916, %v1915
        %v2220 = vpack.c.b16 %v1918, %v1917
        %v2221 = vpack.c.b16 %v1920, %v1919
        %v2222 = vpack.c.b16 %v1922, %v1921
        %v2223 = vpack.c.b16 %v1924, %v1923
        %v2224 = vpack.c.b16 %v1926, %v1925
        %v2225 = vpack.c.b16 %v1928, %v1927
        %v2226 = vpack.c.b16 %v1930, %v1929
        %v2227 = vpack.c.b16 %v1932, %v1931
        %v2228 = vpack.c.b16 %v1934, %v1933
        %v2229 = vpack.c.b16 %v1936, %v1935
        %v2230 = vpack.c.b16 %v1938, %v1937
        %v2231 = vpack.c.b16 %v1940, %v1939
        %v2232 = vpack.c.b16 %v1942, %v1941
        %v2233 = vpack.c.b16 %v1944, %v1943
        %v2234 = vpack.c.b16 %v1946, %v1945
        %v2235 = vpack.c.b16 %v1948, %v1947
        %v2236 = vpack.c.b16 %v1950, %v1949
        %v2237 = vpack.c.b16 %v1952, %v1951
        %v2238 = vpack.c.b16 %v1954, %v1953
        %v2239 = vpack.c.b16 %v1956, %v1955
        %v2240 = vpack.c.b16 %v1958, %v1957
        %v2241 = vpack.c.b16 %v1960, %v1959
        %v2242 = vpack.c.b16 %v1962, %v1961
        %v2243 = vpack.c.b16 %v1964, %v1963
        %v2244 = vpack.c.b16 %v1966, %v1965
        %v2245 = vpack.c.b16 %v1968, %v1967
        %v2246 = vpack.c.b16 %v1970, %v1969
        %v2247 = vpack.c.b16 %v1972, %v1971
        %v2248 = vpack.c.b16 %v1974, %v1973
        %v2249 = vpack.c.b16 %v1976, %v1975
        %v2250 = vpack.c.b16 %v1978, %v1977
        %v2251 = vpack.c.b16 %v1980, %v1979
        %v2252 = vpack.c.b16 %v1982, %v1981
        %v2253 = vpack.c.b16 %v1984, %v1983
        %v2254 = vpack.c.b16 %v1986, %v1985
        %v2255 = vpack.c.b16 %v1988, %v1987
        %v2256 = vpack.c.b16 %v1990, %v1989
        %v2257 = vpack.c.b16 %v1992, %v1991
        %v2258 = vpack.c.b16 %v1994, %v1993
        %v2259 = vpack.c.b16 %v1996, %v1995
        %v2260 = vpack.c.b16 %v1998, %v1997
        %v2261 = vpack.c.b16 %v2000, %v1999
        %v2262 = vpack.c.b16 %v2002, %v2001
        %v2263 = vpack.c.b16 %v2004, %v2003
        %v2264 = vpack.c.b16 %v2006, %v2005
        %v2265 = vpack.c.b16 %v2008, %v2007
        %v2266 = vpack.c.b16 %v2010, %v2009
        %2523 = vmatprep.subr.bf16.mxu0 0
        %2524 = vmatpush1.bf16.msra.mxu0 %v2018
        %2525 = vmatprep.subr.bf16.mxu0 0
        %2526 = vmatpush1.bf16.msra.mxu0 %v2017
        %2527 = vmatprep.subr.bf16.mxu0 0
        %2528 = vmatpush1.bf16.msra.mxu0 %v2016
        %2529 = vmatprep.subr.bf16.mxu0 0
        %2530 = vmatpush1.bf16.msra.mxu0 %v2015
        %2531 = vmatprep.subr.bf16.mxu0 0
        %2532 = vmatpush1.bf16.msra.mxu0 %v2014
        %2533 = vmatprep.subr.bf16.mxu0 0
        %2534 = vmatpush1.bf16.msra.mxu0 %v2013
        %2535 = vmatprep.subr.bf16.mxu0 0
        %2536 = vmatpush1.bf16.msra.mxu0 %v2012
        %2537 = vmatprep.subr.bf16.mxu0 0
        %2538 = vmatpush1.bf16.msra.mxu0 %v2011
        %2539 = vmatprep.subr.bf16.mxu0 0
        %2540 = vmatpush2.bf16.msra.mxu0 %v2026
        %2541 = vmatprep.subr.bf16.mxu0 0
        %2542 = vmatpush2.bf16.msra.mxu0 %v2025
        %2543 = vmatprep.subr.bf16.mxu0 0
        %2544 = vmatpush2.bf16.msra.mxu0 %v2024
        %2545 = vmatprep.subr.bf16.mxu0 0
        %2546 = vmatpush2.bf16.msra.mxu0 %v2023
        %2547 = vmatprep.subr.bf16.mxu0 0
        %2548 = vmatpush2.bf16.msra.mxu0 %v2022
        %2549 = vmatprep.subr.bf16.mxu0 0
        %2550 = vmatpush2.bf16.msra.mxu0 %v2021
        %2551 = vmatprep.subr.bf16.mxu0 0
        %2552 = vmatpush2.bf16.msra.mxu0 %v2020
        %2553 = vmatprep.subr.bf16.mxu0 0
        %2554 = vmatpush2.bf16.msra.mxu0 %v2019
        %2555 = vmatprep.mubr.bf16.mxu0 %v796
        %2556 = vmatmul.mubr.bf16.gmra.mxu0 %v782
        %v2557 = vpop.f32.mrf.mxu0
        %v2558 = vadd.f32 0.0, %v2557
        %v2559 = vpop.f32.mrf.mxu0
        %v2560 = vpop.f32.mrf.mxu0
        %v2561 = vpop.f32.mrf.mxu0
        %2562 = vdwg.mxu0
        %2563 = vmatprep.subr.bf16.mxu0 0
        %2564 = vmatpush1.bf16.msra.mxu0 %v2034
        %2565 = vmatprep.subr.bf16.mxu0 0
        %2566 = vmatpush1.bf16.msra.mxu0 %v2033
        %2567 = vmatprep.subr.bf16.mxu0 0
        %2568 = vmatpush1.bf16.msra.mxu0 %v2032
        %2569 = vmatprep.subr.bf16.mxu0 0
        %2570 = vmatpush1.bf16.msra.mxu0 %v2031
        %2571 = vmatprep.subr.bf16.mxu0 0
        %2572 = vmatpush1.bf16.msra.mxu0 %v2030
        %2573 = vmatprep.subr.bf16.mxu0 0
        %2574 = vmatpush1.bf16.msra.mxu0 %v2029
        %2575 = vmatprep.subr.bf16.mxu0 0
        %2576 = vmatpush1.bf16.msra.mxu0 %v2028
        %2577 = vmatprep.subr.bf16.mxu0 0
        %2578 = vmatpush1.bf16.msra.mxu0 %v2027
        %2579 = vmatprep.subr.bf16.mxu0 0
        %2580 = vmatpush2.bf16.msra.mxu0 %v2042
        %2581 = vmatprep.subr.bf16.mxu0 0
        %2582 = vmatpush2.bf16.msra.mxu0 %v2041
        %2583 = vmatprep.subr.bf16.mxu0 0
        %2584 = vmatpush2.bf16.msra.mxu0 %v2040
        %2585 = vmatprep.subr.bf16.mxu0 0
        %2586 = vmatpush2.bf16.msra.mxu0 %v2039
        %2587 = vmatprep.subr.bf16.mxu0 0
        %2588 = vmatpush2.bf16.msra.mxu0 %v2038
        %2589 = vmatprep.subr.bf16.mxu0 0
        %2590 = vmatpush2.bf16.msra.mxu0 %v2037
        %2591 = vmatprep.subr.bf16.mxu0 0
        %2592 = vmatpush2.bf16.msra.mxu0 %v2036
        %2593 = vmatprep.subr.bf16.mxu0 0
        %2594 = vmatpush2.bf16.msra.mxu0 %v2035
        %2595 = vmatprep.mubr.bf16.mxu0 %v806
        %2596 = vmatmul.mubr.bf16.gmra.mxu0 %v804
        %v2597 = vpop.f32.mrf.mxu0
        %v2598 = vadd.f32 %v2558, %v2597
        %v2599 = vpop.f32.mrf.mxu0
        %v2600 = vpop.f32.mrf.mxu0
        %v2601 = vpop.f32.mrf.mxu0
        %2602 = vdwg.mxu0
        %2603 = vmatprep.subr.bf16.mxu0 0
        %2604 = vmatpush1.bf16.msra.mxu0 %v2050
        %2605 = vmatprep.subr.bf16.mxu0 0
        %2606 = vmatpush1.bf16.msra.mxu0 %v2049
        %2607 = vmatprep.subr.bf16.mxu0 0
        %2608 = vmatpush1.bf16.msra.mxu0 %v2048
        %2609 = vmatprep.subr.bf16.mxu0 0
        %2610 = vmatpush1.bf16.msra.mxu0 %v2047
        %2611 = vmatprep.subr.bf16.mxu0 0
        %2612 = vmatpush1.bf16.msra.mxu0 %v2046
        %2613 = vmatprep.subr.bf16.mxu0 0
        %2614 = vmatpush1.bf16.msra.mxu0 %v2045
        %2615 = vmatprep.subr.bf16.mxu0 0
        %2616 = vmatpush1.bf16.msra.mxu0 %v2044
        %2617 = vmatprep.subr.bf16.mxu0 0
        %2618 = vmatpush1.bf16.msra.mxu0 %v2043
        %2619 = vmatprep.subr.bf16.mxu0 0
        %2620 = vmatpush2.bf16.msra.mxu0 %v2058
        %2621 = vmatprep.subr.bf16.mxu0 0
        %2622 = vmatpush2.bf16.msra.mxu0 %v2057
        %2623 = vmatprep.subr.bf16.mxu0 0
        %2624 = vmatpush2.bf16.msra.mxu0 %v2056
        %2625 = vmatprep.subr.bf16.mxu0 0
        %2626 = vmatpush2.bf16.msra.mxu0 %v2055
        %2627 = vmatprep.subr.bf16.mxu0 0
        %2628 = vmatpush2.bf16.msra.mxu0 %v2054
        %2629 = vmatprep.subr.bf16.mxu0 0
        %2630 = vmatpush2.bf16.msra.mxu0 %v2053
        %2631 = vmatprep.subr.bf16.mxu0 0
        %2632 = vmatpush2.bf16.msra.mxu0 %v2052
        %2633 = vmatprep.subr.bf16.mxu0 0
        %2634 = vmatpush2.bf16.msra.mxu0 %v2051
        %2635 = vmatprep.mubr.bf16.mxu0 %v803
        %2636 = vmatmul.mubr.bf16.gmra.mxu0 %v789
        %v2637 = vpop.f32.mrf.mxu0
        %v2638 = vadd.f32 %v2598, %v2637
        %v2639 = vpop.f32.mrf.mxu0
        %v2640 = vpop.f32.mrf.mxu0
        %v2641 = vpop.f32.mrf.mxu0
        %2642 = vdwg.mxu0
        %2643 = vmatprep.subr.bf16.mxu0 0
        %2644 = vmatpush1.bf16.msra.mxu0 %v2066
        %2645 = vmatprep.subr.bf16.mxu0 0
        %2646 = vmatpush1.bf16.msra.mxu0 %v2065
        %2647 = vmatprep.subr.bf16.mxu0 0
        %2648 = vmatpush1.bf16.msra.mxu0 %v2064
        %2649 = vmatprep.subr.bf16.mxu0 0
        %2650 = vmatpush1.bf16.msra.mxu0 %v2063
        %2651 = vmatprep.subr.bf16.mxu0 0
        %2652 = vmatpush1.bf16.msra.mxu0 %v2062
        %2653 = vmatprep.subr.bf16.mxu0 0
        %2654 = vmatpush1.bf16.msra.mxu0 %v2061
        %2655 = vmatprep.subr.bf16.mxu0 0
        %2656 = vmatpush1.bf16.msra.mxu0 %v2060
        %2657 = vmatprep.subr.bf16.mxu0 0
        %2658 = vmatpush1.bf16.msra.mxu0 %v2059
        %2659 = vmatprep.subr.bf16.mxu0 0
        %2660 = vmatpush2.bf16.msra.mxu0 %v2074
        %2661 = vmatprep.subr.bf16.mxu0 0
        %2662 = vmatpush2.bf16.msra.mxu0 %v2073
        %2663 = vmatprep.subr.bf16.mxu0 0
        %2664 = vmatpush2.bf16.msra.mxu0 %v2072
        %2665 = vmatprep.subr.bf16.mxu0 0
        %2666 = vmatpush2.bf16.msra.mxu0 %v2071
        %2667 = vmatprep.subr.bf16.mxu0 0
        %2668 = vmatpush2.bf16.msra.mxu0 %v2070
        %2669 = vmatprep.subr.bf16.mxu0 0
        %2670 = vmatpush2.bf16.msra.mxu0 %v2069
        %2671 = vmatprep.subr.bf16.mxu0 0
        %2672 = vmatpush2.bf16.msra.mxu0 %v2068
        %2673 = vmatprep.subr.bf16.mxu0 0
        %2674 = vmatpush2.bf16.msra.mxu0 %v2067
        %2675 = vmatprep.mubr.bf16.mxu0 %v807
        %2676 = vmatmul.mubr.bf16.gmra.mxu0 %v805
        %v2677 = vpop.f32.mrf.mxu0
        %v2678 = vadd.f32 %v2638, %v2677
        %v2679 = vpop.f32.mrf.mxu0
        %v2680 = vpop.f32.mrf.mxu0
        %v2681 = vpop.f32.mrf.mxu0
        %2682 = vdwg.mxu0
        %2683 = vmatprep.subr.bf16.mxu0 0
        %2684 = vmatpush1.bf16.msra.mxu0 %v2082
        %2685 = vmatprep.subr.bf16.mxu0 0
        %2686 = vmatpush1.bf16.msra.mxu0 %v2081
        %2687 = vmatprep.subr.bf16.mxu0 0
        %2688 = vmatpush1.bf16.msra.mxu0 %v2080
        %2689 = vmatprep.subr.bf16.mxu0 0
        %2690 = vmatpush1.bf16.msra.mxu0 %v2079
        %2691 = vmatprep.subr.bf16.mxu0 0
        %2692 = vmatpush1.bf16.msra.mxu0 %v2078
        %2693 = vmatprep.subr.bf16.mxu0 0
        %2694 = vmatpush1.bf16.msra.mxu0 %v2077
        %2695 = vmatprep.subr.bf16.mxu0 0
        %2696 = vmatpush1.bf16.msra.mxu0 %v2076
        %2697 = vmatprep.subr.bf16.mxu0 0
        %2698 = vmatpush1.bf16.msra.mxu0 %v2075
        %2699 = vmatprep.subr.bf16.mxu0 0
        %2700 = vmatpush2.bf16.msra.mxu0 %v2090
        %2701 = vmatprep.subr.bf16.mxu0 0
        %2702 = vmatpush2.bf16.msra.mxu0 %v2089
        %2703 = vmatprep.subr.bf16.mxu0 0
        %2704 = vmatpush2.bf16.msra.mxu0 %v2088
        %2705 = vmatprep.subr.bf16.mxu0 0
        %2706 = vmatpush2.bf16.msra.mxu0 %v2087
        %2707 = vmatprep.subr.bf16.mxu0 0
        %2708 = vmatpush2.bf16.msra.mxu0 %v2086
        %2709 = vmatprep.subr.bf16.mxu0 0
        %2710 = vmatpush2.bf16.msra.mxu0 %v2085
        %2711 = vmatprep.subr.bf16.mxu0 0
        %2712 = vmatpush2.bf16.msra.mxu0 %v2084
        %2713 = vmatprep.subr.bf16.mxu0 0
        %2714 = vmatpush2.bf16.msra.mxu0 %v2083
        %2715 = vmatprep.mubr.bf16.mxu0 %v845
        %2716 = vmatmul.mubr.bf16.gmra.mxu0 %v831
        %v2717 = vpop.f32.mrf.mxu0
        %v2718 = vadd.f32 %v2678, %v2717
        %v2719 = vpop.f32.mrf.mxu0
        %v2720 = vpop.f32.mrf.mxu0
        %v2721 = vpop.f32.mrf.mxu0
        %2722 = vdwg.mxu0
        %2723 = vmatprep.subr.bf16.mxu0 0
        %2724 = vmatpush1.bf16.msra.mxu0 %v2098
        %2725 = vmatprep.subr.bf16.mxu0 0
        %2726 = vmatpush1.bf16.msra.mxu0 %v2097
        %2727 = vmatprep.subr.bf16.mxu0 0
        %2728 = vmatpush1.bf16.msra.mxu0 %v2096
        %2729 = vmatprep.subr.bf16.mxu0 0
        %2730 = vmatpush1.bf16.msra.mxu0 %v2095
        %2731 = vmatprep.subr.bf16.mxu0 0
        %2732 = vmatpush1.bf16.msra.mxu0 %v2094
        %2733 = vmatprep.subr.bf16.mxu0 0
        %2734 = vmatpush1.bf16.msra.mxu0 %v2093
        %2735 = vmatprep.subr.bf16.mxu0 0
        %2736 = vmatpush1.bf16.msra.mxu0 %v2092
        %2737 = vmatprep.subr.bf16.mxu0 0
        %2738 = vmatpush1.bf16.msra.mxu0 %v2091
        %2739 = vmatprep.subr.bf16.mxu0 0
        %2740 = vmatpush2.bf16.msra.mxu0 %v2106
        %2741 = vmatprep.subr.bf16.mxu0 0
        %2742 = vmatpush2.bf16.msra.mxu0 %v2105
        %2743 = vmatprep.subr.bf16.mxu0 0
        %2744 = vmatpush2.bf16.msra.mxu0 %v2104
        %2745 = vmatprep.subr.bf16.mxu0 0
        %2746 = vmatpush2.bf16.msra.mxu0 %v2103
        %2747 = vmatprep.subr.bf16.mxu0 0
        %2748 = vmatpush2.bf16.msra.mxu0 %v2102
        %2749 = vmatprep.subr.bf16.mxu0 0
        %2750 = vmatpush2.bf16.msra.mxu0 %v2101
        %2751 = vmatprep.subr.bf16.mxu0 0
        %2752 = vmatpush2.bf16.msra.mxu0 %v2100
        %2753 = vmatprep.subr.bf16.mxu0 0
        %2754 = vmatpush2.bf16.msra.mxu0 %v2099
        %2755 = vmatprep.mubr.bf16.mxu0 %v855
        %2756 = vmatmul.mubr.bf16.gmra.mxu0 %v853
        %v2757 = vpop.f32.mrf.mxu0
        %v2758 = vadd.f32 %v2718, %v2757
        %v2759 = vpop.f32.mrf.mxu0
        %v2760 = vpop.f32.mrf.mxu0
        %v2761 = vpop.f32.mrf.mxu0
        %2762 = vdwg.mxu0
        %2763 = vmatprep.subr.bf16.mxu0 0
        %2764 = vmatpush1.bf16.msra.mxu0 %v2114
        %2765 = vmatprep.subr.bf16.mxu0 0
        %2766 = vmatpush1.bf16.msra.mxu0 %v2113
        %2767 = vmatprep.subr.bf16.mxu0 0
        %2768 = vmatpush1.bf16.msra.mxu0 %v2112
        %2769 = vmatprep.subr.bf16.mxu0 0
        %2770 = vmatpush1.bf16.msra.mxu0 %v2111
        %2771 = vmatprep.subr.bf16.mxu0 0
        %2772 = vmatpush1.bf16.msra.mxu0 %v2110
        %2773 = vmatprep.subr.bf16.mxu0 0
        %2774 = vmatpush1.bf16.msra.mxu0 %v2109
        %2775 = vmatprep.subr.bf16.mxu0 0
        %2776 = vmatpush1.bf16.msra.mxu0 %v2108
        %2777 = vmatprep.subr.bf16.mxu0 0
        %2778 = vmatpush1.bf16.msra.mxu0 %v2107
        %2779 = vmatprep.subr.bf16.mxu0 0
        %2780 = vmatpush2.bf16.msra.mxu0 %v2122
        %2781 = vmatprep.subr.bf16.mxu0 0
        %2782 = vmatpush2.bf16.msra.mxu0 %v2121
        %2783 = vmatprep.subr.bf16.mxu0 0
        %2784 = vmatpush2.bf16.msra.mxu0 %v2120
        %2785 = vmatprep.subr.bf16.mxu0 0
        %2786 = vmatpush2.bf16.msra.mxu0 %v2119
        %2787 = vmatprep.subr.bf16.mxu0 0
        %2788 = vmatpush2.bf16.msra.mxu0 %v2118
        %2789 = vmatprep.subr.bf16.mxu0 0
        %2790 = vmatpush2.bf16.msra.mxu0 %v2117
        %2791 = vmatprep.subr.bf16.mxu0 0
        %2792 = vmatpush2.bf16.msra.mxu0 %v2116
        %2793 = vmatprep.subr.bf16.mxu0 0
        %2794 = vmatpush2.bf16.msra.mxu0 %v2115
        %2795 = vmatprep.mubr.bf16.mxu0 %v852
        %2796 = vmatmul.mubr.bf16.gmra.mxu0 %v838
        %v2797 = vpop.f32.mrf.mxu0
        %v2798 = vadd.f32 %v2758, %v2797
        %v2799 = vpop.f32.mrf.mxu0
        %v2800 = vpop.f32.mrf.mxu0
        %v2801 = vpop.f32.mrf.mxu0
        %2802 = vdwg.mxu0
        %2803 = vmatprep.subr.bf16.mxu0 0
        %2804 = vmatpush1.bf16.msra.mxu0 %v2130
        %2805 = vmatprep.subr.bf16.mxu0 0
        %2806 = vmatpush1.bf16.msra.mxu0 %v2129
        %2807 = vmatprep.subr.bf16.mxu0 0
        %2808 = vmatpush1.bf16.msra.mxu0 %v2128
        %2809 = vmatprep.subr.bf16.mxu0 0
        %2810 = vmatpush1.bf16.msra.mxu0 %v2127
        %2811 = vmatprep.subr.bf16.mxu0 0
        %2812 = vmatpush1.bf16.msra.mxu0 %v2126
        %2813 = vmatprep.subr.bf16.mxu0 0
        %2814 = vmatpush1.bf16.msra.mxu0 %v2125
        %2815 = vmatprep.subr.bf16.mxu0 0
        %2816 = vmatpush1.bf16.msra.mxu0 %v2124
        %2817 = vmatprep.subr.bf16.mxu0 0
        %2818 = vmatpush1.bf16.msra.mxu0 %v2123
        %2819 = vmatprep.subr.bf16.mxu0 0
        %2820 = vmatpush2.bf16.msra.mxu0 %v2138
        %2821 = vmatprep.subr.bf16.mxu0 0
        %2822 = vmatpush2.bf16.msra.mxu0 %v2137
        %2823 = vmatprep.subr.bf16.mxu0 0
        %2824 = vmatpush2.bf16.msra.mxu0 %v2136
        %2825 = vmatprep.subr.bf16.mxu0 0
        %2826 = vmatpush2.bf16.msra.mxu0 %v2135
        %2827 = vmatprep.subr.bf16.mxu0 0
        %2828 = vmatpush2.bf16.msra.mxu0 %v2134
        %2829 = vmatprep.subr.bf16.mxu0 0
        %2830 = vmatpush2.bf16.msra.mxu0 %v2133
        %2831 = vmatprep.subr.bf16.mxu0 0
        %2832 = vmatpush2.bf16.msra.mxu0 %v2132
        %2833 = vmatprep.subr.bf16.mxu0 0
        %2834 = vmatpush2.bf16.msra.mxu0 %v2131
        %2835 = vmatprep.mubr.bf16.mxu0 %v856
        %2836 = vmatmul.mubr.bf16.gmra.mxu0 %v854
        %v2837 = vpop.f32.mrf.mxu0
        %v2838 = vadd.f32 %v2798, %v2837
        %v2839 = vpop.f32.mrf.mxu0
        %v2840 = vpop.f32.mrf.mxu0
        %v2841 = vpop.f32.mrf.mxu0
        %2842 = vdwg.mxu0
        %2843 = vmatprep.subr.bf16.mxu0 0
        %2844 = vmatpush1.bf16.msra.mxu0 %v2146
        %2845 = vmatprep.subr.bf16.mxu0 0
        %2846 = vmatpush1.bf16.msra.mxu0 %v2145
        %2847 = vmatprep.subr.bf16.mxu0 0
        %2848 = vmatpush1.bf16.msra.mxu0 %v2144
        %2849 = vmatprep.subr.bf16.mxu0 0
        %2850 = vmatpush1.bf16.msra.mxu0 %v2143
        %2851 = vmatprep.subr.bf16.mxu0 0
        %2852 = vmatpush1.bf16.msra.mxu0 %v2142
        %2853 = vmatprep.subr.bf16.mxu0 0
        %2854 = vmatpush1.bf16.msra.mxu0 %v2141
        %2855 = vmatprep.subr.bf16.mxu0 0
        %2856 = vmatpush1.bf16.msra.mxu0 %v2140
        %2857 = vmatprep.subr.bf16.mxu0 0
        %2858 = vmatpush1.bf16.msra.mxu0 %v2139
        %2859 = vmatprep.subr.bf16.mxu0 0
        %2860 = vmatpush2.bf16.msra.mxu0 %v2154
        %2861 = vmatprep.subr.bf16.mxu0 0
        %2862 = vmatpush2.bf16.msra.mxu0 %v2153
        %2863 = vmatprep.subr.bf16.mxu0 0
        %2864 = vmatpush2.bf16.msra.mxu0 %v2152
        %2865 = vmatprep.subr.bf16.mxu0 0
        %2866 = vmatpush2.bf16.msra.mxu0 %v2151
        %2867 = vmatprep.subr.bf16.mxu0 0
        %2868 = vmatpush2.bf16.msra.mxu0 %v2150
        %2869 = vmatprep.subr.bf16.mxu0 0
        %2870 = vmatpush2.bf16.msra.mxu0 %v2149
        %2871 = vmatprep.subr.bf16.mxu0 0
        %2872 = vmatpush2.bf16.msra.mxu0 %v2148
        %2873 = vmatprep.subr.bf16.mxu0 0
        %2874 = vmatpush2.bf16.msra.mxu0 %v2147
        %2875 = vmatprep.mubr.bf16.mxu0 %v894
        %2876 = vmatmul.mubr.bf16.gmra.mxu0 %v880
        %v2877 = vpop.f32.mrf.mxu0
        %v2878 = vadd.f32 %v2838, %v2877
        %v2879 = vpop.f32.mrf.mxu0
        %v2880 = vpop.f32.mrf.mxu0
        %v2881 = vpop.f32.mrf.mxu0
        %2882 = vdwg.mxu0
        %2883 = vmatprep.subr.bf16.mxu0 0
        %2884 = vmatpush1.bf16.msra.mxu0 %v2162
        %2885 = vmatprep.subr.bf16.mxu0 0
        %2886 = vmatpush1.bf16.msra.mxu0 %v2161
        %2887 = vmatprep.subr.bf16.mxu0 0
        %2888 = vmatpush1.bf16.msra.mxu0 %v2160
        %2889 = vmatprep.subr.bf16.mxu0 0
        %2890 = vmatpush1.bf16.msra.mxu0 %v2159
        %2891 = vmatprep.subr.bf16.mxu0 0
        %2892 = vmatpush1.bf16.msra.mxu0 %v2158
        %2893 = vmatprep.subr.bf16.mxu0 0
        %2894 = vmatpush1.bf16.msra.mxu0 %v2157
        %2895 = vmatprep.subr.bf16.mxu0 0
        %2896 = vmatpush1.bf16.msra.mxu0 %v2156
        %2897 = vmatprep.subr.bf16.mxu0 0
        %2898 = vmatpush1.bf16.msra.mxu0 %v2155
        %2899 = vmatprep.subr.bf16.mxu0 0
        %2900 = vmatpush2.bf16.msra.mxu0 %v2170
        %2901 = vmatprep.subr.bf16.mxu0 0
        %2902 = vmatpush2.bf16.msra.mxu0 %v2169
        %2903 = vmatprep.subr.bf16.mxu0 0
        %2904 = vmatpush2.bf16.msra.mxu0 %v2168
        %2905 = vmatprep.subr.bf16.mxu0 0
        %2906 = vmatpush2.bf16.msra.mxu0 %v2167
        %2907 = vmatprep.subr.bf16.mxu0 0
        %2908 = vmatpush2.bf16.msra.mxu0 %v2166
        %2909 = vmatprep.subr.bf16.mxu0 0
        %2910 = vmatpush2.bf16.msra.mxu0 %v2165
        %2911 = vmatprep.subr.bf16.mxu0 0
        %2912 = vmatpush2.bf16.msra.mxu0 %v2164
        %2913 = vmatprep.subr.bf16.mxu0 0
        %2914 = vmatpush2.bf16.msra.mxu0 %v2163
        %2915 = vmatprep.mubr.bf16.mxu0 %v904
        %2916 = vmatmul.mubr.bf16.gmra.mxu0 %v902
        %v2917 = vpop.f32.mrf.mxu0
        %v2918 = vadd.f32 %v2878, %v2917
        %v2919 = vpop.f32.mrf.mxu0
        %v2920 = vpop.f32.mrf.mxu0
        %v2921 = vpop.f32.mrf.mxu0
        %2922 = vdwg.mxu0
        %2923 = vmatprep.subr.bf16.mxu0 0
        %2924 = vmatpush1.bf16.msra.mxu0 %v2178
        %2925 = vmatprep.subr.bf16.mxu0 0
        %2926 = vmatpush1.bf16.msra.mxu0 %v2177
        %2927 = vmatprep.subr.bf16.mxu0 0
        %2928 = vmatpush1.bf16.msra.mxu0 %v2176
        %2929 = vmatprep.subr.bf16.mxu0 0
        %2930 = vmatpush1.bf16.msra.mxu0 %v2175
        %2931 = vmatprep.subr.bf16.mxu0 0
        %2932 = vmatpush1.bf16.msra.mxu0 %v2174
        %2933 = vmatprep.subr.bf16.mxu0 0
        %2934 = vmatpush1.bf16.msra.mxu0 %v2173
        %2935 = vmatprep.subr.bf16.mxu0 0
        %2936 = vmatpush1.bf16.msra.mxu0 %v2172
        %2937 = vmatprep.subr.bf16.mxu0 0
        %2938 = vmatpush1.bf16.msra.mxu0 %v2171
        %2939 = vmatprep.subr.bf16.mxu0 0
        %2940 = vmatpush2.bf16.msra.mxu0 %v2186
        %2941 = vmatprep.subr.bf16.mxu0 0
        %2942 = vmatpush2.bf16.msra.mxu0 %v2185
        %2943 = vmatprep.subr.bf16.mxu0 0
        %2944 = vmatpush2.bf16.msra.mxu0 %v2184
        %2945 = vmatprep.subr.bf16.mxu0 0
        %2946 = vmatpush2.bf16.msra.mxu0 %v2183
        %2947 = vmatprep.subr.bf16.mxu0 0
        %2948 = vmatpush2.bf16.msra.mxu0 %v2182
        %2949 = vmatprep.subr.bf16.mxu0 0
        %2950 = vmatpush2.bf16.msra.mxu0 %v2181
        %2951 = vmatprep.subr.bf16.mxu0 0
        %2952 = vmatpush2.bf16.msra.mxu0 %v2180
        %2953 = vmatprep.subr.bf16.mxu0 0
        %2954 = vmatpush2.bf16.msra.mxu0 %v2179
        %2955 = vmatprep.mubr.bf16.mxu0 %v901
        %2956 = vmatmul.mubr.bf16.gmra.mxu0 %v887
        %v2957 = vpop.f32.mrf.mxu0
        %v2958 = vadd.f32 %v2918, %v2957
        %v2959 = vpop.f32.mrf.mxu0
        %v2960 = vpop.f32.mrf.mxu0
        %v2961 = vpop.f32.mrf.mxu0
        %2962 = vdwg.mxu0
        %2963 = vmatprep.subr.bf16.mxu0 0
        %2964 = vmatpush1.bf16.msra.mxu0 %v2194
        %2965 = vmatprep.subr.bf16.mxu0 0
        %2966 = vmatpush1.bf16.msra.mxu0 %v2193
        %2967 = vmatprep.subr.bf16.mxu0 0
        %2968 = vmatpush1.bf16.msra.mxu0 %v2192
        %2969 = vmatprep.subr.bf16.mxu0 0
        %2970 = vmatpush1.bf16.msra.mxu0 %v2191
        %2971 = vmatprep.subr.bf16.mxu0 0
        %2972 = vmatpush1.bf16.msra.mxu0 %v2190
        %2973 = vmatprep.subr.bf16.mxu0 0
        %2974 = vmatpush1.bf16.msra.mxu0 %v2189
        %2975 = vmatprep.subr.bf16.mxu0 0
        %2976 = vmatpush1.bf16.msra.mxu0 %v2188
        %2977 = vmatprep.subr.bf16.mxu0 0
        %2978 = vmatpush1.bf16.msra.mxu0 %v2187
        %2979 = vmatprep.subr.bf16.mxu0 0
        %2980 = vmatpush2.bf16.msra.mxu0 %v2202
        %2981 = vmatprep.subr.bf16.mxu0 0
        %2982 = vmatpush2.bf16.msra.mxu0 %v2201
        %2983 = vmatprep.subr.bf16.mxu0 0
        %2984 = vmatpush2.bf16.msra.mxu0 %v2200
        %2985 = vmatprep.subr.bf16.mxu0 0
        %2986 = vmatpush2.bf16.msra.mxu0 %v2199
        %2987 = vmatprep.subr.bf16.mxu0 0
        %2988 = vmatpush2.bf16.msra.mxu0 %v2198
        %2989 = vmatprep.subr.bf16.mxu0 0
        %2990 = vmatpush2.bf16.msra.mxu0 %v2197
        %2991 = vmatprep.subr.bf16.mxu0 0
        %2992 = vmatpush2.bf16.msra.mxu0 %v2196
        %2993 = vmatprep.subr.bf16.mxu0 0
        %2994 = vmatpush2.bf16.msra.mxu0 %v2195
        %2995 = vmatprep.mubr.bf16.mxu0 %v905
        %2996 = vmatmul.mubr.bf16.gmra.mxu0 %v903
        %v2997 = vpop.f32.mrf.mxu0
        %v2998 = vadd.f32 %v2958, %v2997
        %v2999 = vpop.f32.mrf.mxu0
        %v3000 = vpop.f32.mrf.mxu0
        %v3001 = vpop.f32.mrf.mxu0
        %3002 = vdwg.mxu0
        %3003 = vmatprep.subr.bf16.mxu0 0
        %3004 = vmatpush1.bf16.msra.mxu0 %v2210
        %3005 = vmatprep.subr.bf16.mxu0 0
        %3006 = vmatpush1.bf16.msra.mxu0 %v2209
        %3007 = vmatprep.subr.bf16.mxu0 0
        %3008 = vmatpush1.bf16.msra.mxu0 %v2208
        %3009 = vmatprep.subr.bf16.mxu0 0
        %3010 = vmatpush1.bf16.msra.mxu0 %v2207
        %3011 = vmatprep.subr.bf16.mxu0 0
        %3012 = vmatpush1.bf16.msra.mxu0 %v2206
        %3013 = vmatprep.subr.bf16.mxu0 0
        %3014 = vmatpush1.bf16.msra.mxu0 %v2205
        %3015 = vmatprep.subr.bf16.mxu0 0
        %3016 = vmatpush1.bf16.msra.mxu0 %v2204
        %3017 = vmatprep.subr.bf16.mxu0 0
        %3018 = vmatpush1.bf16.msra.mxu0 %v2203
        %3019 = vmatprep.subr.bf16.mxu0 0
        %3020 = vmatpush2.bf16.msra.mxu0 %v2218
        %3021 = vmatprep.subr.bf16.mxu0 0
        %3022 = vmatpush2.bf16.msra.mxu0 %v2217
        %3023 = vmatprep.subr.bf16.mxu0 0
        %3024 = vmatpush2.bf16.msra.mxu0 %v2216
        %3025 = vmatprep.subr.bf16.mxu0 0
        %3026 = vmatpush2.bf16.msra.mxu0 %v2215
        %3027 = vmatprep.subr.bf16.mxu0 0
        %3028 = vmatpush2.bf16.msra.mxu0 %v2214
        %3029 = vmatprep.subr.bf16.mxu0 0
        %3030 = vmatpush2.bf16.msra.mxu0 %v2213
        %3031 = vmatprep.subr.bf16.mxu0 0
        %3032 = vmatpush2.bf16.msra.mxu0 %v2212
        %3033 = vmatprep.subr.bf16.mxu0 0
        %3034 = vmatpush2.bf16.msra.mxu0 %v2211
        %3035 = vmatprep.mubr.bf16.mxu0 %v943
        %3036 = vmatmul.mubr.bf16.gmra.mxu0 %v929
        %v3037 = vpop.f32.mrf.mxu0
        %v3038 = vadd.f32 %v2998, %v3037
        %v3039 = vpop.f32.mrf.mxu0
        %v3040 = vpop.f32.mrf.mxu0
        %v3041 = vpop.f32.mrf.mxu0
        %3042 = vdwg.mxu0
        %3043 = vmatprep.subr.bf16.mxu0 0
        %3044 = vmatpush1.bf16.msra.mxu0 %v2226
        %3045 = vmatprep.subr.bf16.mxu0 0
        %3046 = vmatpush1.bf16.msra.mxu0 %v2225
        %3047 = vmatprep.subr.bf16.mxu0 0
        %3048 = vmatpush1.bf16.msra.mxu0 %v2224
        %3049 = vmatprep.subr.bf16.mxu0 0
        %3050 = vmatpush1.bf16.msra.mxu0 %v2223
        %3051 = vmatprep.subr.bf16.mxu0 0
        %3052 = vmatpush1.bf16.msra.mxu0 %v2222
        %3053 = vmatprep.subr.bf16.mxu0 0
        %3054 = vmatpush1.bf16.msra.mxu0 %v2221
        %3055 = vmatprep.subr.bf16.mxu0 0
        %3056 = vmatpush1.bf16.msra.mxu0 %v2220
        %3057 = vmatprep.subr.bf16.mxu0 0
        %3058 = vmatpush1.bf16.msra.mxu0 %v2219
        %3059 = vmatprep.subr.bf16.mxu0 0
        %3060 = vmatpush2.bf16.msra.mxu0 %v2234
        %3061 = vmatprep.subr.bf16.mxu0 0
        %3062 = vmatpush2.bf16.msra.mxu0 %v2233
        %3063 = vmatprep.subr.bf16.mxu0 0
        %3064 = vmatpush2.bf16.msra.mxu0 %v2232
        %3065 = vmatprep.subr.bf16.mxu0 0
        %3066 = vmatpush2.bf16.msra.mxu0 %v2231
        %3067 = vmatprep.subr.bf16.mxu0 0
        %3068 = vmatpush2.bf16.msra.mxu0 %v2230
        %3069 = vmatprep.subr.bf16.mxu0 0
        %3070 = vmatpush2.bf16.msra.mxu0 %v2229
        %3071 = vmatprep.subr.bf16.mxu0 0
        %3072 = vmatpush2.bf16.msra.mxu0 %v2228
        %3073 = vmatprep.subr.bf16.mxu0 0
        %3074 = vmatpush2.bf16.msra.mxu0 %v2227
        %3075 = vmatprep.mubr.bf16.mxu0 %v953
        %3076 = vmatmul.mubr.bf16.gmra.mxu0 %v951
        %v3077 = vpop.f32.mrf.mxu0
        %v3078 = vadd.f32 %v3038, %v3077
        %v3079 = vpop.f32.mrf.mxu0
        %v3080 = vpop.f32.mrf.mxu0
        %v3081 = vpop.f32.mrf.mxu0
        %3082 = vdwg.mxu0
        %3083 = vmatprep.subr.bf16.mxu0 0
        %3084 = vmatpush1.bf16.msra.mxu0 %v2242
        %3085 = vmatprep.subr.bf16.mxu0 0
        %3086 = vmatpush1.bf16.msra.mxu0 %v2241
        %3087 = vmatprep.subr.bf16.mxu0 0
        %3088 = vmatpush1.bf16.msra.mxu0 %v2240
        %3089 = vmatprep.subr.bf16.mxu0 0
        %3090 = vmatpush1.bf16.msra.mxu0 %v2239
        %3091 = vmatprep.subr.bf16.mxu0 0
        %3092 = vmatpush1.bf16.msra.mxu0 %v2238
        %3093 = vmatprep.subr.bf16.mxu0 0
        %3094 = vmatpush1.bf16.msra.mxu0 %v2237
        %3095 = vmatprep.subr.bf16.mxu0 0
        %3096 = vmatpush1.bf16.msra.mxu0 %v2236
        %3097 = vmatprep.subr.bf16.mxu0 0
        %3098 = vmatpush1.bf16.msra.mxu0 %v2235
        %3099 = vmatprep.subr.bf16.mxu0 0
        %3100 = vmatpush2.bf16.msra.mxu0 %v2250
        %3101 = vmatprep.subr.bf16.mxu0 0
        %3102 = vmatpush2.bf16.msra.mxu0 %v2249
        %3103 = vmatprep.subr.bf16.mxu0 0
        %3104 = vmatpush2.bf16.msra.mxu0 %v2248
        %3105 = vmatprep.subr.bf16.mxu0 0
        %3106 = vmatpush2.bf16.msra.mxu0 %v2247
        %3107 = vmatprep.subr.bf16.mxu0 0
        %3108 = vmatpush2.bf16.msra.mxu0 %v2246
        %3109 = vmatprep.subr.bf16.mxu0 0
        %3110 = vmatpush2.bf16.msra.mxu0 %v2245
        %3111 = vmatprep.subr.bf16.mxu0 0
        %3112 = vmatpush2.bf16.msra.mxu0 %v2244
        %3113 = vmatprep.subr.bf16.mxu0 0
        %3114 = vmatpush2.bf16.msra.mxu0 %v2243
        %3115 = vmatprep.mubr.bf16.mxu0 %v950
        %3116 = vmatmul.mubr.bf16.gmra.mxu0 %v936
        %v3117 = vpop.f32.mrf.mxu0
        %v3118 = vadd.f32 %v3078, %v3117
        %v3119 = vpop.f32.mrf.mxu0
        %v3120 = vpop.f32.mrf.mxu0
        %v3121 = vpop.f32.mrf.mxu0
        %3122 = vdwg.mxu0
        %3123 = vmatprep.subr.bf16.mxu0 0
        %3124 = vmatpush1.bf16.msra.mxu0 %v2258
        %3125 = vmatprep.subr.bf16.mxu0 0
        %3126 = vmatpush1.bf16.msra.mxu0 %v2257
        %3127 = vmatprep.subr.bf16.mxu0 0
        %3128 = vmatpush1.bf16.msra.mxu0 %v2256
        %3129 = vmatprep.subr.bf16.mxu0 0
        %3130 = vmatpush1.bf16.msra.mxu0 %v2255
        %3131 = vmatprep.subr.bf16.mxu0 0
        %3132 = vmatpush1.bf16.msra.mxu0 %v2254
        %3133 = vmatprep.subr.bf16.mxu0 0
        %3134 = vmatpush1.bf16.msra.mxu0 %v2253
        %3135 = vmatprep.subr.bf16.mxu0 0
        %3136 = vmatpush1.bf16.msra.mxu0 %v2252
        %3137 = vmatprep.subr.bf16.mxu0 0
        %3138 = vmatpush1.bf16.msra.mxu0 %v2251
        %3139 = vmatprep.subr.bf16.mxu0 0
        %3140 = vmatpush2.bf16.msra.mxu0 %v2266
        %3141 = vmatprep.subr.bf16.mxu0 0
        %3142 = vmatpush2.bf16.msra.mxu0 %v2265
        %3143 = vmatprep.subr.bf16.mxu0 0
        %3144 = vmatpush2.bf16.msra.mxu0 %v2264
        %3145 = vmatprep.subr.bf16.mxu0 0
        %3146 = vmatpush2.bf16.msra.mxu0 %v2263
        %3147 = vmatprep.subr.bf16.mxu0 0
        %3148 = vmatpush2.bf16.msra.mxu0 %v2262
        %3149 = vmatprep.subr.bf16.mxu0 0
        %3150 = vmatpush2.bf16.msra.mxu0 %v2261
        %3151 = vmatprep.subr.bf16.mxu0 0
        %3152 = vmatpush2.bf16.msra.mxu0 %v2260
        %3153 = vmatprep.subr.bf16.mxu0 0
        %3154 = vmatpush2.bf16.msra.mxu0 %v2259
        %3155 = vmatprep.mubr.bf16.mxu0 %v954
        %3156 = vmatmul.mubr.bf16.gmra.mxu0 %v952
        %v3157 = vpop.f32.mrf.mxu0
        %v3158 = vadd.f32 %v3118, %v3157
        %v3159 = vpop.f32.mrf.mxu0
        %v3160 = vpop.f32.mrf.mxu0
        %v3161 = vpop.f32.mrf.mxu0
        %3162 = vdwg.mxu0
        %v3163 = vadd.f32 %v238, %v3158
        %3164 = vst [vmem:[#allocation2] sm:$0x3] %v3163
        %p3165 = scmp.eq.s32.totalorder %s17, 3
        // Predicated region
        $region45: #{_lambda_.7} parent=39 // pred_check
          %p3166 = pneg %p3165
        $region46: #{_lambda_.7} parent=39 // pred_check_branch
          %3168 = sbr.rel (%p3166) target = $region48
        $region47: #{_lambda_.7} parent=39 // pred_region
          %v3169 = vld [vmem:[#allocation2] sm:$0x3]
          %v3170 = vld [vmem:[%s2] sm:$0x1]
          %v3172 = vlaneseq
          %v3173 = vshrl.u32 %v3172, 7
          %v3174 = vsub.s32 0, %v3173
          %v3175 = vrot.slane %v3170, %v3174
          %v3177 = vadd.f32 %v3169, %v3175
          %v3178 = vmax.f32 %v3177, 0.0
          %v3179 = vpack.c.bf16 %v3178, %v3178
          %v3180 = vld [vmem:[%s3] sm:$0xf]
          %v3181 = vld [vmem:[%s3 + $0x4] sm:$0xf]
          %v3182 = vld [vmem:[%s3 + $0x8] sm:$0xf]
          %v3183 = vld [vmem:[%s3 + $0xc] sm:$0xf]
          %v3184 = vld [vmem:[%s3 + $0x10] sm:$0xf]
          %v3185 = vld [vmem:[%s3 + $0x14] sm:$0xf]
          %v3186 = vld [vmem:[%s3 + $0x18] sm:$0xf]
          %v3187 = vld [vmem:[%s3 + $0x1c] sm:$0xf]
          %v3188 = vld [vmem:[%s3 + $0x20] sm:$0xf]
          %v3189 = vld [vmem:[%s3 + $0x24] sm:$0xf]
          %v3190 = vld [vmem:[%s3 + $0x28] sm:$0xf]
          %v3191 = vld [vmem:[%s3 + $0x2c] sm:$0xf]
          %v3192 = vld [vmem:[%s3 + $0x30] sm:$0xf]
          %v3193 = vld [vmem:[%s3 + $0x34] sm:$0xf]
          %v3194 = vld [vmem:[%s3 + $0x38] sm:$0xf]
          %v3195 = vld [vmem:[%s3 + $0x3c] sm:$0xf]
          %v3196 = vld [vmem:[%s4] sm:$0x1]
          %v3198 = vlaneseq
          %v3199 = vshrl.u32 %v3198, 7
          %v3200 = vsub.s32 0, %v3199
          %v3201 = vrot.slane %v3196, %v3200
          %v3219 = vunpack.c.l.b16 %v3180
          %v3220 = vunpack.c.l.b16 %v3181
          %v3221 = vunpack.c.l.b16 %v3182
          %v3222 = vunpack.c.l.b16 %v3183
          %v3223 = vunpack.c.l.b16 %v3184
          %v3224 = vunpack.c.l.b16 %v3185
          %v3225 = vunpack.c.l.b16 %v3186
          %v3226 = vunpack.c.l.b16 %v3187
          %v3227 = vunpack.c.l.b16 %v3188
          %v3228 = vunpack.c.l.b16 %v3189
          %v3229 = vunpack.c.l.b16 %v3190
          %v3230 = vunpack.c.l.b16 %v3191
          %v3231 = vunpack.c.l.b16 %v3192
          %v3232 = vunpack.c.l.b16 %v3193
          %v3233 = vunpack.c.l.b16 %v3194
          %v3234 = vunpack.c.l.b16 %v3195
          %v3235 = vpack.c.b16 %v3220, %v3219
          %v3236 = vpack.c.b16 %v3222, %v3221
          %v3237 = vpack.c.b16 %v3224, %v3223
          %v3238 = vpack.c.b16 %v3226, %v3225
          %v3239 = vpack.c.b16 %v3228, %v3227
          %v3240 = vpack.c.b16 %v3230, %v3229
          %v3241 = vpack.c.b16 %v3232, %v3231
          %v3242 = vpack.c.b16 %v3234, %v3233
          %3251 = vmatprep.subr.bf16.mxu0 0
          %3252 = vmatpush1.bf16.msra.mxu0 %v3242
          %3253 = vmatprep.subr.bf16.mxu0 0
          %3254 = vmatpush1.bf16.msra.mxu0 %v3241
          %3255 = vmatprep.subr.bf16.mxu0 0
          %3256 = vmatpush1.bf16.msra.mxu0 %v3240
          %3257 = vmatprep.subr.bf16.mxu0 0
          %3258 = vmatpush1.bf16.msra.mxu0 %v3239
          %3259 = vmatprep.subr.bf16.mxu0 0
          %3260 = vmatpush1.bf16.msra.mxu0 %v3238
          %3261 = vmatprep.subr.bf16.mxu0 0
          %3262 = vmatpush1.bf16.msra.mxu0 %v3237
          %3263 = vmatprep.subr.bf16.mxu0 0
          %3264 = vmatpush1.bf16.msra.mxu0 %v3236
          %3265 = vmatprep.subr.bf16.mxu0 0
          %3266 = vmatpush1.bf16.msra.mxu0 %v3235
          %3267 = vmatprep.subr.bf16.mxu0 0
          %3268 = vmatpush2.bf16.msra.mxu0 0
          %3269 = vmatprep.subr.bf16.mxu0 0
          %3270 = vmatpush2.bf16.msra.mxu0 0
          %3271 = vmatprep.subr.bf16.mxu0 0
          %3272 = vmatpush2.bf16.msra.mxu0 0
          %3273 = vmatprep.subr.bf16.mxu0 0
          %3274 = vmatpush2.bf16.msra.mxu0 0
          %3275 = vmatprep.subr.bf16.mxu0 0
          %3276 = vmatpush2.bf16.msra.mxu0 0
          %3277 = vmatprep.subr.bf16.mxu0 0
          %3278 = vmatpush2.bf16.msra.mxu0 0
          %3279 = vmatprep.subr.bf16.mxu0 0
          %3280 = vmatpush2.bf16.msra.mxu0 0
          %3281 = vmatprep.subr.bf16.mxu0 0
          %3282 = vmatpush2.bf16.msra.mxu0 0
          %3283 = vmatprep.mubr.bf16.mxu0 0
          %3284 = vmatmul.mubr.bf16.gmra.mxu0 %v3179
          %v3285 = vpop.f32.mrf.mxu0
          %v3286 = vadd.f32 %v3201, %v3285
          %v3287 = vpop.f32.mrf.mxu0
          %v3288 = vpop.f32.mrf.mxu0
          %v3289 = vpop.f32.mrf.mxu0
          %3290 = vdwg.mxu0
          %3291 = vst [vmem:[#allocation3] sm:$0x3] %v3286
        $region48: #{_lambda_.7} parent=39 // pred_fallthru
          _
        // Predicated region
        $region49: #{_lambda_.7} parent=39 // pred_check
          %p3292 = pneg %p145
        $region50: #{_lambda_.7} parent=39 // pred_check_branch
          %3294 = sbr.rel (%p3292) target = $region52
        $region51: #{_lambda_.7} parent=39 // pred_region
          %s3296 = ssub.s32 32, 32
          %3297 = vsyncadd [#allocation4], %s3296
          %s3299 = sshll.u32 [#allocation3], 4
          %s3300 = int_to_ptr.vmem [resolvable:$true] %s3299
          %3302 = dma.vmem_to_hbm [thread:$0]  %s3300, 32, %s5, [#allocation4]
        $region52: #{_lambda_.7} parent=39 // pred_fallthru
          _
        // Predicated region
        $region53: #{_lambda_.7} parent=39 // pred_check
          %p3303 = pneg %p145
        $region54: #{_lambda_.7} parent=39 // pred_check_branch
          %3305 = sbr.rel (%p3303) target = $region56
        $region55: #{_lambda_.7} parent=39 // pred_region
          %3306 = dma.done [#allocation4], 32
        $region56: #{_lambda_.7} parent=39 // pred_fallthru
          _
      $region40: #{_lambda_.7} parent=5 // pred_fallthru
        _
      %p3307 = scmp.le.s32.totalorder 2, %s12
      // Predicated region
      $region57: #{_lambda_.7} parent=5 // pred_check
        %p3308 = pneg %p3307
      $region58: #{_lambda_.7} parent=5 // pred_check_branch
        %3310 = sbr.rel (%p3308) target = $region60
      $region59: #{_lambda_.7} parent=5 // pred_region
        %s3311 = ssub.s32 %s12, 2
      $region60: #{_lambda_.7} parent=5 // pred_fallthru
        _
    $region6: #{_lambda_.7} parent=1 // loop_footer
      %s16 = sadd.s32 1, %s12
    $region7: #{_lambda_.7} parent=1 // loop_footer_branch
      %11 = sbr.rel target = $region3
    $region8: #{_lambda_.7} parent=1 // loop_exit
      _
    %3312 = vsyncpa [#allocation4], 1
    %s3313 = scalar_lea.sflag [#allocation4], 1
    %3314 = vsyncpa %s3313, 1

</llo_original>
